<compile_context>
chip_gen: v6e
topology: v6e:2x2x1
jax: 0.10.0
libtpu: 0.0.40
codegen_flags: <defaults>
</compile_context>

<pallas_src>
import jax
import jax.numpy as jnp
import numpy as np
from jax import lax
from jax.experimental import pallas as pl
from jax.experimental.pallas import tpu as pltpu


# ----------------------------------------------------------------------------
# Host-side weight packing
# ----------------------------------------------------------------------------
def _reorder_gate_cols(w_t, H):
    """PyTorch gate column order [i, f, g, o] -> [i, f, o, g] so the kernel applies one
    sigmoid to the first 3H lanes and one tanh to the last H lanes."""
    return jnp.concatenate(
        [w_t[:, :2 * H], w_t[:, 3 * H:4 * H], w_t[:, 2 * H:3 * H]], axis=1)


def _build_weight_slab(params):
    """Packs every weight/bias into ONE (rows, LW) f32 slab (a single HBM->VMEM DMA).
    Blocks start on 8-row (sublane) boundaries.  Returns (slab, {name: (row0, nrows)})."""
    H = params["nhid"]
    nlayers = params["nlayers"]
    ntoken_pad = params["ntoken_pad"]
    H4 = 4 * H
    LW = ((max(H4, ntoken_pad) + 127) // 128) * 128

    blocks, off = [], {}
    cursor = 0

    def add(name, arr):
        nonlocal cursor
        r, c = arr.shape
        arr = jnp.pad(arr.astype(jnp.float32), ((0, (-r) % 8), (0, LW - c)))
        off[name] = (cursor, r)
        blocks.append(arr)
        cursor += arr.shape[0]

    ro = lambda w: _reorder_gate_cols(w, H)

    # ---- lstm1 ----
    for l, (wih_t, whh_t, b) in enumerate(params["lstm1"]):
        if l == 0:
            add("l1_0_Wx", ro(wih_t))     # (ninp, 4H) : hoisted encoder input projection
            add("l1_0_Wh", ro(whh_t))     # (H, 4H)
            add("l1_0_b", ro(b))          # (1, 4H)
        else:
            add(f"l1_{l}_W", jnp.concatenate([ro(wih_t), ro(whh_t)], axis=0))  # (2H, 4H)
            add(f"l1_{l}_b", ro(b))

    # ---- lstm2 ----
    # BOS embedding = one-hot(0) @ W_emb^T + b_emb  -> plain row select (no kernel).
    bos_emb = params["emb_w_t"][0:1] + params["emb_b"]        # (1, H)
    for l, (wih_t, whh_t, b) in enumerate(params["lstm2"]):
        if l == 0:
            w_front = ro(wih_t[:H])       # padding/BOS input half of W_ih^T
            w_back = ro(wih_t[H:])        # out1 input half of W_ih^T
            add("l2_0_W", jnp.concatenate([w_back, ro(whh_t)], axis=0))        # (2H, 4H)
            b_enc = ro(b)
            add("l2_0_b_enc", b_enc)                       # encode: padding half is zero
            add("l2_0_b_dec", b_enc + bos_emb @ w_front)   # decode: constant BOS gate folded
        else:
            add(f"l2_{l}_W", jnp.concatenate([ro(wih_t), ro(whh_t)], axis=0))
            add(f"l2_{l}_b", ro(b))

    # ---- hidden2out (lane-dense padded vocab) ----
    add("out_W", params["out_w_t_pad"])   # (H, ntoken_pad)
    add("out_b", params["out_b_pad"])     # (1, ntoken_pad); padded lanes = -1e30

    return jnp.concatenate(blocks, axis=0), off


# ----------------------------------------------------------------------------
# Fused S2VT kernel
# ----------------------------------------------------------------------------
def _make_s2vt_kernel(nlayers, H, T, target_len, ntoken_pad, off):
    H4 = 4 * H

    def kernel(inp_ref, slab_ref, state_ref, out_ref, xg_ref, y2_ref):
        def wslice(name, ncols):
            r0, r = off[name]
            return slab_ref[r0:r0 + r, 0:ncols]   # static slice, loaded at point of use

        def dot(a, b):
            return jnp.dot(a, b, preferred_element_type=jnp.float32)

        def cell(gates, c):
            # Gate columns pre-reordered to [i | f | o | g]:
            # one sigmoid over 3H lanes + tanh(g) + tanh(c_new).
            sig = jax.nn.sigmoid(gates[:, 0:3 * H])
            g_g = jnp.tanh(gates[:, 3 * H:4 * H])
            i_g = sig[:, 0:H]
            f_g = sig[:, H:2 * H]
            o_g = sig[:, 2 * H:3 * H]
            c_new = f_g * c + i_g * g_g
            return o_g * jnp.tanh(c_new), c_new

        def stack1_step(xg_row, hs, cs):
            """One timestep of stacked lstm1.  xg_row = precomputed x@W_ih gate row for
            layer 0 (encode), or None (decode: zero input, matmul skipped)."""
            hs, cs = list(hs), list(cs)
            g = dot(hs[0], wslice("l1_0_Wh", H4)) + wslice("l1_0_b", H4)
            if xg_row is not None:
                g = g + xg_row
            hs[0], cs[0] = cell(g, cs[0])
            y = hs[0]
            for l in range(1, nlayers):
                xh = jnp.concatenate([y, hs[l]], axis=-1)
                g = dot(xh, wslice(f"l1_{l}_W", H4)) + wslice(f"l1_{l}_b", H4)
                hs[l], cs[l] = cell(g, cs[l])
                y = hs[l]
            return tuple(hs), tuple(cs), y

        def stack2_step(y1, hs, cs, decode):
            """One timestep of stacked lstm2.  Layer-0 input is cat(front, y1); the front
            half is zero (encode) or the BOS embedding whose gate contribution is already
            folded into the decode bias."""
            hs, cs = list(hs), list(cs)
            b0 = wslice("l2_0_b_dec" if decode else "l2_0_b_enc", H4)
            xh = jnp.concatenate([y1, hs[0]], axis=-1)
            g = dot(xh, wslice("l2_0_W", H4)) + b0
            hs[0], cs[0] = cell(g, cs[0])
            y = hs[0]
            for l in range(1, nlayers):
                xh = jnp.concatenate([y, hs[l]], axis=-1)
                g = dot(xh, wslice(f"l2_{l}_W", H4)) + wslice(f"l2_{l}_b", H4)
                hs[l], cs[l] = cell(g, cs[l])
                y = hs[l]
            return tuple(hs), tuple(cs), y

        # Initial recurrent state: packed rows [h1 | c1 | h2 | c2].
        def st(base, l):
            r = base * nlayers + l
            return state_ref[r:r + 1, :]
        h1 = tuple(st(0, l) for l in range(nlayers))
        c1 = tuple(st(1, l) for l in range(nlayers))
        h2 = tuple(st(2, l) for l in range(nlayers))
        c2 = tuple(st(3, l) for l in range(nlayers))

        # ---------------- encoding stage ----------------
        # Hoisted encoder layer-0 input projection: one (T, I) @ (I, 4H) matmul instead of
        # T serial (1, I) matmuls on the recurrence-bound critical path.
        xg_ref[...] = dot(inp_ref[...], wslice("l1_0_Wx", H4))

        def enc_step(t, carry):
            h1, c1, h2, c2 = carry
            h1, c1, y1 = stack1_step(xg_ref[pl.ds(t, 1), :], h1, c1)
            h2, c2, _ = stack2_step(y1, h2, c2, decode=False)  # padding half skipped
            return (h1, c1, h2, c2)

        carry = lax.fori_loop(0, T, enc_step, (h1, c1, h2, c2),
                              unroll=True if T <= 16 else 4)

        # ---------------- decoding stage ----------------
        def dec_step(t, carry):
            h1, c1, h2, c2 = carry
            h1, c1, y1 = stack1_step(None, h1, c1)             # zero input => no x@W_ih
            h2, c2, y2 = stack2_step(y1, h2, c2, decode=True)
            y2_ref[pl.ds(t, 1), :] = y2                        # stash; projection deferred
            return (h1, c1, h2, c2)

        lax.fori_loop(0, target_len, dec_step, carry,
                      unroll=True if target_len <= 16 else 4)

        # Deferred output projection + log-softmax: one matmul, one batched reduction,
        # one dense (sublane + lane) store.  Padded vocab lanes carry a -1e30 bias so
        # their exp underflows to exactly 0 and real-token log-probs are unchanged.
        logits = dot(y2_ref[...], wslice("out_W", ntoken_pad)) + wslice("out_b", ntoken_pad)
        m = jnp.max(logits, axis=-1, keepdims=True)
        z = logits - m
        lse = jnp.log(jnp.sum(jnp.exp(z), axis=-1, keepdims=True))
        out_ref[...] = z - lse

    return kernel


# ----------------------------------------------------------------------------
# S2VT forward (single pallas_call)
# ----------------------------------------------------------------------------
def s2vt_forward(inp, hid1, hid2, target_len, params):
    """inp: (T, B=1, ninp); hid1/hid2: (h, c) each (nlayers, B, nhid).
    Returns log-probs of shape (target_len, B, ntoken)."""
    T, B, ninp = inp.shape
    assert B == 1, "original model's view/cat tricks require bsz == 1"
    H = params["nhid"]
    ntoken = params["ntoken"]
    ntoken_pad = params["ntoken_pad"]
    nlayers = params["nlayers"]
    h1, c1 = hid1
    h2, c2 = hid2

    slab, off = _build_weight_slab(params)
    state = jnp.concatenate(
        [h1.reshape(nlayers, H), c1.reshape(nlayers, H),
         h2.reshape(nlayers, H), c2.reshape(nlayers, H)], axis=0)
    inp2d = inp.reshape(T, ninp)

    # Advisory cost estimate for the XLA scheduler.
    H4 = 4 * H
    steps = T + target_len
    flops = 2 * (T * ninp * H4
                 + steps * (H * H4 + (2 * nlayers - 1) * 2 * H * H4)
                 + target_len * H * ntoken_pad)
    trans = steps * 2 * nlayers * 5 * H + target_len * (ntoken_pad + 1)
    bytes_acc = 4 * (inp2d.size + slab.size + state.size + target_len * ntoken_pad)

    kernel = _make_s2vt_kernel(nlayers, H, T, target_len, ntoken_pad, off)
    out = pl.pallas_call(
        kernel,
        out_shape=jax.ShapeDtypeStruct((target_len, ntoken_pad), jnp.float32),
        in_specs=[pl.BlockSpec(memory_space=pltpu.MemorySpace.VMEM)] * 3,
        out_specs=pl.BlockSpec(memory_space=pltpu.MemorySpace.VMEM),
        scratch_shapes=[pltpu.VMEM((T, H4), jnp.float32),          # hoisted x-gates
                        pltpu.VMEM((target_len, H), jnp.float32)],  # stashed decoder y2
        cost_estimate=pl.CostEstimate(flops=int(flops), transcendentals=int(trans),
                                      bytes_accessed=int(bytes_acc)),
    )(inp2d, slab, state)
    return out[:, :ntoken].reshape(target_len, B, ntoken)


# ----------------------------------------------------------------------------
# Pure-JAX reference (for correctness check)
# ----------------------------------------------------------------------------
def _lstm_stack_ref(x, raw_layers, h0_stack, c0_stack):
    out = x
    hTs, cTs = [], []
    for l, (w_ih, w_hh, b_ih, b_hh) in enumerate(raw_layers):
        def step(carry, xt, w_ih=w_ih, w_hh=w_hh, b_ih=b_ih, b_hh=b_hh):
            h, c = carry
            gates = xt @ w_ih.T + b_ih + h @ w_hh.T + b_hh
            i, f, g, o = jnp.split(gates, 4, axis=-1)
            c = jax.nn.sigmoid(f) * c + jax.nn.sigmoid(i) * jnp.tanh(g)
            h = jax.nn.sigmoid(o) * jnp.tanh(c)
            return (h, c), h
        (hT, cT), out = jax.lax.scan(step, (h0_stack[l], c0_stack[l]), out)
        hTs.append(hT)
        cTs.append(cT)
    return out, jnp.stack(hTs), jnp.stack(cTs)


def s2vt_ref(inp, hid1, hid2, target_len, params):
    T, B, _ = inp.shape
    H, ninp, ntoken = params["nhid"], params["ninp"], params["ntoken"]
    h1, c1 = hid1
    h2, c2 = hid2
    out1, h1, c1 = _lstm_stack_ref(inp, params["lstm1_raw"], h1, c1)
    _, h2, c2 = _lstm_stack_ref(
        jnp.concatenate([jnp.zeros((T, B, H)), out1], axis=2),
        params["lstm2_raw"], h2, c2)
    out1d, h1, c1 = _lstm_stack_ref(jnp.zeros((target_len, B, ninp)),
                                    params["lstm1_raw"], h1, c1)
    bos = jnp.zeros((ntoken,)).at[0].set(1.0)
    bos_emb = bos @ params["emb_w"].T + params["emb_b"][0]
    bos_seq = jnp.broadcast_to(bos_emb[None, None, :], (target_len, B, H))
    out2d, _, _ = _lstm_stack_ref(jnp.concatenate([bos_seq, out1d], axis=2),
                                  params["lstm2_raw"], h2, c2)
    y = out2d.reshape(target_len * B, H) @ params["out_w"].T + params["out_b"][0]
    return jax.nn.log_softmax(y, axis=-1).reshape(target_len, B, ntoken)


# ----------------------------------------------------------------------------
# Deterministic parameter init (PyTorch-style uniform(-1/sqrt(H), 1/sqrt(H)))
# ----------------------------------------------------------------------------
def init_params(key, ninp, nhid, ntoken, nlayers):
    def uni(k, shape, bound):
        return jax.random.uniform(k, shape, jnp.float32, -bound, bound)

    bound = 1.0 / np.sqrt(nhid)
    params = {"ninp": ninp, "nhid": nhid, "ntoken": ntoken, "nlayers": nlayers}

    for name, in_size in (("lstm1", ninp), ("lstm2", 2 * nhid)):
        raw, kern = [], []
        for l in range(nlayers):
            isz = in_size if l == 0 else nhid
            key, k1, k2, k3, k4 = jax.random.split(key, 5)
            w_ih = uni(k1, (4 * nhid, isz), bound)
            w_hh = uni(k2, (4 * nhid, nhid), bound)
            b_ih = uni(k3, (4 * nhid,), bound)
            b_hh = uni(k4, (4 * nhid,), bound)
            raw.append((w_ih, w_hh, b_ih, b_hh))
            kern.append((w_ih.T, w_hh.T, (b_ih + b_hh)[None, :]))
        params[name + "_raw"] = raw
        params[name] = kern

    key, k1, k2 = jax.random.split(key, 3)
    ob = 1.0 / np.sqrt(nhid)
    params["out_w"] = uni(k1, (ntoken, nhid), ob)          # hidden2out
    params["out_b"] = uni(k2, (ntoken,), ob)[None, :]

    key, k1, k2 = jax.random.split(key, 3)
    eb = 1.0 / np.sqrt(ntoken)
    params["emb_w"] = uni(k1, (nhid, ntoken), eb)           # vocab2emb
    params["emb_b"] = uni(k2, (nhid,), eb)[None, :]
    params["emb_w_t"] = params["emb_w"].T

    # Lane-dense (128-multiple) vocab padding for the fused output projection.
    ntoken_pad = ((ntoken + 127) // 128) * 128
    params["ntoken_pad"] = ntoken_pad
    params["out_w_t_pad"] = (jnp.zeros((nhid, ntoken_pad), jnp.float32)
                             .at[:, :ntoken].set(params["out_w"].T))
    params["out_b_pad"] = (jnp.full((1, ntoken_pad), -1e30, jnp.float32)
                           .at[:, :ntoken].set(params["out_b"]))
    return params


# ----------------------------------------------------------------------------
if __name__ == "__main__":
    ninp, nhid, ntoken, nlayers = 64, 32, 48, 2
    bsz = 1                 # original code's view/cat tricks require bsz == 1
    seq_len, target_len = 8, 5

    key = jax.random.PRNGKey(0)
    key, kp, kx = jax.random.split(key, 3)
    params = init_params(kp, ninp, nhid, ntoken, nlayers)

    inp = jax.random.normal(kx, (seq_len, bsz, ninp), jnp.float32)
    hid1 = (jnp.zeros((nlayers, bsz, nhid), jnp.float32),
            jnp.zeros((nlayers, bsz, nhid), jnp.float32))
    hid2 = (jnp.zeros((nlayers, bsz, nhid), jnp.float32),
            jnp.zeros((nlayers, bsz, nhid), jnp.float32))

    out = s2vt_forward(inp, hid1, hid2, target_len, params)
    out = jax.block_until_ready(out)
    assert out.shape == (target_len, bsz, ntoken)

    ref = jax.block_until_ready(s2vt_ref(inp, hid1, hid2, target_len, params))
    np.testing.assert_allclose(np.asarray(out), np.asarray(ref),
                               rtol=1e-4, atol=1e-4)
    print("KERNEL_OK")
</pallas_src>

<mosaic_0001>
module attributes {stable_mosaic.version = 11 : i64} {
  func.func @kernel(%arg0: memref<8x64xf32, #tpu.memory_space<vmem>>, %arg1: memref<368x128xf32, #tpu.memory_space<vmem>>, %arg2: memref<8x32xf32, #tpu.memory_space<vmem>>, %arg3: memref<5x128xf32, #tpu.memory_space<vmem>>, %arg4: memref<8x128xf32, #tpu.memory_space<vmem>>, %arg5: memref<5x32xf32, #tpu.memory_space<vmem>>) attributes {dimension_semantics = [], scalar_prefetch = 0 : i64, scratch_operands = 2 : i64, tpu.core_type = #tpu.core_type<tc>} {
    %c0 = arith.constant 0 : index
    %c0_0 = arith.constant 0 : index
    %0 = vector.load %arg2[%c0, %c0_0] : memref<8x32xf32, #tpu.memory_space<vmem>>, vector<1x32xf32>
    %c1 = arith.constant 1 : index
    %c0_1 = arith.constant 0 : index
    %1 = vector.load %arg2[%c1, %c0_1] : memref<8x32xf32, #tpu.memory_space<vmem>>, vector<1x32xf32>
    %c2 = arith.constant 2 : index
    %c0_2 = arith.constant 0 : index
    %2 = vector.load %arg2[%c2, %c0_2] : memref<8x32xf32, #tpu.memory_space<vmem>>, vector<1x32xf32>
    %c3 = arith.constant 3 : index
    %c0_3 = arith.constant 0 : index
    %3 = vector.load %arg2[%c3, %c0_3] : memref<8x32xf32, #tpu.memory_space<vmem>>, vector<1x32xf32>
    %c4 = arith.constant 4 : index
    %c0_4 = arith.constant 0 : index
    %4 = vector.load %arg2[%c4, %c0_4] : memref<8x32xf32, #tpu.memory_space<vmem>>, vector<1x32xf32>
    %c5 = arith.constant 5 : index
    %c0_5 = arith.constant 0 : index
    %5 = vector.load %arg2[%c5, %c0_5] : memref<8x32xf32, #tpu.memory_space<vmem>>, vector<1x32xf32>
    %c6 = arith.constant 6 : index
    %c0_6 = arith.constant 0 : index
    %6 = vector.load %arg2[%c6, %c0_6] : memref<8x32xf32, #tpu.memory_space<vmem>>, vector<1x32xf32>
    %c7 = arith.constant 7 : index
    %c0_7 = arith.constant 0 : index
    %7 = vector.load %arg2[%c7, %c0_7] : memref<8x32xf32, #tpu.memory_space<vmem>>, vector<1x32xf32>
    %c0_8 = arith.constant 0 : index
    %c0_9 = arith.constant 0 : index
    %8 = vector.load %arg0[%c0_8, %c0_9] : memref<8x64xf32, #tpu.memory_space<vmem>>, vector<8x64xf32>
    %c0_10 = arith.constant 0 : index
    %c0_11 = arith.constant 0 : index
    %9 = vector.load %arg1[%c0_10, %c0_11] : memref<368x128xf32, #tpu.memory_space<vmem>>, vector<64x128xf32>
    %cst = arith.constant dense<0.000000e+00> : vector<8x128xf32>
    %10 = tpu.matmul %8, %9, %cst {dimension_numbers = #tpu.dot_dimension_numbers<[1], [0], [0], [1], [0, 0, 1, 1], [], []>} : vector<8x64xf32>, vector<64x128xf32>, vector<8x128xf32> -> vector<8x128xf32>
    %c0_12 = arith.constant 0 : index
    %c0_13 = arith.constant 0 : index
    %11 = vector.load %arg4[%c0_12, %c0_13] : memref<8x128xf32, #tpu.memory_space<vmem>>, vector<8x128xf32>
    tpu.vector_store %arg4[%c0_12, %c0_13], %10 {strides = array<i32>} : memref<8x128xf32, #tpu.memory_space<vmem>>, vector<8x128xf32>,
    %c0_i32 = arith.constant 0 : i32
    %12 = arith.index_cast %c0_i32 : i32 to index
    %c0_14 = arith.constant 0 : index
    %13 = vector.load %arg4[%12, %c0_14] : memref<8x128xf32, #tpu.memory_space<vmem>>, vector<1x128xf32>
    %c64 = arith.constant 64 : index
    %c0_15 = arith.constant 0 : index
    %14 = vector.load %arg1[%c64, %c0_15] : memref<368x128xf32, #tpu.memory_space<vmem>>, vector<32x128xf32>
    %cst_16 = arith.constant dense<0.000000e+00> : vector<1x128xf32>
    %15 = tpu.matmul %0, %14, %cst_16 {dimension_numbers = #tpu.dot_dimension_numbers<[1], [0], [0], [1], [0, 0, 1, 1], [], []>} : vector<1x32xf32>, vector<32x128xf32>, vector<1x128xf32> -> vector<1x128xf32>
    %c96 = arith.constant 96 : index
    %c0_17 = arith.constant 0 : index
    %16 = vector.load %arg1[%c96, %c0_17] : memref<368x128xf32, #tpu.memory_space<vmem>>, vector<1x128xf32>
    %17 = arith.addf %15, %16 : vector<1x128xf32>
    %18 = arith.addf %17, %13 : vector<1x128xf32>
    %19 = vector.extract_strided_slice %18 {offsets = [0, 0], sizes = [1, 96], strides = [1, 1]} : vector<1x128xf32> to vector<1x96xf32>
    %20 = arith.negf %19 : vector<1x96xf32>
    %21 = math.exp %20 : vector<1x96xf32>
    %cst_18 = arith.constant 1.000000e+00 : f32
    %22 = vector.broadcast %cst_18 : f32 to vector<1x96xf32>
    %23 = arith.addf %22, %21 : vector<1x96xf32>
    %24 = arith.divf %22, %23 : vector<1x96xf32>
    %25 = vector.extract_strided_slice %18 {offsets = [0, 96], sizes = [1, 32], strides = [1, 1]} : vector<1x128xf32> to vector<1x32xf32>
    %26 = math.tanh %25 : vector<1x32xf32>
    %27 = vector.extract_strided_slice %24 {offsets = [0, 0], sizes = [1, 32], strides = [1, 1]} : vector<1x96xf32> to vector<1x32xf32>
    %28 = vector.extract_strided_slice %24 {offsets = [0, 32], sizes = [1, 32], strides = [1, 1]} : vector<1x96xf32> to vector<1x32xf32>
    %29 = vector.extract_strided_slice %24 {offsets = [0, 64], sizes = [1, 32], strides = [1, 1]} : vector<1x96xf32> to vector<1x32xf32>
    %30 = arith.mulf %28, %2 : vector<1x32xf32>
    %31 = arith.mulf %27, %26 : vector<1x32xf32>
    %32 = arith.addf %30, %31 : vector<1x32xf32>
    %33 = math.tanh %32 : vector<1x32xf32>
    %34 = arith.mulf %29, %33 : vector<1x32xf32>
    %35 = tpu.concatenate %34, %1 in 1 : vector<1x32xf32>, vector<1x32xf32> -> vector<1x64xf32>
    %c104 = arith.constant 104 : index
    %c0_19 = arith.constant 0 : index
    %36 = vector.load %arg1[%c104, %c0_19] : memref<368x128xf32, #tpu.memory_space<vmem>>, vector<64x128xf32>
    %cst_20 = arith.constant dense<0.000000e+00> : vector<1x128xf32>
    %37 = tpu.matmul %35, %36, %cst_20 {dimension_numbers = #tpu.dot_dimension_numbers<[1], [0], [0], [1], [0, 0, 1, 1], [], []>} : vector<1x64xf32>, vector<64x128xf32>, vector<1x128xf32> -> vector<1x128xf32>
    %c168 = arith.constant 168 : index
    %c0_21 = arith.constant 0 : index
    %38 = vector.load %arg1[%c168, %c0_21] : memref<368x128xf32, #tpu.memory_space<vmem>>, vector<1x128xf32>
    %39 = arith.addf %37, %38 : vector<1x128xf32>
    %40 = vector.extract_strided_slice %39 {offsets = [0, 0], sizes = [1, 96], strides = [1, 1]} : vector<1x128xf32> to vector<1x96xf32>
    %41 = arith.negf %40 : vector<1x96xf32>
    %42 = math.exp %41 : vector<1x96xf32>
    %cst_22 = arith.constant 1.000000e+00 : f32
    %43 = vector.broadcast %cst_22 : f32 to vector<1x96xf32>
    %44 = arith.addf %43, %42 : vector<1x96xf32>
    %45 = arith.divf %43, %44 : vector<1x96xf32>
    %46 = vector.extract_strided_slice %39 {offsets = [0, 96], sizes = [1, 32], strides = [1, 1]} : vector<1x128xf32> to vector<1x32xf32>
    %47 = math.tanh %46 : vector<1x32xf32>
    %48 = vector.extract_strided_slice %45 {offsets = [0, 0], sizes = [1, 32], strides = [1, 1]} : vector<1x96xf32> to vector<1x32xf32>
    %49 = vector.extract_strided_slice %45 {offsets = [0, 32], sizes = [1, 32], strides = [1, 1]} : vector<1x96xf32> to vector<1x32xf32>
    %50 = vector.extract_strided_slice %45 {offsets = [0, 64], sizes = [1, 32], strides = [1, 1]} : vector<1x96xf32> to vector<1x32xf32>
    %51 = arith.mulf %49, %3 : vector<1x32xf32>
    %52 = arith.mulf %48, %47 : vector<1x32xf32>
    %53 = arith.addf %51, %52 : vector<1x32xf32>
    %54 = math.tanh %53 : vector<1x32xf32>
    %55 = arith.mulf %50, %54 : vector<1x32xf32>
    %c240 = arith.constant 240 : index
    %c0_23 = arith.constant 0 : index
    %56 = vector.load %arg1[%c240, %c0_23] : memref<368x128xf32, #tpu.memory_space<vmem>>, vector<1x128xf32>
    %57 = tpu.concatenate %55, %4 in 1 : vector<1x32xf32>, vector<1x32xf32> -> vector<1x64xf32>
    %c176 = arith.constant 176 : index
    %c0_24 = arith.constant 0 : index
    %58 = vector.load %arg1[%c176, %c0_24] : memref<368x128xf32, #tpu.memory_space<vmem>>, vector<64x128xf32>
    %cst_25 = arith.constant dense<0.000000e+00> : vector<1x128xf32>
    %59 = tpu.matmul %57, %58, %cst_25 {dimension_numbers = #tpu.dot_dimension_numbers<[1], [0], [0], [1], [0, 0, 1, 1], [], []>} : vector<1x64xf32>, vector<64x128xf32>, vector<1x128xf32> -> vector<1x128xf32>
    %60 = arith.addf %59, %56 : vector<1x128xf32>
    %61 = vector.extract_strided_slice %60 {offsets = [0, 0], sizes = [1, 96], strides = [1, 1]} : vector<1x128xf32> to vector<1x96xf32>
    %62 = arith.negf %61 : vector<1x96xf32>
    %63 = math.exp %62 : vector<1x96xf32>
    %cst_26 = arith.constant 1.000000e+00 : f32
    %64 = vector.broadcast %cst_26 : f32 to vector<1x96xf32>
    %65 = arith.addf %64, %63 : vector<1x96xf32>
    %66 = arith.divf %64, %65 : vector<1x96xf32>
    %67 = vector.extract_strided_slice %60 {offsets = [0, 96], sizes = [1, 32], strides = [1, 1]} : vector<1x128xf32> to vector<1x32xf32>
    %68 = math.tanh %67 : vector<1x32xf32>
    %69 = vector.extract_strided_slice %66 {offsets = [0, 0], sizes = [1, 32], strides = [1, 1]} : vector<1x96xf32> to vector<1x32xf32>
    %70 = vector.extract_strided_slice %66 {offsets = [0, 32], sizes = [1, 32], strides = [1, 1]} : vector<1x96xf32> to vector<1x32xf32>
    %71 = vector.extract_strided_slice %66 {offsets = [0, 64], sizes = [1, 32], strides = [1, 1]} : vector<1x96xf32> to vector<1x32xf32>
    %72 = arith.mulf %70, %6 : vector<1x32xf32>
    %73 = arith.mulf %69, %68 : vector<1x32xf32>
    %74 = arith.addf %72, %73 : vector<1x32xf32>
    %75 = math.tanh %74 : vector<1x32xf32>
    %76 = arith.mulf %71, %75 : vector<1x32xf32>
    %77 = tpu.concatenate %76, %5 in 1 : vector<1x32xf32>, vector<1x32xf32> -> vector<1x64xf32>
    %c256 = arith.constant 256 : index
    %c0_27 = arith.constant 0 : index
    %78 = vector.load %arg1[%c256, %c0_27] : memref<368x128xf32, #tpu.memory_space<vmem>>, vector<64x128xf32>
    %cst_28 = arith.constant dense<0.000000e+00> : vector<1x128xf32>
    %79 = tpu.matmul %77, %78, %cst_28 {dimension_numbers = #tpu.dot_dimension_numbers<[1], [0], [0], [1], [0, 0, 1, 1], [], []>} : vector<1x64xf32>, vector<64x128xf32>, vector<1x128xf32> -> vector<1x128xf32>
    %c320 = arith.constant 320 : index
    %c0_29 = arith.constant 0 : index
    %80 = vector.load %arg1[%c320, %c0_29] : memref<368x128xf32, #tpu.memory_space<vmem>>, vector<1x128xf32>
    %81 = arith.addf %79, %80 : vector<1x128xf32>
    %82 = vector.extract_strided_slice %81 {offsets = [0, 0], sizes = [1, 96], strides = [1, 1]} : vector<1x128xf32> to vector<1x96xf32>
    %83 = arith.negf %82 : vector<1x96xf32>
    %84 = math.exp %83 : vector<1x96xf32>
    %cst_30 = arith.constant 1.000000e+00 : f32
    %85 = vector.broadcast %cst_30 : f32 to vector<1x96xf32>
    %86 = arith.addf %85, %84 : vector<1x96xf32>
    %87 = arith.divf %85, %86 : vector<1x96xf32>
    %88 = vector.extract_strided_slice %81 {offsets = [0, 96], sizes = [1, 32], strides = [1, 1]} : vector<1x128xf32> to vector<1x32xf32>
    %89 = math.tanh %88 : vector<1x32xf32>
    %90 = vector.extract_strided_slice %87 {offsets = [0, 0], sizes = [1, 32], strides = [1, 1]} : vector<1x96xf32> to vector<1x32xf32>
    %91 = vector.extract_strided_slice %87 {offsets = [0, 32], sizes = [1, 32], strides = [1, 1]} : vector<1x96xf32> to vector<1x32xf32>
    %92 = vector.extract_strided_slice %87 {offsets = [0, 64], sizes = [1, 32], strides = [1, 1]} : vector<1x96xf32> to vector<1x32xf32>
    %93 = arith.mulf %91, %7 : vector<1x32xf32>
    %94 = arith.mulf %90, %89 : vector<1x32xf32>
    %95 = arith.addf %93, %94 : vector<1x32xf32>
    %96 = math.tanh %95 : vector<1x32xf32>
    %97 = arith.mulf %92, %96 : vector<1x32xf32>
    %c1_i32 = arith.constant 1 : i32
    %98 = arith.index_cast %c1_i32 : i32 to index
    %c0_31 = arith.constant 0 : index
    %99 = vector.load %arg4[%98, %c0_31] : memref<8x128xf32, #tpu.memory_space<vmem>>, vector<1x128xf32>
    %c64_32 = arith.constant 64 : index
    %c0_33 = arith.constant 0 : index
    %100 = vector.load %arg1[%c64_32, %c0_33] : memref<368x128xf32, #tpu.memory_space<vmem>>, vector<32x128xf32>
    %cst_34 = arith.constant dense<0.000000e+00> : vector<1x128xf32>
    %101 = tpu.matmul %34, %100, %cst_34 {dimension_numbers = #tpu.dot_dimension_numbers<[1], [0], [0], [1], [0, 0, 1, 1], [], []>} : vector<1x32xf32>, vector<32x128xf32>, vector<1x128xf32> -> vector<1x128xf32>
    %c96_35 = arith.constant 96 : index
    %c0_36 = arith.constant 0 : index
    %102 = vector.load %arg1[%c96_35, %c0_36] : memref<368x128xf32, #tpu.memory_space<vmem>>, vector<1x128xf32>
    %103 = arith.addf %101, %102 : vector<1x128xf32>
    %104 = arith.addf %103, %99 : vector<1x128xf32>
    %105 = vector.extract_strided_slice %104 {offsets = [0, 0], sizes = [1, 96], strides = [1, 1]} : vector<1x128xf32> to vector<1x96xf32>
    %106 = arith.negf %105 : vector<1x96xf32>
    %107 = math.exp %106 : vector<1x96xf32>
    %cst_37 = arith.constant 1.000000e+00 : f32
    %108 = vector.broadcast %cst_37 : f32 to vector<1x96xf32>
    %109 = arith.addf %108, %107 : vector<1x96xf32>
    %110 = arith.divf %108, %109 : vector<1x96xf32>
    %111 = vector.extract_strided_slice %104 {offsets = [0, 96], sizes = [1, 32], strides = [1, 1]} : vector<1x128xf32> to vector<1x32xf32>
    %112 = math.tanh %111 : vector<1x32xf32>
    %113 = vector.extract_strided_slice %110 {offsets = [0, 0], sizes = [1, 32], strides = [1, 1]} : vector<1x96xf32> to vector<1x32xf32>
    %114 = vector.extract_strided_slice %110 {offsets = [0, 32], sizes = [1, 32], strides = [1, 1]} : vector<1x96xf32> to vector<1x32xf32>
    %115 = vector.extract_strided_slice %110 {offsets = [0, 64], sizes = [1, 32], strides = [1, 1]} : vector<1x96xf32> to vector<1x32xf32>
    %116 = arith.mulf %114, %32 : vector<1x32xf32>
    %117 = arith.mulf %113, %112 : vector<1x32xf32>
    %118 = arith.addf %116, %117 : vector<1x32xf32>
    %119 = math.tanh %118 : vector<1x32xf32>
    %120 = arith.mulf %115, %119 : vector<1x32xf32>
    %121 = tpu.concatenate %120, %55 in 1 : vector<1x32xf32>, vector<1x32xf32> -> vector<1x64xf32>
    %c104_38 = arith.constant 104 : index
    %c0_39 = arith.constant 0 : index
    %122 = vector.load %arg1[%c104_38, %c0_39] : memref<368x128xf32, #tpu.memory_space<vmem>>, vector<64x128xf32>
    %cst_40 = arith.constant dense<0.000000e+00> : vector<1x128xf32>
    %123 = tpu.matmul %121, %122, %cst_40 {dimension_numbers = #tpu.dot_dimension_numbers<[1], [0], [0], [1], [0, 0, 1, 1], [], []>} : vector<1x64xf32>, vector<64x128xf32>, vector<1x128xf32> -> vector<1x128xf32>
    %c168_41 = arith.constant 168 : index
    %c0_42 = arith.constant 0 : index
    %124 = vector.load %arg1[%c168_41, %c0_42] : memref<368x128xf32, #tpu.memory_space<vmem>>, vector<1x128xf32>
    %125 = arith.addf %123, %124 : vector<1x128xf32>
    %126 = vector.extract_strided_slice %125 {offsets = [0, 0], sizes = [1, 96], strides = [1, 1]} : vector<1x128xf32> to vector<1x96xf32>
    %127 = arith.negf %126 : vector<1x96xf32>
    %128 = math.exp %127 : vector<1x96xf32>
    %cst_43 = arith.constant 1.000000e+00 : f32
    %129 = vector.broadcast %cst_43 : f32 to vector<1x96xf32>
    %130 = arith.addf %129, %128 : vector<1x96xf32>
    %131 = arith.divf %129, %130 : vector<1x96xf32>
    %132 = vector.extract_strided_slice %125 {offsets = [0, 96], sizes = [1, 32], strides = [1, 1]} : vector<1x128xf32> to vector<1x32xf32>
    %133 = math.tanh %132 : vector<1x32xf32>
    %134 = vector.extract_strided_slice %131 {offsets = [0, 0], sizes = [1, 32], strides = [1, 1]} : vector<1x96xf32> to vector<1x32xf32>
    %135 = vector.extract_strided_slice %131 {offsets = [0, 32], sizes = [1, 32], strides = [1, 1]} : vector<1x96xf32> to vector<1x32xf32>
    %136 = vector.extract_strided_slice %131 {offsets = [0, 64], sizes = [1, 32], strides = [1, 1]} : vector<1x96xf32> to vector<1x32xf32>
    %137 = arith.mulf %135, %53 : vector<1x32xf32>
    %138 = arith.mulf %134, %133 : vector<1x32xf32>
    %139 = arith.addf %137, %138 : vector<1x32xf32>
    %140 = math.tanh %139 : vector<1x32xf32>
    %141 = arith.mulf %136, %140 : vector<1x32xf32>
    %c240_44 = arith.constant 240 : index
    %c0_45 = arith.constant 0 : index
    %142 = vector.load %arg1[%c240_44, %c0_45] : memref<368x128xf32, #tpu.memory_space<vmem>>, vector<1x128xf32>
    %143 = tpu.concatenate %141, %76 in 1 : vector<1x32xf32>, vector<1x32xf32> -> vector<1x64xf32>
    %c176_46 = arith.constant 176 : index
    %c0_47 = arith.constant 0 : index
    %144 = vector.load %arg1[%c176_46, %c0_47] : memref<368x128xf32, #tpu.memory_space<vmem>>, vector<64x128xf32>
    %cst_48 = arith.constant dense<0.000000e+00> : vector<1x128xf32>
    %145 = tpu.matmul %143, %144, %cst_48 {dimension_numbers = #tpu.dot_dimension_numbers<[1], [0], [0], [1], [0, 0, 1, 1], [], []>} : vector<1x64xf32>, vector<64x128xf32>, vector<1x128xf32> -> vector<1x128xf32>
    %146 = arith.addf %145, %142 : vector<1x128xf32>
    %147 = vector.extract_strided_slice %146 {offsets = [0, 0], sizes = [1, 96], strides = [1, 1]} : vector<1x128xf32> to vector<1x96xf32>
    %148 = arith.negf %147 : vector<1x96xf32>
    %149 = math.exp %148 : vector<1x96xf32>
    %cst_49 = arith.constant 1.000000e+00 : f32
    %150 = vector.broadcast %cst_49 : f32 to vector<1x96xf32>
    %151 = arith.addf %150, %149 : vector<1x96xf32>
    %152 = arith.divf %150, %151 : vector<1x96xf32>
    %153 = vector.extract_strided_slice %146 {offsets = [0, 96], sizes = [1, 32], strides = [1, 1]} : vector<1x128xf32> to vector<1x32xf32>
    %154 = math.tanh %153 : vector<1x32xf32>
    %155 = vector.extract_strided_slice %152 {offsets = [0, 0], sizes = [1, 32], strides = [1, 1]} : vector<1x96xf32> to vector<1x32xf32>
    %156 = vector.extract_strided_slice %152 {offsets = [0, 32], sizes = [1, 32], strides = [1, 1]} : vector<1x96xf32> to vector<1x32xf32>
    %157 = vector.extract_strided_slice %152 {offsets = [0, 64], sizes = [1, 32], strides = [1, 1]} : vector<1x96xf32> to vector<1x32xf32>
    %158 = arith.mulf %156, %74 : vector<1x32xf32>
    %159 = arith.mulf %155, %154 : vector<1x32xf32>
    %160 = arith.addf %158, %159 : vector<1x32xf32>
    %161 = math.tanh %160 : vector<1x32xf32>
    %162 = arith.mulf %157, %161 : vector<1x32xf32>
    %163 = tpu.concatenate %162, %97 in 1 : vector<1x32xf32>, vector<1x32xf32> -> vector<1x64xf32>
    %c256_50 = arith.constant 256 : index
    %c0_51 = arith.constant 0 : index
    %164 = vector.load %arg1[%c256_50, %c0_51] : memref<368x128xf32, #tpu.memory_space<vmem>>, vector<64x128xf32>
    %cst_52 = arith.constant dense<0.000000e+00> : vector<1x128xf32>
    %165 = tpu.matmul %163, %164, %cst_52 {dimension_numbers = #tpu.dot_dimension_numbers<[1], [0], [0], [1], [0, 0, 1, 1], [], []>} : vector<1x64xf32>, vector<64x128xf32>, vector<1x128xf32> -> vector<1x128xf32>
    %c320_53 = arith.constant 320 : index
    %c0_54 = arith.constant 0 : index
    %166 = vector.load %arg1[%c320_53, %c0_54] : memref<368x128xf32, #tpu.memory_space<vmem>>, vector<1x128xf32>
    %167 = arith.addf %165, %166 : vector<1x128xf32>
    %168 = vector.extract_strided_slice %167 {offsets = [0, 0], sizes = [1, 96], strides = [1, 1]} : vector<1x128xf32> to vector<1x96xf32>
    %169 = arith.negf %168 : vector<1x96xf32>
    %170 = math.exp %169 : vector<1x96xf32>
    %cst_55 = arith.constant 1.000000e+00 : f32
    %171 = vector.broadcast %cst_55 : f32 to vector<1x96xf32>
    %172 = arith.addf %171, %170 : vector<1x96xf32>
    %173 = arith.divf %171, %172 : vector<1x96xf32>
    %174 = vector.extract_strided_slice %167 {offsets = [0, 96], sizes = [1, 32], strides = [1, 1]} : vector<1x128xf32> to vector<1x32xf32>
    %175 = math.tanh %174 : vector<1x32xf32>
    %176 = vector.extract_strided_slice %173 {offsets = [0, 0], sizes = [1, 32], strides = [1, 1]} : vector<1x96xf32> to vector<1x32xf32>
    %177 = vector.extract_strided_slice %173 {offsets = [0, 32], sizes = [1, 32], strides = [1, 1]} : vector<1x96xf32> to vector<1x32xf32>
    %178 = vector.extract_strided_slice %173 {offsets = [0, 64], sizes = [1, 32], strides = [1, 1]} : vector<1x96xf32> to vector<1x32xf32>
    %179 = arith.mulf %177, %95 : vector<1x32xf32>
    %180 = arith.mulf %176, %175 : vector<1x32xf32>
    %181 = arith.addf %179, %180 : vector<1x32xf32>
    %182 = math.tanh %181 : vector<1x32xf32>
    %183 = arith.mulf %178, %182 : vector<1x32xf32>
    %c2_i32 = arith.constant 2 : i32
    %184 = arith.index_cast %c2_i32 : i32 to index
    %c0_56 = arith.constant 0 : index
    %185 = vector.load %arg4[%184, %c0_56] : memref<8x128xf32, #tpu.memory_space<vmem>>, vector<1x128xf32>
    %c64_57 = arith.constant 64 : index
    %c0_58 = arith.constant 0 : index
    %186 = vector.load %arg1[%c64_57, %c0_58] : memref<368x128xf32, #tpu.memory_space<vmem>>, vector<32x128xf32>
    %cst_59 = arith.constant dense<0.000000e+00> : vector<1x128xf32>
    %187 = tpu.matmul %120, %186, %cst_59 {dimension_numbers = #tpu.dot_dimension_numbers<[1], [0], [0], [1], [0, 0, 1, 1], [], []>} : vector<1x32xf32>, vector<32x128xf32>, vector<1x128xf32> -> vector<1x128xf32>
    %c96_60 = arith.constant 96 : index
    %c0_61 = arith.constant 0 : index
    %188 = vector.load %arg1[%c96_60, %c0_61] : memref<368x128xf32, #tpu.memory_space<vmem>>, vector<1x128xf32>
    %189 = arith.addf %187, %188 : vector<1x128xf32>
    %190 = arith.addf %189, %185 : vector<1x128xf32>
    %191 = vector.extract_strided_slice %190 {offsets = [0, 0], sizes = [1, 96], strides = [1, 1]} : vector<1x128xf32> to vector<1x96xf32>
    %192 = arith.negf %191 : vector<1x96xf32>
    %193 = math.exp %192 : vector<1x96xf32>
    %cst_62 = arith.constant 1.000000e+00 : f32
    %194 = vector.broadcast %cst_62 : f32 to vector<1x96xf32>
    %195 = arith.addf %194, %193 : vector<1x96xf32>
    %196 = arith.divf %194, %195 : vector<1x96xf32>
    %197 = vector.extract_strided_slice %190 {offsets = [0, 96], sizes = [1, 32], strides = [1, 1]} : vector<1x128xf32> to vector<1x32xf32>
    %198 = math.tanh %197 : vector<1x32xf32>
    %199 = vector.extract_strided_slice %196 {offsets = [0, 0], sizes = [1, 32], strides = [1, 1]} : vector<1x96xf32> to vector<1x32xf32>
    %200 = vector.extract_strided_slice %196 {offsets = [0, 32], sizes = [1, 32], strides = [1, 1]} : vector<1x96xf32> to vector<1x32xf32>
    %201 = vector.extract_strided_slice %196 {offsets = [0, 64], sizes = [1, 32], strides = [1, 1]} : vector<1x96xf32> to vector<1x32xf32>
    %202 = arith.mulf %200, %118 : vector<1x32xf32>
    %203 = arith.mulf %199, %198 : vector<1x32xf32>
    %204 = arith.addf %202, %203 : vector<1x32xf32>
    %205 = math.tanh %204 : vector<1x32xf32>
    %206 = arith.mulf %201, %205 : vector<1x32xf32>
    %207 = tpu.concatenate %206, %141 in 1 : vector<1x32xf32>, vector<1x32xf32> -> vector<1x64xf32>
    %c104_63 = arith.constant 104 : index
    %c0_64 = arith.constant 0 : index
    %208 = vector.load %arg1[%c104_63, %c0_64] : memref<368x128xf32, #tpu.memory_space<vmem>>, vector<64x128xf32>
    %cst_65 = arith.constant dense<0.000000e+00> : vector<1x128xf32>
    %209 = tpu.matmul %207, %208, %cst_65 {dimension_numbers = #tpu.dot_dimension_numbers<[1], [0], [0], [1], [0, 0, 1, 1], [], []>} : vector<1x64xf32>, vector<64x128xf32>, vector<1x128xf32> -> vector<1x128xf32>
    %c168_66 = arith.constant 168 : index
    %c0_67 = arith.constant 0 : index
    %210 = vector.load %arg1[%c168_66, %c0_67] : memref<368x128xf32, #tpu.memory_space<vmem>>, vector<1x128xf32>
    %211 = arith.addf %209, %210 : vector<1x128xf32>
    %212 = vector.extract_strided_slice %211 {offsets = [0, 0], sizes = [1, 96], strides = [1, 1]} : vector<1x128xf32> to vector<1x96xf32>
    %213 = arith.negf %212 : vector<1x96xf32>
    %214 = math.exp %213 : vector<1x96xf32>
    %cst_68 = arith.constant 1.000000e+00 : f32
    %215 = vector.broadcast %cst_68 : f32 to vector<1x96xf32>
    %216 = arith.addf %215, %214 : vector<1x96xf32>
    %217 = arith.divf %215, %216 : vector<1x96xf32>
    %218 = vector.extract_strided_slice %211 {offsets = [0, 96], sizes = [1, 32], strides = [1, 1]} : vector<1x128xf32> to vector<1x32xf32>
    %219 = math.tanh %218 : vector<1x32xf32>
    %220 = vector.extract_strided_slice %217 {offsets = [0, 0], sizes = [1, 32], strides = [1, 1]} : vector<1x96xf32> to vector<1x32xf32>
    %221 = vector.extract_strided_slice %217 {offsets = [0, 32], sizes = [1, 32], strides = [1, 1]} : vector<1x96xf32> to vector<1x32xf32>
    %222 = vector.extract_strided_slice %217 {offsets = [0, 64], sizes = [1, 32], strides = [1, 1]} : vector<1x96xf32> to vector<1x32xf32>
    %223 = arith.mulf %221, %139 : vector<1x32xf32>
    %224 = arith.mulf %220, %219 : vector<1x32xf32>
    %225 = arith.addf %223, %224 : vector<1x32xf32>
    %226 = math.tanh %225 : vector<1x32xf32>
    %227 = arith.mulf %222, %226 : vector<1x32xf32>
    %c240_69 = arith.constant 240 : index
    %c0_70 = arith.constant 0 : index
    %228 = vector.load %arg1[%c240_69, %c0_70] : memref<368x128xf32, #tpu.memory_space<vmem>>, vector<1x128xf32>
    %229 = tpu.concatenate %227, %162 in 1 : vector<1x32xf32>, vector<1x32xf32> -> vector<1x64xf32>
    %c176_71 = arith.constant 176 : index
    %c0_72 = arith.constant 0 : index
    %230 = vector.load %arg1[%c176_71, %c0_72] : memref<368x128xf32, #tpu.memory_space<vmem>>, vector<64x128xf32>
    %cst_73 = arith.constant dense<0.000000e+00> : vector<1x128xf32>
    %231 = tpu.matmul %229, %230, %cst_73 {dimension_numbers = #tpu.dot_dimension_numbers<[1], [0], [0], [1], [0, 0, 1, 1], [], []>} : vector<1x64xf32>, vector<64x128xf32>, vector<1x128xf32> -> vector<1x128xf32>
    %232 = arith.addf %231, %228 : vector<1x128xf32>
    %233 = vector.extract_strided_slice %232 {offsets = [0, 0], sizes = [1, 96], strides = [1, 1]} : vector<1x128xf32> to vector<1x96xf32>
    %234 = arith.negf %233 : vector<1x96xf32>
    %235 = math.exp %234 : vector<1x96xf32>
    %cst_74 = arith.constant 1.000000e+00 : f32
    %236 = vector.broadcast %cst_74 : f32 to vector<1x96xf32>
    %237 = arith.addf %236, %235 : vector<1x96xf32>
    %238 = arith.divf %236, %237 : vector<1x96xf32>
    %239 = vector.extract_strided_slice %232 {offsets = [0, 96], sizes = [1, 32], strides = [1, 1]} : vector<1x128xf32> to vector<1x32xf32>
    %240 = math.tanh %239 : vector<1x32xf32>
    %241 = vector.extract_strided_slice %238 {offsets = [0, 0], sizes = [1, 32], strides = [1, 1]} : vector<1x96xf32> to vector<1x32xf32>
    %242 = vector.extract_strided_slice %238 {offsets = [0, 32], sizes = [1, 32], strides = [1, 1]} : vector<1x96xf32> to vector<1x32xf32>
    %243 = vector.extract_strided_slice %238 {offsets = [0, 64], sizes = [1, 32], strides = [1, 1]} : vector<1x96xf32> to vector<1x32xf32>
    %244 = arith.mulf %242, %160 : vector<1x32xf32>
    %245 = arith.mulf %241, %240 : vector<1x32xf32>
    %246 = arith.addf %244, %245 : vector<1x32xf32>
    %247 = math.tanh %246 : vector<1x32xf32>
    %248 = arith.mulf %243, %247 : vector<1x32xf32>
    %249 = tpu.concatenate %248, %183 in 1 : vector<1x32xf32>, vector<1x32xf32> -> vector<1x64xf32>
    %c256_75 = arith.constant 256 : index
    %c0_76 = arith.constant 0 : index
    %250 = vector.load %arg1[%c256_75, %c0_76] : memref<368x128xf32, #tpu.memory_space<vmem>>, vector<64x128xf32>
    %cst_77 = arith.constant dense<0.000000e+00> : vector<1x128xf32>
    %251 = tpu.matmul %249, %250, %cst_77 {dimension_numbers = #tpu.dot_dimension_numbers<[1], [0], [0], [1], [0, 0, 1, 1], [], []>} : vector<1x64xf32>, vector<64x128xf32>, vector<1x128xf32> -> vector<1x128xf32>
    %c320_78 = arith.constant 320 : index
    %c0_79 = arith.constant 0 : index
    %252 = vector.load %arg1[%c320_78, %c0_79] : memref<368x128xf32, #tpu.memory_space<vmem>>, vector<1x128xf32>
    %253 = arith.addf %251, %252 : vector<1x128xf32>
    %254 = vector.extract_strided_slice %253 {offsets = [0, 0], sizes = [1, 96], strides = [1, 1]} : vector<1x128xf32> to vector<1x96xf32>
    %255 = arith.negf %254 : vector<1x96xf32>
    %256 = math.exp %255 : vector<1x96xf32>
    %cst_80 = arith.constant 1.000000e+00 : f32
    %257 = vector.broadcast %cst_80 : f32 to vector<1x96xf32>
    %258 = arith.addf %257, %256 : vector<1x96xf32>
    %259 = arith.divf %257, %258 : vector<1x96xf32>
    %260 = vector.extract_strided_slice %253 {offsets = [0, 96], sizes = [1, 32], strides = [1, 1]} : vector<1x128xf32> to vector<1x32xf32>
    %261 = math.tanh %260 : vector<1x32xf32>
    %262 = vector.extract_strided_slice %259 {offsets = [0, 0], sizes = [1, 32], strides = [1, 1]} : vector<1x96xf32> to vector<1x32xf32>
    %263 = vector.extract_strided_slice %259 {offsets = [0, 32], sizes = [1, 32], strides = [1, 1]} : vector<1x96xf32> to vector<1x32xf32>
    %264 = vector.extract_strided_slice %259 {offsets = [0, 64], sizes = [1, 32], strides = [1, 1]} : vector<1x96xf32> to vector<1x32xf32>
    %265 = arith.mulf %263, %181 : vector<1x32xf32>
    %266 = arith.mulf %262, %261 : vector<1x32xf32>
    %267 = arith.addf %265, %266 : vector<1x32xf32>
    %268 = math.tanh %267 : vector<1x32xf32>
    %269 = arith.mulf %264, %268 : vector<1x32xf32>
    %c3_i32 = arith.constant 3 : i32
    %270 = arith.index_cast %c3_i32 : i32 to index
    %c0_81 = arith.constant 0 : index
    %271 = vector.load %arg4[%270, %c0_81] : memref<8x128xf32, #tpu.memory_space<vmem>>, vector<1x128xf32>
    %c64_82 = arith.constant 64 : index
    %c0_83 = arith.constant 0 : index
    %272 = vector.load %arg1[%c64_82, %c0_83] : memref<368x128xf32, #tpu.memory_space<vmem>>, vector<32x128xf32>
    %cst_84 = arith.constant dense<0.000000e+00> : vector<1x128xf32>
    %273 = tpu.matmul %206, %272, %cst_84 {dimension_numbers = #tpu.dot_dimension_numbers<[1], [0], [0], [1], [0, 0, 1, 1], [], []>} : vector<1x32xf32>, vector<32x128xf32>, vector<1x128xf32> -> vector<1x128xf32>
    %c96_85 = arith.constant 96 : index
    %c0_86 = arith.constant 0 : index
    %274 = vector.load %arg1[%c96_85, %c0_86] : memref<368x128xf32, #tpu.memory_space<vmem>>, vector<1x128xf32>
    %275 = arith.addf %273, %274 : vector<1x128xf32>
    %276 = arith.addf %275, %271 : vector<1x128xf32>
    %277 = vector.extract_strided_slice %276 {offsets = [0, 0], sizes = [1, 96], strides = [1, 1]} : vector<1x128xf32> to vector<1x96xf32>
    %278 = arith.negf %277 : vector<1x96xf32>
    %279 = math.exp %278 : vector<1x96xf32>
    %cst_87 = arith.constant 1.000000e+00 : f32
    %280 = vector.broadcast %cst_87 : f32 to vector<1x96xf32>
    %281 = arith.addf %280, %279 : vector<1x96xf32>
    %282 = arith.divf %280, %281 : vector<1x96xf32>
    %283 = vector.extract_strided_slice %276 {offsets = [0, 96], sizes = [1, 32], strides = [1, 1]} : vector<1x128xf32> to vector<1x32xf32>
    %284 = math.tanh %283 : vector<1x32xf32>
    %285 = vector.extract_strided_slice %282 {offsets = [0, 0], sizes = [1, 32], strides = [1, 1]} : vector<1x96xf32> to vector<1x32xf32>
    %286 = vector.extract_strided_slice %282 {offsets = [0, 32], sizes = [1, 32], strides = [1, 1]} : vector<1x96xf32> to vector<1x32xf32>
    %287 = vector.extract_strided_slice %282 {offsets = [0, 64], sizes = [1, 32], strides = [1, 1]} : vector<1x96xf32> to vector<1x32xf32>
    %288 = arith.mulf %286, %204 : vector<1x32xf32>
    %289 = arith.mulf %285, %284 : vector<1x32xf32>
    %290 = arith.addf %288, %289 : vector<1x32xf32>
    %291 = math.tanh %290 : vector<1x32xf32>
    %292 = arith.mulf %287, %291 : vector<1x32xf32>
    %293 = tpu.concatenate %292, %227 in 1 : vector<1x32xf32>, vector<1x32xf32> -> vector<1x64xf32>
    %c104_88 = arith.constant 104 : index
    %c0_89 = arith.constant 0 : index
    %294 = vector.load %arg1[%c104_88, %c0_89] : memref<368x128xf32, #tpu.memory_space<vmem>>, vector<64x128xf32>
    %cst_90 = arith.constant dense<0.000000e+00> : vector<1x128xf32>
    %295 = tpu.matmul %293, %294, %cst_90 {dimension_numbers = #tpu.dot_dimension_numbers<[1], [0], [0], [1], [0, 0, 1, 1], [], []>} : vector<1x64xf32>, vector<64x128xf32>, vector<1x128xf32> -> vector<1x128xf32>
    %c168_91 = arith.constant 168 : index
    %c0_92 = arith.constant 0 : index
    %296 = vector.load %arg1[%c168_91, %c0_92] : memref<368x128xf32, #tpu.memory_space<vmem>>, vector<1x128xf32>
    %297 = arith.addf %295, %296 : vector<1x128xf32>
    %298 = vector.extract_strided_slice %297 {offsets = [0, 0], sizes = [1, 96], strides = [1, 1]} : vector<1x128xf32> to vector<1x96xf32>
    %299 = arith.negf %298 : vector<1x96xf32>
    %300 = math.exp %299 : vector<1x96xf32>
    %cst_93 = arith.constant 1.000000e+00 : f32
    %301 = vector.broadcast %cst_93 : f32 to vector<1x96xf32>
    %302 = arith.addf %301, %300 : vector<1x96xf32>
    %303 = arith.divf %301, %302 : vector<1x96xf32>
    %304 = vector.extract_strided_slice %297 {offsets = [0, 96], sizes = [1, 32], strides = [1, 1]} : vector<1x128xf32> to vector<1x32xf32>
    %305 = math.tanh %304 : vector<1x32xf32>
    %306 = vector.extract_strided_slice %303 {offsets = [0, 0], sizes = [1, 32], strides = [1, 1]} : vector<1x96xf32> to vector<1x32xf32>
    %307 = vector.extract_strided_slice %303 {offsets = [0, 32], sizes = [1, 32], strides = [1, 1]} : vector<1x96xf32> to vector<1x32xf32>
    %308 = vector.extract_strided_slice %303 {offsets = [0, 64], sizes = [1, 32], strides = [1, 1]} : vector<1x96xf32> to vector<1x32xf32>
    %309 = arith.mulf %307, %225 : vector<1x32xf32>
    %310 = arith.mulf %306, %305 : vector<1x32xf32>
    %311 = arith.addf %309, %310 : vector<1x32xf32>
    %312 = math.tanh %311 : vector<1x32xf32>
    %313 = arith.mulf %308, %312 : vector<1x32xf32>
    %c240_94 = arith.constant 240 : index
    %c0_95 = arith.constant 0 : index
    %314 = vector.load %arg1[%c240_94, %c0_95] : memref<368x128xf32, #tpu.memory_space<vmem>>, vector<1x128xf32>
    %315 = tpu.concatenate %313, %248 in 1 : vector<1x32xf32>, vector<1x32xf32> -> vector<1x64xf32>
    %c176_96 = arith.constant 176 : index
    %c0_97 = arith.constant 0 : index
    %316 = vector.load %arg1[%c176_96, %c0_97] : memref<368x128xf32, #tpu.memory_space<vmem>>, vector<64x128xf32>
    %cst_98 = arith.constant dense<0.000000e+00> : vector<1x128xf32>
    %317 = tpu.matmul %315, %316, %cst_98 {dimension_numbers = #tpu.dot_dimension_numbers<[1], [0], [0], [1], [0, 0, 1, 1], [], []>} : vector<1x64xf32>, vector<64x128xf32>, vector<1x128xf32> -> vector<1x128xf32>
    %318 = arith.addf %317, %314 : vector<1x128xf32>
    %319 = vector.extract_strided_slice %318 {offsets = [0, 0], sizes = [1, 96], strides = [1, 1]} : vector<1x128xf32> to vector<1x96xf32>
    %320 = arith.negf %319 : vector<1x96xf32>
    %321 = math.exp %320 : vector<1x96xf32>
    %cst_99 = arith.constant 1.000000e+00 : f32
    %322 = vector.broadcast %cst_99 : f32 to vector<1x96xf32>
    %323 = arith.addf %322, %321 : vector<1x96xf32>
    %324 = arith.divf %322, %323 : vector<1x96xf32>
    %325 = vector.extract_strided_slice %318 {offsets = [0, 96], sizes = [1, 32], strides = [1, 1]} : vector<1x128xf32> to vector<1x32xf32>
    %326 = math.tanh %325 : vector<1x32xf32>
    %327 = vector.extract_strided_slice %324 {offsets = [0, 0], sizes = [1, 32], strides = [1, 1]} : vector<1x96xf32> to vector<1x32xf32>
    %328 = vector.extract_strided_slice %324 {offsets = [0, 32], sizes = [1, 32], strides = [1, 1]} : vector<1x96xf32> to vector<1x32xf32>
    %329 = vector.extract_strided_slice %324 {offsets = [0, 64], sizes = [1, 32], strides = [1, 1]} : vector<1x96xf32> to vector<1x32xf32>
    %330 = arith.mulf %328, %246 : vector<1x32xf32>
    %331 = arith.mulf %327, %326 : vector<1x32xf32>
    %332 = arith.addf %330, %331 : vector<1x32xf32>
    %333 = math.tanh %332 : vector<1x32xf32>
    %334 = arith.mulf %329, %333 : vector<1x32xf32>
    %335 = tpu.concatenate %334, %269 in 1 : vector<1x32xf32>, vector<1x32xf32> -> vector<1x64xf32>
    %c256_100 = arith.constant 256 : index
    %c0_101 = arith.constant 0 : index
    %336 = vector.load %arg1[%c256_100, %c0_101] : memref<368x128xf32, #tpu.memory_space<vmem>>, vector<64x128xf32>
    %cst_102 = arith.constant dense<0.000000e+00> : vector<1x128xf32>
    %337 = tpu.matmul %335, %336, %cst_102 {dimension_numbers = #tpu.dot_dimension_numbers<[1], [0], [0], [1], [0, 0, 1, 1], [], []>} : vector<1x64xf32>, vector<64x128xf32>, vector<1x128xf32> -> vector<1x128xf32>
    %c320_103 = arith.constant 320 : index
    %c0_104 = arith.constant 0 : index
    %338 = vector.load %arg1[%c320_103, %c0_104] : memref<368x128xf32, #tpu.memory_space<vmem>>, vector<1x128xf32>
    %339 = arith.addf %337, %338 : vector<1x128xf32>
    %340 = vector.extract_strided_slice %339 {offsets = [0, 0], sizes = [1, 96], strides = [1, 1]} : vector<1x128xf32> to vector<1x96xf32>
    %341 = arith.negf %340 : vector<1x96xf32>
    %342 = math.exp %341 : vector<1x96xf32>
    %cst_105 = arith.constant 1.000000e+00 : f32
    %343 = vector.broadcast %cst_105 : f32 to vector<1x96xf32>
    %344 = arith.addf %343, %342 : vector<1x96xf32>
    %345 = arith.divf %343, %344 : vector<1x96xf32>
    %346 = vector.extract_strided_slice %339 {offsets = [0, 96], sizes = [1, 32], strides = [1, 1]} : vector<1x128xf32> to vector<1x32xf32>
    %347 = math.tanh %346 : vector<1x32xf32>
    %348 = vector.extract_strided_slice %345 {offsets = [0, 0], sizes = [1, 32], strides = [1, 1]} : vector<1x96xf32> to vector<1x32xf32>
    %349 = vector.extract_strided_slice %345 {offsets = [0, 32], sizes = [1, 32], strides = [1, 1]} : vector<1x96xf32> to vector<1x32xf32>
    %350 = vector.extract_strided_slice %345 {offsets = [0, 64], sizes = [1, 32], strides = [1, 1]} : vector<1x96xf32> to vector<1x32xf32>
    %351 = arith.mulf %349, %267 : vector<1x32xf32>
    %352 = arith.mulf %348, %347 : vector<1x32xf32>
    %353 = arith.addf %351, %352 : vector<1x32xf32>
    %354 = math.tanh %353 : vector<1x32xf32>
    %355 = arith.mulf %350, %354 : vector<1x32xf32>
    %c4_i32 = arith.constant 4 : i32
    %356 = arith.index_cast %c4_i32 : i32 to index
    %c0_106 = arith.constant 0 : index
    %357 = vector.load %arg4[%356, %c0_106] : memref<8x128xf32, #tpu.memory_space<vmem>>, vector<1x128xf32>
    %c64_107 = arith.constant 64 : index
    %c0_108 = arith.constant 0 : index
    %358 = vector.load %arg1[%c64_107, %c0_108] : memref<368x128xf32, #tpu.memory_space<vmem>>, vector<32x128xf32>
    %cst_109 = arith.constant dense<0.000000e+00> : vector<1x128xf32>
    %359 = tpu.matmul %292, %358, %cst_109 {dimension_numbers = #tpu.dot_dimension_numbers<[1], [0], [0], [1], [0, 0, 1, 1], [], []>} : vector<1x32xf32>, vector<32x128xf32>, vector<1x128xf32> -> vector<1x128xf32>
    %c96_110 = arith.constant 96 : index
    %c0_111 = arith.constant 0 : index
    %360 = vector.load %arg1[%c96_110, %c0_111] : memref<368x128xf32, #tpu.memory_space<vmem>>, vector<1x128xf32>
    %361 = arith.addf %359, %360 : vector<1x128xf32>
    %362 = arith.addf %361, %357 : vector<1x128xf32>
    %363 = vector.extract_strided_slice %362 {offsets = [0, 0], sizes = [1, 96], strides = [1, 1]} : vector<1x128xf32> to vector<1x96xf32>
    %364 = arith.negf %363 : vector<1x96xf32>
    %365 = math.exp %364 : vector<1x96xf32>
    %cst_112 = arith.constant 1.000000e+00 : f32
    %366 = vector.broadcast %cst_112 : f32 to vector<1x96xf32>
    %367 = arith.addf %366, %365 : vector<1x96xf32>
    %368 = arith.divf %366, %367 : vector<1x96xf32>
    %369 = vector.extract_strided_slice %362 {offsets = [0, 96], sizes = [1, 32], strides = [1, 1]} : vector<1x128xf32> to vector<1x32xf32>
    %370 = math.tanh %369 : vector<1x32xf32>
    %371 = vector.extract_strided_slice %368 {offsets = [0, 0], sizes = [1, 32], strides = [1, 1]} : vector<1x96xf32> to vector<1x32xf32>
    %372 = vector.extract_strided_slice %368 {offsets = [0, 32], sizes = [1, 32], strides = [1, 1]} : vector<1x96xf32> to vector<1x32xf32>
    %373 = vector.extract_strided_slice %368 {offsets = [0, 64], sizes = [1, 32], strides = [1, 1]} : vector<1x96xf32> to vector<1x32xf32>
    %374 = arith.mulf %372, %290 : vector<1x32xf32>
    %375 = arith.mulf %371, %370 : vector<1x32xf32>
    %376 = arith.addf %374, %375 : vector<1x32xf32>
    %377 = math.tanh %376 : vector<1x32xf32>
    %378 = arith.mulf %373, %377 : vector<1x32xf32>
    %379 = tpu.concatenate %378, %313 in 1 : vector<1x32xf32>, vector<1x32xf32> -> vector<1x64xf32>
    %c104_113 = arith.constant 104 : index
    %c0_114 = arith.constant 0 : index
    %380 = vector.load %arg1[%c104_113, %c0_114] : memref<368x128xf32, #tpu.memory_space<vmem>>, vector<64x128xf32>
    %cst_115 = arith.constant dense<0.000000e+00> : vector<1x128xf32>
    %381 = tpu.matmul %379, %380, %cst_115 {dimension_numbers = #tpu.dot_dimension_numbers<[1], [0], [0], [1], [0, 0, 1, 1], [], []>} : vector<1x64xf32>, vector<64x128xf32>, vector<1x128xf32> -> vector<1x128xf32>
    %c168_116 = arith.constant 168 : index
    %c0_117 = arith.constant 0 : index
    %382 = vector.load %arg1[%c168_116, %c0_117] : memref<368x128xf32, #tpu.memory_space<vmem>>, vector<1x128xf32>
    %383 = arith.addf %381, %382 : vector<1x128xf32>
    %384 = vector.extract_strided_slice %383 {offsets = [0, 0], sizes = [1, 96], strides = [1, 1]} : vector<1x128xf32> to vector<1x96xf32>
    %385 = arith.negf %384 : vector<1x96xf32>
    %386 = math.exp %385 : vector<1x96xf32>
    %cst_118 = arith.constant 1.000000e+00 : f32
    %387 = vector.broadcast %cst_118 : f32 to vector<1x96xf32>
    %388 = arith.addf %387, %386 : vector<1x96xf32>
    %389 = arith.divf %387, %388 : vector<1x96xf32>
    %390 = vector.extract_strided_slice %383 {offsets = [0, 96], sizes = [1, 32], strides = [1, 1]} : vector<1x128xf32> to vector<1x32xf32>
    %391 = math.tanh %390 : vector<1x32xf32>
    %392 = vector.extract_strided_slice %389 {offsets = [0, 0], sizes = [1, 32], strides = [1, 1]} : vector<1x96xf32> to vector<1x32xf32>
    %393 = vector.extract_strided_slice %389 {offsets = [0, 32], sizes = [1, 32], strides = [1, 1]} : vector<1x96xf32> to vector<1x32xf32>
    %394 = vector.extract_strided_slice %389 {offsets = [0, 64], sizes = [1, 32], strides = [1, 1]} : vector<1x96xf32> to vector<1x32xf32>
    %395 = arith.mulf %393, %311 : vector<1x32xf32>
    %396 = arith.mulf %392, %391 : vector<1x32xf32>
    %397 = arith.addf %395, %396 : vector<1x32xf32>
    %398 = math.tanh %397 : vector<1x32xf32>
    %399 = arith.mulf %394, %398 : vector<1x32xf32>
    %c240_119 = arith.constant 240 : index
    %c0_120 = arith.constant 0 : index
    %400 = vector.load %arg1[%c240_119, %c0_120] : memref<368x128xf32, #tpu.memory_space<vmem>>, vector<1x128xf32>
    %401 = tpu.concatenate %399, %334 in 1 : vector<1x32xf32>, vector<1x32xf32> -> vector<1x64xf32>
    %c176_121 = arith.constant 176 : index
    %c0_122 = arith.constant 0 : index
    %402 = vector.load %arg1[%c176_121, %c0_122] : memref<368x128xf32, #tpu.memory_space<vmem>>, vector<64x128xf32>
    %cst_123 = arith.constant dense<0.000000e+00> : vector<1x128xf32>
    %403 = tpu.matmul %401, %402, %cst_123 {dimension_numbers = #tpu.dot_dimension_numbers<[1], [0], [0], [1], [0, 0, 1, 1], [], []>} : vector<1x64xf32>, vector<64x128xf32>, vector<1x128xf32> -> vector<1x128xf32>
    %404 = arith.addf %403, %400 : vector<1x128xf32>
    %405 = vector.extract_strided_slice %404 {offsets = [0, 0], sizes = [1, 96], strides = [1, 1]} : vector<1x128xf32> to vector<1x96xf32>
    %406 = arith.negf %405 : vector<1x96xf32>
    %407 = math.exp %406 : vector<1x96xf32>
    %cst_124 = arith.constant 1.000000e+00 : f32
    %408 = vector.broadcast %cst_124 : f32 to vector<1x96xf32>
    %409 = arith.addf %408, %407 : vector<1x96xf32>
    %410 = arith.divf %408, %409 : vector<1x96xf32>
    %411 = vector.extract_strided_slice %404 {offsets = [0, 96], sizes = [1, 32], strides = [1, 1]} : vector<1x128xf32> to vector<1x32xf32>
    %412 = math.tanh %411 : vector<1x32xf32>
    %413 = vector.extract_strided_slice %410 {offsets = [0, 0], sizes = [1, 32], strides = [1, 1]} : vector<1x96xf32> to vector<1x32xf32>
    %414 = vector.extract_strided_slice %410 {offsets = [0, 32], sizes = [1, 32], strides = [1, 1]} : vector<1x96xf32> to vector<1x32xf32>
    %415 = vector.extract_strided_slice %410 {offsets = [0, 64], sizes = [1, 32], strides = [1, 1]} : vector<1x96xf32> to vector<1x32xf32>
    %416 = arith.mulf %414, %332 : vector<1x32xf32>
    %417 = arith.mulf %413, %412 : vector<1x32xf32>
    %418 = arith.addf %416, %417 : vector<1x32xf32>
    %419 = math.tanh %418 : vector<1x32xf32>
    %420 = arith.mulf %415, %419 : vector<1x32xf32>
    %421 = tpu.concatenate %420, %355 in 1 : vector<1x32xf32>, vector<1x32xf32> -> vector<1x64xf32>
    %c256_125 = arith.constant 256 : index
    %c0_126 = arith.constant 0 : index
    %422 = vector.load %arg1[%c256_125, %c0_126] : memref<368x128xf32, #tpu.memory_space<vmem>>, vector<64x128xf32>
    %cst_127 = arith.constant dense<0.000000e+00> : vector<1x128xf32>
    %423 = tpu.matmul %421, %422, %cst_127 {dimension_numbers = #tpu.dot_dimension_numbers<[1], [0], [0], [1], [0, 0, 1, 1], [], []>} : vector<1x64xf32>, vector<64x128xf32>, vector<1x128xf32> -> vector<1x128xf32>
    %c320_128 = arith.constant 320 : index
    %c0_129 = arith.constant 0 : index
    %424 = vector.load %arg1[%c320_128, %c0_129] : memref<368x128xf32, #tpu.memory_space<vmem>>, vector<1x128xf32>
    %425 = arith.addf %423, %424 : vector<1x128xf32>
    %426 = vector.extract_strided_slice %425 {offsets = [0, 0], sizes = [1, 96], strides = [1, 1]} : vector<1x128xf32> to vector<1x96xf32>
    %427 = arith.negf %426 : vector<1x96xf32>
    %428 = math.exp %427 : vector<1x96xf32>
    %cst_130 = arith.constant 1.000000e+00 : f32
    %429 = vector.broadcast %cst_130 : f32 to vector<1x96xf32>
    %430 = arith.addf %429, %428 : vector<1x96xf32>
    %431 = arith.divf %429, %430 : vector<1x96xf32>
    %432 = vector.extract_strided_slice %425 {offsets = [0, 96], sizes = [1, 32], strides = [1, 1]} : vector<1x128xf32> to vector<1x32xf32>
    %433 = math.tanh %432 : vector<1x32xf32>
    %434 = vector.extract_strided_slice %431 {offsets = [0, 0], sizes = [1, 32], strides = [1, 1]} : vector<1x96xf32> to vector<1x32xf32>
    %435 = vector.extract_strided_slice %431 {offsets = [0, 32], sizes = [1, 32], strides = [1, 1]} : vector<1x96xf32> to vector<1x32xf32>
    %436 = vector.extract_strided_slice %431 {offsets = [0, 64], sizes = [1, 32], strides = [1, 1]} : vector<1x96xf32> to vector<1x32xf32>
    %437 = arith.mulf %435, %353 : vector<1x32xf32>
    %438 = arith.mulf %434, %433 : vector<1x32xf32>
    %439 = arith.addf %437, %438 : vector<1x32xf32>
    %440 = math.tanh %439 : vector<1x32xf32>
    %441 = arith.mulf %436, %440 : vector<1x32xf32>
    %c5_i32 = arith.constant 5 : i32
    %442 = arith.index_cast %c5_i32 : i32 to index
    %c0_131 = arith.constant 0 : index
    %443 = vector.load %arg4[%442, %c0_131] : memref<8x128xf32, #tpu.memory_space<vmem>>, vector<1x128xf32>
    %c64_132 = arith.constant 64 : index
    %c0_133 = arith.constant 0 : index
    %444 = vector.load %arg1[%c64_132, %c0_133] : memref<368x128xf32, #tpu.memory_space<vmem>>, vector<32x128xf32>
    %cst_134 = arith.constant dense<0.000000e+00> : vector<1x128xf32>
    %445 = tpu.matmul %378, %444, %cst_134 {dimension_numbers = #tpu.dot_dimension_numbers<[1], [0], [0], [1], [0, 0, 1, 1], [], []>} : vector<1x32xf32>, vector<32x128xf32>, vector<1x128xf32> -> vector<1x128xf32>
    %c96_135 = arith.constant 96 : index
    %c0_136 = arith.constant 0 : index
    %446 = vector.load %arg1[%c96_135, %c0_136] : memref<368x128xf32, #tpu.memory_space<vmem>>, vector<1x128xf32>
    %447 = arith.addf %445, %446 : vector<1x128xf32>
    %448 = arith.addf %447, %443 : vector<1x128xf32>
    %449 = vector.extract_strided_slice %448 {offsets = [0, 0], sizes = [1, 96], strides = [1, 1]} : vector<1x128xf32> to vector<1x96xf32>
    %450 = arith.negf %449 : vector<1x96xf32>
    %451 = math.exp %450 : vector<1x96xf32>
    %cst_137 = arith.constant 1.000000e+00 : f32
    %452 = vector.broadcast %cst_137 : f32 to vector<1x96xf32>
    %453 = arith.addf %452, %451 : vector<1x96xf32>
    %454 = arith.divf %452, %453 : vector<1x96xf32>
    %455 = vector.extract_strided_slice %448 {offsets = [0, 96], sizes = [1, 32], strides = [1, 1]} : vector<1x128xf32> to vector<1x32xf32>
    %456 = math.tanh %455 : vector<1x32xf32>
    %457 = vector.extract_strided_slice %454 {offsets = [0, 0], sizes = [1, 32], strides = [1, 1]} : vector<1x96xf32> to vector<1x32xf32>
    %458 = vector.extract_strided_slice %454 {offsets = [0, 32], sizes = [1, 32], strides = [1, 1]} : vector<1x96xf32> to vector<1x32xf32>
    %459 = vector.extract_strided_slice %454 {offsets = [0, 64], sizes = [1, 32], strides = [1, 1]} : vector<1x96xf32> to vector<1x32xf32>
    %460 = arith.mulf %458, %376 : vector<1x32xf32>
    %461 = arith.mulf %457, %456 : vector<1x32xf32>
    %462 = arith.addf %460, %461 : vector<1x32xf32>
    %463 = math.tanh %462 : vector<1x32xf32>
    %464 = arith.mulf %459, %463 : vector<1x32xf32>
    %465 = tpu.concatenate %464, %399 in 1 : vector<1x32xf32>, vector<1x32xf32> -> vector<1x64xf32>
    %c104_138 = arith.constant 104 : index
    %c0_139 = arith.constant 0 : index
    %466 = vector.load %arg1[%c104_138, %c0_139] : memref<368x128xf32, #tpu.memory_space<vmem>>, vector<64x128xf32>
    %cst_140 = arith.constant dense<0.000000e+00> : vector<1x128xf32>
    %467 = tpu.matmul %465, %466, %cst_140 {dimension_numbers = #tpu.dot_dimension_numbers<[1], [0], [0], [1], [0, 0, 1, 1], [], []>} : vector<1x64xf32>, vector<64x128xf32>, vector<1x128xf32> -> vector<1x128xf32>
    %c168_141 = arith.constant 168 : index
    %c0_142 = arith.constant 0 : index
    %468 = vector.load %arg1[%c168_141, %c0_142] : memref<368x128xf32, #tpu.memory_space<vmem>>, vector<1x128xf32>
    %469 = arith.addf %467, %468 : vector<1x128xf32>
    %470 = vector.extract_strided_slice %469 {offsets = [0, 0], sizes = [1, 96], strides = [1, 1]} : vector<1x128xf32> to vector<1x96xf32>
    %471 = arith.negf %470 : vector<1x96xf32>
    %472 = math.exp %471 : vector<1x96xf32>
    %cst_143 = arith.constant 1.000000e+00 : f32
    %473 = vector.broadcast %cst_143 : f32 to vector<1x96xf32>
    %474 = arith.addf %473, %472 : vector<1x96xf32>
    %475 = arith.divf %473, %474 : vector<1x96xf32>
    %476 = vector.extract_strided_slice %469 {offsets = [0, 96], sizes = [1, 32], strides = [1, 1]} : vector<1x128xf32> to vector<1x32xf32>
    %477 = math.tanh %476 : vector<1x32xf32>
    %478 = vector.extract_strided_slice %475 {offsets = [0, 0], sizes = [1, 32], strides = [1, 1]} : vector<1x96xf32> to vector<1x32xf32>
    %479 = vector.extract_strided_slice %475 {offsets = [0, 32], sizes = [1, 32], strides = [1, 1]} : vector<1x96xf32> to vector<1x32xf32>
    %480 = vector.extract_strided_slice %475 {offsets = [0, 64], sizes = [1, 32], strides = [1, 1]} : vector<1x96xf32> to vector<1x32xf32>
    %481 = arith.mulf %479, %397 : vector<1x32xf32>
    %482 = arith.mulf %478, %477 : vector<1x32xf32>
    %483 = arith.addf %481, %482 : vector<1x32xf32>
    %484 = math.tanh %483 : vector<1x32xf32>
    %485 = arith.mulf %480, %484 : vector<1x32xf32>
    %c240_144 = arith.constant 240 : index
    %c0_145 = arith.constant 0 : index
    %486 = vector.load %arg1[%c240_144, %c0_145] : memref<368x128xf32, #tpu.memory_space<vmem>>, vector<1x128xf32>
    %487 = tpu.concatenate %485, %420 in 1 : vector<1x32xf32>, vector<1x32xf32> -> vector<1x64xf32>
    %c176_146 = arith.constant 176 : index
    %c0_147 = arith.constant 0 : index
    %488 = vector.load %arg1[%c176_146, %c0_147] : memref<368x128xf32, #tpu.memory_space<vmem>>, vector<64x128xf32>
    %cst_148 = arith.constant dense<0.000000e+00> : vector<1x128xf32>
    %489 = tpu.matmul %487, %488, %cst_148 {dimension_numbers = #tpu.dot_dimension_numbers<[1], [0], [0], [1], [0, 0, 1, 1], [], []>} : vector<1x64xf32>, vector<64x128xf32>, vector<1x128xf32> -> vector<1x128xf32>
    %490 = arith.addf %489, %486 : vector<1x128xf32>
    %491 = vector.extract_strided_slice %490 {offsets = [0, 0], sizes = [1, 96], strides = [1, 1]} : vector<1x128xf32> to vector<1x96xf32>
    %492 = arith.negf %491 : vector<1x96xf32>
    %493 = math.exp %492 : vector<1x96xf32>
    %cst_149 = arith.constant 1.000000e+00 : f32
    %494 = vector.broadcast %cst_149 : f32 to vector<1x96xf32>
    %495 = arith.addf %494, %493 : vector<1x96xf32>
    %496 = arith.divf %494, %495 : vector<1x96xf32>
    %497 = vector.extract_strided_slice %490 {offsets = [0, 96], sizes = [1, 32], strides = [1, 1]} : vector<1x128xf32> to vector<1x32xf32>
    %498 = math.tanh %497 : vector<1x32xf32>
    %499 = vector.extract_strided_slice %496 {offsets = [0, 0], sizes = [1, 32], strides = [1, 1]} : vector<1x96xf32> to vector<1x32xf32>
    %500 = vector.extract_strided_slice %496 {offsets = [0, 32], sizes = [1, 32], strides = [1, 1]} : vector<1x96xf32> to vector<1x32xf32>
    %501 = vector.extract_strided_slice %496 {offsets = [0, 64], sizes = [1, 32], strides = [1, 1]} : vector<1x96xf32> to vector<1x32xf32>
    %502 = arith.mulf %500, %418 : vector<1x32xf32>
    %503 = arith.mulf %499, %498 : vector<1x32xf32>
    %504 = arith.addf %502, %503 : vector<1x32xf32>
    %505 = math.tanh %504 : vector<1x32xf32>
    %506 = arith.mulf %501, %505 : vector<1x32xf32>
    %507 = tpu.concatenate %506, %441 in 1 : vector<1x32xf32>, vector<1x32xf32> -> vector<1x64xf32>
    %c256_150 = arith.constant 256 : index
    %c0_151 = arith.constant 0 : index
    %508 = vector.load %arg1[%c256_150, %c0_151] : memref<368x128xf32, #tpu.memory_space<vmem>>, vector<64x128xf32>
    %cst_152 = arith.constant dense<0.000000e+00> : vector<1x128xf32>
    %509 = tpu.matmul %507, %508, %cst_152 {dimension_numbers = #tpu.dot_dimension_numbers<[1], [0], [0], [1], [0, 0, 1, 1], [], []>} : vector<1x64xf32>, vector<64x128xf32>, vector<1x128xf32> -> vector<1x128xf32>
    %c320_153 = arith.constant 320 : index
    %c0_154 = arith.constant 0 : index
    %510 = vector.load %arg1[%c320_153, %c0_154] : memref<368x128xf32, #tpu.memory_space<vmem>>, vector<1x128xf32>
    %511 = arith.addf %509, %510 : vector<1x128xf32>
    %512 = vector.extract_strided_slice %511 {offsets = [0, 0], sizes = [1, 96], strides = [1, 1]} : vector<1x128xf32> to vector<1x96xf32>
    %513 = arith.negf %512 : vector<1x96xf32>
    %514 = math.exp %513 : vector<1x96xf32>
    %cst_155 = arith.constant 1.000000e+00 : f32
    %515 = vector.broadcast %cst_155 : f32 to vector<1x96xf32>
    %516 = arith.addf %515, %514 : vector<1x96xf32>
    %517 = arith.divf %515, %516 : vector<1x96xf32>
    %518 = vector.extract_strided_slice %511 {offsets = [0, 96], sizes = [1, 32], strides = [1, 1]} : vector<1x128xf32> to vector<1x32xf32>
    %519 = math.tanh %518 : vector<1x32xf32>
    %520 = vector.extract_strided_slice %517 {offsets = [0, 0], sizes = [1, 32], strides = [1, 1]} : vector<1x96xf32> to vector<1x32xf32>
    %521 = vector.extract_strided_slice %517 {offsets = [0, 32], sizes = [1, 32], strides = [1, 1]} : vector<1x96xf32> to vector<1x32xf32>
    %522 = vector.extract_strided_slice %517 {offsets = [0, 64], sizes = [1, 32], strides = [1, 1]} : vector<1x96xf32> to vector<1x32xf32>
    %523 = arith.mulf %521, %439 : vector<1x32xf32>
    %524 = arith.mulf %520, %519 : vector<1x32xf32>
    %525 = arith.addf %523, %524 : vector<1x32xf32>
    %526 = math.tanh %525 : vector<1x32xf32>
    %527 = arith.mulf %522, %526 : vector<1x32xf32>
    %c6_i32 = arith.constant 6 : i32
    %528 = arith.index_cast %c6_i32 : i32 to index
    %c0_156 = arith.constant 0 : index
    %529 = vector.load %arg4[%528, %c0_156] : memref<8x128xf32, #tpu.memory_space<vmem>>, vector<1x128xf32>
    %c64_157 = arith.constant 64 : index
    %c0_158 = arith.constant 0 : index
    %530 = vector.load %arg1[%c64_157, %c0_158] : memref<368x128xf32, #tpu.memory_space<vmem>>, vector<32x128xf32>
    %cst_159 = arith.constant dense<0.000000e+00> : vector<1x128xf32>
    %531 = tpu.matmul %464, %530, %cst_159 {dimension_numbers = #tpu.dot_dimension_numbers<[1], [0], [0], [1], [0, 0, 1, 1], [], []>} : vector<1x32xf32>, vector<32x128xf32>, vector<1x128xf32> -> vector<1x128xf32>
    %c96_160 = arith.constant 96 : index
    %c0_161 = arith.constant 0 : index
    %532 = vector.load %arg1[%c96_160, %c0_161] : memref<368x128xf32, #tpu.memory_space<vmem>>, vector<1x128xf32>
    %533 = arith.addf %531, %532 : vector<1x128xf32>
    %534 = arith.addf %533, %529 : vector<1x128xf32>
    %535 = vector.extract_strided_slice %534 {offsets = [0, 0], sizes = [1, 96], strides = [1, 1]} : vector<1x128xf32> to vector<1x96xf32>
    %536 = arith.negf %535 : vector<1x96xf32>
    %537 = math.exp %536 : vector<1x96xf32>
    %cst_162 = arith.constant 1.000000e+00 : f32
    %538 = vector.broadcast %cst_162 : f32 to vector<1x96xf32>
    %539 = arith.addf %538, %537 : vector<1x96xf32>
    %540 = arith.divf %538, %539 : vector<1x96xf32>
    %541 = vector.extract_strided_slice %534 {offsets = [0, 96], sizes = [1, 32], strides = [1, 1]} : vector<1x128xf32> to vector<1x32xf32>
    %542 = math.tanh %541 : vector<1x32xf32>
    %543 = vector.extract_strided_slice %540 {offsets = [0, 0], sizes = [1, 32], strides = [1, 1]} : vector<1x96xf32> to vector<1x32xf32>
    %544 = vector.extract_strided_slice %540 {offsets = [0, 32], sizes = [1, 32], strides = [1, 1]} : vector<1x96xf32> to vector<1x32xf32>
    %545 = vector.extract_strided_slice %540 {offsets = [0, 64], sizes = [1, 32], strides = [1, 1]} : vector<1x96xf32> to vector<1x32xf32>
    %546 = arith.mulf %544, %462 : vector<1x32xf32>
    %547 = arith.mulf %543, %542 : vector<1x32xf32>
    %548 = arith.addf %546, %547 : vector<1x32xf32>
    %549 = math.tanh %548 : vector<1x32xf32>
    %550 = arith.mulf %545, %549 : vector<1x32xf32>
    %551 = tpu.concatenate %550, %485 in 1 : vector<1x32xf32>, vector<1x32xf32> -> vector<1x64xf32>
    %c104_163 = arith.constant 104 : index
    %c0_164 = arith.constant 0 : index
    %552 = vector.load %arg1[%c104_163, %c0_164] : memref<368x128xf32, #tpu.memory_space<vmem>>, vector<64x128xf32>
    %cst_165 = arith.constant dense<0.000000e+00> : vector<1x128xf32>
    %553 = tpu.matmul %551, %552, %cst_165 {dimension_numbers = #tpu.dot_dimension_numbers<[1], [0], [0], [1], [0, 0, 1, 1], [], []>} : vector<1x64xf32>, vector<64x128xf32>, vector<1x128xf32> -> vector<1x128xf32>
    %c168_166 = arith.constant 168 : index
    %c0_167 = arith.constant 0 : index
    %554 = vector.load %arg1[%c168_166, %c0_167] : memref<368x128xf32, #tpu.memory_space<vmem>>, vector<1x128xf32>
    %555 = arith.addf %553, %554 : vector<1x128xf32>
    %556 = vector.extract_strided_slice %555 {offsets = [0, 0], sizes = [1, 96], strides = [1, 1]} : vector<1x128xf32> to vector<1x96xf32>
    %557 = arith.negf %556 : vector<1x96xf32>
    %558 = math.exp %557 : vector<1x96xf32>
    %cst_168 = arith.constant 1.000000e+00 : f32
    %559 = vector.broadcast %cst_168 : f32 to vector<1x96xf32>
    %560 = arith.addf %559, %558 : vector<1x96xf32>
    %561 = arith.divf %559, %560 : vector<1x96xf32>
    %562 = vector.extract_strided_slice %555 {offsets = [0, 96], sizes = [1, 32], strides = [1, 1]} : vector<1x128xf32> to vector<1x32xf32>
    %563 = math.tanh %562 : vector<1x32xf32>
    %564 = vector.extract_strided_slice %561 {offsets = [0, 0], sizes = [1, 32], strides = [1, 1]} : vector<1x96xf32> to vector<1x32xf32>
    %565 = vector.extract_strided_slice %561 {offsets = [0, 32], sizes = [1, 32], strides = [1, 1]} : vector<1x96xf32> to vector<1x32xf32>
    %566 = vector.extract_strided_slice %561 {offsets = [0, 64], sizes = [1, 32], strides = [1, 1]} : vector<1x96xf32> to vector<1x32xf32>
    %567 = arith.mulf %565, %483 : vector<1x32xf32>
    %568 = arith.mulf %564, %563 : vector<1x32xf32>
    %569 = arith.addf %567, %568 : vector<1x32xf32>
    %570 = math.tanh %569 : vector<1x32xf32>
    %571 = arith.mulf %566, %570 : vector<1x32xf32>
    %c240_169 = arith.constant 240 : index
    %c0_170 = arith.constant 0 : index
    %572 = vector.load %arg1[%c240_169, %c0_170] : memref<368x128xf32, #tpu.memory_space<vmem>>, vector<1x128xf32>
    %573 = tpu.concatenate %571, %506 in 1 : vector<1x32xf32>, vector<1x32xf32> -> vector<1x64xf32>
    %c176_171 = arith.constant 176 : index
    %c0_172 = arith.constant 0 : index
    %574 = vector.load %arg1[%c176_171, %c0_172] : memref<368x128xf32, #tpu.memory_space<vmem>>, vector<64x128xf32>
    %cst_173 = arith.constant dense<0.000000e+00> : vector<1x128xf32>
    %575 = tpu.matmul %573, %574, %cst_173 {dimension_numbers = #tpu.dot_dimension_numbers<[1], [0], [0], [1], [0, 0, 1, 1], [], []>} : vector<1x64xf32>, vector<64x128xf32>, vector<1x128xf32> -> vector<1x128xf32>
    %576 = arith.addf %575, %572 : vector<1x128xf32>
    %577 = vector.extract_strided_slice %576 {offsets = [0, 0], sizes = [1, 96], strides = [1, 1]} : vector<1x128xf32> to vector<1x96xf32>
    %578 = arith.negf %577 : vector<1x96xf32>
    %579 = math.exp %578 : vector<1x96xf32>
    %cst_174 = arith.constant 1.000000e+00 : f32
    %580 = vector.broadcast %cst_174 : f32 to vector<1x96xf32>
    %581 = arith.addf %580, %579 : vector<1x96xf32>
    %582 = arith.divf %580, %581 : vector<1x96xf32>
    %583 = vector.extract_strided_slice %576 {offsets = [0, 96], sizes = [1, 32], strides = [1, 1]} : vector<1x128xf32> to vector<1x32xf32>
    %584 = math.tanh %583 : vector<1x32xf32>
    %585 = vector.extract_strided_slice %582 {offsets = [0, 0], sizes = [1, 32], strides = [1, 1]} : vector<1x96xf32> to vector<1x32xf32>
    %586 = vector.extract_strided_slice %582 {offsets = [0, 32], sizes = [1, 32], strides = [1, 1]} : vector<1x96xf32> to vector<1x32xf32>
    %587 = vector.extract_strided_slice %582 {offsets = [0, 64], sizes = [1, 32], strides = [1, 1]} : vector<1x96xf32> to vector<1x32xf32>
    %588 = arith.mulf %586, %504 : vector<1x32xf32>
    %589 = arith.mulf %585, %584 : vector<1x32xf32>
    %590 = arith.addf %588, %589 : vector<1x32xf32>
    %591 = math.tanh %590 : vector<1x32xf32>
    %592 = arith.mulf %587, %591 : vector<1x32xf32>
    %593 = tpu.concatenate %592, %527 in 1 : vector<1x32xf32>, vector<1x32xf32> -> vector<1x64xf32>
    %c256_175 = arith.constant 256 : index
    %c0_176 = arith.constant 0 : index
    %594 = vector.load %arg1[%c256_175, %c0_176] : memref<368x128xf32, #tpu.memory_space<vmem>>, vector<64x128xf32>
    %cst_177 = arith.constant dense<0.000000e+00> : vector<1x128xf32>
    %595 = tpu.matmul %593, %594, %cst_177 {dimension_numbers = #tpu.dot_dimension_numbers<[1], [0], [0], [1], [0, 0, 1, 1], [], []>} : vector<1x64xf32>, vector<64x128xf32>, vector<1x128xf32> -> vector<1x128xf32>
    %c320_178 = arith.constant 320 : index
    %c0_179 = arith.constant 0 : index
    %596 = vector.load %arg1[%c320_178, %c0_179] : memref<368x128xf32, #tpu.memory_space<vmem>>, vector<1x128xf32>
    %597 = arith.addf %595, %596 : vector<1x128xf32>
    %598 = vector.extract_strided_slice %597 {offsets = [0, 0], sizes = [1, 96], strides = [1, 1]} : vector<1x128xf32> to vector<1x96xf32>
    %599 = arith.negf %598 : vector<1x96xf32>
    %600 = math.exp %599 : vector<1x96xf32>
    %cst_180 = arith.constant 1.000000e+00 : f32
    %601 = vector.broadcast %cst_180 : f32 to vector<1x96xf32>
    %602 = arith.addf %601, %600 : vector<1x96xf32>
    %603 = arith.divf %601, %602 : vector<1x96xf32>
    %604 = vector.extract_strided_slice %597 {offsets = [0, 96], sizes = [1, 32], strides = [1, 1]} : vector<1x128xf32> to vector<1x32xf32>
    %605 = math.tanh %604 : vector<1x32xf32>
    %606 = vector.extract_strided_slice %603 {offsets = [0, 0], sizes = [1, 32], strides = [1, 1]} : vector<1x96xf32> to vector<1x32xf32>
    %607 = vector.extract_strided_slice %603 {offsets = [0, 32], sizes = [1, 32], strides = [1, 1]} : vector<1x96xf32> to vector<1x32xf32>
    %608 = vector.extract_strided_slice %603 {offsets = [0, 64], sizes = [1, 32], strides = [1, 1]} : vector<1x96xf32> to vector<1x32xf32>
    %609 = arith.mulf %607, %525 : vector<1x32xf32>
    %610 = arith.mulf %606, %605 : vector<1x32xf32>
    %611 = arith.addf %609, %610 : vector<1x32xf32>
    %612 = math.tanh %611 : vector<1x32xf32>
    %613 = arith.mulf %608, %612 : vector<1x32xf32>
    %c7_i32 = arith.constant 7 : i32
    %614 = arith.index_cast %c7_i32 : i32 to index
    %c0_181 = arith.constant 0 : index
    %615 = vector.load %arg4[%614, %c0_181] : memref<8x128xf32, #tpu.memory_space<vmem>>, vector<1x128xf32>
    %c64_182 = arith.constant 64 : index
    %c0_183 = arith.constant 0 : index
    %616 = vector.load %arg1[%c64_182, %c0_183] : memref<368x128xf32, #tpu.memory_space<vmem>>, vector<32x128xf32>
    %cst_184 = arith.constant dense<0.000000e+00> : vector<1x128xf32>
    %617 = tpu.matmul %550, %616, %cst_184 {dimension_numbers = #tpu.dot_dimension_numbers<[1], [0], [0], [1], [0, 0, 1, 1], [], []>} : vector<1x32xf32>, vector<32x128xf32>, vector<1x128xf32> -> vector<1x128xf32>
    %c96_185 = arith.constant 96 : index
    %c0_186 = arith.constant 0 : index
    %618 = vector.load %arg1[%c96_185, %c0_186] : memref<368x128xf32, #tpu.memory_space<vmem>>, vector<1x128xf32>
    %619 = arith.addf %617, %618 : vector<1x128xf32>
    %620 = arith.addf %619, %615 : vector<1x128xf32>
    %621 = vector.extract_strided_slice %620 {offsets = [0, 0], sizes = [1, 96], strides = [1, 1]} : vector<1x128xf32> to vector<1x96xf32>
    %622 = arith.negf %621 : vector<1x96xf32>
    %623 = math.exp %622 : vector<1x96xf32>
    %cst_187 = arith.constant 1.000000e+00 : f32
    %624 = vector.broadcast %cst_187 : f32 to vector<1x96xf32>
    %625 = arith.addf %624, %623 : vector<1x96xf32>
    %626 = arith.divf %624, %625 : vector<1x96xf32>
    %627 = vector.extract_strided_slice %620 {offsets = [0, 96], sizes = [1, 32], strides = [1, 1]} : vector<1x128xf32> to vector<1x32xf32>
    %628 = math.tanh %627 : vector<1x32xf32>
    %629 = vector.extract_strided_slice %626 {offsets = [0, 0], sizes = [1, 32], strides = [1, 1]} : vector<1x96xf32> to vector<1x32xf32>
    %630 = vector.extract_strided_slice %626 {offsets = [0, 32], sizes = [1, 32], strides = [1, 1]} : vector<1x96xf32> to vector<1x32xf32>
    %631 = vector.extract_strided_slice %626 {offsets = [0, 64], sizes = [1, 32], strides = [1, 1]} : vector<1x96xf32> to vector<1x32xf32>
    %632 = arith.mulf %630, %548 : vector<1x32xf32>
    %633 = arith.mulf %629, %628 : vector<1x32xf32>
    %634 = arith.addf %632, %633 : vector<1x32xf32>
    %635 = math.tanh %634 : vector<1x32xf32>
    %636 = arith.mulf %631, %635 : vector<1x32xf32>
    %637 = tpu.concatenate %636, %571 in 1 : vector<1x32xf32>, vector<1x32xf32> -> vector<1x64xf32>
    %c104_188 = arith.constant 104 : index
    %c0_189 = arith.constant 0 : index
    %638 = vector.load %arg1[%c104_188, %c0_189] : memref<368x128xf32, #tpu.memory_space<vmem>>, vector<64x128xf32>
    %cst_190 = arith.constant dense<0.000000e+00> : vector<1x128xf32>
    %639 = tpu.matmul %637, %638, %cst_190 {dimension_numbers = #tpu.dot_dimension_numbers<[1], [0], [0], [1], [0, 0, 1, 1], [], []>} : vector<1x64xf32>, vector<64x128xf32>, vector<1x128xf32> -> vector<1x128xf32>
    %c168_191 = arith.constant 168 : index
    %c0_192 = arith.constant 0 : index
    %640 = vector.load %arg1[%c168_191, %c0_192] : memref<368x128xf32, #tpu.memory_space<vmem>>, vector<1x128xf32>
    %641 = arith.addf %639, %640 : vector<1x128xf32>
    %642 = vector.extract_strided_slice %641 {offsets = [0, 0], sizes = [1, 96], strides = [1, 1]} : vector<1x128xf32> to vector<1x96xf32>
    %643 = arith.negf %642 : vector<1x96xf32>
    %644 = math.exp %643 : vector<1x96xf32>
    %cst_193 = arith.constant 1.000000e+00 : f32
    %645 = vector.broadcast %cst_193 : f32 to vector<1x96xf32>
    %646 = arith.addf %645, %644 : vector<1x96xf32>
    %647 = arith.divf %645, %646 : vector<1x96xf32>
    %648 = vector.extract_strided_slice %641 {offsets = [0, 96], sizes = [1, 32], strides = [1, 1]} : vector<1x128xf32> to vector<1x32xf32>
    %649 = math.tanh %648 : vector<1x32xf32>
    %650 = vector.extract_strided_slice %647 {offsets = [0, 0], sizes = [1, 32], strides = [1, 1]} : vector<1x96xf32> to vector<1x32xf32>
    %651 = vector.extract_strided_slice %647 {offsets = [0, 32], sizes = [1, 32], strides = [1, 1]} : vector<1x96xf32> to vector<1x32xf32>
    %652 = vector.extract_strided_slice %647 {offsets = [0, 64], sizes = [1, 32], strides = [1, 1]} : vector<1x96xf32> to vector<1x32xf32>
    %653 = arith.mulf %651, %569 : vector<1x32xf32>
    %654 = arith.mulf %650, %649 : vector<1x32xf32>
    %655 = arith.addf %653, %654 : vector<1x32xf32>
    %656 = math.tanh %655 : vector<1x32xf32>
    %657 = arith.mulf %652, %656 : vector<1x32xf32>
    %c240_194 = arith.constant 240 : index
    %c0_195 = arith.constant 0 : index
    %658 = vector.load %arg1[%c240_194, %c0_195] : memref<368x128xf32, #tpu.memory_space<vmem>>, vector<1x128xf32>
    %659 = tpu.concatenate %657, %592 in 1 : vector<1x32xf32>, vector<1x32xf32> -> vector<1x64xf32>
    %c176_196 = arith.constant 176 : index
    %c0_197 = arith.constant 0 : index
    %660 = vector.load %arg1[%c176_196, %c0_197] : memref<368x128xf32, #tpu.memory_space<vmem>>, vector<64x128xf32>
    %cst_198 = arith.constant dense<0.000000e+00> : vector<1x128xf32>
    %661 = tpu.matmul %659, %660, %cst_198 {dimension_numbers = #tpu.dot_dimension_numbers<[1], [0], [0], [1], [0, 0, 1, 1], [], []>} : vector<1x64xf32>, vector<64x128xf32>, vector<1x128xf32> -> vector<1x128xf32>
    %662 = arith.addf %661, %658 : vector<1x128xf32>
    %663 = vector.extract_strided_slice %662 {offsets = [0, 0], sizes = [1, 96], strides = [1, 1]} : vector<1x128xf32> to vector<1x96xf32>
    %664 = arith.negf %663 : vector<1x96xf32>
    %665 = math.exp %664 : vector<1x96xf32>
    %cst_199 = arith.constant 1.000000e+00 : f32
    %666 = vector.broadcast %cst_199 : f32 to vector<1x96xf32>
    %667 = arith.addf %666, %665 : vector<1x96xf32>
    %668 = arith.divf %666, %667 : vector<1x96xf32>
    %669 = vector.extract_strided_slice %662 {offsets = [0, 96], sizes = [1, 32], strides = [1, 1]} : vector<1x128xf32> to vector<1x32xf32>
    %670 = math.tanh %669 : vector<1x32xf32>
    %671 = vector.extract_strided_slice %668 {offsets = [0, 0], sizes = [1, 32], strides = [1, 1]} : vector<1x96xf32> to vector<1x32xf32>
    %672 = vector.extract_strided_slice %668 {offsets = [0, 32], sizes = [1, 32], strides = [1, 1]} : vector<1x96xf32> to vector<1x32xf32>
    %673 = vector.extract_strided_slice %668 {offsets = [0, 64], sizes = [1, 32], strides = [1, 1]} : vector<1x96xf32> to vector<1x32xf32>
    %674 = arith.mulf %672, %590 : vector<1x32xf32>
    %675 = arith.mulf %671, %670 : vector<1x32xf32>
    %676 = arith.addf %674, %675 : vector<1x32xf32>
    %677 = math.tanh %676 : vector<1x32xf32>
    %678 = arith.mulf %673, %677 : vector<1x32xf32>
    %679 = tpu.concatenate %678, %613 in 1 : vector<1x32xf32>, vector<1x32xf32> -> vector<1x64xf32>
    %c256_200 = arith.constant 256 : index
    %c0_201 = arith.constant 0 : index
    %680 = vector.load %arg1[%c256_200, %c0_201] : memref<368x128xf32, #tpu.memory_space<vmem>>, vector<64x128xf32>
    %cst_202 = arith.constant dense<0.000000e+00> : vector<1x128xf32>
    %681 = tpu.matmul %679, %680, %cst_202 {dimension_numbers = #tpu.dot_dimension_numbers<[1], [0], [0], [1], [0, 0, 1, 1], [], []>} : vector<1x64xf32>, vector<64x128xf32>, vector<1x128xf32> -> vector<1x128xf32>
    %c320_203 = arith.constant 320 : index
    %c0_204 = arith.constant 0 : index
    %682 = vector.load %arg1[%c320_203, %c0_204] : memref<368x128xf32, #tpu.memory_space<vmem>>, vector<1x128xf32>
    %683 = arith.addf %681, %682 : vector<1x128xf32>
    %684 = vector.extract_strided_slice %683 {offsets = [0, 0], sizes = [1, 96], strides = [1, 1]} : vector<1x128xf32> to vector<1x96xf32>
    %685 = arith.negf %684 : vector<1x96xf32>
    %686 = math.exp %685 : vector<1x96xf32>
    %cst_205 = arith.constant 1.000000e+00 : f32
    %687 = vector.broadcast %cst_205 : f32 to vector<1x96xf32>
    %688 = arith.addf %687, %686 : vector<1x96xf32>
    %689 = arith.divf %687, %688 : vector<1x96xf32>
    %690 = vector.extract_strided_slice %683 {offsets = [0, 96], sizes = [1, 32], strides = [1, 1]} : vector<1x128xf32> to vector<1x32xf32>
    %691 = math.tanh %690 : vector<1x32xf32>
    %692 = vector.extract_strided_slice %689 {offsets = [0, 0], sizes = [1, 32], strides = [1, 1]} : vector<1x96xf32> to vector<1x32xf32>
    %693 = vector.extract_strided_slice %689 {offsets = [0, 32], sizes = [1, 32], strides = [1, 1]} : vector<1x96xf32> to vector<1x32xf32>
    %694 = vector.extract_strided_slice %689 {offsets = [0, 64], sizes = [1, 32], strides = [1, 1]} : vector<1x96xf32> to vector<1x32xf32>
    %695 = arith.mulf %693, %611 : vector<1x32xf32>
    %696 = arith.mulf %692, %691 : vector<1x32xf32>
    %697 = arith.addf %695, %696 : vector<1x32xf32>
    %698 = math.tanh %697 : vector<1x32xf32>
    %699 = arith.mulf %694, %698 : vector<1x32xf32>
    %c8_i32 = arith.constant 8 : i32
    %c0_i32_206 = arith.constant 0 : i32
    %c64_207 = arith.constant 64 : index
    %c0_208 = arith.constant 0 : index
    %700 = vector.load %arg1[%c64_207, %c0_208] : memref<368x128xf32, #tpu.memory_space<vmem>>, vector<32x128xf32>
    %cst_209 = arith.constant dense<0.000000e+00> : vector<1x128xf32>
    %701 = tpu.matmul %636, %700, %cst_209 {dimension_numbers = #tpu.dot_dimension_numbers<[1], [0], [0], [1], [0, 0, 1, 1], [], []>} : vector<1x32xf32>, vector<32x128xf32>, vector<1x128xf32> -> vector<1x128xf32>
    %c96_210 = arith.constant 96 : index
    %c0_211 = arith.constant 0 : index
    %702 = vector.load %arg1[%c96_210, %c0_211] : memref<368x128xf32, #tpu.memory_space<vmem>>, vector<1x128xf32>
    %703 = arith.addf %701, %702 : vector<1x128xf32>
    %704 = vector.extract_strided_slice %703 {offsets = [0, 0], sizes = [1, 96], strides = [1, 1]} : vector<1x128xf32> to vector<1x96xf32>
    %705 = arith.negf %704 : vector<1x96xf32>
    %706 = math.exp %705 : vector<1x96xf32>
    %cst_212 = arith.constant 1.000000e+00 : f32
    %707 = vector.broadcast %cst_212 : f32 to vector<1x96xf32>
    %708 = arith.addf %707, %706 : vector<1x96xf32>
    %709 = arith.divf %707, %708 : vector<1x96xf32>
    %710 = vector.extract_strided_slice %703 {offsets = [0, 96], sizes = [1, 32], strides = [1, 1]} : vector<1x128xf32> to vector<1x32xf32>
    %711 = math.tanh %710 : vector<1x32xf32>
    %712 = vector.extract_strided_slice %709 {offsets = [0, 0], sizes = [1, 32], strides = [1, 1]} : vector<1x96xf32> to vector<1x32xf32>
    %713 = vector.extract_strided_slice %709 {offsets = [0, 32], sizes = [1, 32], strides = [1, 1]} : vector<1x96xf32> to vector<1x32xf32>
    %714 = vector.extract_strided_slice %709 {offsets = [0, 64], sizes = [1, 32], strides = [1, 1]} : vector<1x96xf32> to vector<1x32xf32>
    %715 = arith.mulf %713, %634 : vector<1x32xf32>
    %716 = arith.mulf %712, %711 : vector<1x32xf32>
    %717 = arith.addf %715, %716 : vector<1x32xf32>
    %718 = math.tanh %717 : vector<1x32xf32>
    %719 = arith.mulf %714, %718 : vector<1x32xf32>
    %720 = tpu.concatenate %719, %657 in 1 : vector<1x32xf32>, vector<1x32xf32> -> vector<1x64xf32>
    %c104_213 = arith.constant 104 : index
    %c0_214 = arith.constant 0 : index
    %721 = vector.load %arg1[%c104_213, %c0_214] : memref<368x128xf32, #tpu.memory_space<vmem>>, vector<64x128xf32>
    %cst_215 = arith.constant dense<0.000000e+00> : vector<1x128xf32>
    %722 = tpu.matmul %720, %721, %cst_215 {dimension_numbers = #tpu.dot_dimension_numbers<[1], [0], [0], [1], [0, 0, 1, 1], [], []>} : vector<1x64xf32>, vector<64x128xf32>, vector<1x128xf32> -> vector<1x128xf32>
    %c168_216 = arith.constant 168 : index
    %c0_217 = arith.constant 0 : index
    %723 = vector.load %arg1[%c168_216, %c0_217] : memref<368x128xf32, #tpu.memory_space<vmem>>, vector<1x128xf32>
    %724 = arith.addf %722, %723 : vector<1x128xf32>
    %725 = vector.extract_strided_slice %724 {offsets = [0, 0], sizes = [1, 96], strides = [1, 1]} : vector<1x128xf32> to vector<1x96xf32>
    %726 = arith.negf %725 : vector<1x96xf32>
    %727 = math.exp %726 : vector<1x96xf32>
    %cst_218 = arith.constant 1.000000e+00 : f32
    %728 = vector.broadcast %cst_218 : f32 to vector<1x96xf32>
    %729 = arith.addf %728, %727 : vector<1x96xf32>
    %730 = arith.divf %728, %729 : vector<1x96xf32>
    %731 = vector.extract_strided_slice %724 {offsets = [0, 96], sizes = [1, 32], strides = [1, 1]} : vector<1x128xf32> to vector<1x32xf32>
    %732 = math.tanh %731 : vector<1x32xf32>
    %733 = vector.extract_strided_slice %730 {offsets = [0, 0], sizes = [1, 32], strides = [1, 1]} : vector<1x96xf32> to vector<1x32xf32>
    %734 = vector.extract_strided_slice %730 {offsets = [0, 32], sizes = [1, 32], strides = [1, 1]} : vector<1x96xf32> to vector<1x32xf32>
    %735 = vector.extract_strided_slice %730 {offsets = [0, 64], sizes = [1, 32], strides = [1, 1]} : vector<1x96xf32> to vector<1x32xf32>
    %736 = arith.mulf %734, %655 : vector<1x32xf32>
    %737 = arith.mulf %733, %732 : vector<1x32xf32>
    %738 = arith.addf %736, %737 : vector<1x32xf32>
    %739 = math.tanh %738 : vector<1x32xf32>
    %740 = arith.mulf %735, %739 : vector<1x32xf32>
    %c248 = arith.constant 248 : index
    %c0_219 = arith.constant 0 : index
    %741 = vector.load %arg1[%c248, %c0_219] : memref<368x128xf32, #tpu.memory_space<vmem>>, vector<1x128xf32>
    %742 = tpu.concatenate %740, %678 in 1 : vector<1x32xf32>, vector<1x32xf32> -> vector<1x64xf32>
    %c176_220 = arith.constant 176 : index
    %c0_221 = arith.constant 0 : index
    %743 = vector.load %arg1[%c176_220, %c0_221] : memref<368x128xf32, #tpu.memory_space<vmem>>, vector<64x128xf32>
    %cst_222 = arith.constant dense<0.000000e+00> : vector<1x128xf32>
    %744 = tpu.matmul %742, %743, %cst_222 {dimension_numbers = #tpu.dot_dimension_numbers<[1], [0], [0], [1], [0, 0, 1, 1], [], []>} : vector<1x64xf32>, vector<64x128xf32>, vector<1x128xf32> -> vector<1x128xf32>
    %745 = arith.addf %744, %741 : vector<1x128xf32>
    %746 = vector.extract_strided_slice %745 {offsets = [0, 0], sizes = [1, 96], strides = [1, 1]} : vector<1x128xf32> to vector<1x96xf32>
    %747 = arith.negf %746 : vector<1x96xf32>
    %748 = math.exp %747 : vector<1x96xf32>
    %cst_223 = arith.constant 1.000000e+00 : f32
    %749 = vector.broadcast %cst_223 : f32 to vector<1x96xf32>
    %750 = arith.addf %749, %748 : vector<1x96xf32>
    %751 = arith.divf %749, %750 : vector<1x96xf32>
    %752 = vector.extract_strided_slice %745 {offsets = [0, 96], sizes = [1, 32], strides = [1, 1]} : vector<1x128xf32> to vector<1x32xf32>
    %753 = math.tanh %752 : vector<1x32xf32>
    %754 = vector.extract_strided_slice %751 {offsets = [0, 0], sizes = [1, 32], strides = [1, 1]} : vector<1x96xf32> to vector<1x32xf32>
    %755 = vector.extract_strided_slice %751 {offsets = [0, 32], sizes = [1, 32], strides = [1, 1]} : vector<1x96xf32> to vector<1x32xf32>
    %756 = vector.extract_strided_slice %751 {offsets = [0, 64], sizes = [1, 32], strides = [1, 1]} : vector<1x96xf32> to vector<1x32xf32>
    %757 = arith.mulf %755, %676 : vector<1x32xf32>
    %758 = arith.mulf %754, %753 : vector<1x32xf32>
    %759 = arith.addf %757, %758 : vector<1x32xf32>
    %760 = math.tanh %759 : vector<1x32xf32>
    %761 = arith.mulf %756, %760 : vector<1x32xf32>
    %762 = tpu.concatenate %761, %699 in 1 : vector<1x32xf32>, vector<1x32xf32> -> vector<1x64xf32>
    %c256_224 = arith.constant 256 : index
    %c0_225 = arith.constant 0 : index
    %763 = vector.load %arg1[%c256_224, %c0_225] : memref<368x128xf32, #tpu.memory_space<vmem>>, vector<64x128xf32>
    %cst_226 = arith.constant dense<0.000000e+00> : vector<1x128xf32>
    %764 = tpu.matmul %762, %763, %cst_226 {dimension_numbers = #tpu.dot_dimension_numbers<[1], [0], [0], [1], [0, 0, 1, 1], [], []>} : vector<1x64xf32>, vector<64x128xf32>, vector<1x128xf32> -> vector<1x128xf32>
    %c320_227 = arith.constant 320 : index
    %c0_228 = arith.constant 0 : index
    %765 = vector.load %arg1[%c320_227, %c0_228] : memref<368x128xf32, #tpu.memory_space<vmem>>, vector<1x128xf32>
    %766 = arith.addf %764, %765 : vector<1x128xf32>
    %767 = vector.extract_strided_slice %766 {offsets = [0, 0], sizes = [1, 96], strides = [1, 1]} : vector<1x128xf32> to vector<1x96xf32>
    %768 = arith.negf %767 : vector<1x96xf32>
    %769 = math.exp %768 : vector<1x96xf32>
    %cst_229 = arith.constant 1.000000e+00 : f32
    %770 = vector.broadcast %cst_229 : f32 to vector<1x96xf32>
    %771 = arith.addf %770, %769 : vector<1x96xf32>
    %772 = arith.divf %770, %771 : vector<1x96xf32>
    %773 = vector.extract_strided_slice %766 {offsets = [0, 96], sizes = [1, 32], strides = [1, 1]} : vector<1x128xf32> to vector<1x32xf32>
    %774 = math.tanh %773 : vector<1x32xf32>
    %775 = vector.extract_strided_slice %772 {offsets = [0, 0], sizes = [1, 32], strides = [1, 1]} : vector<1x96xf32> to vector<1x32xf32>
    %776 = vector.extract_strided_slice %772 {offsets = [0, 32], sizes = [1, 32], strides = [1, 1]} : vector<1x96xf32> to vector<1x32xf32>
    %777 = vector.extract_strided_slice %772 {offsets = [0, 64], sizes = [1, 32], strides = [1, 1]} : vector<1x96xf32> to vector<1x32xf32>
    %778 = arith.mulf %776, %697 : vector<1x32xf32>
    %779 = arith.mulf %775, %774 : vector<1x32xf32>
    %780 = arith.addf %778, %779 : vector<1x32xf32>
    %781 = math.tanh %780 : vector<1x32xf32>
    %782 = arith.mulf %777, %781 : vector<1x32xf32>
    %783 = arith.index_cast %c0_i32_206 : i32 to index
    %c0_230 = arith.constant 0 : index
    %784 = vector.load %arg5[%783, %c0_230] : memref<5x32xf32, #tpu.memory_space<vmem>>, vector<1x32xf32>
    tpu.vector_store %arg5[%783, %c0_230], %782 {strides = array<i32>} : memref<5x32xf32, #tpu.memory_space<vmem>>, vector<1x32xf32>,
    %c1_i32_231 = arith.constant 1 : i32
    %c64_232 = arith.constant 64 : index
    %c0_233 = arith.constant 0 : index
    %785 = vector.load %arg1[%c64_232, %c0_233] : memref<368x128xf32, #tpu.memory_space<vmem>>, vector<32x128xf32>
    %cst_234 = arith.constant dense<0.000000e+00> : vector<1x128xf32>
    %786 = tpu.matmul %719, %785, %cst_234 {dimension_numbers = #tpu.dot_dimension_numbers<[1], [0], [0], [1], [0, 0, 1, 1], [], []>} : vector<1x32xf32>, vector<32x128xf32>, vector<1x128xf32> -> vector<1x128xf32>
    %c96_235 = arith.constant 96 : index
    %c0_236 = arith.constant 0 : index
    %787 = vector.load %arg1[%c96_235, %c0_236] : memref<368x128xf32, #tpu.memory_space<vmem>>, vector<1x128xf32>
    %788 = arith.addf %786, %787 : vector<1x128xf32>
    %789 = vector.extract_strided_slice %788 {offsets = [0, 0], sizes = [1, 96], strides = [1, 1]} : vector<1x128xf32> to vector<1x96xf32>
    %790 = arith.negf %789 : vector<1x96xf32>
    %791 = math.exp %790 : vector<1x96xf32>
    %cst_237 = arith.constant 1.000000e+00 : f32
    %792 = vector.broadcast %cst_237 : f32 to vector<1x96xf32>
    %793 = arith.addf %792, %791 : vector<1x96xf32>
    %794 = arith.divf %792, %793 : vector<1x96xf32>
    %795 = vector.extract_strided_slice %788 {offsets = [0, 96], sizes = [1, 32], strides = [1, 1]} : vector<1x128xf32> to vector<1x32xf32>
    %796 = math.tanh %795 : vector<1x32xf32>
    %797 = vector.extract_strided_slice %794 {offsets = [0, 0], sizes = [1, 32], strides = [1, 1]} : vector<1x96xf32> to vector<1x32xf32>
    %798 = vector.extract_strided_slice %794 {offsets = [0, 32], sizes = [1, 32], strides = [1, 1]} : vector<1x96xf32> to vector<1x32xf32>
    %799 = vector.extract_strided_slice %794 {offsets = [0, 64], sizes = [1, 32], strides = [1, 1]} : vector<1x96xf32> to vector<1x32xf32>
    %800 = arith.mulf %798, %717 : vector<1x32xf32>
    %801 = arith.mulf %797, %796 : vector<1x32xf32>
    %802 = arith.addf %800, %801 : vector<1x32xf32>
    %803 = math.tanh %802 : vector<1x32xf32>
    %804 = arith.mulf %799, %803 : vector<1x32xf32>
    %805 = tpu.concatenate %804, %740 in 1 : vector<1x32xf32>, vector<1x32xf32> -> vector<1x64xf32>
    %c104_238 = arith.constant 104 : index
    %c0_239 = arith.constant 0 : index
    %806 = vector.load %arg1[%c104_238, %c0_239] : memref<368x128xf32, #tpu.memory_space<vmem>>, vector<64x128xf32>
    %cst_240 = arith.constant dense<0.000000e+00> : vector<1x128xf32>
    %807 = tpu.matmul %805, %806, %cst_240 {dimension_numbers = #tpu.dot_dimension_numbers<[1], [0], [0], [1], [0, 0, 1, 1], [], []>} : vector<1x64xf32>, vector<64x128xf32>, vector<1x128xf32> -> vector<1x128xf32>
    %c168_241 = arith.constant 168 : index
    %c0_242 = arith.constant 0 : index
    %808 = vector.load %arg1[%c168_241, %c0_242] : memref<368x128xf32, #tpu.memory_space<vmem>>, vector<1x128xf32>
    %809 = arith.addf %807, %808 : vector<1x128xf32>
    %810 = vector.extract_strided_slice %809 {offsets = [0, 0], sizes = [1, 96], strides = [1, 1]} : vector<1x128xf32> to vector<1x96xf32>
    %811 = arith.negf %810 : vector<1x96xf32>
    %812 = math.exp %811 : vector<1x96xf32>
    %cst_243 = arith.constant 1.000000e+00 : f32
    %813 = vector.broadcast %cst_243 : f32 to vector<1x96xf32>
    %814 = arith.addf %813, %812 : vector<1x96xf32>
    %815 = arith.divf %813, %814 : vector<1x96xf32>
    %816 = vector.extract_strided_slice %809 {offsets = [0, 96], sizes = [1, 32], strides = [1, 1]} : vector<1x128xf32> to vector<1x32xf32>
    %817 = math.tanh %816 : vector<1x32xf32>
    %818 = vector.extract_strided_slice %815 {offsets = [0, 0], sizes = [1, 32], strides = [1, 1]} : vector<1x96xf32> to vector<1x32xf32>
    %819 = vector.extract_strided_slice %815 {offsets = [0, 32], sizes = [1, 32], strides = [1, 1]} : vector<1x96xf32> to vector<1x32xf32>
    %820 = vector.extract_strided_slice %815 {offsets = [0, 64], sizes = [1, 32], strides = [1, 1]} : vector<1x96xf32> to vector<1x32xf32>
    %821 = arith.mulf %819, %738 : vector<1x32xf32>
    %822 = arith.mulf %818, %817 : vector<1x32xf32>
    %823 = arith.addf %821, %822 : vector<1x32xf32>
    %824 = math.tanh %823 : vector<1x32xf32>
    %825 = arith.mulf %820, %824 : vector<1x32xf32>
    %c248_244 = arith.constant 248 : index
    %c0_245 = arith.constant 0 : index
    %826 = vector.load %arg1[%c248_244, %c0_245] : memref<368x128xf32, #tpu.memory_space<vmem>>, vector<1x128xf32>
    %827 = tpu.concatenate %825, %761 in 1 : vector<1x32xf32>, vector<1x32xf32> -> vector<1x64xf32>
    %c176_246 = arith.constant 176 : index
    %c0_247 = arith.constant 0 : index
    %828 = vector.load %arg1[%c176_246, %c0_247] : memref<368x128xf32, #tpu.memory_space<vmem>>, vector<64x128xf32>
    %cst_248 = arith.constant dense<0.000000e+00> : vector<1x128xf32>
    %829 = tpu.matmul %827, %828, %cst_248 {dimension_numbers = #tpu.dot_dimension_numbers<[1], [0], [0], [1], [0, 0, 1, 1], [], []>} : vector<1x64xf32>, vector<64x128xf32>, vector<1x128xf32> -> vector<1x128xf32>
    %830 = arith.addf %829, %826 : vector<1x128xf32>
    %831 = vector.extract_strided_slice %830 {offsets = [0, 0], sizes = [1, 96], strides = [1, 1]} : vector<1x128xf32> to vector<1x96xf32>
    %832 = arith.negf %831 : vector<1x96xf32>
    %833 = math.exp %832 : vector<1x96xf32>
    %cst_249 = arith.constant 1.000000e+00 : f32
    %834 = vector.broadcast %cst_249 : f32 to vector<1x96xf32>
    %835 = arith.addf %834, %833 : vector<1x96xf32>
    %836 = arith.divf %834, %835 : vector<1x96xf32>
    %837 = vector.extract_strided_slice %830 {offsets = [0, 96], sizes = [1, 32], strides = [1, 1]} : vector<1x128xf32> to vector<1x32xf32>
    %838 = math.tanh %837 : vector<1x32xf32>
    %839 = vector.extract_strided_slice %836 {offsets = [0, 0], sizes = [1, 32], strides = [1, 1]} : vector<1x96xf32> to vector<1x32xf32>
    %840 = vector.extract_strided_slice %836 {offsets = [0, 32], sizes = [1, 32], strides = [1, 1]} : vector<1x96xf32> to vector<1x32xf32>
    %841 = vector.extract_strided_slice %836 {offsets = [0, 64], sizes = [1, 32], strides = [1, 1]} : vector<1x96xf32> to vector<1x32xf32>
    %842 = arith.mulf %840, %759 : vector<1x32xf32>
    %843 = arith.mulf %839, %838 : vector<1x32xf32>
    %844 = arith.addf %842, %843 : vector<1x32xf32>
    %845 = math.tanh %844 : vector<1x32xf32>
    %846 = arith.mulf %841, %845 : vector<1x32xf32>
    %847 = tpu.concatenate %846, %782 in 1 : vector<1x32xf32>, vector<1x32xf32> -> vector<1x64xf32>
    %c256_250 = arith.constant 256 : index
    %c0_251 = arith.constant 0 : index
    %848 = vector.load %arg1[%c256_250, %c0_251] : memref<368x128xf32, #tpu.memory_space<vmem>>, vector<64x128xf32>
    %cst_252 = arith.constant dense<0.000000e+00> : vector<1x128xf32>
    %849 = tpu.matmul %847, %848, %cst_252 {dimension_numbers = #tpu.dot_dimension_numbers<[1], [0], [0], [1], [0, 0, 1, 1], [], []>} : vector<1x64xf32>, vector<64x128xf32>, vector<1x128xf32> -> vector<1x128xf32>
    %c320_253 = arith.constant 320 : index
    %c0_254 = arith.constant 0 : index
    %850 = vector.load %arg1[%c320_253, %c0_254] : memref<368x128xf32, #tpu.memory_space<vmem>>, vector<1x128xf32>
    %851 = arith.addf %849, %850 : vector<1x128xf32>
    %852 = vector.extract_strided_slice %851 {offsets = [0, 0], sizes = [1, 96], strides = [1, 1]} : vector<1x128xf32> to vector<1x96xf32>
    %853 = arith.negf %852 : vector<1x96xf32>
    %854 = math.exp %853 : vector<1x96xf32>
    %cst_255 = arith.constant 1.000000e+00 : f32
    %855 = vector.broadcast %cst_255 : f32 to vector<1x96xf32>
    %856 = arith.addf %855, %854 : vector<1x96xf32>
    %857 = arith.divf %855, %856 : vector<1x96xf32>
    %858 = vector.extract_strided_slice %851 {offsets = [0, 96], sizes = [1, 32], strides = [1, 1]} : vector<1x128xf32> to vector<1x32xf32>
    %859 = math.tanh %858 : vector<1x32xf32>
    %860 = vector.extract_strided_slice %857 {offsets = [0, 0], sizes = [1, 32], strides = [1, 1]} : vector<1x96xf32> to vector<1x32xf32>
    %861 = vector.extract_strided_slice %857 {offsets = [0, 32], sizes = [1, 32], strides = [1, 1]} : vector<1x96xf32> to vector<1x32xf32>
    %862 = vector.extract_strided_slice %857 {offsets = [0, 64], sizes = [1, 32], strides = [1, 1]} : vector<1x96xf32> to vector<1x32xf32>
    %863 = arith.mulf %861, %780 : vector<1x32xf32>
    %864 = arith.mulf %860, %859 : vector<1x32xf32>
    %865 = arith.addf %863, %864 : vector<1x32xf32>
    %866 = math.tanh %865 : vector<1x32xf32>
    %867 = arith.mulf %862, %866 : vector<1x32xf32>
    %868 = arith.index_cast %c1_i32_231 : i32 to index
    %c0_256 = arith.constant 0 : index
    %869 = vector.load %arg5[%868, %c0_256] : memref<5x32xf32, #tpu.memory_space<vmem>>, vector<1x32xf32>
    tpu.vector_store %arg5[%868, %c0_256], %867 {strides = array<i32>} : memref<5x32xf32, #tpu.memory_space<vmem>>, vector<1x32xf32>,
    %c2_i32_257 = arith.constant 2 : i32
    %c64_258 = arith.constant 64 : index
    %c0_259 = arith.constant 0 : index
    %870 = vector.load %arg1[%c64_258, %c0_259] : memref<368x128xf32, #tpu.memory_space<vmem>>, vector<32x128xf32>
    %cst_260 = arith.constant dense<0.000000e+00> : vector<1x128xf32>
    %871 = tpu.matmul %804, %870, %cst_260 {dimension_numbers = #tpu.dot_dimension_numbers<[1], [0], [0], [1], [0, 0, 1, 1], [], []>} : vector<1x32xf32>, vector<32x128xf32>, vector<1x128xf32> -> vector<1x128xf32>
    %c96_261 = arith.constant 96 : index
    %c0_262 = arith.constant 0 : index
    %872 = vector.load %arg1[%c96_261, %c0_262] : memref<368x128xf32, #tpu.memory_space<vmem>>, vector<1x128xf32>
    %873 = arith.addf %871, %872 : vector<1x128xf32>
    %874 = vector.extract_strided_slice %873 {offsets = [0, 0], sizes = [1, 96], strides = [1, 1]} : vector<1x128xf32> to vector<1x96xf32>
    %875 = arith.negf %874 : vector<1x96xf32>
    %876 = math.exp %875 : vector<1x96xf32>
    %cst_263 = arith.constant 1.000000e+00 : f32
    %877 = vector.broadcast %cst_263 : f32 to vector<1x96xf32>
    %878 = arith.addf %877, %876 : vector<1x96xf32>
    %879 = arith.divf %877, %878 : vector<1x96xf32>
    %880 = vector.extract_strided_slice %873 {offsets = [0, 96], sizes = [1, 32], strides = [1, 1]} : vector<1x128xf32> to vector<1x32xf32>
    %881 = math.tanh %880 : vector<1x32xf32>
    %882 = vector.extract_strided_slice %879 {offsets = [0, 0], sizes = [1, 32], strides = [1, 1]} : vector<1x96xf32> to vector<1x32xf32>
    %883 = vector.extract_strided_slice %879 {offsets = [0, 32], sizes = [1, 32], strides = [1, 1]} : vector<1x96xf32> to vector<1x32xf32>
    %884 = vector.extract_strided_slice %879 {offsets = [0, 64], sizes = [1, 32], strides = [1, 1]} : vector<1x96xf32> to vector<1x32xf32>
    %885 = arith.mulf %883, %802 : vector<1x32xf32>
    %886 = arith.mulf %882, %881 : vector<1x32xf32>
    %887 = arith.addf %885, %886 : vector<1x32xf32>
    %888 = math.tanh %887 : vector<1x32xf32>
    %889 = arith.mulf %884, %888 : vector<1x32xf32>
    %890 = tpu.concatenate %889, %825 in 1 : vector<1x32xf32>, vector<1x32xf32> -> vector<1x64xf32>
    %c104_264 = arith.constant 104 : index
    %c0_265 = arith.constant 0 : index
    %891 = vector.load %arg1[%c104_264, %c0_265] : memref<368x128xf32, #tpu.memory_space<vmem>>, vector<64x128xf32>
    %cst_266 = arith.constant dense<0.000000e+00> : vector<1x128xf32>
    %892 = tpu.matmul %890, %891, %cst_266 {dimension_numbers = #tpu.dot_dimension_numbers<[1], [0], [0], [1], [0, 0, 1, 1], [], []>} : vector<1x64xf32>, vector<64x128xf32>, vector<1x128xf32> -> vector<1x128xf32>
    %c168_267 = arith.constant 168 : index
    %c0_268 = arith.constant 0 : index
    %893 = vector.load %arg1[%c168_267, %c0_268] : memref<368x128xf32, #tpu.memory_space<vmem>>, vector<1x128xf32>
    %894 = arith.addf %892, %893 : vector<1x128xf32>
    %895 = vector.extract_strided_slice %894 {offsets = [0, 0], sizes = [1, 96], strides = [1, 1]} : vector<1x128xf32> to vector<1x96xf32>
    %896 = arith.negf %895 : vector<1x96xf32>
    %897 = math.exp %896 : vector<1x96xf32>
    %cst_269 = arith.constant 1.000000e+00 : f32
    %898 = vector.broadcast %cst_269 : f32 to vector<1x96xf32>
    %899 = arith.addf %898, %897 : vector<1x96xf32>
    %900 = arith.divf %898, %899 : vector<1x96xf32>
    %901 = vector.extract_strided_slice %894 {offsets = [0, 96], sizes = [1, 32], strides = [1, 1]} : vector<1x128xf32> to vector<1x32xf32>
    %902 = math.tanh %901 : vector<1x32xf32>
    %903 = vector.extract_strided_slice %900 {offsets = [0, 0], sizes = [1, 32], strides = [1, 1]} : vector<1x96xf32> to vector<1x32xf32>
    %904 = vector.extract_strided_slice %900 {offsets = [0, 32], sizes = [1, 32], strides = [1, 1]} : vector<1x96xf32> to vector<1x32xf32>
    %905 = vector.extract_strided_slice %900 {offsets = [0, 64], sizes = [1, 32], strides = [1, 1]} : vector<1x96xf32> to vector<1x32xf32>
    %906 = arith.mulf %904, %823 : vector<1x32xf32>
    %907 = arith.mulf %903, %902 : vector<1x32xf32>
    %908 = arith.addf %906, %907 : vector<1x32xf32>
    %909 = math.tanh %908 : vector<1x32xf32>
    %910 = arith.mulf %905, %909 : vector<1x32xf32>
    %c248_270 = arith.constant 248 : index
    %c0_271 = arith.constant 0 : index
    %911 = vector.load %arg1[%c248_270, %c0_271] : memref<368x128xf32, #tpu.memory_space<vmem>>, vector<1x128xf32>
    %912 = tpu.concatenate %910, %846 in 1 : vector<1x32xf32>, vector<1x32xf32> -> vector<1x64xf32>
    %c176_272 = arith.constant 176 : index
    %c0_273 = arith.constant 0 : index
    %913 = vector.load %arg1[%c176_272, %c0_273] : memref<368x128xf32, #tpu.memory_space<vmem>>, vector<64x128xf32>
    %cst_274 = arith.constant dense<0.000000e+00> : vector<1x128xf32>
    %914 = tpu.matmul %912, %913, %cst_274 {dimension_numbers = #tpu.dot_dimension_numbers<[1], [0], [0], [1], [0, 0, 1, 1], [], []>} : vector<1x64xf32>, vector<64x128xf32>, vector<1x128xf32> -> vector<1x128xf32>
    %915 = arith.addf %914, %911 : vector<1x128xf32>
    %916 = vector.extract_strided_slice %915 {offsets = [0, 0], sizes = [1, 96], strides = [1, 1]} : vector<1x128xf32> to vector<1x96xf32>
    %917 = arith.negf %916 : vector<1x96xf32>
    %918 = math.exp %917 : vector<1x96xf32>
    %cst_275 = arith.constant 1.000000e+00 : f32
    %919 = vector.broadcast %cst_275 : f32 to vector<1x96xf32>
    %920 = arith.addf %919, %918 : vector<1x96xf32>
    %921 = arith.divf %919, %920 : vector<1x96xf32>
    %922 = vector.extract_strided_slice %915 {offsets = [0, 96], sizes = [1, 32], strides = [1, 1]} : vector<1x128xf32> to vector<1x32xf32>
    %923 = math.tanh %922 : vector<1x32xf32>
    %924 = vector.extract_strided_slice %921 {offsets = [0, 0], sizes = [1, 32], strides = [1, 1]} : vector<1x96xf32> to vector<1x32xf32>
    %925 = vector.extract_strided_slice %921 {offsets = [0, 32], sizes = [1, 32], strides = [1, 1]} : vector<1x96xf32> to vector<1x32xf32>
    %926 = vector.extract_strided_slice %921 {offsets = [0, 64], sizes = [1, 32], strides = [1, 1]} : vector<1x96xf32> to vector<1x32xf32>
    %927 = arith.mulf %925, %844 : vector<1x32xf32>
    %928 = arith.mulf %924, %923 : vector<1x32xf32>
    %929 = arith.addf %927, %928 : vector<1x32xf32>
    %930 = math.tanh %929 : vector<1x32xf32>
    %931 = arith.mulf %926, %930 : vector<1x32xf32>
    %932 = tpu.concatenate %931, %867 in 1 : vector<1x32xf32>, vector<1x32xf32> -> vector<1x64xf32>
    %c256_276 = arith.constant 256 : index
    %c0_277 = arith.constant 0 : index
    %933 = vector.load %arg1[%c256_276, %c0_277] : memref<368x128xf32, #tpu.memory_space<vmem>>, vector<64x128xf32>
    %cst_278 = arith.constant dense<0.000000e+00> : vector<1x128xf32>
    %934 = tpu.matmul %932, %933, %cst_278 {dimension_numbers = #tpu.dot_dimension_numbers<[1], [0], [0], [1], [0, 0, 1, 1], [], []>} : vector<1x64xf32>, vector<64x128xf32>, vector<1x128xf32> -> vector<1x128xf32>
    %c320_279 = arith.constant 320 : index
    %c0_280 = arith.constant 0 : index
    %935 = vector.load %arg1[%c320_279, %c0_280] : memref<368x128xf32, #tpu.memory_space<vmem>>, vector<1x128xf32>
    %936 = arith.addf %934, %935 : vector<1x128xf32>
    %937 = vector.extract_strided_slice %936 {offsets = [0, 0], sizes = [1, 96], strides = [1, 1]} : vector<1x128xf32> to vector<1x96xf32>
    %938 = arith.negf %937 : vector<1x96xf32>
    %939 = math.exp %938 : vector<1x96xf32>
    %cst_281 = arith.constant 1.000000e+00 : f32
    %940 = vector.broadcast %cst_281 : f32 to vector<1x96xf32>
    %941 = arith.addf %940, %939 : vector<1x96xf32>
    %942 = arith.divf %940, %941 : vector<1x96xf32>
    %943 = vector.extract_strided_slice %936 {offsets = [0, 96], sizes = [1, 32], strides = [1, 1]} : vector<1x128xf32> to vector<1x32xf32>
    %944 = math.tanh %943 : vector<1x32xf32>
    %945 = vector.extract_strided_slice %942 {offsets = [0, 0], sizes = [1, 32], strides = [1, 1]} : vector<1x96xf32> to vector<1x32xf32>
    %946 = vector.extract_strided_slice %942 {offsets = [0, 32], sizes = [1, 32], strides = [1, 1]} : vector<1x96xf32> to vector<1x32xf32>
    %947 = vector.extract_strided_slice %942 {offsets = [0, 64], sizes = [1, 32], strides = [1, 1]} : vector<1x96xf32> to vector<1x32xf32>
    %948 = arith.mulf %946, %865 : vector<1x32xf32>
    %949 = arith.mulf %945, %944 : vector<1x32xf32>
    %950 = arith.addf %948, %949 : vector<1x32xf32>
    %951 = math.tanh %950 : vector<1x32xf32>
    %952 = arith.mulf %947, %951 : vector<1x32xf32>
    %953 = arith.index_cast %c2_i32_257 : i32 to index
    %c0_282 = arith.constant 0 : index
    %954 = vector.load %arg5[%953, %c0_282] : memref<5x32xf32, #tpu.memory_space<vmem>>, vector<1x32xf32>
    tpu.vector_store %arg5[%953, %c0_282], %952 {strides = array<i32>} : memref<5x32xf32, #tpu.memory_space<vmem>>, vector<1x32xf32>,
    %c3_i32_283 = arith.constant 3 : i32
    %c64_284 = arith.constant 64 : index
    %c0_285 = arith.constant 0 : index
    %955 = vector.load %arg1[%c64_284, %c0_285] : memref<368x128xf32, #tpu.memory_space<vmem>>, vector<32x128xf32>
    %cst_286 = arith.constant dense<0.000000e+00> : vector<1x128xf32>
    %956 = tpu.matmul %889, %955, %cst_286 {dimension_numbers = #tpu.dot_dimension_numbers<[1], [0], [0], [1], [0, 0, 1, 1], [], []>} : vector<1x32xf32>, vector<32x128xf32>, vector<1x128xf32> -> vector<1x128xf32>
    %c96_287 = arith.constant 96 : index
    %c0_288 = arith.constant 0 : index
    %957 = vector.load %arg1[%c96_287, %c0_288] : memref<368x128xf32, #tpu.memory_space<vmem>>, vector<1x128xf32>
    %958 = arith.addf %956, %957 : vector<1x128xf32>
    %959 = vector.extract_strided_slice %958 {offsets = [0, 0], sizes = [1, 96], strides = [1, 1]} : vector<1x128xf32> to vector<1x96xf32>
    %960 = arith.negf %959 : vector<1x96xf32>
    %961 = math.exp %960 : vector<1x96xf32>
    %cst_289 = arith.constant 1.000000e+00 : f32
    %962 = vector.broadcast %cst_289 : f32 to vector<1x96xf32>
    %963 = arith.addf %962, %961 : vector<1x96xf32>
    %964 = arith.divf %962, %963 : vector<1x96xf32>
    %965 = vector.extract_strided_slice %958 {offsets = [0, 96], sizes = [1, 32], strides = [1, 1]} : vector<1x128xf32> to vector<1x32xf32>
    %966 = math.tanh %965 : vector<1x32xf32>
    %967 = vector.extract_strided_slice %964 {offsets = [0, 0], sizes = [1, 32], strides = [1, 1]} : vector<1x96xf32> to vector<1x32xf32>
    %968 = vector.extract_strided_slice %964 {offsets = [0, 32], sizes = [1, 32], strides = [1, 1]} : vector<1x96xf32> to vector<1x32xf32>
    %969 = vector.extract_strided_slice %964 {offsets = [0, 64], sizes = [1, 32], strides = [1, 1]} : vector<1x96xf32> to vector<1x32xf32>
    %970 = arith.mulf %968, %887 : vector<1x32xf32>
    %971 = arith.mulf %967, %966 : vector<1x32xf32>
    %972 = arith.addf %970, %971 : vector<1x32xf32>
    %973 = math.tanh %972 : vector<1x32xf32>
    %974 = arith.mulf %969, %973 : vector<1x32xf32>
    %975 = tpu.concatenate %974, %910 in 1 : vector<1x32xf32>, vector<1x32xf32> -> vector<1x64xf32>
    %c104_290 = arith.constant 104 : index
    %c0_291 = arith.constant 0 : index
    %976 = vector.load %arg1[%c104_290, %c0_291] : memref<368x128xf32, #tpu.memory_space<vmem>>, vector<64x128xf32>
    %cst_292 = arith.constant dense<0.000000e+00> : vector<1x128xf32>
    %977 = tpu.matmul %975, %976, %cst_292 {dimension_numbers = #tpu.dot_dimension_numbers<[1], [0], [0], [1], [0, 0, 1, 1], [], []>} : vector<1x64xf32>, vector<64x128xf32>, vector<1x128xf32> -> vector<1x128xf32>
    %c168_293 = arith.constant 168 : index
    %c0_294 = arith.constant 0 : index
    %978 = vector.load %arg1[%c168_293, %c0_294] : memref<368x128xf32, #tpu.memory_space<vmem>>, vector<1x128xf32>
    %979 = arith.addf %977, %978 : vector<1x128xf32>
    %980 = vector.extract_strided_slice %979 {offsets = [0, 0], sizes = [1, 96], strides = [1, 1]} : vector<1x128xf32> to vector<1x96xf32>
    %981 = arith.negf %980 : vector<1x96xf32>
    %982 = math.exp %981 : vector<1x96xf32>
    %cst_295 = arith.constant 1.000000e+00 : f32
    %983 = vector.broadcast %cst_295 : f32 to vector<1x96xf32>
    %984 = arith.addf %983, %982 : vector<1x96xf32>
    %985 = arith.divf %983, %984 : vector<1x96xf32>
    %986 = vector.extract_strided_slice %979 {offsets = [0, 96], sizes = [1, 32], strides = [1, 1]} : vector<1x128xf32> to vector<1x32xf32>
    %987 = math.tanh %986 : vector<1x32xf32>
    %988 = vector.extract_strided_slice %985 {offsets = [0, 0], sizes = [1, 32], strides = [1, 1]} : vector<1x96xf32> to vector<1x32xf32>
    %989 = vector.extract_strided_slice %985 {offsets = [0, 32], sizes = [1, 32], strides = [1, 1]} : vector<1x96xf32> to vector<1x32xf32>
    %990 = vector.extract_strided_slice %985 {offsets = [0, 64], sizes = [1, 32], strides = [1, 1]} : vector<1x96xf32> to vector<1x32xf32>
    %991 = arith.mulf %989, %908 : vector<1x32xf32>
    %992 = arith.mulf %988, %987 : vector<1x32xf32>
    %993 = arith.addf %991, %992 : vector<1x32xf32>
    %994 = math.tanh %993 : vector<1x32xf32>
    %995 = arith.mulf %990, %994 : vector<1x32xf32>
    %c248_296 = arith.constant 248 : index
    %c0_297 = arith.constant 0 : index
    %996 = vector.load %arg1[%c248_296, %c0_297] : memref<368x128xf32, #tpu.memory_space<vmem>>, vector<1x128xf32>
    %997 = tpu.concatenate %995, %931 in 1 : vector<1x32xf32>, vector<1x32xf32> -> vector<1x64xf32>
    %c176_298 = arith.constant 176 : index
    %c0_299 = arith.constant 0 : index
    %998 = vector.load %arg1[%c176_298, %c0_299] : memref<368x128xf32, #tpu.memory_space<vmem>>, vector<64x128xf32>
    %cst_300 = arith.constant dense<0.000000e+00> : vector<1x128xf32>
    %999 = tpu.matmul %997, %998, %cst_300 {dimension_numbers = #tpu.dot_dimension_numbers<[1], [0], [0], [1], [0, 0, 1, 1], [], []>} : vector<1x64xf32>, vector<64x128xf32>, vector<1x128xf32> -> vector<1x128xf32>
    %1000 = arith.addf %999, %996 : vector<1x128xf32>
    %1001 = vector.extract_strided_slice %1000 {offsets = [0, 0], sizes = [1, 96], strides = [1, 1]} : vector<1x128xf32> to vector<1x96xf32>
    %1002 = arith.negf %1001 : vector<1x96xf32>
    %1003 = math.exp %1002 : vector<1x96xf32>
    %cst_301 = arith.constant 1.000000e+00 : f32
    %1004 = vector.broadcast %cst_301 : f32 to vector<1x96xf32>
    %1005 = arith.addf %1004, %1003 : vector<1x96xf32>
    %1006 = arith.divf %1004, %1005 : vector<1x96xf32>
    %1007 = vector.extract_strided_slice %1000 {offsets = [0, 96], sizes = [1, 32], strides = [1, 1]} : vector<1x128xf32> to vector<1x32xf32>
    %1008 = math.tanh %1007 : vector<1x32xf32>
    %1009 = vector.extract_strided_slice %1006 {offsets = [0, 0], sizes = [1, 32], strides = [1, 1]} : vector<1x96xf32> to vector<1x32xf32>
    %1010 = vector.extract_strided_slice %1006 {offsets = [0, 32], sizes = [1, 32], strides = [1, 1]} : vector<1x96xf32> to vector<1x32xf32>
    %1011 = vector.extract_strided_slice %1006 {offsets = [0, 64], sizes = [1, 32], strides = [1, 1]} : vector<1x96xf32> to vector<1x32xf32>
    %1012 = arith.mulf %1010, %929 : vector<1x32xf32>
    %1013 = arith.mulf %1009, %1008 : vector<1x32xf32>
    %1014 = arith.addf %1012, %1013 : vector<1x32xf32>
    %1015 = math.tanh %1014 : vector<1x32xf32>
    %1016 = arith.mulf %1011, %1015 : vector<1x32xf32>
    %1017 = tpu.concatenate %1016, %952 in 1 : vector<1x32xf32>, vector<1x32xf32> -> vector<1x64xf32>
    %c256_302 = arith.constant 256 : index
    %c0_303 = arith.constant 0 : index
    %1018 = vector.load %arg1[%c256_302, %c0_303] : memref<368x128xf32, #tpu.memory_space<vmem>>, vector<64x128xf32>
    %cst_304 = arith.constant dense<0.000000e+00> : vector<1x128xf32>
    %1019 = tpu.matmul %1017, %1018, %cst_304 {dimension_numbers = #tpu.dot_dimension_numbers<[1], [0], [0], [1], [0, 0, 1, 1], [], []>} : vector<1x64xf32>, vector<64x128xf32>, vector<1x128xf32> -> vector<1x128xf32>
    %c320_305 = arith.constant 320 : index
    %c0_306 = arith.constant 0 : index
    %1020 = vector.load %arg1[%c320_305, %c0_306] : memref<368x128xf32, #tpu.memory_space<vmem>>, vector<1x128xf32>
    %1021 = arith.addf %1019, %1020 : vector<1x128xf32>
    %1022 = vector.extract_strided_slice %1021 {offsets = [0, 0], sizes = [1, 96], strides = [1, 1]} : vector<1x128xf32> to vector<1x96xf32>
    %1023 = arith.negf %1022 : vector<1x96xf32>
    %1024 = math.exp %1023 : vector<1x96xf32>
    %cst_307 = arith.constant 1.000000e+00 : f32
    %1025 = vector.broadcast %cst_307 : f32 to vector<1x96xf32>
    %1026 = arith.addf %1025, %1024 : vector<1x96xf32>
    %1027 = arith.divf %1025, %1026 : vector<1x96xf32>
    %1028 = vector.extract_strided_slice %1021 {offsets = [0, 96], sizes = [1, 32], strides = [1, 1]} : vector<1x128xf32> to vector<1x32xf32>
    %1029 = math.tanh %1028 : vector<1x32xf32>
    %1030 = vector.extract_strided_slice %1027 {offsets = [0, 0], sizes = [1, 32], strides = [1, 1]} : vector<1x96xf32> to vector<1x32xf32>
    %1031 = vector.extract_strided_slice %1027 {offsets = [0, 32], sizes = [1, 32], strides = [1, 1]} : vector<1x96xf32> to vector<1x32xf32>
    %1032 = vector.extract_strided_slice %1027 {offsets = [0, 64], sizes = [1, 32], strides = [1, 1]} : vector<1x96xf32> to vector<1x32xf32>
    %1033 = arith.mulf %1031, %950 : vector<1x32xf32>
    %1034 = arith.mulf %1030, %1029 : vector<1x32xf32>
    %1035 = arith.addf %1033, %1034 : vector<1x32xf32>
    %1036 = math.tanh %1035 : vector<1x32xf32>
    %1037 = arith.mulf %1032, %1036 : vector<1x32xf32>
    %1038 = arith.index_cast %c3_i32_283 : i32 to index
    %c0_308 = arith.constant 0 : index
    %1039 = vector.load %arg5[%1038, %c0_308] : memref<5x32xf32, #tpu.memory_space<vmem>>, vector<1x32xf32>
    tpu.vector_store %arg5[%1038, %c0_308], %1037 {strides = array<i32>} : memref<5x32xf32, #tpu.memory_space<vmem>>, vector<1x32xf32>,
    %c4_i32_309 = arith.constant 4 : i32
    %c64_310 = arith.constant 64 : index
    %c0_311 = arith.constant 0 : index
    %1040 = vector.load %arg1[%c64_310, %c0_311] : memref<368x128xf32, #tpu.memory_space<vmem>>, vector<32x128xf32>
    %cst_312 = arith.constant dense<0.000000e+00> : vector<1x128xf32>
    %1041 = tpu.matmul %974, %1040, %cst_312 {dimension_numbers = #tpu.dot_dimension_numbers<[1], [0], [0], [1], [0, 0, 1, 1], [], []>} : vector<1x32xf32>, vector<32x128xf32>, vector<1x128xf32> -> vector<1x128xf32>
    %c96_313 = arith.constant 96 : index
    %c0_314 = arith.constant 0 : index
    %1042 = vector.load %arg1[%c96_313, %c0_314] : memref<368x128xf32, #tpu.memory_space<vmem>>, vector<1x128xf32>
    %1043 = arith.addf %1041, %1042 : vector<1x128xf32>
    %1044 = vector.extract_strided_slice %1043 {offsets = [0, 0], sizes = [1, 96], strides = [1, 1]} : vector<1x128xf32> to vector<1x96xf32>
    %1045 = arith.negf %1044 : vector<1x96xf32>
    %1046 = math.exp %1045 : vector<1x96xf32>
    %cst_315 = arith.constant 1.000000e+00 : f32
    %1047 = vector.broadcast %cst_315 : f32 to vector<1x96xf32>
    %1048 = arith.addf %1047, %1046 : vector<1x96xf32>
    %1049 = arith.divf %1047, %1048 : vector<1x96xf32>
    %1050 = vector.extract_strided_slice %1043 {offsets = [0, 96], sizes = [1, 32], strides = [1, 1]} : vector<1x128xf32> to vector<1x32xf32>
    %1051 = math.tanh %1050 : vector<1x32xf32>
    %1052 = vector.extract_strided_slice %1049 {offsets = [0, 0], sizes = [1, 32], strides = [1, 1]} : vector<1x96xf32> to vector<1x32xf32>
    %1053 = vector.extract_strided_slice %1049 {offsets = [0, 32], sizes = [1, 32], strides = [1, 1]} : vector<1x96xf32> to vector<1x32xf32>
    %1054 = vector.extract_strided_slice %1049 {offsets = [0, 64], sizes = [1, 32], strides = [1, 1]} : vector<1x96xf32> to vector<1x32xf32>
    %1055 = arith.mulf %1053, %972 : vector<1x32xf32>
    %1056 = arith.mulf %1052, %1051 : vector<1x32xf32>
    %1057 = arith.addf %1055, %1056 : vector<1x32xf32>
    %1058 = math.tanh %1057 : vector<1x32xf32>
    %1059 = arith.mulf %1054, %1058 : vector<1x32xf32>
    %1060 = tpu.concatenate %1059, %995 in 1 : vector<1x32xf32>, vector<1x32xf32> -> vector<1x64xf32>
    %c104_316 = arith.constant 104 : index
    %c0_317 = arith.constant 0 : index
    %1061 = vector.load %arg1[%c104_316, %c0_317] : memref<368x128xf32, #tpu.memory_space<vmem>>, vector<64x128xf32>
    %cst_318 = arith.constant dense<0.000000e+00> : vector<1x128xf32>
    %1062 = tpu.matmul %1060, %1061, %cst_318 {dimension_numbers = #tpu.dot_dimension_numbers<[1], [0], [0], [1], [0, 0, 1, 1], [], []>} : vector<1x64xf32>, vector<64x128xf32>, vector<1x128xf32> -> vector<1x128xf32>
    %c168_319 = arith.constant 168 : index
    %c0_320 = arith.constant 0 : index
    %1063 = vector.load %arg1[%c168_319, %c0_320] : memref<368x128xf32, #tpu.memory_space<vmem>>, vector<1x128xf32>
    %1064 = arith.addf %1062, %1063 : vector<1x128xf32>
    %1065 = vector.extract_strided_slice %1064 {offsets = [0, 0], sizes = [1, 96], strides = [1, 1]} : vector<1x128xf32> to vector<1x96xf32>
    %1066 = arith.negf %1065 : vector<1x96xf32>
    %1067 = math.exp %1066 : vector<1x96xf32>
    %cst_321 = arith.constant 1.000000e+00 : f32
    %1068 = vector.broadcast %cst_321 : f32 to vector<1x96xf32>
    %1069 = arith.addf %1068, %1067 : vector<1x96xf32>
    %1070 = arith.divf %1068, %1069 : vector<1x96xf32>
    %1071 = vector.extract_strided_slice %1064 {offsets = [0, 96], sizes = [1, 32], strides = [1, 1]} : vector<1x128xf32> to vector<1x32xf32>
    %1072 = math.tanh %1071 : vector<1x32xf32>
    %1073 = vector.extract_strided_slice %1070 {offsets = [0, 0], sizes = [1, 32], strides = [1, 1]} : vector<1x96xf32> to vector<1x32xf32>
    %1074 = vector.extract_strided_slice %1070 {offsets = [0, 32], sizes = [1, 32], strides = [1, 1]} : vector<1x96xf32> to vector<1x32xf32>
    %1075 = vector.extract_strided_slice %1070 {offsets = [0, 64], sizes = [1, 32], strides = [1, 1]} : vector<1x96xf32> to vector<1x32xf32>
    %1076 = arith.mulf %1074, %993 : vector<1x32xf32>
    %1077 = arith.mulf %1073, %1072 : vector<1x32xf32>
    %1078 = arith.addf %1076, %1077 : vector<1x32xf32>
    %1079 = math.tanh %1078 : vector<1x32xf32>
    %1080 = arith.mulf %1075, %1079 : vector<1x32xf32>
    %c248_322 = arith.constant 248 : index
    %c0_323 = arith.constant 0 : index
    %1081 = vector.load %arg1[%c248_322, %c0_323] : memref<368x128xf32, #tpu.memory_space<vmem>>, vector<1x128xf32>
    %1082 = tpu.concatenate %1080, %1016 in 1 : vector<1x32xf32>, vector<1x32xf32> -> vector<1x64xf32>
    %c176_324 = arith.constant 176 : index
    %c0_325 = arith.constant 0 : index
    %1083 = vector.load %arg1[%c176_324, %c0_325] : memref<368x128xf32, #tpu.memory_space<vmem>>, vector<64x128xf32>
    %cst_326 = arith.constant dense<0.000000e+00> : vector<1x128xf32>
    %1084 = tpu.matmul %1082, %1083, %cst_326 {dimension_numbers = #tpu.dot_dimension_numbers<[1], [0], [0], [1], [0, 0, 1, 1], [], []>} : vector<1x64xf32>, vector<64x128xf32>, vector<1x128xf32> -> vector<1x128xf32>
    %1085 = arith.addf %1084, %1081 : vector<1x128xf32>
    %1086 = vector.extract_strided_slice %1085 {offsets = [0, 0], sizes = [1, 96], strides = [1, 1]} : vector<1x128xf32> to vector<1x96xf32>
    %1087 = arith.negf %1086 : vector<1x96xf32>
    %1088 = math.exp %1087 : vector<1x96xf32>
    %cst_327 = arith.constant 1.000000e+00 : f32
    %1089 = vector.broadcast %cst_327 : f32 to vector<1x96xf32>
    %1090 = arith.addf %1089, %1088 : vector<1x96xf32>
    %1091 = arith.divf %1089, %1090 : vector<1x96xf32>
    %1092 = vector.extract_strided_slice %1085 {offsets = [0, 96], sizes = [1, 32], strides = [1, 1]} : vector<1x128xf32> to vector<1x32xf32>
    %1093 = math.tanh %1092 : vector<1x32xf32>
    %1094 = vector.extract_strided_slice %1091 {offsets = [0, 0], sizes = [1, 32], strides = [1, 1]} : vector<1x96xf32> to vector<1x32xf32>
    %1095 = vector.extract_strided_slice %1091 {offsets = [0, 32], sizes = [1, 32], strides = [1, 1]} : vector<1x96xf32> to vector<1x32xf32>
    %1096 = vector.extract_strided_slice %1091 {offsets = [0, 64], sizes = [1, 32], strides = [1, 1]} : vector<1x96xf32> to vector<1x32xf32>
    %1097 = arith.mulf %1095, %1014 : vector<1x32xf32>
    %1098 = arith.mulf %1094, %1093 : vector<1x32xf32>
    %1099 = arith.addf %1097, %1098 : vector<1x32xf32>
    %1100 = math.tanh %1099 : vector<1x32xf32>
    %1101 = arith.mulf %1096, %1100 : vector<1x32xf32>
    %1102 = tpu.concatenate %1101, %1037 in 1 : vector<1x32xf32>, vector<1x32xf32> -> vector<1x64xf32>
    %c256_328 = arith.constant 256 : index
    %c0_329 = arith.constant 0 : index
    %1103 = vector.load %arg1[%c256_328, %c0_329] : memref<368x128xf32, #tpu.memory_space<vmem>>, vector<64x128xf32>
    %cst_330 = arith.constant dense<0.000000e+00> : vector<1x128xf32>
    %1104 = tpu.matmul %1102, %1103, %cst_330 {dimension_numbers = #tpu.dot_dimension_numbers<[1], [0], [0], [1], [0, 0, 1, 1], [], []>} : vector<1x64xf32>, vector<64x128xf32>, vector<1x128xf32> -> vector<1x128xf32>
    %c320_331 = arith.constant 320 : index
    %c0_332 = arith.constant 0 : index
    %1105 = vector.load %arg1[%c320_331, %c0_332] : memref<368x128xf32, #tpu.memory_space<vmem>>, vector<1x128xf32>
    %1106 = arith.addf %1104, %1105 : vector<1x128xf32>
    %1107 = vector.extract_strided_slice %1106 {offsets = [0, 0], sizes = [1, 96], strides = [1, 1]} : vector<1x128xf32> to vector<1x96xf32>
    %1108 = arith.negf %1107 : vector<1x96xf32>
    %1109 = math.exp %1108 : vector<1x96xf32>
    %cst_333 = arith.constant 1.000000e+00 : f32
    %1110 = vector.broadcast %cst_333 : f32 to vector<1x96xf32>
    %1111 = arith.addf %1110, %1109 : vector<1x96xf32>
    %1112 = arith.divf %1110, %1111 : vector<1x96xf32>
    %1113 = vector.extract_strided_slice %1106 {offsets = [0, 96], sizes = [1, 32], strides = [1, 1]} : vector<1x128xf32> to vector<1x32xf32>
    %1114 = math.tanh %1113 : vector<1x32xf32>
    %1115 = vector.extract_strided_slice %1112 {offsets = [0, 0], sizes = [1, 32], strides = [1, 1]} : vector<1x96xf32> to vector<1x32xf32>
    %1116 = vector.extract_strided_slice %1112 {offsets = [0, 32], sizes = [1, 32], strides = [1, 1]} : vector<1x96xf32> to vector<1x32xf32>
    %1117 = vector.extract_strided_slice %1112 {offsets = [0, 64], sizes = [1, 32], strides = [1, 1]} : vector<1x96xf32> to vector<1x32xf32>
    %1118 = arith.mulf %1116, %1035 : vector<1x32xf32>
    %1119 = arith.mulf %1115, %1114 : vector<1x32xf32>
    %1120 = arith.addf %1118, %1119 : vector<1x32xf32>
    %1121 = math.tanh %1120 : vector<1x32xf32>
    %1122 = arith.mulf %1117, %1121 : vector<1x32xf32>
    %1123 = arith.index_cast %c4_i32_309 : i32 to index
    %c0_334 = arith.constant 0 : index
    %1124 = vector.load %arg5[%1123, %c0_334] : memref<5x32xf32, #tpu.memory_space<vmem>>, vector<1x32xf32>
    tpu.vector_store %arg5[%1123, %c0_334], %1122 {strides = array<i32>} : memref<5x32xf32, #tpu.memory_space<vmem>>, vector<1x32xf32>,
    %c5_i32_335 = arith.constant 5 : i32
    %c0_336 = arith.constant 0 : index
    %c0_337 = arith.constant 0 : index
    %1125 = vector.load %arg5[%c0_336, %c0_337] : memref<5x32xf32, #tpu.memory_space<vmem>>, vector<5x32xf32>
    %c328 = arith.constant 328 : index
    %c0_338 = arith.constant 0 : index
    %1126 = vector.load %arg1[%c328, %c0_338] : memref<368x128xf32, #tpu.memory_space<vmem>>, vector<32x128xf32>
    %cst_339 = arith.constant dense<0.000000e+00> : vector<5x128xf32>
    %1127 = tpu.matmul %1125, %1126, %cst_339 {dimension_numbers = #tpu.dot_dimension_numbers<[1], [0], [0], [1], [0, 0, 1, 1], [], []>} : vector<5x32xf32>, vector<32x128xf32>, vector<5x128xf32> -> vector<5x128xf32>
    %c360 = arith.constant 360 : index
    %c0_340 = arith.constant 0 : index
    %1128 = vector.load %arg1[%c360, %c0_340] : memref<368x128xf32, #tpu.memory_space<vmem>>, vector<1x128xf32>
    %1129 = vector.broadcast %1128 : vector<1x128xf32> to vector<5x128xf32>
    %1130 = arith.addf %1127, %1129 : vector<5x128xf32>
    %cst_341 = arith.constant dense<0xFF800000> : vector<5xf32>
    %1131 = vector.multi_reduction <maximumf>, %1130, %cst_341 [1] : vector<5x128xf32> to vector<5xf32>
    %1132 = vector.shape_cast %1131 : vector<5xf32> to vector<5x1xf32>
    %1133 = vector.broadcast %1132 : vector<5x1xf32> to vector<5x128xf32>
    %1134 = arith.subf %1130, %1133 : vector<5x128xf32>
    %1135 = math.exp %1134 : vector<5x128xf32>
    %cst_342 = arith.constant dense<0.000000e+00> : vector<5xf32>
    %1136 = vector.multi_reduction <add>, %1135, %cst_342 [1] : vector<5x128xf32> to vector<5xf32>
    %1137 = vector.shape_cast %1136 : vector<5xf32> to vector<5x1xf32>
    %1138 = math.log %1137 : vector<5x1xf32>
    %1139 = vector.broadcast %1138 : vector<5x1xf32> to vector<5x128xf32>
    %1140 = arith.subf %1134, %1139 : vector<5x128xf32>
    %c0_343 = arith.constant 0 : index
    %c0_344 = arith.constant 0 : index
    %1141 = vector.load %arg3[%c0_343, %c0_344] : memref<5x128xf32, #tpu.memory_space<vmem>>, vector<5x128xf32>
    tpu.vector_store %arg3[%c0_343, %c0_344], %1140 {strides = array<i32>} : memref<5x128xf32, #tpu.memory_space<vmem>>, vector<5x128xf32>,
    return
  }
}

</mosaic_0001>

<llo_original>
// kernel: tpu_custom_call.1
$region0: #{tpu_custom_call.1}
  #allocation0 [shape = 'u32[]', space=smem, size = 0x4, offset = 0x4, fixed_abs, tag = 'smem constant byte address 0x4 - core index']
  #allocation1 [shape = 'u32[144,128]{1,0:T(1,128)}', space=vmem, size = 0x12000, scoped, tag = 'internal scratch']
  #allocation2 [shape = 'f32[8,128]{1,0:T(8,128)}', space=vmem, size = 0x1000, scoped, tag = 'scratch operand']
  #allocation3 [shape = 'f32[5,32]{1,0:T(8,128)}', space=vmem, size = 0x1000, scoped, tag = 'scratch operand']
  %s0 = inlined_call_operand.hbm [shape: f32[8,64], index: 0, kind: input, shape index: {}]
  %s1 = inlined_call_operand.hbm [shape: f32[368,128], index: 1, kind: input, shape index: {}]
  %s2 = inlined_call_operand.hbm [shape: f32[8,32], index: 2, kind: input, shape index: {}]
  %s3 = inlined_call_operand.hbm [shape: f32[5,128], index: 3, kind: output, shape index: {}]
  %s4 = sld [smem:[#allocation0]]
  $region34: #{tpu_custom_call.1} parent=0
    _
  %s6 = ssub.s32 1, %s4
  %s7 = scalar_select 0, %s6, %s4
  $region1: #{tpu_custom_call.1} parent=0
    #allocation4 [shape = 'u8[4096]{0}', space=vmem, size = 0x1000, scoped, tag = 'input window, operand 0, single buffered']
    #allocation5 [shape = 's32[1]{0}', space=sflag, size = 0x4, scoped, tag = 'scoped memory for tpu_custom_call.1']
    #allocation6 [shape = 's32[1]{0}', space=sflag, size = 0x4, scoped, tag = 'scoped memory for tpu_custom_call.1']
    #allocation7 [shape = 'u8[188416]{0}', space=vmem, size = 0x2e000, scoped, tag = 'input window, operand 1, single buffered']
    #allocation8 [shape = 's32[1]{0}', space=sflag, size = 0x4, scoped, tag = 'scoped memory for tpu_custom_call.1']
    #allocation9 [shape = 'u8[4096]{0}', space=vmem, size = 0x1000, scoped, tag = 'input window, operand 2, single buffered']
    #allocation10 [shape = 'u8[4096]{0}', space=vmem, size = 0x1000, scoped, tag = 'output window, operand 0, single buffered']
    %8 = vsyncpa [#allocation5], 0
    %9 = vsyncpa [#allocation8], 0
    %10 = vsyncpa [#allocation6], 0
    // Predicated region
    $region2: #{tpu_custom_call.1} parent=1 // pred_check
      _
    $region3: #{tpu_custom_call.1} parent=1 // pred_check_branch
      %12 = sbr.rel (0) target = $region5
    $region4: #{tpu_custom_call.1} parent=1 // pred_region
      %s14 = ssub.s32 128, 128
      %15 = vsyncadd [#allocation5], %s14
      %s17 = sshll.u32 [#allocation4], 4
      %s18 = int_to_ptr.vmem [resolvable:$true] %s17
      %20 = dma.hbm_to_vmem [thread:$0]  %s0, 128, %s18, [#allocation5]
    $region5: #{tpu_custom_call.1} parent=1 // pred_fallthru
      _
    // Predicated region
    $region6: #{tpu_custom_call.1} parent=1 // pred_check
      _
    $region7: #{tpu_custom_call.1} parent=1 // pred_check_branch
      %22 = sbr.rel (0) target = $region9
    $region8: #{tpu_custom_call.1} parent=1 // pred_region
      %s24 = ssub.s32 5888, 5888
      %25 = vsyncadd [#allocation8], %s24
      %s26 = sshll.u32 [#allocation7], 4
      %s27 = int_to_ptr.vmem [resolvable:$true] %s26
      %32 = dma.hbm_to_vmem [thread:$0]  %s1, 5888, %s27, [#allocation8], 128, 128, 8
    $region9: #{tpu_custom_call.1} parent=1 // pred_fallthru
      _
    // Predicated region
    $region10: #{tpu_custom_call.1} parent=1 // pred_check
      _
    $region11: #{tpu_custom_call.1} parent=1 // pred_check_branch
      %34 = sbr.rel (0) target = $region13
    $region12: #{tpu_custom_call.1} parent=1 // pred_region
      %s36 = ssub.s32 128, 128
      %37 = vsyncadd [#allocation8], %s36
      %s39 = sshll.u32 [#allocation9], 4
      %s40 = int_to_ptr.vmem [resolvable:$true] %s39
      %42 = dma.hbm_to_vmem [thread:$0]  %s2, 128, %s40, [#allocation8]
    $region13: #{tpu_custom_call.1} parent=1 // pred_fallthru
      _
    // Predicated region
    $region14: #{tpu_custom_call.1} parent=1 // pred_check
      _
    $region15: #{tpu_custom_call.1} parent=1 // pred_check_branch
      %44 = sbr.rel (0) target = $region17
    $region16: #{tpu_custom_call.1} parent=1 // pred_region
      %45 = dma.done [#allocation5], 128
    $region17: #{tpu_custom_call.1} parent=1 // pred_fallthru
      _
    // Predicated region
    $region18: #{tpu_custom_call.1} parent=1 // pred_check
      _
    $region19: #{tpu_custom_call.1} parent=1 // pred_check_branch
      %47 = sbr.rel (0) target = $region21
    $region20: #{tpu_custom_call.1} parent=1 // pred_region
      %48 = dma.done [#allocation8], 5888
    $region21: #{tpu_custom_call.1} parent=1 // pred_fallthru
      _
    // Predicated region
    $region22: #{tpu_custom_call.1} parent=1 // pred_check
      _
    $region23: #{tpu_custom_call.1} parent=1 // pred_check_branch
      %50 = sbr.rel (0) target = $region25
    $region24: #{tpu_custom_call.1} parent=1 // pred_region
      %51 = dma.done [#allocation8], 128
    $region25: #{tpu_custom_call.1} parent=1 // pred_fallthru
      _
    %v52 = vld [vmem:[#allocation9] sm:$0x1]
    %v53 = vld [vmem:[#allocation9 + $0x1] sm:$0x1]
    %v54 = vld [vmem:[#allocation9 + $0x2] sm:$0x1]
    %v55 = vld [vmem:[#allocation9 + $0x3] sm:$0x1]
    %v56 = vld [vmem:[#allocation9 + $0x4] sm:$0x1]
    %v57 = vld [vmem:[#allocation9 + $0x5] sm:$0x1]
    %v58 = vld [vmem:[#allocation9 + $0x6] sm:$0x1]
    %v59 = vld [vmem:[#allocation9 + $0x7] sm:$0x1]
    %v60 = vld [vmem:[#allocation4] sm:$0xff]
    %v61 = vld [vmem:[#allocation7] sm:$0xff]
    %v62 = vld [vmem:[#allocation7 + $0x8] sm:$0xff]
    %v63 = vld [vmem:[#allocation7 + $0x10] sm:$0xff]
    %v64 = vld [vmem:[#allocation7 + $0x18] sm:$0xff]
    %v65 = vld [vmem:[#allocation7 + $0x20] sm:$0xff]
    %v66 = vld [vmem:[#allocation7 + $0x28] sm:$0xff]
    %v67 = vld [vmem:[#allocation7 + $0x30] sm:$0xff]
    %v68 = vld [vmem:[#allocation7 + $0x38] sm:$0xff]
    %vm69 = vcmask 523264
    %v71 = vsel %vm69, %v60, 0
    %73 = vmatprep.subr.mxu0 0.0
    %74 = vmatpush1.msra.mxu0 0.0
    %75 = vmatprep.subr.mxu0 0.0
    %76 = vmatpush1.msra.mxu0 0.0
    %77 = vmatprep.subr.mxu0 0.0
    %78 = vmatpush1.msra.mxu0 0.0
    %79 = vmatprep.subr.mxu0 0.0
    %80 = vmatpush1.msra.mxu0 0.0
    %81 = vmatprep.subr.mxu0 0.0
    %82 = vmatpush1.msra.mxu0 0.0
    %83 = vmatprep.subr.mxu0 0.0
    %84 = vmatpush1.msra.mxu0 0.0
    %85 = vmatprep.subr.mxu0 0.0
    %86 = vmatpush1.msra.mxu0 0.0
    %87 = vmatprep.subr.mxu0 0.0
    %88 = vmatpush1.msra.mxu0 0.0
    %89 = vmatprep.subr.mxu0 0.0
    %90 = vmatpush1.msra.mxu0 %v68
    %91 = vmatprep.subr.mxu0 0.0
    %92 = vmatpush1.msra.mxu0 %v67
    %93 = vmatprep.subr.mxu0 0.0
    %94 = vmatpush1.msra.mxu0 %v66
    %95 = vmatprep.subr.mxu0 0.0
    %96 = vmatpush1.msra.mxu0 %v65
    %97 = vmatprep.subr.mxu0 0.0
    %98 = vmatpush1.msra.mxu0 %v64
    %99 = vmatprep.subr.mxu0 0.0
    %100 = vmatpush1.msra.mxu0 %v63
    %101 = vmatprep.subr.mxu0 0.0
    %102 = vmatpush1.msra.mxu0 %v62
    %103 = vmatprep.subr.mxu0 0.0
    %104 = vmatpush1.msra.mxu0 %v61
    %105 = vmatprep.subr.mxu0 0.0
    %106 = vmatpush2.msra.mxu0 0.0
    %107 = vmatprep.subr.mxu0 0.0
    %108 = vmatpush2.msra.mxu0 0.0
    %109 = vmatprep.subr.mxu0 0.0
    %110 = vmatpush2.msra.mxu0 0.0
    %111 = vmatprep.subr.mxu0 0.0
    %112 = vmatpush2.msra.mxu0 0.0
    %113 = vmatprep.subr.mxu0 0.0
    %114 = vmatpush2.msra.mxu0 0.0
    %115 = vmatprep.subr.mxu0 0.0
    %116 = vmatpush2.msra.mxu0 0.0
    %117 = vmatprep.subr.mxu0 0.0
    %118 = vmatpush2.msra.mxu0 0.0
    %119 = vmatprep.subr.mxu0 0.0
    %120 = vmatpush2.msra.mxu0 0.0
    %121 = vmatprep.subr.mxu0 0.0
    %122 = vmatpush2.msra.mxu0 0.0
    %123 = vmatprep.subr.mxu0 0.0
    %124 = vmatpush2.msra.mxu0 0.0
    %125 = vmatprep.subr.mxu0 0.0
    %126 = vmatpush2.msra.mxu0 0.0
    %127 = vmatprep.subr.mxu0 0.0
    %128 = vmatpush2.msra.mxu0 0.0
    %129 = vmatprep.subr.mxu0 0.0
    %130 = vmatpush2.msra.mxu0 0.0
    %131 = vmatprep.subr.mxu0 0.0
    %132 = vmatpush2.msra.mxu0 0.0
    %133 = vmatprep.subr.mxu0 0.0
    %134 = vmatpush2.msra.mxu0 0.0
    %135 = vmatprep.subr.mxu0 0.0
    %136 = vmatpush2.msra.mxu0 0.0
    %137 = vmatprep.mubr.f32.mxu0 0.0
    %138 = vmatmul.mubr.f32.gmra.mxu0 %v71
    %v139 = vpop.f32.mrf.mxu0
    %v140 = vadd.f32 0.0, %v139
    %v141 = vpop.f32.mrf.mxu0
    %142 = vdwg.mxu0
    %143 = vst [vmem:[#allocation2] sm:$0xff] %v140
    %v144 = vld [vmem:[#allocation2] sm:$0x1]
    %v145 = vld [vmem:[#allocation7 + $0x40] sm:$0xff]
    %v146 = vld [vmem:[#allocation7 + $0x48] sm:$0xff]
    %v147 = vld [vmem:[#allocation7 + $0x50] sm:$0xff]
    %v148 = vld [vmem:[#allocation7 + $0x58] sm:$0xff]
    %v149 = vld [vmem:[#allocation7 + $0x60] sm:$0x1]
    %vm150 = vcmask 261120
    %v152 = vsel %vm150, %v52, 0
    %154 = vmatprep.subr.mxu0 0.0
    %155 = vmatpush1.msra.mxu0 0.0
    %156 = vmatprep.subr.mxu0 0.0
    %157 = vmatpush1.msra.mxu0 0.0
    %158 = vmatprep.subr.mxu0 0.0
    %159 = vmatpush1.msra.mxu0 0.0
    %160 = vmatprep.subr.mxu0 0.0
    %161 = vmatpush1.msra.mxu0 0.0
    %162 = vmatprep.subr.mxu0 0.0
    %163 = vmatpush1.msra.mxu0 0.0
    %164 = vmatprep.subr.mxu0 0.0
    %165 = vmatpush1.msra.mxu0 0.0
    %166 = vmatprep.subr.mxu0 0.0
    %167 = vmatpush1.msra.mxu0 0.0
    %168 = vmatprep.subr.mxu0 0.0
    %169 = vmatpush1.msra.mxu0 0.0
    %170 = vmatprep.subr.mxu0 0.0
    %171 = vmatpush1.msra.mxu0 0.0
    %172 = vmatprep.subr.mxu0 0.0
    %173 = vmatpush1.msra.mxu0 0.0
    %174 = vmatprep.subr.mxu0 0.0
    %175 = vmatpush1.msra.mxu0 0.0
    %176 = vmatprep.subr.mxu0 0.0
    %177 = vmatpush1.msra.mxu0 0.0
    %178 = vmatprep.subr.mxu0 0.0
    %179 = vmatpush1.msra.mxu0 %v148
    %180 = vmatprep.subr.mxu0 0.0
    %181 = vmatpush1.msra.mxu0 %v147
    %182 = vmatprep.subr.mxu0 0.0
    %183 = vmatpush1.msra.mxu0 %v146
    %184 = vmatprep.subr.mxu0 0.0
    %185 = vmatpush1.msra.mxu0 %v145
    %186 = vmatprep.subr.mxu0 0.0
    %187 = vmatpush2.msra.mxu0 0.0
    %188 = vmatprep.subr.mxu0 0.0
    %189 = vmatpush2.msra.mxu0 0.0
    %190 = vmatprep.subr.mxu0 0.0
    %191 = vmatpush2.msra.mxu0 0.0
    %192 = vmatprep.subr.mxu0 0.0
    %193 = vmatpush2.msra.mxu0 0.0
    %194 = vmatprep.subr.mxu0 0.0
    %195 = vmatpush2.msra.mxu0 0.0
    %196 = vmatprep.subr.mxu0 0.0
    %197 = vmatpush2.msra.mxu0 0.0
    %198 = vmatprep.subr.mxu0 0.0
    %199 = vmatpush2.msra.mxu0 0.0
    %200 = vmatprep.subr.mxu0 0.0
    %201 = vmatpush2.msra.mxu0 0.0
    %202 = vmatprep.subr.mxu0 0.0
    %203 = vmatpush2.msra.mxu0 0.0
    %204 = vmatprep.subr.mxu0 0.0
    %205 = vmatpush2.msra.mxu0 0.0
    %206 = vmatprep.subr.mxu0 0.0
    %207 = vmatpush2.msra.mxu0 0.0
    %208 = vmatprep.subr.mxu0 0.0
    %209 = vmatpush2.msra.mxu0 0.0
    %210 = vmatprep.subr.mxu0 0.0
    %211 = vmatpush2.msra.mxu0 0.0
    %212 = vmatprep.subr.mxu0 0.0
    %213 = vmatpush2.msra.mxu0 0.0
    %214 = vmatprep.subr.mxu0 0.0
    %215 = vmatpush2.msra.mxu0 0.0
    %216 = vmatprep.subr.mxu0 0.0
    %217 = vmatpush2.msra.mxu0 0.0
    %218 = vmatprep.mubr.f32.mxu0 0.0
    %219 = vmatmul.mubr.f32.gmra.mxu0 %v152
    %v220 = vpop.f32.mrf.mxu0
    %v221 = vadd.f32 %v149, %v220
    %v222 = vpop.f32.mrf.mxu0
    %223 = vdwg.mxu0
    %v224 = vadd.f32 %v221, %v144
    %v225 = vxor.u32 %v224, 2147483648
    %v226 = vmul.f32 %v225, 1.442695
    %v227 = vpow.pop %v226
    %v228 = vadd.f32 %v227, 1.0
    %v229 = vrcp.pop %v228
    %v230 = vmul.f32 1.0, %v229
    %v231 = vtanh.pop %v224
    %233 = vrot.lane.b32.xlu0 %v54, 32
    %v234 = vpop.permute.xlu0 %233
    %v236 = vmul.f32 %v230, %v234
    %238 = vrot.lane.b32.xlu0 %v231, 32
    %v239 = vpop.permute.xlu0 %238
    %v241 = vmul.f32 %v230, %v239
    %243 = vrot.lane.b32.xlu0 %v241, 32
    %v244 = vpop.permute.xlu0 %243
    %v246 = vadd.f32 %v236, %v244
    %v247 = vtanh.pop %v246
    %249 = vrot.lane.b32.xlu0 %v247, 32
    %v250 = vpop.permute.xlu0 %249
    %v252 = vmul.f32 %v230, %v250
    %254 = vrot.lane.b32.xlu0 %v252, 64
    %v255 = vpop.permute.xlu0 %254
    %258 = vrot.lane.b32.xlu0 %v53, 32
    %v259 = vpop.permute.xlu0 %258
    %v261 = vsel %vm150, %v255, %v259
    %v262 = vld [vmem:[#allocation7 + $0x68] sm:$0xff]
    %v263 = vld [vmem:[#allocation7 + $0x70] sm:$0xff]
    %v264 = vld [vmem:[#allocation7 + $0x78] sm:$0xff]
    %v265 = vld [vmem:[#allocation7 + $0x80] sm:$0xff]
    %v266 = vld [vmem:[#allocation7 + $0x88] sm:$0xff]
    %v267 = vld [vmem:[#allocation7 + $0x90] sm:$0xff]
    %v268 = vld [vmem:[#allocation7 + $0x98] sm:$0xff]
    %v269 = vld [vmem:[#allocation7 + $0xa0] sm:$0xff]
    %v270 = vld [vmem:[#allocation7 + $0xa8] sm:$0x1]
    %v272 = vsel %vm69, %v261, 0
    %274 = vmatprep.subr.mxu0 0.0
    %275 = vmatpush1.msra.mxu0 0.0
    %276 = vmatprep.subr.mxu0 0.0
    %277 = vmatpush1.msra.mxu0 0.0
    %278 = vmatprep.subr.mxu0 0.0
    %279 = vmatpush1.msra.mxu0 0.0
    %280 = vmatprep.subr.mxu0 0.0
    %281 = vmatpush1.msra.mxu0 0.0
    %282 = vmatprep.subr.mxu0 0.0
    %283 = vmatpush1.msra.mxu0 0.0
    %284 = vmatprep.subr.mxu0 0.0
    %285 = vmatpush1.msra.mxu0 0.0
    %286 = vmatprep.subr.mxu0 0.0
    %287 = vmatpush1.msra.mxu0 0.0
    %288 = vmatprep.subr.mxu0 0.0
    %289 = vmatpush1.msra.mxu0 0.0
    %290 = vmatprep.subr.mxu0 0.0
    %291 = vmatpush1.msra.mxu0 %v269
    %292 = vmatprep.subr.mxu0 0.0
    %293 = vmatpush1.msra.mxu0 %v268
    %294 = vmatprep.subr.mxu0 0.0
    %295 = vmatpush1.msra.mxu0 %v267
    %296 = vmatprep.subr.mxu0 0.0
    %297 = vmatpush1.msra.mxu0 %v266
    %298 = vmatprep.subr.mxu0 0.0
    %299 = vmatpush1.msra.mxu0 %v265
    %300 = vmatprep.subr.mxu0 0.0
    %301 = vmatpush1.msra.mxu0 %v264
    %302 = vmatprep.subr.mxu0 0.0
    %303 = vmatpush1.msra.mxu0 %v263
    %304 = vmatprep.subr.mxu0 0.0
    %305 = vmatpush1.msra.mxu0 %v262
    %306 = vmatprep.subr.mxu0 0.0
    %307 = vmatpush2.msra.mxu0 0.0
    %308 = vmatprep.subr.mxu0 0.0
    %309 = vmatpush2.msra.mxu0 0.0
    %310 = vmatprep.subr.mxu0 0.0
    %311 = vmatpush2.msra.mxu0 0.0
    %312 = vmatprep.subr.mxu0 0.0
    %313 = vmatpush2.msra.mxu0 0.0
    %314 = vmatprep.subr.mxu0 0.0
    %315 = vmatpush2.msra.mxu0 0.0
    %316 = vmatprep.subr.mxu0 0.0
    %317 = vmatpush2.msra.mxu0 0.0
    %318 = vmatprep.subr.mxu0 0.0
    %319 = vmatpush2.msra.mxu0 0.0
    %320 = vmatprep.subr.mxu0 0.0
    %321 = vmatpush2.msra.mxu0 0.0
    %322 = vmatprep.subr.mxu0 0.0
    %323 = vmatpush2.msra.mxu0 0.0
    %324 = vmatprep.subr.mxu0 0.0
    %325 = vmatpush2.msra.mxu0 0.0
    %326 = vmatprep.subr.mxu0 0.0
    %327 = vmatpush2.msra.mxu0 0.0
    %328 = vmatprep.subr.mxu0 0.0
    %329 = vmatpush2.msra.mxu0 0.0
    %330 = vmatprep.subr.mxu0 0.0
    %331 = vmatpush2.msra.mxu0 0.0
    %332 = vmatprep.subr.mxu0 0.0
    %333 = vmatpush2.msra.mxu0 0.0
    %334 = vmatprep.subr.mxu0 0.0
    %335 = vmatpush2.msra.mxu0 0.0
    %336 = vmatprep.subr.mxu0 0.0
    %337 = vmatpush2.msra.mxu0 0.0
    %338 = vmatprep.mubr.f32.mxu0 0.0
    %339 = vmatmul.mubr.f32.gmra.mxu0 %v272
    %v340 = vpop.f32.mrf.mxu0
    %v341 = vadd.f32 %v270, %v340
    %v342 = vpop.f32.mrf.mxu0
    %343 = vdwg.mxu0
    %v344 = vxor.u32 %v341, 2147483648
    %v345 = vmul.f32 %v344, 1.442695
    %v346 = vpow.pop %v345
    %v347 = vadd.f32 %v346, 1.0
    %v348 = vrcp.pop %v347
    %v349 = vmul.f32 1.0, %v348
    %v350 = vtanh.pop %v341
    %352 = vrot.lane.b32.xlu0 %v55, 32
    %v353 = vpop.permute.xlu0 %352
    %v355 = vmul.f32 %v349, %v353
    %357 = vrot.lane.b32.xlu0 %v350, 32
    %v358 = vpop.permute.xlu0 %357
    %v360 = vmul.f32 %v349, %v358
    %362 = vrot.lane.b32.xlu0 %v360, 32
    %v363 = vpop.permute.xlu0 %362
    %v365 = vadd.f32 %v355, %v363
    %v366 = vtanh.pop %v365
    %368 = vrot.lane.b32.xlu0 %v366, 32
    %v369 = vpop.permute.xlu0 %368
    %v371 = vmul.f32 %v349, %v369
    %v372 = vld [vmem:[#allocation7 + $0xf0] sm:$0x1]
    %374 = vrot.lane.b32.xlu0 %v371, 64
    %v375 = vpop.permute.xlu0 %374
    %378 = vrot.lane.b32.xlu0 %v56, 32
    %v379 = vpop.permute.xlu0 %378
    %v381 = vsel %vm150, %v375, %v379
    %v382 = vld [vmem:[#allocation7 + $0xb0] sm:$0xff]
    %v383 = vld [vmem:[#allocation7 + $0xb8] sm:$0xff]
    %v384 = vld [vmem:[#allocation7 + $0xc0] sm:$0xff]
    %v385 = vld [vmem:[#allocation7 + $0xc8] sm:$0xff]
    %v386 = vld [vmem:[#allocation7 + $0xd0] sm:$0xff]
    %v387 = vld [vmem:[#allocation7 + $0xd8] sm:$0xff]
    %v388 = vld [vmem:[#allocation7 + $0xe0] sm:$0xff]
    %v389 = vld [vmem:[#allocation7 + $0xe8] sm:$0xff]
    %v391 = vsel %vm69, %v381, 0
    %393 = vmatprep.subr.mxu0 0.0
    %394 = vmatpush1.msra.mxu0 0.0
    %395 = vmatprep.subr.mxu0 0.0
    %396 = vmatpush1.msra.mxu0 0.0
    %397 = vmatprep.subr.mxu0 0.0
    %398 = vmatpush1.msra.mxu0 0.0
    %399 = vmatprep.subr.mxu0 0.0
    %400 = vmatpush1.msra.mxu0 0.0
    %401 = vmatprep.subr.mxu0 0.0
    %402 = vmatpush1.msra.mxu0 0.0
    %403 = vmatprep.subr.mxu0 0.0
    %404 = vmatpush1.msra.mxu0 0.0
    %405 = vmatprep.subr.mxu0 0.0
    %406 = vmatpush1.msra.mxu0 0.0
    %407 = vmatprep.subr.mxu0 0.0
    %408 = vmatpush1.msra.mxu0 0.0
    %409 = vmatprep.subr.mxu0 0.0
    %410 = vmatpush1.msra.mxu0 %v389
    %411 = vmatprep.subr.mxu0 0.0
    %412 = vmatpush1.msra.mxu0 %v388
    %413 = vmatprep.subr.mxu0 0.0
    %414 = vmatpush1.msra.mxu0 %v387
    %415 = vmatprep.subr.mxu0 0.0
    %416 = vmatpush1.msra.mxu0 %v386
    %417 = vmatprep.subr.mxu0 0.0
    %418 = vmatpush1.msra.mxu0 %v385
    %419 = vmatprep.subr.mxu0 0.0
    %420 = vmatpush1.msra.mxu0 %v384
    %421 = vmatprep.subr.mxu0 0.0
    %422 = vmatpush1.msra.mxu0 %v383
    %423 = vmatprep.subr.mxu0 0.0
    %424 = vmatpush1.msra.mxu0 %v382
    %425 = vmatprep.subr.mxu0 0.0
    %426 = vmatpush2.msra.mxu0 0.0
    %427 = vmatprep.subr.mxu0 0.0
    %428 = vmatpush2.msra.mxu0 0.0
    %429 = vmatprep.subr.mxu0 0.0
    %430 = vmatpush2.msra.mxu0 0.0
    %431 = vmatprep.subr.mxu0 0.0
    %432 = vmatpush2.msra.mxu0 0.0
    %433 = vmatprep.subr.mxu0 0.0
    %434 = vmatpush2.msra.mxu0 0.0
    %435 = vmatprep.subr.mxu0 0.0
    %436 = vmatpush2.msra.mxu0 0.0
    %437 = vmatprep.subr.mxu0 0.0
    %438 = vmatpush2.msra.mxu0 0.0
    %439 = vmatprep.subr.mxu0 0.0
    %440 = vmatpush2.msra.mxu0 0.0
    %441 = vmatprep.subr.mxu0 0.0
    %442 = vmatpush2.msra.mxu0 0.0
    %443 = vmatprep.subr.mxu0 0.0
    %444 = vmatpush2.msra.mxu0 0.0
    %445 = vmatprep.subr.mxu0 0.0
    %446 = vmatpush2.msra.mxu0 0.0
    %447 = vmatprep.subr.mxu0 0.0
    %448 = vmatpush2.msra.mxu0 0.0
    %449 = vmatprep.subr.mxu0 0.0
    %450 = vmatpush2.msra.mxu0 0.0
    %451 = vmatprep.subr.mxu0 0.0
    %452 = vmatpush2.msra.mxu0 0.0
    %453 = vmatprep.subr.mxu0 0.0
    %454 = vmatpush2.msra.mxu0 0.0
    %455 = vmatprep.subr.mxu0 0.0
    %456 = vmatpush2.msra.mxu0 0.0
    %457 = vmatprep.mubr.f32.mxu0 0.0
    %458 = vmatmul.mubr.f32.gmra.mxu0 %v391
    %v459 = vpop.f32.mrf.mxu0
    %v460 = vadd.f32 %v372, %v459
    %v461 = vpop.f32.mrf.mxu0
    %462 = vdwg.mxu0
    %v463 = vxor.u32 %v460, 2147483648
    %v464 = vmul.f32 %v463, 1.442695
    %v465 = vpow.pop %v464
    %v466 = vadd.f32 %v465, 1.0
    %v467 = vrcp.pop %v466
    %v468 = vmul.f32 1.0, %v467
    %v469 = vtanh.pop %v460
    %471 = vrot.lane.b32.xlu0 %v58, 32
    %v472 = vpop.permute.xlu0 %471
    %v474 = vmul.f32 %v468, %v472
    %476 = vrot.lane.b32.xlu0 %v469, 32
    %v477 = vpop.permute.xlu0 %476
    %v479 = vmul.f32 %v468, %v477
    %481 = vrot.lane.b32.xlu0 %v479, 32
    %v482 = vpop.permute.xlu0 %481
    %v484 = vadd.f32 %v474, %v482
    %v485 = vtanh.pop %v484
    %487 = vrot.lane.b32.xlu0 %v485, 32
    %v488 = vpop.permute.xlu0 %487
    %v490 = vmul.f32 %v468, %v488
    %492 = vrot.lane.b32.xlu0 %v490, 64
    %v493 = vpop.permute.xlu0 %492
    %496 = vrot.lane.b32.xlu0 %v57, 32
    %v497 = vpop.permute.xlu0 %496
    %v499 = vsel %vm150, %v493, %v497
    %v500 = vld [vmem:[#allocation7 + $0x100] sm:$0xff]
    %v501 = vld [vmem:[#allocation7 + $0x108] sm:$0xff]
    %v502 = vld [vmem:[#allocation7 + $0x110] sm:$0xff]
    %v503 = vld [vmem:[#allocation7 + $0x118] sm:$0xff]
    %v504 = vld [vmem:[#allocation7 + $0x120] sm:$0xff]
    %v505 = vld [vmem:[#allocation7 + $0x128] sm:$0xff]
    %v506 = vld [vmem:[#allocation7 + $0x130] sm:$0xff]
    %v507 = vld [vmem:[#allocation7 + $0x138] sm:$0xff]
    %v508 = vld [vmem:[#allocation7 + $0x140] sm:$0x1]
    %v510 = vsel %vm69, %v499, 0
    %512 = vmatprep.subr.mxu0 0.0
    %513 = vmatpush1.msra.mxu0 0.0
    %514 = vmatprep.subr.mxu0 0.0
    %515 = vmatpush1.msra.mxu0 0.0
    %516 = vmatprep.subr.mxu0 0.0
    %517 = vmatpush1.msra.mxu0 0.0
    %518 = vmatprep.subr.mxu0 0.0
    %519 = vmatpush1.msra.mxu0 0.0
    %520 = vmatprep.subr.mxu0 0.0
    %521 = vmatpush1.msra.mxu0 0.0
    %522 = vmatprep.subr.mxu0 0.0
    %523 = vmatpush1.msra.mxu0 0.0
    %524 = vmatprep.subr.mxu0 0.0
    %525 = vmatpush1.msra.mxu0 0.0
    %526 = vmatprep.subr.mxu0 0.0
    %527 = vmatpush1.msra.mxu0 0.0
    %528 = vmatprep.subr.mxu0 0.0
    %529 = vmatpush1.msra.mxu0 %v507
    %530 = vmatprep.subr.mxu0 0.0
    %531 = vmatpush1.msra.mxu0 %v506
    %532 = vmatprep.subr.mxu0 0.0
    %533 = vmatpush1.msra.mxu0 %v505
    %534 = vmatprep.subr.mxu0 0.0
    %535 = vmatpush1.msra.mxu0 %v504
    %536 = vmatprep.subr.mxu0 0.0
    %537 = vmatpush1.msra.mxu0 %v503
    %538 = vmatprep.subr.mxu0 0.0
    %539 = vmatpush1.msra.mxu0 %v502
    %540 = vmatprep.subr.mxu0 0.0
    %541 = vmatpush1.msra.mxu0 %v501
    %542 = vmatprep.subr.mxu0 0.0
    %543 = vmatpush1.msra.mxu0 %v500
    %544 = vmatprep.subr.mxu0 0.0
    %545 = vmatpush2.msra.mxu0 0.0
    %546 = vmatprep.subr.mxu0 0.0
    %547 = vmatpush2.msra.mxu0 0.0
    %548 = vmatprep.subr.mxu0 0.0
    %549 = vmatpush2.msra.mxu0 0.0
    %550 = vmatprep.subr.mxu0 0.0
    %551 = vmatpush2.msra.mxu0 0.0
    %552 = vmatprep.subr.mxu0 0.0
    %553 = vmatpush2.msra.mxu0 0.0
    %554 = vmatprep.subr.mxu0 0.0
    %555 = vmatpush2.msra.mxu0 0.0
    %556 = vmatprep.subr.mxu0 0.0
    %557 = vmatpush2.msra.mxu0 0.0
    %558 = vmatprep.subr.mxu0 0.0
    %559 = vmatpush2.msra.mxu0 0.0
    %560 = vmatprep.subr.mxu0 0.0
    %561 = vmatpush2.msra.mxu0 0.0
    %562 = vmatprep.subr.mxu0 0.0
    %563 = vmatpush2.msra.mxu0 0.0
    %564 = vmatprep.subr.mxu0 0.0
    %565 = vmatpush2.msra.mxu0 0.0
    %566 = vmatprep.subr.mxu0 0.0
    %567 = vmatpush2.msra.mxu0 0.0
    %568 = vmatprep.subr.mxu0 0.0
    %569 = vmatpush2.msra.mxu0 0.0
    %570 = vmatprep.subr.mxu0 0.0
    %571 = vmatpush2.msra.mxu0 0.0
    %572 = vmatprep.subr.mxu0 0.0
    %573 = vmatpush2.msra.mxu0 0.0
    %574 = vmatprep.subr.mxu0 0.0
    %575 = vmatpush2.msra.mxu0 0.0
    %576 = vmatprep.mubr.f32.mxu0 0.0
    %577 = vmatmul.mubr.f32.gmra.mxu0 %v510
    %v578 = vpop.f32.mrf.mxu0
    %v579 = vadd.f32 %v508, %v578
    %v580 = vpop.f32.mrf.mxu0
    %581 = vdwg.mxu0
    %v582 = vxor.u32 %v579, 2147483648
    %v583 = vmul.f32 %v582, 1.442695
    %v584 = vpow.pop %v583
    %v585 = vadd.f32 %v584, 1.0
    %v586 = vrcp.pop %v585
    %v587 = vmul.f32 1.0, %v586
    %v588 = vtanh.pop %v579
    %590 = vrot.lane.b32.xlu0 %v59, 32
    %v591 = vpop.permute.xlu0 %590
    %v593 = vmul.f32 %v587, %v591
    %595 = vrot.lane.b32.xlu0 %v588, 32
    %v596 = vpop.permute.xlu0 %595
    %v598 = vmul.f32 %v587, %v596
    %600 = vrot.lane.b32.xlu0 %v598, 32
    %v601 = vpop.permute.xlu0 %600
    %v603 = vadd.f32 %v593, %v601
    %v604 = vtanh.pop %v603
    %606 = vrot.lane.b32.xlu0 %v604, 32
    %v607 = vpop.permute.xlu0 %606
    %v609 = vmul.f32 %v587, %v607
    %v610 = vld [vmem:[#allocation2 + $0x1] sm:$0x1]
    %v611 = vsel %vm150, %v255, 0
    %613 = vmatprep.subr.mxu0 0.0
    %614 = vmatpush1.msra.mxu0 0.0
    %615 = vmatprep.subr.mxu0 0.0
    %616 = vmatpush1.msra.mxu0 0.0
    %617 = vmatprep.subr.mxu0 0.0
    %618 = vmatpush1.msra.mxu0 0.0
    %619 = vmatprep.subr.mxu0 0.0
    %620 = vmatpush1.msra.mxu0 0.0
    %621 = vmatprep.subr.mxu0 0.0
    %622 = vmatpush1.msra.mxu0 0.0
    %623 = vmatprep.subr.mxu0 0.0
    %624 = vmatpush1.msra.mxu0 0.0
    %625 = vmatprep.subr.mxu0 0.0
    %626 = vmatpush1.msra.mxu0 0.0
    %627 = vmatprep.subr.mxu0 0.0
    %628 = vmatpush1.msra.mxu0 0.0
    %629 = vmatprep.subr.mxu0 0.0
    %630 = vmatpush1.msra.mxu0 0.0
    %631 = vmatprep.subr.mxu0 0.0
    %632 = vmatpush1.msra.mxu0 0.0
    %633 = vmatprep.subr.mxu0 0.0
    %634 = vmatpush1.msra.mxu0 0.0
    %635 = vmatprep.subr.mxu0 0.0
    %636 = vmatpush1.msra.mxu0 0.0
    %637 = vmatprep.subr.mxu0 0.0
    %638 = vmatpush1.msra.mxu0 %v148
    %639 = vmatprep.subr.mxu0 0.0
    %640 = vmatpush1.msra.mxu0 %v147
    %641 = vmatprep.subr.mxu0 0.0
    %642 = vmatpush1.msra.mxu0 %v146
    %643 = vmatprep.subr.mxu0 0.0
    %644 = vmatpush1.msra.mxu0 %v145
    %645 = vmatprep.subr.mxu0 0.0
    %646 = vmatpush2.msra.mxu0 0.0
    %647 = vmatprep.subr.mxu0 0.0
    %648 = vmatpush2.msra.mxu0 0.0
    %649 = vmatprep.subr.mxu0 0.0
    %650 = vmatpush2.msra.mxu0 0.0
    %651 = vmatprep.subr.mxu0 0.0
    %652 = vmatpush2.msra.mxu0 0.0
    %653 = vmatprep.subr.mxu0 0.0
    %654 = vmatpush2.msra.mxu0 0.0
    %655 = vmatprep.subr.mxu0 0.0
    %656 = vmatpush2.msra.mxu0 0.0
    %657 = vmatprep.subr.mxu0 0.0
    %658 = vmatpush2.msra.mxu0 0.0
    %659 = vmatprep.subr.mxu0 0.0
    %660 = vmatpush2.msra.mxu0 0.0
    %661 = vmatprep.subr.mxu0 0.0
    %662 = vmatpush2.msra.mxu0 0.0
    %663 = vmatprep.subr.mxu0 0.0
    %664 = vmatpush2.msra.mxu0 0.0
    %665 = vmatprep.subr.mxu0 0.0
    %666 = vmatpush2.msra.mxu0 0.0
    %667 = vmatprep.subr.mxu0 0.0
    %668 = vmatpush2.msra.mxu0 0.0
    %669 = vmatprep.subr.mxu0 0.0
    %670 = vmatpush2.msra.mxu0 0.0
    %671 = vmatprep.subr.mxu0 0.0
    %672 = vmatpush2.msra.mxu0 0.0
    %673 = vmatprep.subr.mxu0 0.0
    %674 = vmatpush2.msra.mxu0 0.0
    %675 = vmatprep.subr.mxu0 0.0
    %676 = vmatpush2.msra.mxu0 0.0
    %677 = vmatprep.mubr.f32.mxu0 0.0
    %678 = vmatmul.mubr.f32.gmra.mxu0 %v611
    %v679 = vpop.f32.mrf.mxu0
    %v680 = vadd.f32 %v149, %v679
    %v681 = vpop.f32.mrf.mxu0
    %682 = vdwg.mxu0
    %v683 = vadd.f32 %v680, %v610
    %v684 = vxor.u32 %v683, 2147483648
    %v685 = vmul.f32 %v684, 1.442695
    %v686 = vpow.pop %v685
    %v687 = vadd.f32 %v686, 1.0
    %v688 = vrcp.pop %v687
    %v689 = vmul.f32 1.0, %v688
    %v690 = vtanh.pop %v683
    %v691 = vmul.f32 %v689, %v246
    %693 = vrot.lane.b32.xlu0 %v690, 32
    %v694 = vpop.permute.xlu0 %693
    %v696 = vmul.f32 %v689, %v694
    %698 = vrot.lane.b32.xlu0 %v696, 32
    %v699 = vpop.permute.xlu0 %698
    %v701 = vadd.f32 %v691, %v699
    %v702 = vtanh.pop %v701
    %704 = vrot.lane.b32.xlu0 %v702, 32
    %v705 = vpop.permute.xlu0 %704
    %v707 = vmul.f32 %v689, %v705
    %709 = vrot.lane.b32.xlu0 %v707, 64
    %v710 = vpop.permute.xlu0 %709
    %712 = vrot.lane.b32.xlu0 %v371, 96
    %v713 = vpop.permute.xlu0 %712
    %v715 = vsel %vm150, %v710, %v713
    %v717 = vsel %vm69, %v715, 0
    %719 = vmatprep.subr.mxu0 0.0
    %720 = vmatpush1.msra.mxu0 0.0
    %721 = vmatprep.subr.mxu0 0.0
    %722 = vmatpush1.msra.mxu0 0.0
    %723 = vmatprep.subr.mxu0 0.0
    %724 = vmatpush1.msra.mxu0 0.0
    %725 = vmatprep.subr.mxu0 0.0
    %726 = vmatpush1.msra.mxu0 0.0
    %727 = vmatprep.subr.mxu0 0.0
    %728 = vmatpush1.msra.mxu0 0.0
    %729 = vmatprep.subr.mxu0 0.0
    %730 = vmatpush1.msra.mxu0 0.0
    %731 = vmatprep.subr.mxu0 0.0
    %732 = vmatpush1.msra.mxu0 0.0
    %733 = vmatprep.subr.mxu0 0.0
    %734 = vmatpush1.msra.mxu0 0.0
    %735 = vmatprep.subr.mxu0 0.0
    %736 = vmatpush1.msra.mxu0 %v269
    %737 = vmatprep.subr.mxu0 0.0
    %738 = vmatpush1.msra.mxu0 %v268
    %739 = vmatprep.subr.mxu0 0.0
    %740 = vmatpush1.msra.mxu0 %v267
    %741 = vmatprep.subr.mxu0 0.0
    %742 = vmatpush1.msra.mxu0 %v266
    %743 = vmatprep.subr.mxu0 0.0
    %744 = vmatpush1.msra.mxu0 %v265
    %745 = vmatprep.subr.mxu0 0.0
    %746 = vmatpush1.msra.mxu0 %v264
    %747 = vmatprep.subr.mxu0 0.0
    %748 = vmatpush1.msra.mxu0 %v263
    %749 = vmatprep.subr.mxu0 0.0
    %750 = vmatpush1.msra.mxu0 %v262
    %751 = vmatprep.subr.mxu0 0.0
    %752 = vmatpush2.msra.mxu0 0.0
    %753 = vmatprep.subr.mxu0 0.0
    %754 = vmatpush2.msra.mxu0 0.0
    %755 = vmatprep.subr.mxu0 0.0
    %756 = vmatpush2.msra.mxu0 0.0
    %757 = vmatprep.subr.mxu0 0.0
    %758 = vmatpush2.msra.mxu0 0.0
    %759 = vmatprep.subr.mxu0 0.0
    %760 = vmatpush2.msra.mxu0 0.0
    %761 = vmatprep.subr.mxu0 0.0
    %762 = vmatpush2.msra.mxu0 0.0
    %763 = vmatprep.subr.mxu0 0.0
    %764 = vmatpush2.msra.mxu0 0.0
    %765 = vmatprep.subr.mxu0 0.0
    %766 = vmatpush2.msra.mxu0 0.0
    %767 = vmatprep.subr.mxu0 0.0
    %768 = vmatpush2.msra.mxu0 0.0
    %769 = vmatprep.subr.mxu0 0.0
    %770 = vmatpush2.msra.mxu0 0.0
    %771 = vmatprep.subr.mxu0 0.0
    %772 = vmatpush2.msra.mxu0 0.0
    %773 = vmatprep.subr.mxu0 0.0
    %774 = vmatpush2.msra.mxu0 0.0
    %775 = vmatprep.subr.mxu0 0.0
    %776 = vmatpush2.msra.mxu0 0.0
    %777 = vmatprep.subr.mxu0 0.0
    %778 = vmatpush2.msra.mxu0 0.0
    %779 = vmatprep.subr.mxu0 0.0
    %780 = vmatpush2.msra.mxu0 0.0
    %781 = vmatprep.subr.mxu0 0.0
    %782 = vmatpush2.msra.mxu0 0.0
    %783 = vmatprep.mubr.f32.mxu0 0.0
    %784 = vmatmul.mubr.f32.gmra.mxu0 %v717
    %v785 = vpop.f32.mrf.mxu0
    %v786 = vadd.f32 %v270, %v785
    %v787 = vpop.f32.mrf.mxu0
    %788 = vdwg.mxu0
    %v789 = vxor.u32 %v786, 2147483648
    %v790 = vmul.f32 %v789, 1.442695
    %v791 = vpow.pop %v790
    %v792 = vadd.f32 %v791, 1.0
    %v793 = vrcp.pop %v792
    %v794 = vmul.f32 1.0, %v793
    %v795 = vtanh.pop %v786
    %v796 = vmul.f32 %v794, %v365
    %798 = vrot.lane.b32.xlu0 %v795, 32
    %v799 = vpop.permute.xlu0 %798
    %v801 = vmul.f32 %v794, %v799
    %803 = vrot.lane.b32.xlu0 %v801, 32
    %v804 = vpop.permute.xlu0 %803
    %v806 = vadd.f32 %v796, %v804
    %v807 = vtanh.pop %v806
    %809 = vrot.lane.b32.xlu0 %v807, 32
    %v810 = vpop.permute.xlu0 %809
    %v812 = vmul.f32 %v794, %v810
    %814 = vrot.lane.b32.xlu0 %v812, 64
    %v815 = vpop.permute.xlu0 %814
    %817 = vrot.lane.b32.xlu0 %v490, 96
    %v818 = vpop.permute.xlu0 %817
    %v820 = vsel %vm150, %v815, %v818
    %v822 = vsel %vm69, %v820, 0
    %824 = vmatprep.subr.mxu0 0.0
    %825 = vmatpush1.msra.mxu0 0.0
    %826 = vmatprep.subr.mxu0 0.0
    %827 = vmatpush1.msra.mxu0 0.0
    %828 = vmatprep.subr.mxu0 0.0
    %829 = vmatpush1.msra.mxu0 0.0
    %830 = vmatprep.subr.mxu0 0.0
    %831 = vmatpush1.msra.mxu0 0.0
    %832 = vmatprep.subr.mxu0 0.0
    %833 = vmatpush1.msra.mxu0 0.0
    %834 = vmatprep.subr.mxu0 0.0
    %835 = vmatpush1.msra.mxu0 0.0
    %836 = vmatprep.subr.mxu0 0.0
    %837 = vmatpush1.msra.mxu0 0.0
    %838 = vmatprep.subr.mxu0 0.0
    %839 = vmatpush1.msra.mxu0 0.0
    %840 = vmatprep.subr.mxu0 0.0
    %841 = vmatpush1.msra.mxu0 %v389
    %842 = vmatprep.subr.mxu0 0.0
    %843 = vmatpush1.msra.mxu0 %v388
    %844 = vmatprep.subr.mxu0 0.0
    %845 = vmatpush1.msra.mxu0 %v387
    %846 = vmatprep.subr.mxu0 0.0
    %847 = vmatpush1.msra.mxu0 %v386
    %848 = vmatprep.subr.mxu0 0.0
    %849 = vmatpush1.msra.mxu0 %v385
    %850 = vmatprep.subr.mxu0 0.0
    %851 = vmatpush1.msra.mxu0 %v384
    %852 = vmatprep.subr.mxu0 0.0
    %853 = vmatpush1.msra.mxu0 %v383
    %854 = vmatprep.subr.mxu0 0.0
    %855 = vmatpush1.msra.mxu0 %v382
    %856 = vmatprep.subr.mxu0 0.0
    %857 = vmatpush2.msra.mxu0 0.0
    %858 = vmatprep.subr.mxu0 0.0
    %859 = vmatpush2.msra.mxu0 0.0
    %860 = vmatprep.subr.mxu0 0.0
    %861 = vmatpush2.msra.mxu0 0.0
    %862 = vmatprep.subr.mxu0 0.0
    %863 = vmatpush2.msra.mxu0 0.0
    %864 = vmatprep.subr.mxu0 0.0
    %865 = vmatpush2.msra.mxu0 0.0
    %866 = vmatprep.subr.mxu0 0.0
    %867 = vmatpush2.msra.mxu0 0.0
    %868 = vmatprep.subr.mxu0 0.0
    %869 = vmatpush2.msra.mxu0 0.0
    %870 = vmatprep.subr.mxu0 0.0
    %871 = vmatpush2.msra.mxu0 0.0
    %872 = vmatprep.subr.mxu0 0.0
    %873 = vmatpush2.msra.mxu0 0.0
    %874 = vmatprep.subr.mxu0 0.0
    %875 = vmatpush2.msra.mxu0 0.0
    %876 = vmatprep.subr.mxu0 0.0
    %877 = vmatpush2.msra.mxu0 0.0
    %878 = vmatprep.subr.mxu0 0.0
    %879 = vmatpush2.msra.mxu0 0.0
    %880 = vmatprep.subr.mxu0 0.0
    %881 = vmatpush2.msra.mxu0 0.0
    %882 = vmatprep.subr.mxu0 0.0
    %883 = vmatpush2.msra.mxu0 0.0
    %884 = vmatprep.subr.mxu0 0.0
    %885 = vmatpush2.msra.mxu0 0.0
    %886 = vmatprep.subr.mxu0 0.0
    %887 = vmatpush2.msra.mxu0 0.0
    %888 = vmatprep.mubr.f32.mxu0 0.0
    %889 = vmatmul.mubr.f32.gmra.mxu0 %v822
    %v890 = vpop.f32.mrf.mxu0
    %v891 = vadd.f32 %v372, %v890
    %v892 = vpop.f32.mrf.mxu0
    %893 = vdwg.mxu0
    %v894 = vxor.u32 %v891, 2147483648
    %v895 = vmul.f32 %v894, 1.442695
    %v896 = vpow.pop %v895
    %v897 = vadd.f32 %v896, 1.0
    %v898 = vrcp.pop %v897
    %v899 = vmul.f32 1.0, %v898
    %v900 = vtanh.pop %v891
    %v901 = vmul.f32 %v899, %v484
    %903 = vrot.lane.b32.xlu0 %v900, 32
    %v904 = vpop.permute.xlu0 %903
    %v906 = vmul.f32 %v899, %v904
    %908 = vrot.lane.b32.xlu0 %v906, 32
    %v909 = vpop.permute.xlu0 %908
    %v911 = vadd.f32 %v901, %v909
    %v912 = vtanh.pop %v911
    %914 = vrot.lane.b32.xlu0 %v912, 32
    %v915 = vpop.permute.xlu0 %914
    %v917 = vmul.f32 %v899, %v915
    %919 = vrot.lane.b32.xlu0 %v917, 64
    %v920 = vpop.permute.xlu0 %919
    %923 = vrot.lane.b32.xlu0 %v609, 96
    %v924 = vpop.permute.xlu0 %923
    %v926 = vsel %vm150, %v920, %v924
    %v928 = vsel %vm69, %v926, 0
    %930 = vmatprep.subr.mxu0 0.0
    %931 = vmatpush1.msra.mxu0 0.0
    %932 = vmatprep.subr.mxu0 0.0
    %933 = vmatpush1.msra.mxu0 0.0
    %934 = vmatprep.subr.mxu0 0.0
    %935 = vmatpush1.msra.mxu0 0.0
    %936 = vmatprep.subr.mxu0 0.0
    %937 = vmatpush1.msra.mxu0 0.0
    %938 = vmatprep.subr.mxu0 0.0
    %939 = vmatpush1.msra.mxu0 0.0
    %940 = vmatprep.subr.mxu0 0.0
    %941 = vmatpush1.msra.mxu0 0.0
    %942 = vmatprep.subr.mxu0 0.0
    %943 = vmatpush1.msra.mxu0 0.0
    %944 = vmatprep.subr.mxu0 0.0
    %945 = vmatpush1.msra.mxu0 0.0
    %946 = vmatprep.subr.mxu0 0.0
    %947 = vmatpush1.msra.mxu0 %v507
    %948 = vmatprep.subr.mxu0 0.0
    %949 = vmatpush1.msra.mxu0 %v506
    %950 = vmatprep.subr.mxu0 0.0
    %951 = vmatpush1.msra.mxu0 %v505
    %952 = vmatprep.subr.mxu0 0.0
    %953 = vmatpush1.msra.mxu0 %v504
    %954 = vmatprep.subr.mxu0 0.0
    %955 = vmatpush1.msra.mxu0 %v503
    %956 = vmatprep.subr.mxu0 0.0
    %957 = vmatpush1.msra.mxu0 %v502
    %958 = vmatprep.subr.mxu0 0.0
    %959 = vmatpush1.msra.mxu0 %v501
    %960 = vmatprep.subr.mxu0 0.0
    %961 = vmatpush1.msra.mxu0 %v500
    %962 = vmatprep.subr.mxu0 0.0
    %963 = vmatpush2.msra.mxu0 0.0
    %964 = vmatprep.subr.mxu0 0.0
    %965 = vmatpush2.msra.mxu0 0.0
    %966 = vmatprep.subr.mxu0 0.0
    %967 = vmatpush2.msra.mxu0 0.0
    %968 = vmatprep.subr.mxu0 0.0
    %969 = vmatpush2.msra.mxu0 0.0
    %970 = vmatprep.subr.mxu0 0.0
    %971 = vmatpush2.msra.mxu0 0.0
    %972 = vmatprep.subr.mxu0 0.0
    %973 = vmatpush2.msra.mxu0 0.0
    %974 = vmatprep.subr.mxu0 0.0
    %975 = vmatpush2.msra.mxu0 0.0
    %976 = vmatprep.subr.mxu0 0.0
    %977 = vmatpush2.msra.mxu0 0.0
    %978 = vmatprep.subr.mxu0 0.0
    %979 = vmatpush2.msra.mxu0 0.0
    %980 = vmatprep.subr.mxu0 0.0
    %981 = vmatpush2.msra.mxu0 0.0
    %982 = vmatprep.subr.mxu0 0.0
    %983 = vmatpush2.msra.mxu0 0.0
    %984 = vmatprep.subr.mxu0 0.0
    %985 = vmatpush2.msra.mxu0 0.0
    %986 = vmatprep.subr.mxu0 0.0
    %987 = vmatpush2.msra.mxu0 0.0
    %988 = vmatprep.subr.mxu0 0.0
    %989 = vmatpush2.msra.mxu0 0.0
    %990 = vmatprep.subr.mxu0 0.0
    %991 = vmatpush2.msra.mxu0 0.0
    %992 = vmatprep.subr.mxu0 0.0
    %993 = vmatpush2.msra.mxu0 0.0
    %994 = vmatprep.mubr.f32.mxu0 0.0
    %995 = vmatmul.mubr.f32.gmra.mxu0 %v928
    %v996 = vpop.f32.mrf.mxu0
    %v997 = vadd.f32 %v508, %v996
    %v998 = vpop.f32.mrf.mxu0
    %999 = vdwg.mxu0
    %v1000 = vxor.u32 %v997, 2147483648
    %v1001 = vmul.f32 %v1000, 1.442695
    %v1002 = vpow.pop %v1001
    %v1003 = vadd.f32 %v1002, 1.0
    %v1004 = vrcp.pop %v1003
    %v1005 = vmul.f32 1.0, %v1004
    %v1006 = vtanh.pop %v997
    %v1007 = vmul.f32 %v1005, %v603
    %1009 = vrot.lane.b32.xlu0 %v1006, 32
    %v1010 = vpop.permute.xlu0 %1009
    %v1012 = vmul.f32 %v1005, %v1010
    %1014 = vrot.lane.b32.xlu0 %v1012, 32
    %v1015 = vpop.permute.xlu0 %1014
    %v1017 = vadd.f32 %v1007, %v1015
    %v1018 = vtanh.pop %v1017
    %1020 = vrot.lane.b32.xlu0 %v1018, 32
    %v1021 = vpop.permute.xlu0 %1020
    %v1023 = vmul.f32 %v1005, %v1021
    %v1024 = vld [vmem:[#allocation2 + $0x2] sm:$0x1]
    %v1025 = vsel %vm150, %v710, 0
    %1027 = vmatprep.subr.mxu0 0.0
    %1028 = vmatpush1.msra.mxu0 0.0
    %1029 = vmatprep.subr.mxu0 0.0
    %1030 = vmatpush1.msra.mxu0 0.0
    %1031 = vmatprep.subr.mxu0 0.0
    %1032 = vmatpush1.msra.mxu0 0.0
    %1033 = vmatprep.subr.mxu0 0.0
    %1034 = vmatpush1.msra.mxu0 0.0
    %1035 = vmatprep.subr.mxu0 0.0
    %1036 = vmatpush1.msra.mxu0 0.0
    %1037 = vmatprep.subr.mxu0 0.0
    %1038 = vmatpush1.msra.mxu0 0.0
    %1039 = vmatprep.subr.mxu0 0.0
    %1040 = vmatpush1.msra.mxu0 0.0
    %1041 = vmatprep.subr.mxu0 0.0
    %1042 = vmatpush1.msra.mxu0 0.0
    %1043 = vmatprep.subr.mxu0 0.0
    %1044 = vmatpush1.msra.mxu0 0.0
    %1045 = vmatprep.subr.mxu0 0.0
    %1046 = vmatpush1.msra.mxu0 0.0
    %1047 = vmatprep.subr.mxu0 0.0
    %1048 = vmatpush1.msra.mxu0 0.0
    %1049 = vmatprep.subr.mxu0 0.0
    %1050 = vmatpush1.msra.mxu0 0.0
    %1051 = vmatprep.subr.mxu0 0.0
    %1052 = vmatpush1.msra.mxu0 %v148
    %1053 = vmatprep.subr.mxu0 0.0
    %1054 = vmatpush1.msra.mxu0 %v147
    %1055 = vmatprep.subr.mxu0 0.0
    %1056 = vmatpush1.msra.mxu0 %v146
    %1057 = vmatprep.subr.mxu0 0.0
    %1058 = vmatpush1.msra.mxu0 %v145
    %1059 = vmatprep.subr.mxu0 0.0
    %1060 = vmatpush2.msra.mxu0 0.0
    %1061 = vmatprep.subr.mxu0 0.0
    %1062 = vmatpush2.msra.mxu0 0.0
    %1063 = vmatprep.subr.mxu0 0.0
    %1064 = vmatpush2.msra.mxu0 0.0
    %1065 = vmatprep.subr.mxu0 0.0
    %1066 = vmatpush2.msra.mxu0 0.0
    %1067 = vmatprep.subr.mxu0 0.0
    %1068 = vmatpush2.msra.mxu0 0.0
    %1069 = vmatprep.subr.mxu0 0.0
    %1070 = vmatpush2.msra.mxu0 0.0
    %1071 = vmatprep.subr.mxu0 0.0
    %1072 = vmatpush2.msra.mxu0 0.0
    %1073 = vmatprep.subr.mxu0 0.0
    %1074 = vmatpush2.msra.mxu0 0.0
    %1075 = vmatprep.subr.mxu0 0.0
    %1076 = vmatpush2.msra.mxu0 0.0
    %1077 = vmatprep.subr.mxu0 0.0
    %1078 = vmatpush2.msra.mxu0 0.0
    %1079 = vmatprep.subr.mxu0 0.0
    %1080 = vmatpush2.msra.mxu0 0.0
    %1081 = vmatprep.subr.mxu0 0.0
    %1082 = vmatpush2.msra.mxu0 0.0
    %1083 = vmatprep.subr.mxu0 0.0
    %1084 = vmatpush2.msra.mxu0 0.0
    %1085 = vmatprep.subr.mxu0 0.0
    %1086 = vmatpush2.msra.mxu0 0.0
    %1087 = vmatprep.subr.mxu0 0.0
    %1088 = vmatpush2.msra.mxu0 0.0
    %1089 = vmatprep.subr.mxu0 0.0
    %1090 = vmatpush2.msra.mxu0 0.0
    %1091 = vmatprep.mubr.f32.mxu0 0.0
    %1092 = vmatmul.mubr.f32.gmra.mxu0 %v1025
    %v1093 = vpop.f32.mrf.mxu0
    %v1094 = vadd.f32 %v149, %v1093
    %v1095 = vpop.f32.mrf.mxu0
    %1096 = vdwg.mxu0
    %v1097 = vadd.f32 %v1094, %v1024
    %v1098 = vxor.u32 %v1097, 2147483648
    %v1099 = vmul.f32 %v1098, 1.442695
    %v1100 = vpow.pop %v1099
    %v1101 = vadd.f32 %v1100, 1.0
    %v1102 = vrcp.pop %v1101
    %v1103 = vmul.f32 1.0, %v1102
    %v1104 = vtanh.pop %v1097
    %v1105 = vmul.f32 %v1103, %v701
    %1107 = vrot.lane.b32.xlu0 %v1104, 32
    %v1108 = vpop.permute.xlu0 %1107
    %v1110 = vmul.f32 %v1103, %v1108
    %1112 = vrot.lane.b32.xlu0 %v1110, 32
    %v1113 = vpop.permute.xlu0 %1112
    %v1115 = vadd.f32 %v1105, %v1113
    %v1116 = vtanh.pop %v1115
    %1118 = vrot.lane.b32.xlu0 %v1116, 32
    %v1119 = vpop.permute.xlu0 %1118
    %v1121 = vmul.f32 %v1103, %v1119
    %1123 = vrot.lane.b32.xlu0 %v1121, 64
    %v1124 = vpop.permute.xlu0 %1123
    %1126 = vrot.lane.b32.xlu0 %v812, 96
    %v1127 = vpop.permute.xlu0 %1126
    %v1129 = vsel %vm150, %v1124, %v1127
    %v1131 = vsel %vm69, %v1129, 0
    %1133 = vmatprep.subr.mxu0 0.0
    %1134 = vmatpush1.msra.mxu0 0.0
    %1135 = vmatprep.subr.mxu0 0.0
    %1136 = vmatpush1.msra.mxu0 0.0
    %1137 = vmatprep.subr.mxu0 0.0
    %1138 = vmatpush1.msra.mxu0 0.0
    %1139 = vmatprep.subr.mxu0 0.0
    %1140 = vmatpush1.msra.mxu0 0.0
    %1141 = vmatprep.subr.mxu0 0.0
    %1142 = vmatpush1.msra.mxu0 0.0
    %1143 = vmatprep.subr.mxu0 0.0
    %1144 = vmatpush1.msra.mxu0 0.0
    %1145 = vmatprep.subr.mxu0 0.0
    %1146 = vmatpush1.msra.mxu0 0.0
    %1147 = vmatprep.subr.mxu0 0.0
    %1148 = vmatpush1.msra.mxu0 0.0
    %1149 = vmatprep.subr.mxu0 0.0
    %1150 = vmatpush1.msra.mxu0 %v269
    %1151 = vmatprep.subr.mxu0 0.0
    %1152 = vmatpush1.msra.mxu0 %v268
    %1153 = vmatprep.subr.mxu0 0.0
    %1154 = vmatpush1.msra.mxu0 %v267
    %1155 = vmatprep.subr.mxu0 0.0
    %1156 = vmatpush1.msra.mxu0 %v266
    %1157 = vmatprep.subr.mxu0 0.0
    %1158 = vmatpush1.msra.mxu0 %v265
    %1159 = vmatprep.subr.mxu0 0.0
    %1160 = vmatpush1.msra.mxu0 %v264
    %1161 = vmatprep.subr.mxu0 0.0
    %1162 = vmatpush1.msra.mxu0 %v263
    %1163 = vmatprep.subr.mxu0 0.0
    %1164 = vmatpush1.msra.mxu0 %v262
    %1165 = vmatprep.subr.mxu0 0.0
    %1166 = vmatpush2.msra.mxu0 0.0
    %1167 = vmatprep.subr.mxu0 0.0
    %1168 = vmatpush2.msra.mxu0 0.0
    %1169 = vmatprep.subr.mxu0 0.0
    %1170 = vmatpush2.msra.mxu0 0.0
    %1171 = vmatprep.subr.mxu0 0.0
    %1172 = vmatpush2.msra.mxu0 0.0
    %1173 = vmatprep.subr.mxu0 0.0
    %1174 = vmatpush2.msra.mxu0 0.0
    %1175 = vmatprep.subr.mxu0 0.0
    %1176 = vmatpush2.msra.mxu0 0.0
    %1177 = vmatprep.subr.mxu0 0.0
    %1178 = vmatpush2.msra.mxu0 0.0
    %1179 = vmatprep.subr.mxu0 0.0
    %1180 = vmatpush2.msra.mxu0 0.0
    %1181 = vmatprep.subr.mxu0 0.0
    %1182 = vmatpush2.msra.mxu0 0.0
    %1183 = vmatprep.subr.mxu0 0.0
    %1184 = vmatpush2.msra.mxu0 0.0
    %1185 = vmatprep.subr.mxu0 0.0
    %1186 = vmatpush2.msra.mxu0 0.0
    %1187 = vmatprep.subr.mxu0 0.0
    %1188 = vmatpush2.msra.mxu0 0.0
    %1189 = vmatprep.subr.mxu0 0.0
    %1190 = vmatpush2.msra.mxu0 0.0
    %1191 = vmatprep.subr.mxu0 0.0
    %1192 = vmatpush2.msra.mxu0 0.0
    %1193 = vmatprep.subr.mxu0 0.0
    %1194 = vmatpush2.msra.mxu0 0.0
    %1195 = vmatprep.subr.mxu0 0.0
    %1196 = vmatpush2.msra.mxu0 0.0
    %1197 = vmatprep.mubr.f32.mxu0 0.0
    %1198 = vmatmul.mubr.f32.gmra.mxu0 %v1131
    %v1199 = vpop.f32.mrf.mxu0
    %v1200 = vadd.f32 %v270, %v1199
    %v1201 = vpop.f32.mrf.mxu0
    %1202 = vdwg.mxu0
    %v1203 = vxor.u32 %v1200, 2147483648
    %v1204 = vmul.f32 %v1203, 1.442695
    %v1205 = vpow.pop %v1204
    %v1206 = vadd.f32 %v1205, 1.0
    %v1207 = vrcp.pop %v1206
    %v1208 = vmul.f32 1.0, %v1207
    %v1209 = vtanh.pop %v1200
    %v1210 = vmul.f32 %v1208, %v806
    %1212 = vrot.lane.b32.xlu0 %v1209, 32
    %v1213 = vpop.permute.xlu0 %1212
    %v1215 = vmul.f32 %v1208, %v1213
    %1217 = vrot.lane.b32.xlu0 %v1215, 32
    %v1218 = vpop.permute.xlu0 %1217
    %v1220 = vadd.f32 %v1210, %v1218
    %v1221 = vtanh.pop %v1220
    %1223 = vrot.lane.b32.xlu0 %v1221, 32
    %v1224 = vpop.permute.xlu0 %1223
    %v1226 = vmul.f32 %v1208, %v1224
    %1228 = vrot.lane.b32.xlu0 %v1226, 64
    %v1229 = vpop.permute.xlu0 %1228
    %1231 = vrot.lane.b32.xlu0 %v917, 96
    %v1232 = vpop.permute.xlu0 %1231
    %v1234 = vsel %vm150, %v1229, %v1232
    %v1236 = vsel %vm69, %v1234, 0
    %1238 = vmatprep.subr.mxu0 0.0
    %1239 = vmatpush1.msra.mxu0 0.0
    %1240 = vmatprep.subr.mxu0 0.0
    %1241 = vmatpush1.msra.mxu0 0.0
    %1242 = vmatprep.subr.mxu0 0.0
    %1243 = vmatpush1.msra.mxu0 0.0
    %1244 = vmatprep.subr.mxu0 0.0
    %1245 = vmatpush1.msra.mxu0 0.0
    %1246 = vmatprep.subr.mxu0 0.0
    %1247 = vmatpush1.msra.mxu0 0.0
    %1248 = vmatprep.subr.mxu0 0.0
    %1249 = vmatpush1.msra.mxu0 0.0
    %1250 = vmatprep.subr.mxu0 0.0
    %1251 = vmatpush1.msra.mxu0 0.0
    %1252 = vmatprep.subr.mxu0 0.0
    %1253 = vmatpush1.msra.mxu0 0.0
    %1254 = vmatprep.subr.mxu0 0.0
    %1255 = vmatpush1.msra.mxu0 %v389
    %1256 = vmatprep.subr.mxu0 0.0
    %1257 = vmatpush1.msra.mxu0 %v388
    %1258 = vmatprep.subr.mxu0 0.0
    %1259 = vmatpush1.msra.mxu0 %v387
    %1260 = vmatprep.subr.mxu0 0.0
    %1261 = vmatpush1.msra.mxu0 %v386
    %1262 = vmatprep.subr.mxu0 0.0
    %1263 = vmatpush1.msra.mxu0 %v385
    %1264 = vmatprep.subr.mxu0 0.0
    %1265 = vmatpush1.msra.mxu0 %v384
    %1266 = vmatprep.subr.mxu0 0.0
    %1267 = vmatpush1.msra.mxu0 %v383
    %1268 = vmatprep.subr.mxu0 0.0
    %1269 = vmatpush1.msra.mxu0 %v382
    %1270 = vmatprep.subr.mxu0 0.0
    %1271 = vmatpush2.msra.mxu0 0.0
    %1272 = vmatprep.subr.mxu0 0.0
    %1273 = vmatpush2.msra.mxu0 0.0
    %1274 = vmatprep.subr.mxu0 0.0
    %1275 = vmatpush2.msra.mxu0 0.0
    %1276 = vmatprep.subr.mxu0 0.0
    %1277 = vmatpush2.msra.mxu0 0.0
    %1278 = vmatprep.subr.mxu0 0.0
    %1279 = vmatpush2.msra.mxu0 0.0
    %1280 = vmatprep.subr.mxu0 0.0
    %1281 = vmatpush2.msra.mxu0 0.0
    %1282 = vmatprep.subr.mxu0 0.0
    %1283 = vmatpush2.msra.mxu0 0.0
    %1284 = vmatprep.subr.mxu0 0.0
    %1285 = vmatpush2.msra.mxu0 0.0
    %1286 = vmatprep.subr.mxu0 0.0
    %1287 = vmatpush2.msra.mxu0 0.0
    %1288 = vmatprep.subr.mxu0 0.0
    %1289 = vmatpush2.msra.mxu0 0.0
    %1290 = vmatprep.subr.mxu0 0.0
    %1291 = vmatpush2.msra.mxu0 0.0
    %1292 = vmatprep.subr.mxu0 0.0
    %1293 = vmatpush2.msra.mxu0 0.0
    %1294 = vmatprep.subr.mxu0 0.0
    %1295 = vmatpush2.msra.mxu0 0.0
    %1296 = vmatprep.subr.mxu0 0.0
    %1297 = vmatpush2.msra.mxu0 0.0
    %1298 = vmatprep.subr.mxu0 0.0
    %1299 = vmatpush2.msra.mxu0 0.0
    %1300 = vmatprep.subr.mxu0 0.0
    %1301 = vmatpush2.msra.mxu0 0.0
    %1302 = vmatprep.mubr.f32.mxu0 0.0
    %1303 = vmatmul.mubr.f32.gmra.mxu0 %v1236
    %v1304 = vpop.f32.mrf.mxu0
    %v1305 = vadd.f32 %v372, %v1304
    %v1306 = vpop.f32.mrf.mxu0
    %1307 = vdwg.mxu0
    %v1308 = vxor.u32 %v1305, 2147483648
    %v1309 = vmul.f32 %v1308, 1.442695
    %v1310 = vpow.pop %v1309
    %v1311 = vadd.f32 %v1310, 1.0
    %v1312 = vrcp.pop %v1311
    %v1313 = vmul.f32 1.0, %v1312
    %v1314 = vtanh.pop %v1305
    %v1315 = vmul.f32 %v1313, %v911
    %1317 = vrot.lane.b32.xlu0 %v1314, 32
    %v1318 = vpop.permute.xlu0 %1317
    %v1320 = vmul.f32 %v1313, %v1318
    %1322 = vrot.lane.b32.xlu0 %v1320, 32
    %v1323 = vpop.permute.xlu0 %1322
    %v1325 = vadd.f32 %v1315, %v1323
    %v1326 = vtanh.pop %v1325
    %1328 = vrot.lane.b32.xlu0 %v1326, 32
    %v1329 = vpop.permute.xlu0 %1328
    %v1331 = vmul.f32 %v1313, %v1329
    %1333 = vrot.lane.b32.xlu0 %v1331, 64
    %v1334 = vpop.permute.xlu0 %1333
    %1337 = vrot.lane.b32.xlu0 %v1023, 96
    %v1338 = vpop.permute.xlu0 %1337
    %v1340 = vsel %vm150, %v1334, %v1338
    %v1342 = vsel %vm69, %v1340, 0
    %1344 = vmatprep.subr.mxu0 0.0
    %1345 = vmatpush1.msra.mxu0 0.0
    %1346 = vmatprep.subr.mxu0 0.0
    %1347 = vmatpush1.msra.mxu0 0.0
    %1348 = vmatprep.subr.mxu0 0.0
    %1349 = vmatpush1.msra.mxu0 0.0
    %1350 = vmatprep.subr.mxu0 0.0
    %1351 = vmatpush1.msra.mxu0 0.0
    %1352 = vmatprep.subr.mxu0 0.0
    %1353 = vmatpush1.msra.mxu0 0.0
    %1354 = vmatprep.subr.mxu0 0.0
    %1355 = vmatpush1.msra.mxu0 0.0
    %1356 = vmatprep.subr.mxu0 0.0
    %1357 = vmatpush1.msra.mxu0 0.0
    %1358 = vmatprep.subr.mxu0 0.0
    %1359 = vmatpush1.msra.mxu0 0.0
    %1360 = vmatprep.subr.mxu0 0.0
    %1361 = vmatpush1.msra.mxu0 %v507
    %1362 = vmatprep.subr.mxu0 0.0
    %1363 = vmatpush1.msra.mxu0 %v506
    %1364 = vmatprep.subr.mxu0 0.0
    %1365 = vmatpush1.msra.mxu0 %v505
    %1366 = vmatprep.subr.mxu0 0.0
    %1367 = vmatpush1.msra.mxu0 %v504
    %1368 = vmatprep.subr.mxu0 0.0
    %1369 = vmatpush1.msra.mxu0 %v503
    %1370 = vmatprep.subr.mxu0 0.0
    %1371 = vmatpush1.msra.mxu0 %v502
    %1372 = vmatprep.subr.mxu0 0.0
    %1373 = vmatpush1.msra.mxu0 %v501
    %1374 = vmatprep.subr.mxu0 0.0
    %1375 = vmatpush1.msra.mxu0 %v500
    %1376 = vmatprep.subr.mxu0 0.0
    %1377 = vmatpush2.msra.mxu0 0.0
    %1378 = vmatprep.subr.mxu0 0.0
    %1379 = vmatpush2.msra.mxu0 0.0
    %1380 = vmatprep.subr.mxu0 0.0
    %1381 = vmatpush2.msra.mxu0 0.0
    %1382 = vmatprep.subr.mxu0 0.0
    %1383 = vmatpush2.msra.mxu0 0.0
    %1384 = vmatprep.subr.mxu0 0.0
    %1385 = vmatpush2.msra.mxu0 0.0
    %1386 = vmatprep.subr.mxu0 0.0
    %1387 = vmatpush2.msra.mxu0 0.0
    %1388 = vmatprep.subr.mxu0 0.0
    %1389 = vmatpush2.msra.mxu0 0.0
    %1390 = vmatprep.subr.mxu0 0.0
    %1391 = vmatpush2.msra.mxu0 0.0
    %1392 = vmatprep.subr.mxu0 0.0
    %1393 = vmatpush2.msra.mxu0 0.0
    %1394 = vmatprep.subr.mxu0 0.0
    %1395 = vmatpush2.msra.mxu0 0.0
    %1396 = vmatprep.subr.mxu0 0.0
    %1397 = vmatpush2.msra.mxu0 0.0
    %1398 = vmatprep.subr.mxu0 0.0
    %1399 = vmatpush2.msra.mxu0 0.0
    %1400 = vmatprep.subr.mxu0 0.0
    %1401 = vmatpush2.msra.mxu0 0.0
    %1402 = vmatprep.subr.mxu0 0.0
    %1403 = vmatpush2.msra.mxu0 0.0
    %1404 = vmatprep.subr.mxu0 0.0
    %1405 = vmatpush2.msra.mxu0 0.0
    %1406 = vmatprep.subr.mxu0 0.0
    %1407 = vmatpush2.msra.mxu0 0.0
    %1408 = vmatprep.mubr.f32.mxu0 0.0
    %1409 = vmatmul.mubr.f32.gmra.mxu0 %v1342
    %v1410 = vpop.f32.mrf.mxu0
    %v1411 = vadd.f32 %v508, %v1410
    %v1412 = vpop.f32.mrf.mxu0
    %1413 = vdwg.mxu0
    %v1414 = vxor.u32 %v1411, 2147483648
    %v1415 = vmul.f32 %v1414, 1.442695
    %v1416 = vpow.pop %v1415
    %v1417 = vadd.f32 %v1416, 1.0
    %v1418 = vrcp.pop %v1417
    %v1419 = vmul.f32 1.0, %v1418
    %v1420 = vtanh.pop %v1411
    %v1421 = vmul.f32 %v1419, %v1017
    %1423 = vrot.lane.b32.xlu0 %v1420, 32
    %v1424 = vpop.permute.xlu0 %1423
    %v1426 = vmul.f32 %v1419, %v1424
    %1428 = vrot.lane.b32.xlu0 %v1426, 32
    %v1429 = vpop.permute.xlu0 %1428
    %v1431 = vadd.f32 %v1421, %v1429
    %v1432 = vtanh.pop %v1431
    %1434 = vrot.lane.b32.xlu0 %v1432, 32
    %v1435 = vpop.permute.xlu0 %1434
    %v1437 = vmul.f32 %v1419, %v1435
    %v1438 = vld [vmem:[#allocation2 + $0x3] sm:$0x1]
    %v1439 = vsel %vm150, %v1124, 0
    %1441 = vmatprep.subr.mxu0 0.0
    %1442 = vmatpush1.msra.mxu0 0.0
    %1443 = vmatprep.subr.mxu0 0.0
    %1444 = vmatpush1.msra.mxu0 0.0
    %1445 = vmatprep.subr.mxu0 0.0
    %1446 = vmatpush1.msra.mxu0 0.0
    %1447 = vmatprep.subr.mxu0 0.0
    %1448 = vmatpush1.msra.mxu0 0.0
    %1449 = vmatprep.subr.mxu0 0.0
    %1450 = vmatpush1.msra.mxu0 0.0
    %1451 = vmatprep.subr.mxu0 0.0
    %1452 = vmatpush1.msra.mxu0 0.0
    %1453 = vmatprep.subr.mxu0 0.0
    %1454 = vmatpush1.msra.mxu0 0.0
    %1455 = vmatprep.subr.mxu0 0.0
    %1456 = vmatpush1.msra.mxu0 0.0
    %1457 = vmatprep.subr.mxu0 0.0
    %1458 = vmatpush1.msra.mxu0 0.0
    %1459 = vmatprep.subr.mxu0 0.0
    %1460 = vmatpush1.msra.mxu0 0.0
    %1461 = vmatprep.subr.mxu0 0.0
    %1462 = vmatpush1.msra.mxu0 0.0
    %1463 = vmatprep.subr.mxu0 0.0
    %1464 = vmatpush1.msra.mxu0 0.0
    %1465 = vmatprep.subr.mxu0 0.0
    %1466 = vmatpush1.msra.mxu0 %v148
    %1467 = vmatprep.subr.mxu0 0.0
    %1468 = vmatpush1.msra.mxu0 %v147
    %1469 = vmatprep.subr.mxu0 0.0
    %1470 = vmatpush1.msra.mxu0 %v146
    %1471 = vmatprep.subr.mxu0 0.0
    %1472 = vmatpush1.msra.mxu0 %v145
    %1473 = vmatprep.subr.mxu0 0.0
    %1474 = vmatpush2.msra.mxu0 0.0
    %1475 = vmatprep.subr.mxu0 0.0
    %1476 = vmatpush2.msra.mxu0 0.0
    %1477 = vmatprep.subr.mxu0 0.0
    %1478 = vmatpush2.msra.mxu0 0.0
    %1479 = vmatprep.subr.mxu0 0.0
    %1480 = vmatpush2.msra.mxu0 0.0
    %1481 = vmatprep.subr.mxu0 0.0
    %1482 = vmatpush2.msra.mxu0 0.0
    %1483 = vmatprep.subr.mxu0 0.0
    %1484 = vmatpush2.msra.mxu0 0.0
    %1485 = vmatprep.subr.mxu0 0.0
    %1486 = vmatpush2.msra.mxu0 0.0
    %1487 = vmatprep.subr.mxu0 0.0
    %1488 = vmatpush2.msra.mxu0 0.0
    %1489 = vmatprep.subr.mxu0 0.0
    %1490 = vmatpush2.msra.mxu0 0.0
    %1491 = vmatprep.subr.mxu0 0.0
    %1492 = vmatpush2.msra.mxu0 0.0
    %1493 = vmatprep.subr.mxu0 0.0
    %1494 = vmatpush2.msra.mxu0 0.0
    %1495 = vmatprep.subr.mxu0 0.0
    %1496 = vmatpush2.msra.mxu0 0.0
    %1497 = vmatprep.subr.mxu0 0.0
    %1498 = vmatpush2.msra.mxu0 0.0
    %1499 = vmatprep.subr.mxu0 0.0
    %1500 = vmatpush2.msra.mxu0 0.0
    %1501 = vmatprep.subr.mxu0 0.0
    %1502 = vmatpush2.msra.mxu0 0.0
    %1503 = vmatprep.subr.mxu0 0.0
    %1504 = vmatpush2.msra.mxu0 0.0
    %1505 = vmatprep.mubr.f32.mxu0 0.0
    %1506 = vmatmul.mubr.f32.gmra.mxu0 %v1439
    %v1507 = vpop.f32.mrf.mxu0
    %v1508 = vadd.f32 %v149, %v1507
    %v1509 = vpop.f32.mrf.mxu0
    %1510 = vdwg.mxu0
    %v1511 = vadd.f32 %v1508, %v1438
    %v1512 = vxor.u32 %v1511, 2147483648
    %v1513 = vmul.f32 %v1512, 1.442695
    %v1514 = vpow.pop %v1513
    %v1515 = vadd.f32 %v1514, 1.0
    %v1516 = vrcp.pop %v1515
    %v1517 = vmul.f32 1.0, %v1516
    %v1518 = vtanh.pop %v1511
    %v1519 = vmul.f32 %v1517, %v1115
    %1521 = vrot.lane.b32.xlu0 %v1518, 32
    %v1522 = vpop.permute.xlu0 %1521
    %v1524 = vmul.f32 %v1517, %v1522
    %1526 = vrot.lane.b32.xlu0 %v1524, 32
    %v1527 = vpop.permute.xlu0 %1526
    %v1529 = vadd.f32 %v1519, %v1527
    %v1530 = vtanh.pop %v1529
    %1532 = vrot.lane.b32.xlu0 %v1530, 32
    %v1533 = vpop.permute.xlu0 %1532
    %v1535 = vmul.f32 %v1517, %v1533
    %1537 = vrot.lane.b32.xlu0 %v1535, 64
    %v1538 = vpop.permute.xlu0 %1537
    %1540 = vrot.lane.b32.xlu0 %v1226, 96
    %v1541 = vpop.permute.xlu0 %1540
    %v1543 = vsel %vm150, %v1538, %v1541
    %v1545 = vsel %vm69, %v1543, 0
    %1547 = vmatprep.subr.mxu0 0.0
    %1548 = vmatpush1.msra.mxu0 0.0
    %1549 = vmatprep.subr.mxu0 0.0
    %1550 = vmatpush1.msra.mxu0 0.0
    %1551 = vmatprep.subr.mxu0 0.0
    %1552 = vmatpush1.msra.mxu0 0.0
    %1553 = vmatprep.subr.mxu0 0.0
    %1554 = vmatpush1.msra.mxu0 0.0
    %1555 = vmatprep.subr.mxu0 0.0
    %1556 = vmatpush1.msra.mxu0 0.0
    %1557 = vmatprep.subr.mxu0 0.0
    %1558 = vmatpush1.msra.mxu0 0.0
    %1559 = vmatprep.subr.mxu0 0.0
    %1560 = vmatpush1.msra.mxu0 0.0
    %1561 = vmatprep.subr.mxu0 0.0
    %1562 = vmatpush1.msra.mxu0 0.0
    %1563 = vmatprep.subr.mxu0 0.0
    %1564 = vmatpush1.msra.mxu0 %v269
    %1565 = vmatprep.subr.mxu0 0.0
    %1566 = vmatpush1.msra.mxu0 %v268
    %1567 = vmatprep.subr.mxu0 0.0
    %1568 = vmatpush1.msra.mxu0 %v267
    %1569 = vmatprep.subr.mxu0 0.0
    %1570 = vmatpush1.msra.mxu0 %v266
    %1571 = vmatprep.subr.mxu0 0.0
    %1572 = vmatpush1.msra.mxu0 %v265
    %1573 = vmatprep.subr.mxu0 0.0
    %1574 = vmatpush1.msra.mxu0 %v264
    %1575 = vmatprep.subr.mxu0 0.0
    %1576 = vmatpush1.msra.mxu0 %v263
    %1577 = vmatprep.subr.mxu0 0.0
    %1578 = vmatpush1.msra.mxu0 %v262
    %1579 = vmatprep.subr.mxu0 0.0
    %1580 = vmatpush2.msra.mxu0 0.0
    %1581 = vmatprep.subr.mxu0 0.0
    %1582 = vmatpush2.msra.mxu0 0.0
    %1583 = vmatprep.subr.mxu0 0.0
    %1584 = vmatpush2.msra.mxu0 0.0
    %1585 = vmatprep.subr.mxu0 0.0
    %1586 = vmatpush2.msra.mxu0 0.0
    %1587 = vmatprep.subr.mxu0 0.0
    %1588 = vmatpush2.msra.mxu0 0.0
    %1589 = vmatprep.subr.mxu0 0.0
    %1590 = vmatpush2.msra.mxu0 0.0
    %1591 = vmatprep.subr.mxu0 0.0
    %1592 = vmatpush2.msra.mxu0 0.0
    %1593 = vmatprep.subr.mxu0 0.0
    %1594 = vmatpush2.msra.mxu0 0.0
    %1595 = vmatprep.subr.mxu0 0.0
    %1596 = vmatpush2.msra.mxu0 0.0
    %1597 = vmatprep.subr.mxu0 0.0
    %1598 = vmatpush2.msra.mxu0 0.0
    %1599 = vmatprep.subr.mxu0 0.0
    %1600 = vmatpush2.msra.mxu0 0.0
    %1601 = vmatprep.subr.mxu0 0.0
    %1602 = vmatpush2.msra.mxu0 0.0
    %1603 = vmatprep.subr.mxu0 0.0
    %1604 = vmatpush2.msra.mxu0 0.0
    %1605 = vmatprep.subr.mxu0 0.0
    %1606 = vmatpush2.msra.mxu0 0.0
    %1607 = vmatprep.subr.mxu0 0.0
    %1608 = vmatpush2.msra.mxu0 0.0
    %1609 = vmatprep.subr.mxu0 0.0
    %1610 = vmatpush2.msra.mxu0 0.0
    %1611 = vmatprep.mubr.f32.mxu0 0.0
    %1612 = vmatmul.mubr.f32.gmra.mxu0 %v1545
    %v1613 = vpop.f32.mrf.mxu0
    %v1614 = vadd.f32 %v270, %v1613
    %v1615 = vpop.f32.mrf.mxu0
    %1616 = vdwg.mxu0
    %v1617 = vxor.u32 %v1614, 2147483648
    %v1618 = vmul.f32 %v1617, 1.442695
    %v1619 = vpow.pop %v1618
    %v1620 = vadd.f32 %v1619, 1.0
    %v1621 = vrcp.pop %v1620
    %v1622 = vmul.f32 1.0, %v1621
    %v1623 = vtanh.pop %v1614
    %v1624 = vmul.f32 %v1622, %v1220
    %1626 = vrot.lane.b32.xlu0 %v1623, 32
    %v1627 = vpop.permute.xlu0 %1626
    %v1629 = vmul.f32 %v1622, %v1627
    %1631 = vrot.lane.b32.xlu0 %v1629, 32
    %v1632 = vpop.permute.xlu0 %1631
    %v1634 = vadd.f32 %v1624, %v1632
    %v1635 = vtanh.pop %v1634
    %1637 = vrot.lane.b32.xlu0 %v1635, 32
    %v1638 = vpop.permute.xlu0 %1637
    %v1640 = vmul.f32 %v1622, %v1638
    %1642 = vrot.lane.b32.xlu0 %v1640, 64
    %v1643 = vpop.permute.xlu0 %1642
    %1645 = vrot.lane.b32.xlu0 %v1331, 96
    %v1646 = vpop.permute.xlu0 %1645
    %v1648 = vsel %vm150, %v1643, %v1646
    %v1650 = vsel %vm69, %v1648, 0
    %1652 = vmatprep.subr.mxu0 0.0
    %1653 = vmatpush1.msra.mxu0 0.0
    %1654 = vmatprep.subr.mxu0 0.0
    %1655 = vmatpush1.msra.mxu0 0.0
    %1656 = vmatprep.subr.mxu0 0.0
    %1657 = vmatpush1.msra.mxu0 0.0
    %1658 = vmatprep.subr.mxu0 0.0
    %1659 = vmatpush1.msra.mxu0 0.0
    %1660 = vmatprep.subr.mxu0 0.0
    %1661 = vmatpush1.msra.mxu0 0.0
    %1662 = vmatprep.subr.mxu0 0.0
    %1663 = vmatpush1.msra.mxu0 0.0
    %1664 = vmatprep.subr.mxu0 0.0
    %1665 = vmatpush1.msra.mxu0 0.0
    %1666 = vmatprep.subr.mxu0 0.0
    %1667 = vmatpush1.msra.mxu0 0.0
    %1668 = vmatprep.subr.mxu0 0.0
    %1669 = vmatpush1.msra.mxu0 %v389
    %1670 = vmatprep.subr.mxu0 0.0
    %1671 = vmatpush1.msra.mxu0 %v388
    %1672 = vmatprep.subr.mxu0 0.0
    %1673 = vmatpush1.msra.mxu0 %v387
    %1674 = vmatprep.subr.mxu0 0.0
    %1675 = vmatpush1.msra.mxu0 %v386
    %1676 = vmatprep.subr.mxu0 0.0
    %1677 = vmatpush1.msra.mxu0 %v385
    %1678 = vmatprep.subr.mxu0 0.0
    %1679 = vmatpush1.msra.mxu0 %v384
    %1680 = vmatprep.subr.mxu0 0.0
    %1681 = vmatpush1.msra.mxu0 %v383
    %1682 = vmatprep.subr.mxu0 0.0
    %1683 = vmatpush1.msra.mxu0 %v382
    %1684 = vmatprep.subr.mxu0 0.0
    %1685 = vmatpush2.msra.mxu0 0.0
    %1686 = vmatprep.subr.mxu0 0.0
    %1687 = vmatpush2.msra.mxu0 0.0
    %1688 = vmatprep.subr.mxu0 0.0
    %1689 = vmatpush2.msra.mxu0 0.0
    %1690 = vmatprep.subr.mxu0 0.0
    %1691 = vmatpush2.msra.mxu0 0.0
    %1692 = vmatprep.subr.mxu0 0.0
    %1693 = vmatpush2.msra.mxu0 0.0
    %1694 = vmatprep.subr.mxu0 0.0
    %1695 = vmatpush2.msra.mxu0 0.0
    %1696 = vmatprep.subr.mxu0 0.0
    %1697 = vmatpush2.msra.mxu0 0.0
    %1698 = vmatprep.subr.mxu0 0.0
    %1699 = vmatpush2.msra.mxu0 0.0
    %1700 = vmatprep.subr.mxu0 0.0
    %1701 = vmatpush2.msra.mxu0 0.0
    %1702 = vmatprep.subr.mxu0 0.0
    %1703 = vmatpush2.msra.mxu0 0.0
    %1704 = vmatprep.subr.mxu0 0.0
    %1705 = vmatpush2.msra.mxu0 0.0
    %1706 = vmatprep.subr.mxu0 0.0
    %1707 = vmatpush2.msra.mxu0 0.0
    %1708 = vmatprep.subr.mxu0 0.0
    %1709 = vmatpush2.msra.mxu0 0.0
    %1710 = vmatprep.subr.mxu0 0.0
    %1711 = vmatpush2.msra.mxu0 0.0
    %1712 = vmatprep.subr.mxu0 0.0
    %1713 = vmatpush2.msra.mxu0 0.0
    %1714 = vmatprep.subr.mxu0 0.0
    %1715 = vmatpush2.msra.mxu0 0.0
    %1716 = vmatprep.mubr.f32.mxu0 0.0
    %1717 = vmatmul.mubr.f32.gmra.mxu0 %v1650
    %v1718 = vpop.f32.mrf.mxu0
    %v1719 = vadd.f32 %v372, %v1718
    %v1720 = vpop.f32.mrf.mxu0
    %1721 = vdwg.mxu0
    %v1722 = vxor.u32 %v1719, 2147483648
    %v1723 = vmul.f32 %v1722, 1.442695
    %v1724 = vpow.pop %v1723
    %v1725 = vadd.f32 %v1724, 1.0
    %v1726 = vrcp.pop %v1725
    %v1727 = vmul.f32 1.0, %v1726
    %v1728 = vtanh.pop %v1719
    %v1729 = vmul.f32 %v1727, %v1325
    %1731 = vrot.lane.b32.xlu0 %v1728, 32
    %v1732 = vpop.permute.xlu0 %1731
    %v1734 = vmul.f32 %v1727, %v1732
    %1736 = vrot.lane.b32.xlu0 %v1734, 32
    %v1737 = vpop.permute.xlu0 %1736
    %v1739 = vadd.f32 %v1729, %v1737
    %v1740 = vtanh.pop %v1739
    %1742 = vrot.lane.b32.xlu0 %v1740, 32
    %v1743 = vpop.permute.xlu0 %1742
    %v1745 = vmul.f32 %v1727, %v1743
    %1747 = vrot.lane.b32.xlu0 %v1745, 64
    %v1748 = vpop.permute.xlu0 %1747
    %1751 = vrot.lane.b32.xlu0 %v1437, 96
    %v1752 = vpop.permute.xlu0 %1751
    %v1754 = vsel %vm150, %v1748, %v1752
    %v1756 = vsel %vm69, %v1754, 0
    %1758 = vmatprep.subr.mxu0 0.0
    %1759 = vmatpush1.msra.mxu0 0.0
    %1760 = vmatprep.subr.mxu0 0.0
    %1761 = vmatpush1.msra.mxu0 0.0
    %1762 = vmatprep.subr.mxu0 0.0
    %1763 = vmatpush1.msra.mxu0 0.0
    %1764 = vmatprep.subr.mxu0 0.0
    %1765 = vmatpush1.msra.mxu0 0.0
    %1766 = vmatprep.subr.mxu0 0.0
    %1767 = vmatpush1.msra.mxu0 0.0
    %1768 = vmatprep.subr.mxu0 0.0
    %1769 = vmatpush1.msra.mxu0 0.0
    %1770 = vmatprep.subr.mxu0 0.0
    %1771 = vmatpush1.msra.mxu0 0.0
    %1772 = vmatprep.subr.mxu0 0.0
    %1773 = vmatpush1.msra.mxu0 0.0
    %1774 = vmatprep.subr.mxu0 0.0
    %1775 = vmatpush1.msra.mxu0 %v507
    %1776 = vmatprep.subr.mxu0 0.0
    %1777 = vmatpush1.msra.mxu0 %v506
    %1778 = vmatprep.subr.mxu0 0.0
    %1779 = vmatpush1.msra.mxu0 %v505
    %1780 = vmatprep.subr.mxu0 0.0
    %1781 = vmatpush1.msra.mxu0 %v504
    %1782 = vmatprep.subr.mxu0 0.0
    %1783 = vmatpush1.msra.mxu0 %v503
    %1784 = vmatprep.subr.mxu0 0.0
    %1785 = vmatpush1.msra.mxu0 %v502
    %1786 = vmatprep.subr.mxu0 0.0
    %1787 = vmatpush1.msra.mxu0 %v501
    %1788 = vmatprep.subr.mxu0 0.0
    %1789 = vmatpush1.msra.mxu0 %v500
    %1790 = vmatprep.subr.mxu0 0.0
    %1791 = vmatpush2.msra.mxu0 0.0
    %1792 = vmatprep.subr.mxu0 0.0
    %1793 = vmatpush2.msra.mxu0 0.0
    %1794 = vmatprep.subr.mxu0 0.0
    %1795 = vmatpush2.msra.mxu0 0.0
    %1796 = vmatprep.subr.mxu0 0.0
    %1797 = vmatpush2.msra.mxu0 0.0
    %1798 = vmatprep.subr.mxu0 0.0
    %1799 = vmatpush2.msra.mxu0 0.0
    %1800 = vmatprep.subr.mxu0 0.0
    %1801 = vmatpush2.msra.mxu0 0.0
    %1802 = vmatprep.subr.mxu0 0.0
    %1803 = vmatpush2.msra.mxu0 0.0
    %1804 = vmatprep.subr.mxu0 0.0
    %1805 = vmatpush2.msra.mxu0 0.0
    %1806 = vmatprep.subr.mxu0 0.0
    %1807 = vmatpush2.msra.mxu0 0.0
    %1808 = vmatprep.subr.mxu0 0.0
    %1809 = vmatpush2.msra.mxu0 0.0
    %1810 = vmatprep.subr.mxu0 0.0
    %1811 = vmatpush2.msra.mxu0 0.0
    %1812 = vmatprep.subr.mxu0 0.0
    %1813 = vmatpush2.msra.mxu0 0.0
    %1814 = vmatprep.subr.mxu0 0.0
    %1815 = vmatpush2.msra.mxu0 0.0
    %1816 = vmatprep.subr.mxu0 0.0
    %1817 = vmatpush2.msra.mxu0 0.0
    %1818 = vmatprep.subr.mxu0 0.0
    %1819 = vmatpush2.msra.mxu0 0.0
    %1820 = vmatprep.subr.mxu0 0.0
    %1821 = vmatpush2.msra.mxu0 0.0
    %1822 = vmatprep.mubr.f32.mxu0 0.0
    %1823 = vmatmul.mubr.f32.gmra.mxu0 %v1756
    %v1824 = vpop.f32.mrf.mxu0
    %v1825 = vadd.f32 %v508, %v1824
    %v1826 = vpop.f32.mrf.mxu0
    %1827 = vdwg.mxu0
    %v1828 = vxor.u32 %v1825, 2147483648
    %v1829 = vmul.f32 %v1828, 1.442695
    %v1830 = vpow.pop %v1829
    %v1831 = vadd.f32 %v1830, 1.0
    %v1832 = vrcp.pop %v1831
    %v1833 = vmul.f32 1.0, %v1832
    %v1834 = vtanh.pop %v1825
    %v1835 = vmul.f32 %v1833, %v1431
    %1837 = vrot.lane.b32.xlu0 %v1834, 32
    %v1838 = vpop.permute.xlu0 %1837
    %v1840 = vmul.f32 %v1833, %v1838
    %1842 = vrot.lane.b32.xlu0 %v1840, 32
    %v1843 = vpop.permute.xlu0 %1842
    %v1845 = vadd.f32 %v1835, %v1843
    %v1846 = vtanh.pop %v1845
    %1848 = vrot.lane.b32.xlu0 %v1846, 32
    %v1849 = vpop.permute.xlu0 %1848
    %v1851 = vmul.f32 %v1833, %v1849
    %v1852 = vld [vmem:[#allocation2 + $0x4] sm:$0x1]
    %v1853 = vsel %vm150, %v1538, 0
    %1855 = vmatprep.subr.mxu0 0.0
    %1856 = vmatpush1.msra.mxu0 0.0
    %1857 = vmatprep.subr.mxu0 0.0
    %1858 = vmatpush1.msra.mxu0 0.0
    %1859 = vmatprep.subr.mxu0 0.0
    %1860 = vmatpush1.msra.mxu0 0.0
    %1861 = vmatprep.subr.mxu0 0.0
    %1862 = vmatpush1.msra.mxu0 0.0
    %1863 = vmatprep.subr.mxu0 0.0
    %1864 = vmatpush1.msra.mxu0 0.0
    %1865 = vmatprep.subr.mxu0 0.0
    %1866 = vmatpush1.msra.mxu0 0.0
    %1867 = vmatprep.subr.mxu0 0.0
    %1868 = vmatpush1.msra.mxu0 0.0
    %1869 = vmatprep.subr.mxu0 0.0
    %1870 = vmatpush1.msra.mxu0 0.0
    %1871 = vmatprep.subr.mxu0 0.0
    %1872 = vmatpush1.msra.mxu0 0.0
    %1873 = vmatprep.subr.mxu0 0.0
    %1874 = vmatpush1.msra.mxu0 0.0
    %1875 = vmatprep.subr.mxu0 0.0
    %1876 = vmatpush1.msra.mxu0 0.0
    %1877 = vmatprep.subr.mxu0 0.0
    %1878 = vmatpush1.msra.mxu0 0.0
    %1879 = vmatprep.subr.mxu0 0.0
    %1880 = vmatpush1.msra.mxu0 %v148
    %1881 = vmatprep.subr.mxu0 0.0
    %1882 = vmatpush1.msra.mxu0 %v147
    %1883 = vmatprep.subr.mxu0 0.0
    %1884 = vmatpush1.msra.mxu0 %v146
    %1885 = vmatprep.subr.mxu0 0.0
    %1886 = vmatpush1.msra.mxu0 %v145
    %1887 = vmatprep.subr.mxu0 0.0
    %1888 = vmatpush2.msra.mxu0 0.0
    %1889 = vmatprep.subr.mxu0 0.0
    %1890 = vmatpush2.msra.mxu0 0.0
    %1891 = vmatprep.subr.mxu0 0.0
    %1892 = vmatpush2.msra.mxu0 0.0
    %1893 = vmatprep.subr.mxu0 0.0
    %1894 = vmatpush2.msra.mxu0 0.0
    %1895 = vmatprep.subr.mxu0 0.0
    %1896 = vmatpush2.msra.mxu0 0.0
    %1897 = vmatprep.subr.mxu0 0.0
    %1898 = vmatpush2.msra.mxu0 0.0
    %1899 = vmatprep.subr.mxu0 0.0
    %1900 = vmatpush2.msra.mxu0 0.0
    %1901 = vmatprep.subr.mxu0 0.0
    %1902 = vmatpush2.msra.mxu0 0.0
    %1903 = vmatprep.subr.mxu0 0.0
    %1904 = vmatpush2.msra.mxu0 0.0
    %1905 = vmatprep.subr.mxu0 0.0
    %1906 = vmatpush2.msra.mxu0 0.0
    %1907 = vmatprep.subr.mxu0 0.0
    %1908 = vmatpush2.msra.mxu0 0.0
    %1909 = vmatprep.subr.mxu0 0.0
    %1910 = vmatpush2.msra.mxu0 0.0
    %1911 = vmatprep.subr.mxu0 0.0
    %1912 = vmatpush2.msra.mxu0 0.0
    %1913 = vmatprep.subr.mxu0 0.0
    %1914 = vmatpush2.msra.mxu0 0.0
    %1915 = vmatprep.subr.mxu0 0.0
    %1916 = vmatpush2.msra.mxu0 0.0
    %1917 = vmatprep.subr.mxu0 0.0
    %1918 = vmatpush2.msra.mxu0 0.0
    %1919 = vmatprep.mubr.f32.mxu0 0.0
    %1920 = vmatmul.mubr.f32.gmra.mxu0 %v1853
    %v1921 = vpop.f32.mrf.mxu0
    %v1922 = vadd.f32 %v149, %v1921
    %v1923 = vpop.f32.mrf.mxu0
    %1924 = vdwg.mxu0
    %v1925 = vadd.f32 %v1922, %v1852
    %v1926 = vxor.u32 %v1925, 2147483648
    %v1927 = vmul.f32 %v1926, 1.442695
    %v1928 = vpow.pop %v1927
    %v1929 = vadd.f32 %v1928, 1.0
    %v1930 = vrcp.pop %v1929
    %v1931 = vmul.f32 1.0, %v1930
    %v1932 = vtanh.pop %v1925
    %v1933 = vmul.f32 %v1931, %v1529
    %1935 = vrot.lane.b32.xlu0 %v1932, 32
    %v1936 = vpop.permute.xlu0 %1935
    %v1938 = vmul.f32 %v1931, %v1936
    %1940 = vrot.lane.b32.xlu0 %v1938, 32
    %v1941 = vpop.permute.xlu0 %1940
    %v1943 = vadd.f32 %v1933, %v1941
    %v1944 = vtanh.pop %v1943
    %1946 = vrot.lane.b32.xlu0 %v1944, 32
    %v1947 = vpop.permute.xlu0 %1946
    %v1949 = vmul.f32 %v1931, %v1947
    %1951 = vrot.lane.b32.xlu0 %v1949, 64
    %v1952 = vpop.permute.xlu0 %1951
    %1954 = vrot.lane.b32.xlu0 %v1640, 96
    %v1955 = vpop.permute.xlu0 %1954
    %v1957 = vsel %vm150, %v1952, %v1955
    %v1959 = vsel %vm69, %v1957, 0
    %1961 = vmatprep.subr.mxu0 0.0
    %1962 = vmatpush1.msra.mxu0 0.0
    %1963 = vmatprep.subr.mxu0 0.0
    %1964 = vmatpush1.msra.mxu0 0.0
    %1965 = vmatprep.subr.mxu0 0.0
    %1966 = vmatpush1.msra.mxu0 0.0
    %1967 = vmatprep.subr.mxu0 0.0
    %1968 = vmatpush1.msra.mxu0 0.0
    %1969 = vmatprep.subr.mxu0 0.0
    %1970 = vmatpush1.msra.mxu0 0.0
    %1971 = vmatprep.subr.mxu0 0.0
    %1972 = vmatpush1.msra.mxu0 0.0
    %1973 = vmatprep.subr.mxu0 0.0
    %1974 = vmatpush1.msra.mxu0 0.0
    %1975 = vmatprep.subr.mxu0 0.0
    %1976 = vmatpush1.msra.mxu0 0.0
    %1977 = vmatprep.subr.mxu0 0.0
    %1978 = vmatpush1.msra.mxu0 %v269
    %1979 = vmatprep.subr.mxu0 0.0
    %1980 = vmatpush1.msra.mxu0 %v268
    %1981 = vmatprep.subr.mxu0 0.0
    %1982 = vmatpush1.msra.mxu0 %v267
    %1983 = vmatprep.subr.mxu0 0.0
    %1984 = vmatpush1.msra.mxu0 %v266
    %1985 = vmatprep.subr.mxu0 0.0
    %1986 = vmatpush1.msra.mxu0 %v265
    %1987 = vmatprep.subr.mxu0 0.0
    %1988 = vmatpush1.msra.mxu0 %v264
    %1989 = vmatprep.subr.mxu0 0.0
    %1990 = vmatpush1.msra.mxu0 %v263
    %1991 = vmatprep.subr.mxu0 0.0
    %1992 = vmatpush1.msra.mxu0 %v262
    %1993 = vmatprep.subr.mxu0 0.0
    %1994 = vmatpush2.msra.mxu0 0.0
    %1995 = vmatprep.subr.mxu0 0.0
    %1996 = vmatpush2.msra.mxu0 0.0
    %1997 = vmatprep.subr.mxu0 0.0
    %1998 = vmatpush2.msra.mxu0 0.0
    %1999 = vmatprep.subr.mxu0 0.0
    %2000 = vmatpush2.msra.mxu0 0.0
    %2001 = vmatprep.subr.mxu0 0.0
    %2002 = vmatpush2.msra.mxu0 0.0
    %2003 = vmatprep.subr.mxu0 0.0
    %2004 = vmatpush2.msra.mxu0 0.0
    %2005 = vmatprep.subr.mxu0 0.0
    %2006 = vmatpush2.msra.mxu0 0.0
    %2007 = vmatprep.subr.mxu0 0.0
    %2008 = vmatpush2.msra.mxu0 0.0
    %2009 = vmatprep.subr.mxu0 0.0
    %2010 = vmatpush2.msra.mxu0 0.0
    %2011 = vmatprep.subr.mxu0 0.0
    %2012 = vmatpush2.msra.mxu0 0.0
    %2013 = vmatprep.subr.mxu0 0.0
    %2014 = vmatpush2.msra.mxu0 0.0
    %2015 = vmatprep.subr.mxu0 0.0
    %2016 = vmatpush2.msra.mxu0 0.0
    %2017 = vmatprep.subr.mxu0 0.0
    %2018 = vmatpush2.msra.mxu0 0.0
    %2019 = vmatprep.subr.mxu0 0.0
    %2020 = vmatpush2.msra.mxu0 0.0
    %2021 = vmatprep.subr.mxu0 0.0
    %2022 = vmatpush2.msra.mxu0 0.0
    %2023 = vmatprep.subr.mxu0 0.0
    %2024 = vmatpush2.msra.mxu0 0.0
    %2025 = vmatprep.mubr.f32.mxu0 0.0
    %2026 = vmatmul.mubr.f32.gmra.mxu0 %v1959
    %v2027 = vpop.f32.mrf.mxu0
    %v2028 = vadd.f32 %v270, %v2027
    %v2029 = vpop.f32.mrf.mxu0
    %2030 = vdwg.mxu0
    %v2031 = vxor.u32 %v2028, 2147483648
    %v2032 = vmul.f32 %v2031, 1.442695
    %v2033 = vpow.pop %v2032
    %v2034 = vadd.f32 %v2033, 1.0
    %v2035 = vrcp.pop %v2034
    %v2036 = vmul.f32 1.0, %v2035
    %v2037 = vtanh.pop %v2028
    %v2038 = vmul.f32 %v2036, %v1634
    %2040 = vrot.lane.b32.xlu0 %v2037, 32
    %v2041 = vpop.permute.xlu0 %2040
    %v2043 = vmul.f32 %v2036, %v2041
    %2045 = vrot.lane.b32.xlu0 %v2043, 32
    %v2046 = vpop.permute.xlu0 %2045
    %v2048 = vadd.f32 %v2038, %v2046
    %v2049 = vtanh.pop %v2048
    %2051 = vrot.lane.b32.xlu0 %v2049, 32
    %v2052 = vpop.permute.xlu0 %2051
    %v2054 = vmul.f32 %v2036, %v2052
    %2056 = vrot.lane.b32.xlu0 %v2054, 64
    %v2057 = vpop.permute.xlu0 %2056
    %2059 = vrot.lane.b32.xlu0 %v1745, 96
    %v2060 = vpop.permute.xlu0 %2059
    %v2062 = vsel %vm150, %v2057, %v2060
    %v2064 = vsel %vm69, %v2062, 0
    %2066 = vmatprep.subr.mxu0 0.0
    %2067 = vmatpush1.msra.mxu0 0.0
    %2068 = vmatprep.subr.mxu0 0.0
    %2069 = vmatpush1.msra.mxu0 0.0
    %2070 = vmatprep.subr.mxu0 0.0
    %2071 = vmatpush1.msra.mxu0 0.0
    %2072 = vmatprep.subr.mxu0 0.0
    %2073 = vmatpush1.msra.mxu0 0.0
    %2074 = vmatprep.subr.mxu0 0.0
    %2075 = vmatpush1.msra.mxu0 0.0
    %2076 = vmatprep.subr.mxu0 0.0
    %2077 = vmatpush1.msra.mxu0 0.0
    %2078 = vmatprep.subr.mxu0 0.0
    %2079 = vmatpush1.msra.mxu0 0.0
    %2080 = vmatprep.subr.mxu0 0.0
    %2081 = vmatpush1.msra.mxu0 0.0
    %2082 = vmatprep.subr.mxu0 0.0
    %2083 = vmatpush1.msra.mxu0 %v389
    %2084 = vmatprep.subr.mxu0 0.0
    %2085 = vmatpush1.msra.mxu0 %v388
    %2086 = vmatprep.subr.mxu0 0.0
    %2087 = vmatpush1.msra.mxu0 %v387
    %2088 = vmatprep.subr.mxu0 0.0
    %2089 = vmatpush1.msra.mxu0 %v386
    %2090 = vmatprep.subr.mxu0 0.0
    %2091 = vmatpush1.msra.mxu0 %v385
    %2092 = vmatprep.subr.mxu0 0.0
    %2093 = vmatpush1.msra.mxu0 %v384
    %2094 = vmatprep.subr.mxu0 0.0
    %2095 = vmatpush1.msra.mxu0 %v383
    %2096 = vmatprep.subr.mxu0 0.0
    %2097 = vmatpush1.msra.mxu0 %v382
    %2098 = vmatprep.subr.mxu0 0.0
    %2099 = vmatpush2.msra.mxu0 0.0
    %2100 = vmatprep.subr.mxu0 0.0
    %2101 = vmatpush2.msra.mxu0 0.0
    %2102 = vmatprep.subr.mxu0 0.0
    %2103 = vmatpush2.msra.mxu0 0.0
    %2104 = vmatprep.subr.mxu0 0.0
    %2105 = vmatpush2.msra.mxu0 0.0
    %2106 = vmatprep.subr.mxu0 0.0
    %2107 = vmatpush2.msra.mxu0 0.0
    %2108 = vmatprep.subr.mxu0 0.0
    %2109 = vmatpush2.msra.mxu0 0.0
    %2110 = vmatprep.subr.mxu0 0.0
    %2111 = vmatpush2.msra.mxu0 0.0
    %2112 = vmatprep.subr.mxu0 0.0
    %2113 = vmatpush2.msra.mxu0 0.0
    %2114 = vmatprep.subr.mxu0 0.0
    %2115 = vmatpush2.msra.mxu0 0.0
    %2116 = vmatprep.subr.mxu0 0.0
    %2117 = vmatpush2.msra.mxu0 0.0
    %2118 = vmatprep.subr.mxu0 0.0
    %2119 = vmatpush2.msra.mxu0 0.0
    %2120 = vmatprep.subr.mxu0 0.0
    %2121 = vmatpush2.msra.mxu0 0.0
    %2122 = vmatprep.subr.mxu0 0.0
    %2123 = vmatpush2.msra.mxu0 0.0
    %2124 = vmatprep.subr.mxu0 0.0
    %2125 = vmatpush2.msra.mxu0 0.0
    %2126 = vmatprep.subr.mxu0 0.0
    %2127 = vmatpush2.msra.mxu0 0.0
    %2128 = vmatprep.subr.mxu0 0.0
    %2129 = vmatpush2.msra.mxu0 0.0
    %2130 = vmatprep.mubr.f32.mxu0 0.0
    %2131 = vmatmul.mubr.f32.gmra.mxu0 %v2064
    %v2132 = vpop.f32.mrf.mxu0
    %v2133 = vadd.f32 %v372, %v2132
    %v2134 = vpop.f32.mrf.mxu0
    %2135 = vdwg.mxu0
    %v2136 = vxor.u32 %v2133, 2147483648
    %v2137 = vmul.f32 %v2136, 1.442695
    %v2138 = vpow.pop %v2137
    %v2139 = vadd.f32 %v2138, 1.0
    %v2140 = vrcp.pop %v2139
    %v2141 = vmul.f32 1.0, %v2140
    %v2142 = vtanh.pop %v2133
    %v2143 = vmul.f32 %v2141, %v1739
    %2145 = vrot.lane.b32.xlu0 %v2142, 32
    %v2146 = vpop.permute.xlu0 %2145
    %v2148 = vmul.f32 %v2141, %v2146
    %2150 = vrot.lane.b32.xlu0 %v2148, 32
    %v2151 = vpop.permute.xlu0 %2150
    %v2153 = vadd.f32 %v2143, %v2151
    %v2154 = vtanh.pop %v2153
    %2156 = vrot.lane.b32.xlu0 %v2154, 32
    %v2157 = vpop.permute.xlu0 %2156
    %v2159 = vmul.f32 %v2141, %v2157
    %2161 = vrot.lane.b32.xlu0 %v2159, 64
    %v2162 = vpop.permute.xlu0 %2161
    %2165 = vrot.lane.b32.xlu0 %v1851, 96
    %v2166 = vpop.permute.xlu0 %2165
    %v2168 = vsel %vm150, %v2162, %v2166
    %v2170 = vsel %vm69, %v2168, 0
    %2172 = vmatprep.subr.mxu0 0.0
    %2173 = vmatpush1.msra.mxu0 0.0
    %2174 = vmatprep.subr.mxu0 0.0
    %2175 = vmatpush1.msra.mxu0 0.0
    %2176 = vmatprep.subr.mxu0 0.0
    %2177 = vmatpush1.msra.mxu0 0.0
    %2178 = vmatprep.subr.mxu0 0.0
    %2179 = vmatpush1.msra.mxu0 0.0
    %2180 = vmatprep.subr.mxu0 0.0
    %2181 = vmatpush1.msra.mxu0 0.0
    %2182 = vmatprep.subr.mxu0 0.0
    %2183 = vmatpush1.msra.mxu0 0.0
    %2184 = vmatprep.subr.mxu0 0.0
    %2185 = vmatpush1.msra.mxu0 0.0
    %2186 = vmatprep.subr.mxu0 0.0
    %2187 = vmatpush1.msra.mxu0 0.0
    %2188 = vmatprep.subr.mxu0 0.0
    %2189 = vmatpush1.msra.mxu0 %v507
    %2190 = vmatprep.subr.mxu0 0.0
    %2191 = vmatpush1.msra.mxu0 %v506
    %2192 = vmatprep.subr.mxu0 0.0
    %2193 = vmatpush1.msra.mxu0 %v505
    %2194 = vmatprep.subr.mxu0 0.0
    %2195 = vmatpush1.msra.mxu0 %v504
    %2196 = vmatprep.subr.mxu0 0.0
    %2197 = vmatpush1.msra.mxu0 %v503
    %2198 = vmatprep.subr.mxu0 0.0
    %2199 = vmatpush1.msra.mxu0 %v502
    %2200 = vmatprep.subr.mxu0 0.0
    %2201 = vmatpush1.msra.mxu0 %v501
    %2202 = vmatprep.subr.mxu0 0.0
    %2203 = vmatpush1.msra.mxu0 %v500
    %2204 = vmatprep.subr.mxu0 0.0
    %2205 = vmatpush2.msra.mxu0 0.0
    %2206 = vmatprep.subr.mxu0 0.0
    %2207 = vmatpush2.msra.mxu0 0.0
    %2208 = vmatprep.subr.mxu0 0.0
    %2209 = vmatpush2.msra.mxu0 0.0
    %2210 = vmatprep.subr.mxu0 0.0
    %2211 = vmatpush2.msra.mxu0 0.0
    %2212 = vmatprep.subr.mxu0 0.0
    %2213 = vmatpush2.msra.mxu0 0.0
    %2214 = vmatprep.subr.mxu0 0.0
    %2215 = vmatpush2.msra.mxu0 0.0
    %2216 = vmatprep.subr.mxu0 0.0
    %2217 = vmatpush2.msra.mxu0 0.0
    %2218 = vmatprep.subr.mxu0 0.0
    %2219 = vmatpush2.msra.mxu0 0.0
    %2220 = vmatprep.subr.mxu0 0.0
    %2221 = vmatpush2.msra.mxu0 0.0
    %2222 = vmatprep.subr.mxu0 0.0
    %2223 = vmatpush2.msra.mxu0 0.0
    %2224 = vmatprep.subr.mxu0 0.0
    %2225 = vmatpush2.msra.mxu0 0.0
    %2226 = vmatprep.subr.mxu0 0.0
    %2227 = vmatpush2.msra.mxu0 0.0
    %2228 = vmatprep.subr.mxu0 0.0
    %2229 = vmatpush2.msra.mxu0 0.0
    %2230 = vmatprep.subr.mxu0 0.0
    %2231 = vmatpush2.msra.mxu0 0.0
    %2232 = vmatprep.subr.mxu0 0.0
    %2233 = vmatpush2.msra.mxu0 0.0
    %2234 = vmatprep.subr.mxu0 0.0
    %2235 = vmatpush2.msra.mxu0 0.0
    %2236 = vmatprep.mubr.f32.mxu0 0.0
    %2237 = vmatmul.mubr.f32.gmra.mxu0 %v2170
    %v2238 = vpop.f32.mrf.mxu0
    %v2239 = vadd.f32 %v508, %v2238
    %v2240 = vpop.f32.mrf.mxu0
    %2241 = vdwg.mxu0
    %v2242 = vxor.u32 %v2239, 2147483648
    %v2243 = vmul.f32 %v2242, 1.442695
    %v2244 = vpow.pop %v2243
    %v2245 = vadd.f32 %v2244, 1.0
    %v2246 = vrcp.pop %v2245
    %v2247 = vmul.f32 1.0, %v2246
    %v2248 = vtanh.pop %v2239
    %v2249 = vmul.f32 %v2247, %v1845
    %2251 = vrot.lane.b32.xlu0 %v2248, 32
    %v2252 = vpop.permute.xlu0 %2251
    %v2254 = vmul.f32 %v2247, %v2252
    %2256 = vrot.lane.b32.xlu0 %v2254, 32
    %v2257 = vpop.permute.xlu0 %2256
    %v2259 = vadd.f32 %v2249, %v2257
    %v2260 = vtanh.pop %v2259
    %2262 = vrot.lane.b32.xlu0 %v2260, 32
    %v2263 = vpop.permute.xlu0 %2262
    %v2265 = vmul.f32 %v2247, %v2263
    %v2266 = vld [vmem:[#allocation2 + $0x5] sm:$0x1]
    %v2267 = vsel %vm150, %v1952, 0
    %2269 = vmatprep.subr.mxu0 0.0
    %2270 = vmatpush1.msra.mxu0 0.0
    %2271 = vmatprep.subr.mxu0 0.0
    %2272 = vmatpush1.msra.mxu0 0.0
    %2273 = vmatprep.subr.mxu0 0.0
    %2274 = vmatpush1.msra.mxu0 0.0
    %2275 = vmatprep.subr.mxu0 0.0
    %2276 = vmatpush1.msra.mxu0 0.0
    %2277 = vmatprep.subr.mxu0 0.0
    %2278 = vmatpush1.msra.mxu0 0.0
    %2279 = vmatprep.subr.mxu0 0.0
    %2280 = vmatpush1.msra.mxu0 0.0
    %2281 = vmatprep.subr.mxu0 0.0
    %2282 = vmatpush1.msra.mxu0 0.0
    %2283 = vmatprep.subr.mxu0 0.0
    %2284 = vmatpush1.msra.mxu0 0.0
    %2285 = vmatprep.subr.mxu0 0.0
    %2286 = vmatpush1.msra.mxu0 0.0
    %2287 = vmatprep.subr.mxu0 0.0
    %2288 = vmatpush1.msra.mxu0 0.0
    %2289 = vmatprep.subr.mxu0 0.0
    %2290 = vmatpush1.msra.mxu0 0.0
    %2291 = vmatprep.subr.mxu0 0.0
    %2292 = vmatpush1.msra.mxu0 0.0
    %2293 = vmatprep.subr.mxu0 0.0
    %2294 = vmatpush1.msra.mxu0 %v148
    %2295 = vmatprep.subr.mxu0 0.0
    %2296 = vmatpush1.msra.mxu0 %v147
    %2297 = vmatprep.subr.mxu0 0.0
    %2298 = vmatpush1.msra.mxu0 %v146
    %2299 = vmatprep.subr.mxu0 0.0
    %2300 = vmatpush1.msra.mxu0 %v145
    %2301 = vmatprep.subr.mxu0 0.0
    %2302 = vmatpush2.msra.mxu0 0.0
    %2303 = vmatprep.subr.mxu0 0.0
    %2304 = vmatpush2.msra.mxu0 0.0
    %2305 = vmatprep.subr.mxu0 0.0
    %2306 = vmatpush2.msra.mxu0 0.0
    %2307 = vmatprep.subr.mxu0 0.0
    %2308 = vmatpush2.msra.mxu0 0.0
    %2309 = vmatprep.subr.mxu0 0.0
    %2310 = vmatpush2.msra.mxu0 0.0
    %2311 = vmatprep.subr.mxu0 0.0
    %2312 = vmatpush2.msra.mxu0 0.0
    %2313 = vmatprep.subr.mxu0 0.0
    %2314 = vmatpush2.msra.mxu0 0.0
    %2315 = vmatprep.subr.mxu0 0.0
    %2316 = vmatpush2.msra.mxu0 0.0
    %2317 = vmatprep.subr.mxu0 0.0
    %2318 = vmatpush2.msra.mxu0 0.0
    %2319 = vmatprep.subr.mxu0 0.0
    %2320 = vmatpush2.msra.mxu0 0.0
    %2321 = vmatprep.subr.mxu0 0.0
    %2322 = vmatpush2.msra.mxu0 0.0
    %2323 = vmatprep.subr.mxu0 0.0
    %2324 = vmatpush2.msra.mxu0 0.0
    %2325 = vmatprep.subr.mxu0 0.0
    %2326 = vmatpush2.msra.mxu0 0.0
    %2327 = vmatprep.subr.mxu0 0.0
    %2328 = vmatpush2.msra.mxu0 0.0
    %2329 = vmatprep.subr.mxu0 0.0
    %2330 = vmatpush2.msra.mxu0 0.0
    %2331 = vmatprep.subr.mxu0 0.0
    %2332 = vmatpush2.msra.mxu0 0.0
    %2333 = vmatprep.mubr.f32.mxu0 0.0
    %2334 = vmatmul.mubr.f32.gmra.mxu0 %v2267
    %v2335 = vpop.f32.mrf.mxu0
    %v2336 = vadd.f32 %v149, %v2335
    %v2337 = vpop.f32.mrf.mxu0
    %2338 = vdwg.mxu0
    %v2339 = vadd.f32 %v2336, %v2266
    %v2340 = vxor.u32 %v2339, 2147483648
    %v2341 = vmul.f32 %v2340, 1.442695
    %v2342 = vpow.pop %v2341
    %v2343 = vadd.f32 %v2342, 1.0
    %v2344 = vrcp.pop %v2343
    %v2345 = vmul.f32 1.0, %v2344
    %v2346 = vtanh.pop %v2339
    %v2347 = vmul.f32 %v2345, %v1943
    %2349 = vrot.lane.b32.xlu0 %v2346, 32
    %v2350 = vpop.permute.xlu0 %2349
    %v2352 = vmul.f32 %v2345, %v2350
    %2354 = vrot.lane.b32.xlu0 %v2352, 32
    %v2355 = vpop.permute.xlu0 %2354
    %v2357 = vadd.f32 %v2347, %v2355
    %v2358 = vtanh.pop %v2357
    %2360 = vrot.lane.b32.xlu0 %v2358, 32
    %v2361 = vpop.permute.xlu0 %2360
    %v2363 = vmul.f32 %v2345, %v2361
    %2365 = vrot.lane.b32.xlu0 %v2363, 64
    %v2366 = vpop.permute.xlu0 %2365
    %2368 = vrot.lane.b32.xlu0 %v2054, 96
    %v2369 = vpop.permute.xlu0 %2368
    %v2371 = vsel %vm150, %v2366, %v2369
    %v2373 = vsel %vm69, %v2371, 0
    %2375 = vmatprep.subr.mxu0 0.0
    %2376 = vmatpush1.msra.mxu0 0.0
    %2377 = vmatprep.subr.mxu0 0.0
    %2378 = vmatpush1.msra.mxu0 0.0
    %2379 = vmatprep.subr.mxu0 0.0
    %2380 = vmatpush1.msra.mxu0 0.0
    %2381 = vmatprep.subr.mxu0 0.0
    %2382 = vmatpush1.msra.mxu0 0.0
    %2383 = vmatprep.subr.mxu0 0.0
    %2384 = vmatpush1.msra.mxu0 0.0
    %2385 = vmatprep.subr.mxu0 0.0
    %2386 = vmatpush1.msra.mxu0 0.0
    %2387 = vmatprep.subr.mxu0 0.0
    %2388 = vmatpush1.msra.mxu0 0.0
    %2389 = vmatprep.subr.mxu0 0.0
    %2390 = vmatpush1.msra.mxu0 0.0
    %2391 = vmatprep.subr.mxu0 0.0
    %2392 = vmatpush1.msra.mxu0 %v269
    %2393 = vmatprep.subr.mxu0 0.0
    %2394 = vmatpush1.msra.mxu0 %v268
    %2395 = vmatprep.subr.mxu0 0.0
    %2396 = vmatpush1.msra.mxu0 %v267
    %2397 = vmatprep.subr.mxu0 0.0
    %2398 = vmatpush1.msra.mxu0 %v266
    %2399 = vmatprep.subr.mxu0 0.0
    %2400 = vmatpush1.msra.mxu0 %v265
    %2401 = vmatprep.subr.mxu0 0.0
    %2402 = vmatpush1.msra.mxu0 %v264
    %2403 = vmatprep.subr.mxu0 0.0
    %2404 = vmatpush1.msra.mxu0 %v263
    %2405 = vmatprep.subr.mxu0 0.0
    %2406 = vmatpush1.msra.mxu0 %v262
    %2407 = vmatprep.subr.mxu0 0.0
    %2408 = vmatpush2.msra.mxu0 0.0
    %2409 = vmatprep.subr.mxu0 0.0
    %2410 = vmatpush2.msra.mxu0 0.0
    %2411 = vmatprep.subr.mxu0 0.0
    %2412 = vmatpush2.msra.mxu0 0.0
    %2413 = vmatprep.subr.mxu0 0.0
    %2414 = vmatpush2.msra.mxu0 0.0
    %2415 = vmatprep.subr.mxu0 0.0
    %2416 = vmatpush2.msra.mxu0 0.0
    %2417 = vmatprep.subr.mxu0 0.0
    %2418 = vmatpush2.msra.mxu0 0.0
    %2419 = vmatprep.subr.mxu0 0.0
    %2420 = vmatpush2.msra.mxu0 0.0
    %2421 = vmatprep.subr.mxu0 0.0
    %2422 = vmatpush2.msra.mxu0 0.0
    %2423 = vmatprep.subr.mxu0 0.0
    %2424 = vmatpush2.msra.mxu0 0.0
    %2425 = vmatprep.subr.mxu0 0.0
    %2426 = vmatpush2.msra.mxu0 0.0
    %2427 = vmatprep.subr.mxu0 0.0
    %2428 = vmatpush2.msra.mxu0 0.0
    %2429 = vmatprep.subr.mxu0 0.0
    %2430 = vmatpush2.msra.mxu0 0.0
    %2431 = vmatprep.subr.mxu0 0.0
    %2432 = vmatpush2.msra.mxu0 0.0
    %2433 = vmatprep.subr.mxu0 0.0
    %2434 = vmatpush2.msra.mxu0 0.0
    %2435 = vmatprep.subr.mxu0 0.0
    %2436 = vmatpush2.msra.mxu0 0.0
    %2437 = vmatprep.subr.mxu0 0.0
    %2438 = vmatpush2.msra.mxu0 0.0
    %2439 = vmatprep.mubr.f32.mxu0 0.0
    %2440 = vmatmul.mubr.f32.gmra.mxu0 %v2373
    %v2441 = vpop.f32.mrf.mxu0
    %v2442 = vadd.f32 %v270, %v2441
    %v2443 = vpop.f32.mrf.mxu0
    %2444 = vdwg.mxu0
    %v2445 = vxor.u32 %v2442, 2147483648
    %v2446 = vmul.f32 %v2445, 1.442695
    %v2447 = vpow.pop %v2446
    %v2448 = vadd.f32 %v2447, 1.0
    %v2449 = vrcp.pop %v2448
    %v2450 = vmul.f32 1.0, %v2449
    %v2451 = vtanh.pop %v2442
    %v2452 = vmul.f32 %v2450, %v2048
    %2454 = vrot.lane.b32.xlu0 %v2451, 32
    %v2455 = vpop.permute.xlu0 %2454
    %v2457 = vmul.f32 %v2450, %v2455
    %2459 = vrot.lane.b32.xlu0 %v2457, 32
    %v2460 = vpop.permute.xlu0 %2459
    %v2462 = vadd.f32 %v2452, %v2460
    %v2463 = vtanh.pop %v2462
    %2465 = vrot.lane.b32.xlu0 %v2463, 32
    %v2466 = vpop.permute.xlu0 %2465
    %v2468 = vmul.f32 %v2450, %v2466
    %2470 = vrot.lane.b32.xlu0 %v2468, 64
    %v2471 = vpop.permute.xlu0 %2470
    %2473 = vrot.lane.b32.xlu0 %v2159, 96
    %v2474 = vpop.permute.xlu0 %2473
    %v2476 = vsel %vm150, %v2471, %v2474
    %v2478 = vsel %vm69, %v2476, 0
    %2480 = vmatprep.subr.mxu0 0.0
    %2481 = vmatpush1.msra.mxu0 0.0
    %2482 = vmatprep.subr.mxu0 0.0
    %2483 = vmatpush1.msra.mxu0 0.0
    %2484 = vmatprep.subr.mxu0 0.0
    %2485 = vmatpush1.msra.mxu0 0.0
    %2486 = vmatprep.subr.mxu0 0.0
    %2487 = vmatpush1.msra.mxu0 0.0
    %2488 = vmatprep.subr.mxu0 0.0
    %2489 = vmatpush1.msra.mxu0 0.0
    %2490 = vmatprep.subr.mxu0 0.0
    %2491 = vmatpush1.msra.mxu0 0.0
    %2492 = vmatprep.subr.mxu0 0.0
    %2493 = vmatpush1.msra.mxu0 0.0
    %2494 = vmatprep.subr.mxu0 0.0
    %2495 = vmatpush1.msra.mxu0 0.0
    %2496 = vmatprep.subr.mxu0 0.0
    %2497 = vmatpush1.msra.mxu0 %v389
    %2498 = vmatprep.subr.mxu0 0.0
    %2499 = vmatpush1.msra.mxu0 %v388
    %2500 = vmatprep.subr.mxu0 0.0
    %2501 = vmatpush1.msra.mxu0 %v387
    %2502 = vmatprep.subr.mxu0 0.0
    %2503 = vmatpush1.msra.mxu0 %v386
    %2504 = vmatprep.subr.mxu0 0.0
    %2505 = vmatpush1.msra.mxu0 %v385
    %2506 = vmatprep.subr.mxu0 0.0
    %2507 = vmatpush1.msra.mxu0 %v384
    %2508 = vmatprep.subr.mxu0 0.0
    %2509 = vmatpush1.msra.mxu0 %v383
    %2510 = vmatprep.subr.mxu0 0.0
    %2511 = vmatpush1.msra.mxu0 %v382
    %2512 = vmatprep.subr.mxu0 0.0
    %2513 = vmatpush2.msra.mxu0 0.0
    %2514 = vmatprep.subr.mxu0 0.0
    %2515 = vmatpush2.msra.mxu0 0.0
    %2516 = vmatprep.subr.mxu0 0.0
    %2517 = vmatpush2.msra.mxu0 0.0
    %2518 = vmatprep.subr.mxu0 0.0
    %2519 = vmatpush2.msra.mxu0 0.0
    %2520 = vmatprep.subr.mxu0 0.0
    %2521 = vmatpush2.msra.mxu0 0.0
    %2522 = vmatprep.subr.mxu0 0.0
    %2523 = vmatpush2.msra.mxu0 0.0
    %2524 = vmatprep.subr.mxu0 0.0
    %2525 = vmatpush2.msra.mxu0 0.0
    %2526 = vmatprep.subr.mxu0 0.0
    %2527 = vmatpush2.msra.mxu0 0.0
    %2528 = vmatprep.subr.mxu0 0.0
    %2529 = vmatpush2.msra.mxu0 0.0
    %2530 = vmatprep.subr.mxu0 0.0
    %2531 = vmatpush2.msra.mxu0 0.0
    %2532 = vmatprep.subr.mxu0 0.0
    %2533 = vmatpush2.msra.mxu0 0.0
    %2534 = vmatprep.subr.mxu0 0.0
    %2535 = vmatpush2.msra.mxu0 0.0
    %2536 = vmatprep.subr.mxu0 0.0
    %2537 = vmatpush2.msra.mxu0 0.0
    %2538 = vmatprep.subr.mxu0 0.0
    %2539 = vmatpush2.msra.mxu0 0.0
    %2540 = vmatprep.subr.mxu0 0.0
    %2541 = vmatpush2.msra.mxu0 0.0
    %2542 = vmatprep.subr.mxu0 0.0
    %2543 = vmatpush2.msra.mxu0 0.0
    %2544 = vmatprep.mubr.f32.mxu0 0.0
    %2545 = vmatmul.mubr.f32.gmra.mxu0 %v2478
    %v2546 = vpop.f32.mrf.mxu0
    %v2547 = vadd.f32 %v372, %v2546
    %v2548 = vpop.f32.mrf.mxu0
    %2549 = vdwg.mxu0
    %v2550 = vxor.u32 %v2547, 2147483648
    %v2551 = vmul.f32 %v2550, 1.442695
    %v2552 = vpow.pop %v2551
    %v2553 = vadd.f32 %v2552, 1.0
    %v2554 = vrcp.pop %v2553
    %v2555 = vmul.f32 1.0, %v2554
    %v2556 = vtanh.pop %v2547
    %v2557 = vmul.f32 %v2555, %v2153
    %2559 = vrot.lane.b32.xlu0 %v2556, 32
    %v2560 = vpop.permute.xlu0 %2559
    %v2562 = vmul.f32 %v2555, %v2560
    %2564 = vrot.lane.b32.xlu0 %v2562, 32
    %v2565 = vpop.permute.xlu0 %2564
    %v2567 = vadd.f32 %v2557, %v2565
    %v2568 = vtanh.pop %v2567
    %2570 = vrot.lane.b32.xlu0 %v2568, 32
    %v2571 = vpop.permute.xlu0 %2570
    %v2573 = vmul.f32 %v2555, %v2571
    %2575 = vrot.lane.b32.xlu0 %v2573, 64
    %v2576 = vpop.permute.xlu0 %2575
    %2579 = vrot.lane.b32.xlu0 %v2265, 96
    %v2580 = vpop.permute.xlu0 %2579
    %v2582 = vsel %vm150, %v2576, %v2580
    %v2584 = vsel %vm69, %v2582, 0
    %2586 = vmatprep.subr.mxu0 0.0
    %2587 = vmatpush1.msra.mxu0 0.0
    %2588 = vmatprep.subr.mxu0 0.0
    %2589 = vmatpush1.msra.mxu0 0.0
    %2590 = vmatprep.subr.mxu0 0.0
    %2591 = vmatpush1.msra.mxu0 0.0
    %2592 = vmatprep.subr.mxu0 0.0
    %2593 = vmatpush1.msra.mxu0 0.0
    %2594 = vmatprep.subr.mxu0 0.0
    %2595 = vmatpush1.msra.mxu0 0.0
    %2596 = vmatprep.subr.mxu0 0.0
    %2597 = vmatpush1.msra.mxu0 0.0
    %2598 = vmatprep.subr.mxu0 0.0
    %2599 = vmatpush1.msra.mxu0 0.0
    %2600 = vmatprep.subr.mxu0 0.0
    %2601 = vmatpush1.msra.mxu0 0.0
    %2602 = vmatprep.subr.mxu0 0.0
    %2603 = vmatpush1.msra.mxu0 %v507
    %2604 = vmatprep.subr.mxu0 0.0
    %2605 = vmatpush1.msra.mxu0 %v506
    %2606 = vmatprep.subr.mxu0 0.0
    %2607 = vmatpush1.msra.mxu0 %v505
    %2608 = vmatprep.subr.mxu0 0.0
    %2609 = vmatpush1.msra.mxu0 %v504
    %2610 = vmatprep.subr.mxu0 0.0
    %2611 = vmatpush1.msra.mxu0 %v503
    %2612 = vmatprep.subr.mxu0 0.0
    %2613 = vmatpush1.msra.mxu0 %v502
    %2614 = vmatprep.subr.mxu0 0.0
    %2615 = vmatpush1.msra.mxu0 %v501
    %2616 = vmatprep.subr.mxu0 0.0
    %2617 = vmatpush1.msra.mxu0 %v500
    %2618 = vmatprep.subr.mxu0 0.0
    %2619 = vmatpush2.msra.mxu0 0.0
    %2620 = vmatprep.subr.mxu0 0.0
    %2621 = vmatpush2.msra.mxu0 0.0
    %2622 = vmatprep.subr.mxu0 0.0
    %2623 = vmatpush2.msra.mxu0 0.0
    %2624 = vmatprep.subr.mxu0 0.0
    %2625 = vmatpush2.msra.mxu0 0.0
    %2626 = vmatprep.subr.mxu0 0.0
    %2627 = vmatpush2.msra.mxu0 0.0
    %2628 = vmatprep.subr.mxu0 0.0
    %2629 = vmatpush2.msra.mxu0 0.0
    %2630 = vmatprep.subr.mxu0 0.0
    %2631 = vmatpush2.msra.mxu0 0.0
    %2632 = vmatprep.subr.mxu0 0.0
    %2633 = vmatpush2.msra.mxu0 0.0
    %2634 = vmatprep.subr.mxu0 0.0
    %2635 = vmatpush2.msra.mxu0 0.0
    %2636 = vmatprep.subr.mxu0 0.0
    %2637 = vmatpush2.msra.mxu0 0.0
    %2638 = vmatprep.subr.mxu0 0.0
    %2639 = vmatpush2.msra.mxu0 0.0
    %2640 = vmatprep.subr.mxu0 0.0
    %2641 = vmatpush2.msra.mxu0 0.0
    %2642 = vmatprep.subr.mxu0 0.0
    %2643 = vmatpush2.msra.mxu0 0.0
    %2644 = vmatprep.subr.mxu0 0.0
    %2645 = vmatpush2.msra.mxu0 0.0
    %2646 = vmatprep.subr.mxu0 0.0
    %2647 = vmatpush2.msra.mxu0 0.0
    %2648 = vmatprep.subr.mxu0 0.0
    %2649 = vmatpush2.msra.mxu0 0.0
    %2650 = vmatprep.mubr.f32.mxu0 0.0
    %2651 = vmatmul.mubr.f32.gmra.mxu0 %v2584
    %v2652 = vpop.f32.mrf.mxu0
    %v2653 = vadd.f32 %v508, %v2652
    %v2654 = vpop.f32.mrf.mxu0
    %2655 = vdwg.mxu0
    %v2656 = vxor.u32 %v2653, 2147483648
    %v2657 = vmul.f32 %v2656, 1.442695
    %v2658 = vpow.pop %v2657
    %v2659 = vadd.f32 %v2658, 1.0
    %v2660 = vrcp.pop %v2659
    %v2661 = vmul.f32 1.0, %v2660
    %v2662 = vtanh.pop %v2653
    %v2663 = vmul.f32 %v2661, %v2259
    %2665 = vrot.lane.b32.xlu0 %v2662, 32
    %v2666 = vpop.permute.xlu0 %2665
    %v2668 = vmul.f32 %v2661, %v2666
    %2670 = vrot.lane.b32.xlu0 %v2668, 32
    %v2671 = vpop.permute.xlu0 %2670
    %v2673 = vadd.f32 %v2663, %v2671
    %v2674 = vtanh.pop %v2673
    %2676 = vrot.lane.b32.xlu0 %v2674, 32
    %v2677 = vpop.permute.xlu0 %2676
    %v2679 = vmul.f32 %v2661, %v2677
    %v2680 = vld [vmem:[#allocation2 + $0x6] sm:$0x1]
    %v2681 = vsel %vm150, %v2366, 0
    %2683 = vmatprep.subr.mxu0 0.0
    %2684 = vmatpush1.msra.mxu0 0.0
    %2685 = vmatprep.subr.mxu0 0.0
    %2686 = vmatpush1.msra.mxu0 0.0
    %2687 = vmatprep.subr.mxu0 0.0
    %2688 = vmatpush1.msra.mxu0 0.0
    %2689 = vmatprep.subr.mxu0 0.0
    %2690 = vmatpush1.msra.mxu0 0.0
    %2691 = vmatprep.subr.mxu0 0.0
    %2692 = vmatpush1.msra.mxu0 0.0
    %2693 = vmatprep.subr.mxu0 0.0
    %2694 = vmatpush1.msra.mxu0 0.0
    %2695 = vmatprep.subr.mxu0 0.0
    %2696 = vmatpush1.msra.mxu0 0.0
    %2697 = vmatprep.subr.mxu0 0.0
    %2698 = vmatpush1.msra.mxu0 0.0
    %2699 = vmatprep.subr.mxu0 0.0
    %2700 = vmatpush1.msra.mxu0 0.0
    %2701 = vmatprep.subr.mxu0 0.0
    %2702 = vmatpush1.msra.mxu0 0.0
    %2703 = vmatprep.subr.mxu0 0.0
    %2704 = vmatpush1.msra.mxu0 0.0
    %2705 = vmatprep.subr.mxu0 0.0
    %2706 = vmatpush1.msra.mxu0 0.0
    %2707 = vmatprep.subr.mxu0 0.0
    %2708 = vmatpush1.msra.mxu0 %v148
    %2709 = vmatprep.subr.mxu0 0.0
    %2710 = vmatpush1.msra.mxu0 %v147
    %2711 = vmatprep.subr.mxu0 0.0
    %2712 = vmatpush1.msra.mxu0 %v146
    %2713 = vmatprep.subr.mxu0 0.0
    %2714 = vmatpush1.msra.mxu0 %v145
    %2715 = vmatprep.subr.mxu0 0.0
    %2716 = vmatpush2.msra.mxu0 0.0
    %2717 = vmatprep.subr.mxu0 0.0
    %2718 = vmatpush2.msra.mxu0 0.0
    %2719 = vmatprep.subr.mxu0 0.0
    %2720 = vmatpush2.msra.mxu0 0.0
    %2721 = vmatprep.subr.mxu0 0.0
    %2722 = vmatpush2.msra.mxu0 0.0
    %2723 = vmatprep.subr.mxu0 0.0
    %2724 = vmatpush2.msra.mxu0 0.0
    %2725 = vmatprep.subr.mxu0 0.0
    %2726 = vmatpush2.msra.mxu0 0.0
    %2727 = vmatprep.subr.mxu0 0.0
    %2728 = vmatpush2.msra.mxu0 0.0
    %2729 = vmatprep.subr.mxu0 0.0
    %2730 = vmatpush2.msra.mxu0 0.0
    %2731 = vmatprep.subr.mxu0 0.0
    %2732 = vmatpush2.msra.mxu0 0.0
    %2733 = vmatprep.subr.mxu0 0.0
    %2734 = vmatpush2.msra.mxu0 0.0
    %2735 = vmatprep.subr.mxu0 0.0
    %2736 = vmatpush2.msra.mxu0 0.0
    %2737 = vmatprep.subr.mxu0 0.0
    %2738 = vmatpush2.msra.mxu0 0.0
    %2739 = vmatprep.subr.mxu0 0.0
    %2740 = vmatpush2.msra.mxu0 0.0
    %2741 = vmatprep.subr.mxu0 0.0
    %2742 = vmatpush2.msra.mxu0 0.0
    %2743 = vmatprep.subr.mxu0 0.0
    %2744 = vmatpush2.msra.mxu0 0.0
    %2745 = vmatprep.subr.mxu0 0.0
    %2746 = vmatpush2.msra.mxu0 0.0
    %2747 = vmatprep.mubr.f32.mxu0 0.0
    %2748 = vmatmul.mubr.f32.gmra.mxu0 %v2681
    %v2749 = vpop.f32.mrf.mxu0
    %v2750 = vadd.f32 %v149, %v2749
    %v2751 = vpop.f32.mrf.mxu0
    %2752 = vdwg.mxu0
    %v2753 = vadd.f32 %v2750, %v2680
    %v2754 = vxor.u32 %v2753, 2147483648
    %v2755 = vmul.f32 %v2754, 1.442695
    %v2756 = vpow.pop %v2755
    %v2757 = vadd.f32 %v2756, 1.0
    %v2758 = vrcp.pop %v2757
    %v2759 = vmul.f32 1.0, %v2758
    %v2760 = vtanh.pop %v2753
    %v2761 = vmul.f32 %v2759, %v2357
    %2763 = vrot.lane.b32.xlu0 %v2760, 32
    %v2764 = vpop.permute.xlu0 %2763
    %v2766 = vmul.f32 %v2759, %v2764
    %2768 = vrot.lane.b32.xlu0 %v2766, 32
    %v2769 = vpop.permute.xlu0 %2768
    %v2771 = vadd.f32 %v2761, %v2769
    %v2772 = vtanh.pop %v2771
    %2774 = vrot.lane.b32.xlu0 %v2772, 32
    %v2775 = vpop.permute.xlu0 %2774
    %v2777 = vmul.f32 %v2759, %v2775
    %2779 = vrot.lane.b32.xlu0 %v2777, 64
    %v2780 = vpop.permute.xlu0 %2779
    %2782 = vrot.lane.b32.xlu0 %v2468, 96
    %v2783 = vpop.permute.xlu0 %2782
    %v2785 = vsel %vm150, %v2780, %v2783
    %v2787 = vsel %vm69, %v2785, 0
    %2789 = vmatprep.subr.mxu0 0.0
    %2790 = vmatpush1.msra.mxu0 0.0
    %2791 = vmatprep.subr.mxu0 0.0
    %2792 = vmatpush1.msra.mxu0 0.0
    %2793 = vmatprep.subr.mxu0 0.0
    %2794 = vmatpush1.msra.mxu0 0.0
    %2795 = vmatprep.subr.mxu0 0.0
    %2796 = vmatpush1.msra.mxu0 0.0
    %2797 = vmatprep.subr.mxu0 0.0
    %2798 = vmatpush1.msra.mxu0 0.0
    %2799 = vmatprep.subr.mxu0 0.0
    %2800 = vmatpush1.msra.mxu0 0.0
    %2801 = vmatprep.subr.mxu0 0.0
    %2802 = vmatpush1.msra.mxu0 0.0
    %2803 = vmatprep.subr.mxu0 0.0
    %2804 = vmatpush1.msra.mxu0 0.0
    %2805 = vmatprep.subr.mxu0 0.0
    %2806 = vmatpush1.msra.mxu0 %v269
    %2807 = vmatprep.subr.mxu0 0.0
    %2808 = vmatpush1.msra.mxu0 %v268
    %2809 = vmatprep.subr.mxu0 0.0
    %2810 = vmatpush1.msra.mxu0 %v267
    %2811 = vmatprep.subr.mxu0 0.0
    %2812 = vmatpush1.msra.mxu0 %v266
    %2813 = vmatprep.subr.mxu0 0.0
    %2814 = vmatpush1.msra.mxu0 %v265
    %2815 = vmatprep.subr.mxu0 0.0
    %2816 = vmatpush1.msra.mxu0 %v264
    %2817 = vmatprep.subr.mxu0 0.0
    %2818 = vmatpush1.msra.mxu0 %v263
    %2819 = vmatprep.subr.mxu0 0.0
    %2820 = vmatpush1.msra.mxu0 %v262
    %2821 = vmatprep.subr.mxu0 0.0
    %2822 = vmatpush2.msra.mxu0 0.0
    %2823 = vmatprep.subr.mxu0 0.0
    %2824 = vmatpush2.msra.mxu0 0.0
    %2825 = vmatprep.subr.mxu0 0.0
    %2826 = vmatpush2.msra.mxu0 0.0
    %2827 = vmatprep.subr.mxu0 0.0
    %2828 = vmatpush2.msra.mxu0 0.0
    %2829 = vmatprep.subr.mxu0 0.0
    %2830 = vmatpush2.msra.mxu0 0.0
    %2831 = vmatprep.subr.mxu0 0.0
    %2832 = vmatpush2.msra.mxu0 0.0
    %2833 = vmatprep.subr.mxu0 0.0
    %2834 = vmatpush2.msra.mxu0 0.0
    %2835 = vmatprep.subr.mxu0 0.0
    %2836 = vmatpush2.msra.mxu0 0.0
    %2837 = vmatprep.subr.mxu0 0.0
    %2838 = vmatpush2.msra.mxu0 0.0
    %2839 = vmatprep.subr.mxu0 0.0
    %2840 = vmatpush2.msra.mxu0 0.0
    %2841 = vmatprep.subr.mxu0 0.0
    %2842 = vmatpush2.msra.mxu0 0.0
    %2843 = vmatprep.subr.mxu0 0.0
    %2844 = vmatpush2.msra.mxu0 0.0
    %2845 = vmatprep.subr.mxu0 0.0
    %2846 = vmatpush2.msra.mxu0 0.0
    %2847 = vmatprep.subr.mxu0 0.0
    %2848 = vmatpush2.msra.mxu0 0.0
    %2849 = vmatprep.subr.mxu0 0.0
    %2850 = vmatpush2.msra.mxu0 0.0
    %2851 = vmatprep.subr.mxu0 0.0
    %2852 = vmatpush2.msra.mxu0 0.0
    %2853 = vmatprep.mubr.f32.mxu0 0.0
    %2854 = vmatmul.mubr.f32.gmra.mxu0 %v2787
    %v2855 = vpop.f32.mrf.mxu0
    %v2856 = vadd.f32 %v270, %v2855
    %v2857 = vpop.f32.mrf.mxu0
    %2858 = vdwg.mxu0
    %v2859 = vxor.u32 %v2856, 2147483648
    %v2860 = vmul.f32 %v2859, 1.442695
    %v2861 = vpow.pop %v2860
    %v2862 = vadd.f32 %v2861, 1.0
    %v2863 = vrcp.pop %v2862
    %v2864 = vmul.f32 1.0, %v2863
    %v2865 = vtanh.pop %v2856
    %v2866 = vmul.f32 %v2864, %v2462
    %2868 = vrot.lane.b32.xlu0 %v2865, 32
    %v2869 = vpop.permute.xlu0 %2868
    %v2871 = vmul.f32 %v2864, %v2869
    %2873 = vrot.lane.b32.xlu0 %v2871, 32
    %v2874 = vpop.permute.xlu0 %2873
    %v2876 = vadd.f32 %v2866, %v2874
    %v2877 = vtanh.pop %v2876
    %2879 = vrot.lane.b32.xlu0 %v2877, 32
    %v2880 = vpop.permute.xlu0 %2879
    %v2882 = vmul.f32 %v2864, %v2880
    %2884 = vrot.lane.b32.xlu0 %v2882, 64
    %v2885 = vpop.permute.xlu0 %2884
    %2887 = vrot.lane.b32.xlu0 %v2573, 96
    %v2888 = vpop.permute.xlu0 %2887
    %v2890 = vsel %vm150, %v2885, %v2888
    %v2892 = vsel %vm69, %v2890, 0
    %2894 = vmatprep.subr.mxu0 0.0
    %2895 = vmatpush1.msra.mxu0 0.0
    %2896 = vmatprep.subr.mxu0 0.0
    %2897 = vmatpush1.msra.mxu0 0.0
    %2898 = vmatprep.subr.mxu0 0.0
    %2899 = vmatpush1.msra.mxu0 0.0
    %2900 = vmatprep.subr.mxu0 0.0
    %2901 = vmatpush1.msra.mxu0 0.0
    %2902 = vmatprep.subr.mxu0 0.0
    %2903 = vmatpush1.msra.mxu0 0.0
    %2904 = vmatprep.subr.mxu0 0.0
    %2905 = vmatpush1.msra.mxu0 0.0
    %2906 = vmatprep.subr.mxu0 0.0
    %2907 = vmatpush1.msra.mxu0 0.0
    %2908 = vmatprep.subr.mxu0 0.0
    %2909 = vmatpush1.msra.mxu0 0.0
    %2910 = vmatprep.subr.mxu0 0.0
    %2911 = vmatpush1.msra.mxu0 %v389
    %2912 = vmatprep.subr.mxu0 0.0
    %2913 = vmatpush1.msra.mxu0 %v388
    %2914 = vmatprep.subr.mxu0 0.0
    %2915 = vmatpush1.msra.mxu0 %v387
    %2916 = vmatprep.subr.mxu0 0.0
    %2917 = vmatpush1.msra.mxu0 %v386
    %2918 = vmatprep.subr.mxu0 0.0
    %2919 = vmatpush1.msra.mxu0 %v385
    %2920 = vmatprep.subr.mxu0 0.0
    %2921 = vmatpush1.msra.mxu0 %v384
    %2922 = vmatprep.subr.mxu0 0.0
    %2923 = vmatpush1.msra.mxu0 %v383
    %2924 = vmatprep.subr.mxu0 0.0
    %2925 = vmatpush1.msra.mxu0 %v382
    %2926 = vmatprep.subr.mxu0 0.0
    %2927 = vmatpush2.msra.mxu0 0.0
    %2928 = vmatprep.subr.mxu0 0.0
    %2929 = vmatpush2.msra.mxu0 0.0
    %2930 = vmatprep.subr.mxu0 0.0
    %2931 = vmatpush2.msra.mxu0 0.0
    %2932 = vmatprep.subr.mxu0 0.0
    %2933 = vmatpush2.msra.mxu0 0.0
    %2934 = vmatprep.subr.mxu0 0.0
    %2935 = vmatpush2.msra.mxu0 0.0
    %2936 = vmatprep.subr.mxu0 0.0
    %2937 = vmatpush2.msra.mxu0 0.0
    %2938 = vmatprep.subr.mxu0 0.0
    %2939 = vmatpush2.msra.mxu0 0.0
    %2940 = vmatprep.subr.mxu0 0.0
    %2941 = vmatpush2.msra.mxu0 0.0
    %2942 = vmatprep.subr.mxu0 0.0
    %2943 = vmatpush2.msra.mxu0 0.0
    %2944 = vmatprep.subr.mxu0 0.0
    %2945 = vmatpush2.msra.mxu0 0.0
    %2946 = vmatprep.subr.mxu0 0.0
    %2947 = vmatpush2.msra.mxu0 0.0
    %2948 = vmatprep.subr.mxu0 0.0
    %2949 = vmatpush2.msra.mxu0 0.0
    %2950 = vmatprep.subr.mxu0 0.0
    %2951 = vmatpush2.msra.mxu0 0.0
    %2952 = vmatprep.subr.mxu0 0.0
    %2953 = vmatpush2.msra.mxu0 0.0
    %2954 = vmatprep.subr.mxu0 0.0
    %2955 = vmatpush2.msra.mxu0 0.0
    %2956 = vmatprep.subr.mxu0 0.0
    %2957 = vmatpush2.msra.mxu0 0.0
    %2958 = vmatprep.mubr.f32.mxu0 0.0
    %2959 = vmatmul.mubr.f32.gmra.mxu0 %v2892
    %v2960 = vpop.f32.mrf.mxu0
    %v2961 = vadd.f32 %v372, %v2960
    %v2962 = vpop.f32.mrf.mxu0
    %2963 = vdwg.mxu0
    %v2964 = vxor.u32 %v2961, 2147483648
    %v2965 = vmul.f32 %v2964, 1.442695
    %v2966 = vpow.pop %v2965
    %v2967 = vadd.f32 %v2966, 1.0
    %v2968 = vrcp.pop %v2967
    %v2969 = vmul.f32 1.0, %v2968
    %v2970 = vtanh.pop %v2961
    %v2971 = vmul.f32 %v2969, %v2567
    %2973 = vrot.lane.b32.xlu0 %v2970, 32
    %v2974 = vpop.permute.xlu0 %2973
    %v2976 = vmul.f32 %v2969, %v2974
    %2978 = vrot.lane.b32.xlu0 %v2976, 32
    %v2979 = vpop.permute.xlu0 %2978
    %v2981 = vadd.f32 %v2971, %v2979
    %v2982 = vtanh.pop %v2981
    %2984 = vrot.lane.b32.xlu0 %v2982, 32
    %v2985 = vpop.permute.xlu0 %2984
    %v2987 = vmul.f32 %v2969, %v2985
    %2989 = vrot.lane.b32.xlu0 %v2987, 64
    %v2990 = vpop.permute.xlu0 %2989
    %2993 = vrot.lane.b32.xlu0 %v2679, 96
    %v2994 = vpop.permute.xlu0 %2993
    %v2996 = vsel %vm150, %v2990, %v2994
    %v2998 = vsel %vm69, %v2996, 0
    %3000 = vmatprep.subr.mxu0 0.0
    %3001 = vmatpush1.msra.mxu0 0.0
    %3002 = vmatprep.subr.mxu0 0.0
    %3003 = vmatpush1.msra.mxu0 0.0
    %3004 = vmatprep.subr.mxu0 0.0
    %3005 = vmatpush1.msra.mxu0 0.0
    %3006 = vmatprep.subr.mxu0 0.0
    %3007 = vmatpush1.msra.mxu0 0.0
    %3008 = vmatprep.subr.mxu0 0.0
    %3009 = vmatpush1.msra.mxu0 0.0
    %3010 = vmatprep.subr.mxu0 0.0
    %3011 = vmatpush1.msra.mxu0 0.0
    %3012 = vmatprep.subr.mxu0 0.0
    %3013 = vmatpush1.msra.mxu0 0.0
    %3014 = vmatprep.subr.mxu0 0.0
    %3015 = vmatpush1.msra.mxu0 0.0
    %3016 = vmatprep.subr.mxu0 0.0
    %3017 = vmatpush1.msra.mxu0 %v507
    %3018 = vmatprep.subr.mxu0 0.0
    %3019 = vmatpush1.msra.mxu0 %v506
    %3020 = vmatprep.subr.mxu0 0.0
    %3021 = vmatpush1.msra.mxu0 %v505
    %3022 = vmatprep.subr.mxu0 0.0
    %3023 = vmatpush1.msra.mxu0 %v504
    %3024 = vmatprep.subr.mxu0 0.0
    %3025 = vmatpush1.msra.mxu0 %v503
    %3026 = vmatprep.subr.mxu0 0.0
    %3027 = vmatpush1.msra.mxu0 %v502
    %3028 = vmatprep.subr.mxu0 0.0
    %3029 = vmatpush1.msra.mxu0 %v501
    %3030 = vmatprep.subr.mxu0 0.0
    %3031 = vmatpush1.msra.mxu0 %v500
    %3032 = vmatprep.subr.mxu0 0.0
    %3033 = vmatpush2.msra.mxu0 0.0
    %3034 = vmatprep.subr.mxu0 0.0
    %3035 = vmatpush2.msra.mxu0 0.0
    %3036 = vmatprep.subr.mxu0 0.0
    %3037 = vmatpush2.msra.mxu0 0.0
    %3038 = vmatprep.subr.mxu0 0.0
    %3039 = vmatpush2.msra.mxu0 0.0
    %3040 = vmatprep.subr.mxu0 0.0
    %3041 = vmatpush2.msra.mxu0 0.0
    %3042 = vmatprep.subr.mxu0 0.0
    %3043 = vmatpush2.msra.mxu0 0.0
    %3044 = vmatprep.subr.mxu0 0.0
    %3045 = vmatpush2.msra.mxu0 0.0
    %3046 = vmatprep.subr.mxu0 0.0
    %3047 = vmatpush2.msra.mxu0 0.0
    %3048 = vmatprep.subr.mxu0 0.0
    %3049 = vmatpush2.msra.mxu0 0.0
    %3050 = vmatprep.subr.mxu0 0.0
    %3051 = vmatpush2.msra.mxu0 0.0
    %3052 = vmatprep.subr.mxu0 0.0
    %3053 = vmatpush2.msra.mxu0 0.0
    %3054 = vmatprep.subr.mxu0 0.0
    %3055 = vmatpush2.msra.mxu0 0.0
    %3056 = vmatprep.subr.mxu0 0.0
    %3057 = vmatpush2.msra.mxu0 0.0
    %3058 = vmatprep.subr.mxu0 0.0
    %3059 = vmatpush2.msra.mxu0 0.0
    %3060 = vmatprep.subr.mxu0 0.0
    %3061 = vmatpush2.msra.mxu0 0.0
    %3062 = vmatprep.subr.mxu0 0.0
    %3063 = vmatpush2.msra.mxu0 0.0
    %3064 = vmatprep.mubr.f32.mxu0 0.0
    %3065 = vmatmul.mubr.f32.gmra.mxu0 %v2998
    %v3066 = vpop.f32.mrf.mxu0
    %v3067 = vadd.f32 %v508, %v3066
    %v3068 = vpop.f32.mrf.mxu0
    %3069 = vdwg.mxu0
    %v3070 = vxor.u32 %v3067, 2147483648
    %v3071 = vmul.f32 %v3070, 1.442695
    %v3072 = vpow.pop %v3071
    %v3073 = vadd.f32 %v3072, 1.0
    %v3074 = vrcp.pop %v3073
    %v3075 = vmul.f32 1.0, %v3074
    %v3076 = vtanh.pop %v3067
    %v3077 = vmul.f32 %v3075, %v2673
    %3079 = vrot.lane.b32.xlu0 %v3076, 32
    %v3080 = vpop.permute.xlu0 %3079
    %v3082 = vmul.f32 %v3075, %v3080
    %3084 = vrot.lane.b32.xlu0 %v3082, 32
    %v3085 = vpop.permute.xlu0 %3084
    %v3087 = vadd.f32 %v3077, %v3085
    %v3088 = vtanh.pop %v3087
    %3090 = vrot.lane.b32.xlu0 %v3088, 32
    %v3091 = vpop.permute.xlu0 %3090
    %v3093 = vmul.f32 %v3075, %v3091
    %v3094 = vld [vmem:[#allocation2 + $0x7] sm:$0x1]
    %v3095 = vsel %vm150, %v2780, 0
    %3097 = vmatprep.subr.mxu0 0.0
    %3098 = vmatpush1.msra.mxu0 0.0
    %3099 = vmatprep.subr.mxu0 0.0
    %3100 = vmatpush1.msra.mxu0 0.0
    %3101 = vmatprep.subr.mxu0 0.0
    %3102 = vmatpush1.msra.mxu0 0.0
    %3103 = vmatprep.subr.mxu0 0.0
    %3104 = vmatpush1.msra.mxu0 0.0
    %3105 = vmatprep.subr.mxu0 0.0
    %3106 = vmatpush1.msra.mxu0 0.0
    %3107 = vmatprep.subr.mxu0 0.0
    %3108 = vmatpush1.msra.mxu0 0.0
    %3109 = vmatprep.subr.mxu0 0.0
    %3110 = vmatpush1.msra.mxu0 0.0
    %3111 = vmatprep.subr.mxu0 0.0
    %3112 = vmatpush1.msra.mxu0 0.0
    %3113 = vmatprep.subr.mxu0 0.0
    %3114 = vmatpush1.msra.mxu0 0.0
    %3115 = vmatprep.subr.mxu0 0.0
    %3116 = vmatpush1.msra.mxu0 0.0
    %3117 = vmatprep.subr.mxu0 0.0
    %3118 = vmatpush1.msra.mxu0 0.0
    %3119 = vmatprep.subr.mxu0 0.0
    %3120 = vmatpush1.msra.mxu0 0.0
    %3121 = vmatprep.subr.mxu0 0.0
    %3122 = vmatpush1.msra.mxu0 %v148
    %3123 = vmatprep.subr.mxu0 0.0
    %3124 = vmatpush1.msra.mxu0 %v147
    %3125 = vmatprep.subr.mxu0 0.0
    %3126 = vmatpush1.msra.mxu0 %v146
    %3127 = vmatprep.subr.mxu0 0.0
    %3128 = vmatpush1.msra.mxu0 %v145
    %3129 = vmatprep.subr.mxu0 0.0
    %3130 = vmatpush2.msra.mxu0 0.0
    %3131 = vmatprep.subr.mxu0 0.0
    %3132 = vmatpush2.msra.mxu0 0.0
    %3133 = vmatprep.subr.mxu0 0.0
    %3134 = vmatpush2.msra.mxu0 0.0
    %3135 = vmatprep.subr.mxu0 0.0
    %3136 = vmatpush2.msra.mxu0 0.0
    %3137 = vmatprep.subr.mxu0 0.0
    %3138 = vmatpush2.msra.mxu0 0.0
    %3139 = vmatprep.subr.mxu0 0.0
    %3140 = vmatpush2.msra.mxu0 0.0
    %3141 = vmatprep.subr.mxu0 0.0
    %3142 = vmatpush2.msra.mxu0 0.0
    %3143 = vmatprep.subr.mxu0 0.0
    %3144 = vmatpush2.msra.mxu0 0.0
    %3145 = vmatprep.subr.mxu0 0.0
    %3146 = vmatpush2.msra.mxu0 0.0
    %3147 = vmatprep.subr.mxu0 0.0
    %3148 = vmatpush2.msra.mxu0 0.0
    %3149 = vmatprep.subr.mxu0 0.0
    %3150 = vmatpush2.msra.mxu0 0.0
    %3151 = vmatprep.subr.mxu0 0.0
    %3152 = vmatpush2.msra.mxu0 0.0
    %3153 = vmatprep.subr.mxu0 0.0
    %3154 = vmatpush2.msra.mxu0 0.0
    %3155 = vmatprep.subr.mxu0 0.0
    %3156 = vmatpush2.msra.mxu0 0.0
    %3157 = vmatprep.subr.mxu0 0.0
    %3158 = vmatpush2.msra.mxu0 0.0
    %3159 = vmatprep.subr.mxu0 0.0
    %3160 = vmatpush2.msra.mxu0 0.0
    %3161 = vmatprep.mubr.f32.mxu0 0.0
    %3162 = vmatmul.mubr.f32.gmra.mxu0 %v3095
    %v3163 = vpop.f32.mrf.mxu0
    %v3164 = vadd.f32 %v149, %v3163
    %v3165 = vpop.f32.mrf.mxu0
    %3166 = vdwg.mxu0
    %v3167 = vadd.f32 %v3164, %v3094
    %v3168 = vxor.u32 %v3167, 2147483648
    %v3169 = vmul.f32 %v3168, 1.442695
    %v3170 = vpow.pop %v3169
    %v3171 = vadd.f32 %v3170, 1.0
    %v3172 = vrcp.pop %v3171
    %v3173 = vmul.f32 1.0, %v3172
    %v3174 = vtanh.pop %v3167
    %v3175 = vmul.f32 %v3173, %v2771
    %3177 = vrot.lane.b32.xlu0 %v3174, 32
    %v3178 = vpop.permute.xlu0 %3177
    %v3180 = vmul.f32 %v3173, %v3178
    %3182 = vrot.lane.b32.xlu0 %v3180, 32
    %v3183 = vpop.permute.xlu0 %3182
    %v3185 = vadd.f32 %v3175, %v3183
    %v3186 = vtanh.pop %v3185
    %3188 = vrot.lane.b32.xlu0 %v3186, 32
    %v3189 = vpop.permute.xlu0 %3188
    %v3191 = vmul.f32 %v3173, %v3189
    %3193 = vrot.lane.b32.xlu0 %v3191, 64
    %v3194 = vpop.permute.xlu0 %3193
    %3196 = vrot.lane.b32.xlu0 %v2882, 96
    %v3197 = vpop.permute.xlu0 %3196
    %v3199 = vsel %vm150, %v3194, %v3197
    %v3201 = vsel %vm69, %v3199, 0
    %3203 = vmatprep.subr.mxu0 0.0
    %3204 = vmatpush1.msra.mxu0 0.0
    %3205 = vmatprep.subr.mxu0 0.0
    %3206 = vmatpush1.msra.mxu0 0.0
    %3207 = vmatprep.subr.mxu0 0.0
    %3208 = vmatpush1.msra.mxu0 0.0
    %3209 = vmatprep.subr.mxu0 0.0
    %3210 = vmatpush1.msra.mxu0 0.0
    %3211 = vmatprep.subr.mxu0 0.0
    %3212 = vmatpush1.msra.mxu0 0.0
    %3213 = vmatprep.subr.mxu0 0.0
    %3214 = vmatpush1.msra.mxu0 0.0
    %3215 = vmatprep.subr.mxu0 0.0
    %3216 = vmatpush1.msra.mxu0 0.0
    %3217 = vmatprep.subr.mxu0 0.0
    %3218 = vmatpush1.msra.mxu0 0.0
    %3219 = vmatprep.subr.mxu0 0.0
    %3220 = vmatpush1.msra.mxu0 %v269
    %3221 = vmatprep.subr.mxu0 0.0
    %3222 = vmatpush1.msra.mxu0 %v268
    %3223 = vmatprep.subr.mxu0 0.0
    %3224 = vmatpush1.msra.mxu0 %v267
    %3225 = vmatprep.subr.mxu0 0.0
    %3226 = vmatpush1.msra.mxu0 %v266
    %3227 = vmatprep.subr.mxu0 0.0
    %3228 = vmatpush1.msra.mxu0 %v265
    %3229 = vmatprep.subr.mxu0 0.0
    %3230 = vmatpush1.msra.mxu0 %v264
    %3231 = vmatprep.subr.mxu0 0.0
    %3232 = vmatpush1.msra.mxu0 %v263
    %3233 = vmatprep.subr.mxu0 0.0
    %3234 = vmatpush1.msra.mxu0 %v262
    %3235 = vmatprep.subr.mxu0 0.0
    %3236 = vmatpush2.msra.mxu0 0.0
    %3237 = vmatprep.subr.mxu0 0.0
    %3238 = vmatpush2.msra.mxu0 0.0
    %3239 = vmatprep.subr.mxu0 0.0
    %3240 = vmatpush2.msra.mxu0 0.0
    %3241 = vmatprep.subr.mxu0 0.0
    %3242 = vmatpush2.msra.mxu0 0.0
    %3243 = vmatprep.subr.mxu0 0.0
    %3244 = vmatpush2.msra.mxu0 0.0
    %3245 = vmatprep.subr.mxu0 0.0
    %3246 = vmatpush2.msra.mxu0 0.0
    %3247 = vmatprep.subr.mxu0 0.0
    %3248 = vmatpush2.msra.mxu0 0.0
    %3249 = vmatprep.subr.mxu0 0.0
    %3250 = vmatpush2.msra.mxu0 0.0
    %3251 = vmatprep.subr.mxu0 0.0
    %3252 = vmatpush2.msra.mxu0 0.0
    %3253 = vmatprep.subr.mxu0 0.0
    %3254 = vmatpush2.msra.mxu0 0.0
    %3255 = vmatprep.subr.mxu0 0.0
    %3256 = vmatpush2.msra.mxu0 0.0
    %3257 = vmatprep.subr.mxu0 0.0
    %3258 = vmatpush2.msra.mxu0 0.0
    %3259 = vmatprep.subr.mxu0 0.0
    %3260 = vmatpush2.msra.mxu0 0.0
    %3261 = vmatprep.subr.mxu0 0.0
    %3262 = vmatpush2.msra.mxu0 0.0
    %3263 = vmatprep.subr.mxu0 0.0
    %3264 = vmatpush2.msra.mxu0 0.0
    %3265 = vmatprep.subr.mxu0 0.0
    %3266 = vmatpush2.msra.mxu0 0.0
    %3267 = vmatprep.mubr.f32.mxu0 0.0
    %3268 = vmatmul.mubr.f32.gmra.mxu0 %v3201
    %v3269 = vpop.f32.mrf.mxu0
    %v3270 = vadd.f32 %v270, %v3269
    %v3271 = vpop.f32.mrf.mxu0
    %3272 = vdwg.mxu0
    %v3273 = vxor.u32 %v3270, 2147483648
    %v3274 = vmul.f32 %v3273, 1.442695
    %v3275 = vpow.pop %v3274
    %v3276 = vadd.f32 %v3275, 1.0
    %v3277 = vrcp.pop %v3276
    %v3278 = vmul.f32 1.0, %v3277
    %v3279 = vtanh.pop %v3270
    %v3280 = vmul.f32 %v3278, %v2876
    %3282 = vrot.lane.b32.xlu0 %v3279, 32
    %v3283 = vpop.permute.xlu0 %3282
    %v3285 = vmul.f32 %v3278, %v3283
    %3287 = vrot.lane.b32.xlu0 %v3285, 32
    %v3288 = vpop.permute.xlu0 %3287
    %v3290 = vadd.f32 %v3280, %v3288
    %v3291 = vtanh.pop %v3290
    %3293 = vrot.lane.b32.xlu0 %v3291, 32
    %v3294 = vpop.permute.xlu0 %3293
    %v3296 = vmul.f32 %v3278, %v3294
    %3298 = vrot.lane.b32.xlu0 %v3296, 64
    %v3299 = vpop.permute.xlu0 %3298
    %3301 = vrot.lane.b32.xlu0 %v2987, 96
    %v3302 = vpop.permute.xlu0 %3301
    %v3304 = vsel %vm150, %v3299, %v3302
    %v3306 = vsel %vm69, %v3304, 0
    %3308 = vmatprep.subr.mxu0 0.0
    %3309 = vmatpush1.msra.mxu0 0.0
    %3310 = vmatprep.subr.mxu0 0.0
    %3311 = vmatpush1.msra.mxu0 0.0
    %3312 = vmatprep.subr.mxu0 0.0
    %3313 = vmatpush1.msra.mxu0 0.0
    %3314 = vmatprep.subr.mxu0 0.0
    %3315 = vmatpush1.msra.mxu0 0.0
    %3316 = vmatprep.subr.mxu0 0.0
    %3317 = vmatpush1.msra.mxu0 0.0
    %3318 = vmatprep.subr.mxu0 0.0
    %3319 = vmatpush1.msra.mxu0 0.0
    %3320 = vmatprep.subr.mxu0 0.0
    %3321 = vmatpush1.msra.mxu0 0.0
    %3322 = vmatprep.subr.mxu0 0.0
    %3323 = vmatpush1.msra.mxu0 0.0
    %3324 = vmatprep.subr.mxu0 0.0
    %3325 = vmatpush1.msra.mxu0 %v389
    %3326 = vmatprep.subr.mxu0 0.0
    %3327 = vmatpush1.msra.mxu0 %v388
    %3328 = vmatprep.subr.mxu0 0.0
    %3329 = vmatpush1.msra.mxu0 %v387
    %3330 = vmatprep.subr.mxu0 0.0
    %3331 = vmatpush1.msra.mxu0 %v386
    %3332 = vmatprep.subr.mxu0 0.0
    %3333 = vmatpush1.msra.mxu0 %v385
    %3334 = vmatprep.subr.mxu0 0.0
    %3335 = vmatpush1.msra.mxu0 %v384
    %3336 = vmatprep.subr.mxu0 0.0
    %3337 = vmatpush1.msra.mxu0 %v383
    %3338 = vmatprep.subr.mxu0 0.0
    %3339 = vmatpush1.msra.mxu0 %v382
    %3340 = vmatprep.subr.mxu0 0.0
    %3341 = vmatpush2.msra.mxu0 0.0
    %3342 = vmatprep.subr.mxu0 0.0
    %3343 = vmatpush2.msra.mxu0 0.0
    %3344 = vmatprep.subr.mxu0 0.0
    %3345 = vmatpush2.msra.mxu0 0.0
    %3346 = vmatprep.subr.mxu0 0.0
    %3347 = vmatpush2.msra.mxu0 0.0
    %3348 = vmatprep.subr.mxu0 0.0
    %3349 = vmatpush2.msra.mxu0 0.0
    %3350 = vmatprep.subr.mxu0 0.0
    %3351 = vmatpush2.msra.mxu0 0.0
    %3352 = vmatprep.subr.mxu0 0.0
    %3353 = vmatpush2.msra.mxu0 0.0
    %3354 = vmatprep.subr.mxu0 0.0
    %3355 = vmatpush2.msra.mxu0 0.0
    %3356 = vmatprep.subr.mxu0 0.0
    %3357 = vmatpush2.msra.mxu0 0.0
    %3358 = vmatprep.subr.mxu0 0.0
    %3359 = vmatpush2.msra.mxu0 0.0
    %3360 = vmatprep.subr.mxu0 0.0
    %3361 = vmatpush2.msra.mxu0 0.0
    %3362 = vmatprep.subr.mxu0 0.0
    %3363 = vmatpush2.msra.mxu0 0.0
    %3364 = vmatprep.subr.mxu0 0.0
    %3365 = vmatpush2.msra.mxu0 0.0
    %3366 = vmatprep.subr.mxu0 0.0
    %3367 = vmatpush2.msra.mxu0 0.0
    %3368 = vmatprep.subr.mxu0 0.0
    %3369 = vmatpush2.msra.mxu0 0.0
    %3370 = vmatprep.subr.mxu0 0.0
    %3371 = vmatpush2.msra.mxu0 0.0
    %3372 = vmatprep.mubr.f32.mxu0 0.0
    %3373 = vmatmul.mubr.f32.gmra.mxu0 %v3306
    %v3374 = vpop.f32.mrf.mxu0
    %v3375 = vadd.f32 %v372, %v3374
    %v3376 = vpop.f32.mrf.mxu0
    %3377 = vdwg.mxu0
    %v3378 = vxor.u32 %v3375, 2147483648
    %v3379 = vmul.f32 %v3378, 1.442695
    %v3380 = vpow.pop %v3379
    %v3381 = vadd.f32 %v3380, 1.0
    %v3382 = vrcp.pop %v3381
    %v3383 = vmul.f32 1.0, %v3382
    %v3384 = vtanh.pop %v3375
    %v3385 = vmul.f32 %v3383, %v2981
    %3387 = vrot.lane.b32.xlu0 %v3384, 32
    %v3388 = vpop.permute.xlu0 %3387
    %v3390 = vmul.f32 %v3383, %v3388
    %3392 = vrot.lane.b32.xlu0 %v3390, 32
    %v3393 = vpop.permute.xlu0 %3392
    %v3395 = vadd.f32 %v3385, %v3393
    %v3396 = vtanh.pop %v3395
    %3398 = vrot.lane.b32.xlu0 %v3396, 32
    %v3399 = vpop.permute.xlu0 %3398
    %v3401 = vmul.f32 %v3383, %v3399
    %3403 = vrot.lane.b32.xlu0 %v3401, 64
    %v3404 = vpop.permute.xlu0 %3403
    %3407 = vrot.lane.b32.xlu0 %v3093, 96
    %v3408 = vpop.permute.xlu0 %3407
    %v3410 = vsel %vm150, %v3404, %v3408
    %v3412 = vsel %vm69, %v3410, 0
    %3414 = vmatprep.subr.mxu0 0.0
    %3415 = vmatpush1.msra.mxu0 0.0
    %3416 = vmatprep.subr.mxu0 0.0
    %3417 = vmatpush1.msra.mxu0 0.0
    %3418 = vmatprep.subr.mxu0 0.0
    %3419 = vmatpush1.msra.mxu0 0.0
    %3420 = vmatprep.subr.mxu0 0.0
    %3421 = vmatpush1.msra.mxu0 0.0
    %3422 = vmatprep.subr.mxu0 0.0
    %3423 = vmatpush1.msra.mxu0 0.0
    %3424 = vmatprep.subr.mxu0 0.0
    %3425 = vmatpush1.msra.mxu0 0.0
    %3426 = vmatprep.subr.mxu0 0.0
    %3427 = vmatpush1.msra.mxu0 0.0
    %3428 = vmatprep.subr.mxu0 0.0
    %3429 = vmatpush1.msra.mxu0 0.0
    %3430 = vmatprep.subr.mxu0 0.0
    %3431 = vmatpush1.msra.mxu0 %v507
    %3432 = vmatprep.subr.mxu0 0.0
    %3433 = vmatpush1.msra.mxu0 %v506
    %3434 = vmatprep.subr.mxu0 0.0
    %3435 = vmatpush1.msra.mxu0 %v505
    %3436 = vmatprep.subr.mxu0 0.0
    %3437 = vmatpush1.msra.mxu0 %v504
    %3438 = vmatprep.subr.mxu0 0.0
    %3439 = vmatpush1.msra.mxu0 %v503
    %3440 = vmatprep.subr.mxu0 0.0
    %3441 = vmatpush1.msra.mxu0 %v502
    %3442 = vmatprep.subr.mxu0 0.0
    %3443 = vmatpush1.msra.mxu0 %v501
    %3444 = vmatprep.subr.mxu0 0.0
    %3445 = vmatpush1.msra.mxu0 %v500
    %3446 = vmatprep.subr.mxu0 0.0
    %3447 = vmatpush2.msra.mxu0 0.0
    %3448 = vmatprep.subr.mxu0 0.0
    %3449 = vmatpush2.msra.mxu0 0.0
    %3450 = vmatprep.subr.mxu0 0.0
    %3451 = vmatpush2.msra.mxu0 0.0
    %3452 = vmatprep.subr.mxu0 0.0
    %3453 = vmatpush2.msra.mxu0 0.0
    %3454 = vmatprep.subr.mxu0 0.0
    %3455 = vmatpush2.msra.mxu0 0.0
    %3456 = vmatprep.subr.mxu0 0.0
    %3457 = vmatpush2.msra.mxu0 0.0
    %3458 = vmatprep.subr.mxu0 0.0
    %3459 = vmatpush2.msra.mxu0 0.0
    %3460 = vmatprep.subr.mxu0 0.0
    %3461 = vmatpush2.msra.mxu0 0.0
    %3462 = vmatprep.subr.mxu0 0.0
    %3463 = vmatpush2.msra.mxu0 0.0
    %3464 = vmatprep.subr.mxu0 0.0
    %3465 = vmatpush2.msra.mxu0 0.0
    %3466 = vmatprep.subr.mxu0 0.0
    %3467 = vmatpush2.msra.mxu0 0.0
    %3468 = vmatprep.subr.mxu0 0.0
    %3469 = vmatpush2.msra.mxu0 0.0
    %3470 = vmatprep.subr.mxu0 0.0
    %3471 = vmatpush2.msra.mxu0 0.0
    %3472 = vmatprep.subr.mxu0 0.0
    %3473 = vmatpush2.msra.mxu0 0.0
    %3474 = vmatprep.subr.mxu0 0.0
    %3475 = vmatpush2.msra.mxu0 0.0
    %3476 = vmatprep.subr.mxu0 0.0
    %3477 = vmatpush2.msra.mxu0 0.0
    %3478 = vmatprep.mubr.f32.mxu0 0.0
    %3479 = vmatmul.mubr.f32.gmra.mxu0 %v3412
    %v3480 = vpop.f32.mrf.mxu0
    %v3481 = vadd.f32 %v508, %v3480
    %v3482 = vpop.f32.mrf.mxu0
    %3483 = vdwg.mxu0
    %v3484 = vxor.u32 %v3481, 2147483648
    %v3485 = vmul.f32 %v3484, 1.442695
    %v3486 = vpow.pop %v3485
    %v3487 = vadd.f32 %v3486, 1.0
    %v3488 = vrcp.pop %v3487
    %v3489 = vmul.f32 1.0, %v3488
    %v3490 = vtanh.pop %v3481
    %v3491 = vmul.f32 %v3489, %v3087
    %3493 = vrot.lane.b32.xlu0 %v3490, 32
    %v3494 = vpop.permute.xlu0 %3493
    %v3496 = vmul.f32 %v3489, %v3494
    %3498 = vrot.lane.b32.xlu0 %v3496, 32
    %v3499 = vpop.permute.xlu0 %3498
    %v3501 = vadd.f32 %v3491, %v3499
    %v3502 = vtanh.pop %v3501
    %3504 = vrot.lane.b32.xlu0 %v3502, 32
    %v3505 = vpop.permute.xlu0 %3504
    %v3507 = vmul.f32 %v3489, %v3505
    %v3508 = vsel %vm150, %v3194, 0
    %3510 = vmatprep.subr.mxu0 0.0
    %3511 = vmatpush1.msra.mxu0 0.0
    %3512 = vmatprep.subr.mxu0 0.0
    %3513 = vmatpush1.msra.mxu0 0.0
    %3514 = vmatprep.subr.mxu0 0.0
    %3515 = vmatpush1.msra.mxu0 0.0
    %3516 = vmatprep.subr.mxu0 0.0
    %3517 = vmatpush1.msra.mxu0 0.0
    %3518 = vmatprep.subr.mxu0 0.0
    %3519 = vmatpush1.msra.mxu0 0.0
    %3520 = vmatprep.subr.mxu0 0.0
    %3521 = vmatpush1.msra.mxu0 0.0
    %3522 = vmatprep.subr.mxu0 0.0
    %3523 = vmatpush1.msra.mxu0 0.0
    %3524 = vmatprep.subr.mxu0 0.0
    %3525 = vmatpush1.msra.mxu0 0.0
    %3526 = vmatprep.subr.mxu0 0.0
    %3527 = vmatpush1.msra.mxu0 0.0
    %3528 = vmatprep.subr.mxu0 0.0
    %3529 = vmatpush1.msra.mxu0 0.0
    %3530 = vmatprep.subr.mxu0 0.0
    %3531 = vmatpush1.msra.mxu0 0.0
    %3532 = vmatprep.subr.mxu0 0.0
    %3533 = vmatpush1.msra.mxu0 0.0
    %3534 = vmatprep.subr.mxu0 0.0
    %3535 = vmatpush1.msra.mxu0 %v148
    %3536 = vmatprep.subr.mxu0 0.0
    %3537 = vmatpush1.msra.mxu0 %v147
    %3538 = vmatprep.subr.mxu0 0.0
    %3539 = vmatpush1.msra.mxu0 %v146
    %3540 = vmatprep.subr.mxu0 0.0
    %3541 = vmatpush1.msra.mxu0 %v145
    %3542 = vmatprep.subr.mxu0 0.0
    %3543 = vmatpush2.msra.mxu0 0.0
    %3544 = vmatprep.subr.mxu0 0.0
    %3545 = vmatpush2.msra.mxu0 0.0
    %3546 = vmatprep.subr.mxu0 0.0
    %3547 = vmatpush2.msra.mxu0 0.0
    %3548 = vmatprep.subr.mxu0 0.0
    %3549 = vmatpush2.msra.mxu0 0.0
    %3550 = vmatprep.subr.mxu0 0.0
    %3551 = vmatpush2.msra.mxu0 0.0
    %3552 = vmatprep.subr.mxu0 0.0
    %3553 = vmatpush2.msra.mxu0 0.0
    %3554 = vmatprep.subr.mxu0 0.0
    %3555 = vmatpush2.msra.mxu0 0.0
    %3556 = vmatprep.subr.mxu0 0.0
    %3557 = vmatpush2.msra.mxu0 0.0
    %3558 = vmatprep.subr.mxu0 0.0
    %3559 = vmatpush2.msra.mxu0 0.0
    %3560 = vmatprep.subr.mxu0 0.0
    %3561 = vmatpush2.msra.mxu0 0.0
    %3562 = vmatprep.subr.mxu0 0.0
    %3563 = vmatpush2.msra.mxu0 0.0
    %3564 = vmatprep.subr.mxu0 0.0
    %3565 = vmatpush2.msra.mxu0 0.0
    %3566 = vmatprep.subr.mxu0 0.0
    %3567 = vmatpush2.msra.mxu0 0.0
    %3568 = vmatprep.subr.mxu0 0.0
    %3569 = vmatpush2.msra.mxu0 0.0
    %3570 = vmatprep.subr.mxu0 0.0
    %3571 = vmatpush2.msra.mxu0 0.0
    %3572 = vmatprep.subr.mxu0 0.0
    %3573 = vmatpush2.msra.mxu0 0.0
    %3574 = vmatprep.mubr.f32.mxu0 0.0
    %3575 = vmatmul.mubr.f32.gmra.mxu0 %v3508
    %v3576 = vpop.f32.mrf.mxu0
    %v3577 = vadd.f32 %v149, %v3576
    %v3578 = vpop.f32.mrf.mxu0
    %3579 = vdwg.mxu0
    %v3580 = vxor.u32 %v3577, 2147483648
    %v3581 = vmul.f32 %v3580, 1.442695
    %v3582 = vpow.pop %v3581
    %v3583 = vadd.f32 %v3582, 1.0
    %v3584 = vrcp.pop %v3583
    %v3585 = vmul.f32 1.0, %v3584
    %v3586 = vtanh.pop %v3577
    %v3587 = vmul.f32 %v3585, %v3185
    %3589 = vrot.lane.b32.xlu0 %v3586, 32
    %v3590 = vpop.permute.xlu0 %3589
    %v3592 = vmul.f32 %v3585, %v3590
    %3594 = vrot.lane.b32.xlu0 %v3592, 32
    %v3595 = vpop.permute.xlu0 %3594
    %v3597 = vadd.f32 %v3587, %v3595
    %v3598 = vtanh.pop %v3597
    %3600 = vrot.lane.b32.xlu0 %v3598, 32
    %v3601 = vpop.permute.xlu0 %3600
    %v3603 = vmul.f32 %v3585, %v3601
    %3605 = vrot.lane.b32.xlu0 %v3603, 64
    %v3606 = vpop.permute.xlu0 %3605
    %3608 = vrot.lane.b32.xlu0 %v3296, 96
    %v3609 = vpop.permute.xlu0 %3608
    %v3611 = vsel %vm150, %v3606, %v3609
    %v3613 = vsel %vm69, %v3611, 0
    %3615 = vmatprep.subr.mxu0 0.0
    %3616 = vmatpush1.msra.mxu0 0.0
    %3617 = vmatprep.subr.mxu0 0.0
    %3618 = vmatpush1.msra.mxu0 0.0
    %3619 = vmatprep.subr.mxu0 0.0
    %3620 = vmatpush1.msra.mxu0 0.0
    %3621 = vmatprep.subr.mxu0 0.0
    %3622 = vmatpush1.msra.mxu0 0.0
    %3623 = vmatprep.subr.mxu0 0.0
    %3624 = vmatpush1.msra.mxu0 0.0
    %3625 = vmatprep.subr.mxu0 0.0
    %3626 = vmatpush1.msra.mxu0 0.0
    %3627 = vmatprep.subr.mxu0 0.0
    %3628 = vmatpush1.msra.mxu0 0.0
    %3629 = vmatprep.subr.mxu0 0.0
    %3630 = vmatpush1.msra.mxu0 0.0
    %3631 = vmatprep.subr.mxu0 0.0
    %3632 = vmatpush1.msra.mxu0 %v269
    %3633 = vmatprep.subr.mxu0 0.0
    %3634 = vmatpush1.msra.mxu0 %v268
    %3635 = vmatprep.subr.mxu0 0.0
    %3636 = vmatpush1.msra.mxu0 %v267
    %3637 = vmatprep.subr.mxu0 0.0
    %3638 = vmatpush1.msra.mxu0 %v266
    %3639 = vmatprep.subr.mxu0 0.0
    %3640 = vmatpush1.msra.mxu0 %v265
    %3641 = vmatprep.subr.mxu0 0.0
    %3642 = vmatpush1.msra.mxu0 %v264
    %3643 = vmatprep.subr.mxu0 0.0
    %3644 = vmatpush1.msra.mxu0 %v263
    %3645 = vmatprep.subr.mxu0 0.0
    %3646 = vmatpush1.msra.mxu0 %v262
    %3647 = vmatprep.subr.mxu0 0.0
    %3648 = vmatpush2.msra.mxu0 0.0
    %3649 = vmatprep.subr.mxu0 0.0
    %3650 = vmatpush2.msra.mxu0 0.0
    %3651 = vmatprep.subr.mxu0 0.0
    %3652 = vmatpush2.msra.mxu0 0.0
    %3653 = vmatprep.subr.mxu0 0.0
    %3654 = vmatpush2.msra.mxu0 0.0
    %3655 = vmatprep.subr.mxu0 0.0
    %3656 = vmatpush2.msra.mxu0 0.0
    %3657 = vmatprep.subr.mxu0 0.0
    %3658 = vmatpush2.msra.mxu0 0.0
    %3659 = vmatprep.subr.mxu0 0.0
    %3660 = vmatpush2.msra.mxu0 0.0
    %3661 = vmatprep.subr.mxu0 0.0
    %3662 = vmatpush2.msra.mxu0 0.0
    %3663 = vmatprep.subr.mxu0 0.0
    %3664 = vmatpush2.msra.mxu0 0.0
    %3665 = vmatprep.subr.mxu0 0.0
    %3666 = vmatpush2.msra.mxu0 0.0
    %3667 = vmatprep.subr.mxu0 0.0
    %3668 = vmatpush2.msra.mxu0 0.0
    %3669 = vmatprep.subr.mxu0 0.0
    %3670 = vmatpush2.msra.mxu0 0.0
    %3671 = vmatprep.subr.mxu0 0.0
    %3672 = vmatpush2.msra.mxu0 0.0
    %3673 = vmatprep.subr.mxu0 0.0
    %3674 = vmatpush2.msra.mxu0 0.0
    %3675 = vmatprep.subr.mxu0 0.0
    %3676 = vmatpush2.msra.mxu0 0.0
    %3677 = vmatprep.subr.mxu0 0.0
    %3678 = vmatpush2.msra.mxu0 0.0
    %3679 = vmatprep.mubr.f32.mxu0 0.0
    %3680 = vmatmul.mubr.f32.gmra.mxu0 %v3613
    %v3681 = vpop.f32.mrf.mxu0
    %v3682 = vadd.f32 %v270, %v3681
    %v3683 = vpop.f32.mrf.mxu0
    %3684 = vdwg.mxu0
    %v3685 = vxor.u32 %v3682, 2147483648
    %v3686 = vmul.f32 %v3685, 1.442695
    %v3687 = vpow.pop %v3686
    %v3688 = vadd.f32 %v3687, 1.0
    %v3689 = vrcp.pop %v3688
    %v3690 = vmul.f32 1.0, %v3689
    %v3691 = vtanh.pop %v3682
    %v3692 = vmul.f32 %v3690, %v3290
    %3694 = vrot.lane.b32.xlu0 %v3691, 32
    %v3695 = vpop.permute.xlu0 %3694
    %v3697 = vmul.f32 %v3690, %v3695
    %3699 = vrot.lane.b32.xlu0 %v3697, 32
    %v3700 = vpop.permute.xlu0 %3699
    %v3702 = vadd.f32 %v3692, %v3700
    %v3703 = vtanh.pop %v3702
    %3705 = vrot.lane.b32.xlu0 %v3703, 32
    %v3706 = vpop.permute.xlu0 %3705
    %v3708 = vmul.f32 %v3690, %v3706
    %v3709 = vld [vmem:[#allocation7 + $0xf8] sm:$0x1]
    %3711 = vrot.lane.b32.xlu0 %v3708, 64
    %v3712 = vpop.permute.xlu0 %3711
    %3714 = vrot.lane.b32.xlu0 %v3401, 96
    %v3715 = vpop.permute.xlu0 %3714
    %v3717 = vsel %vm150, %v3712, %v3715
    %v3719 = vsel %vm69, %v3717, 0
    %3721 = vmatprep.subr.mxu0 0.0
    %3722 = vmatpush1.msra.mxu0 0.0
    %3723 = vmatprep.subr.mxu0 0.0
    %3724 = vmatpush1.msra.mxu0 0.0
    %3725 = vmatprep.subr.mxu0 0.0
    %3726 = vmatpush1.msra.mxu0 0.0
    %3727 = vmatprep.subr.mxu0 0.0
    %3728 = vmatpush1.msra.mxu0 0.0
    %3729 = vmatprep.subr.mxu0 0.0
    %3730 = vmatpush1.msra.mxu0 0.0
    %3731 = vmatprep.subr.mxu0 0.0
    %3732 = vmatpush1.msra.mxu0 0.0
    %3733 = vmatprep.subr.mxu0 0.0
    %3734 = vmatpush1.msra.mxu0 0.0
    %3735 = vmatprep.subr.mxu0 0.0
    %3736 = vmatpush1.msra.mxu0 0.0
    %3737 = vmatprep.subr.mxu0 0.0
    %3738 = vmatpush1.msra.mxu0 %v389
    %3739 = vmatprep.subr.mxu0 0.0
    %3740 = vmatpush1.msra.mxu0 %v388
    %3741 = vmatprep.subr.mxu0 0.0
    %3742 = vmatpush1.msra.mxu0 %v387
    %3743 = vmatprep.subr.mxu0 0.0
    %3744 = vmatpush1.msra.mxu0 %v386
    %3745 = vmatprep.subr.mxu0 0.0
    %3746 = vmatpush1.msra.mxu0 %v385
    %3747 = vmatprep.subr.mxu0 0.0
    %3748 = vmatpush1.msra.mxu0 %v384
    %3749 = vmatprep.subr.mxu0 0.0
    %3750 = vmatpush1.msra.mxu0 %v383
    %3751 = vmatprep.subr.mxu0 0.0
    %3752 = vmatpush1.msra.mxu0 %v382
    %3753 = vmatprep.subr.mxu0 0.0
    %3754 = vmatpush2.msra.mxu0 0.0
    %3755 = vmatprep.subr.mxu0 0.0
    %3756 = vmatpush2.msra.mxu0 0.0
    %3757 = vmatprep.subr.mxu0 0.0
    %3758 = vmatpush2.msra.mxu0 0.0
    %3759 = vmatprep.subr.mxu0 0.0
    %3760 = vmatpush2.msra.mxu0 0.0
    %3761 = vmatprep.subr.mxu0 0.0
    %3762 = vmatpush2.msra.mxu0 0.0
    %3763 = vmatprep.subr.mxu0 0.0
    %3764 = vmatpush2.msra.mxu0 0.0
    %3765 = vmatprep.subr.mxu0 0.0
    %3766 = vmatpush2.msra.mxu0 0.0
    %3767 = vmatprep.subr.mxu0 0.0
    %3768 = vmatpush2.msra.mxu0 0.0
    %3769 = vmatprep.subr.mxu0 0.0
    %3770 = vmatpush2.msra.mxu0 0.0
    %3771 = vmatprep.subr.mxu0 0.0
    %3772 = vmatpush2.msra.mxu0 0.0
    %3773 = vmatprep.subr.mxu0 0.0
    %3774 = vmatpush2.msra.mxu0 0.0
    %3775 = vmatprep.subr.mxu0 0.0
    %3776 = vmatpush2.msra.mxu0 0.0
    %3777 = vmatprep.subr.mxu0 0.0
    %3778 = vmatpush2.msra.mxu0 0.0
    %3779 = vmatprep.subr.mxu0 0.0
    %3780 = vmatpush2.msra.mxu0 0.0
    %3781 = vmatprep.subr.mxu0 0.0
    %3782 = vmatpush2.msra.mxu0 0.0
    %3783 = vmatprep.subr.mxu0 0.0
    %3784 = vmatpush2.msra.mxu0 0.0
    %3785 = vmatprep.mubr.f32.mxu0 0.0
    %3786 = vmatmul.mubr.f32.gmra.mxu0 %v3719
    %v3787 = vpop.f32.mrf.mxu0
    %v3788 = vadd.f32 %v3709, %v3787
    %v3789 = vpop.f32.mrf.mxu0
    %3790 = vdwg.mxu0
    %v3791 = vxor.u32 %v3788, 2147483648
    %v3792 = vmul.f32 %v3791, 1.442695
    %v3793 = vpow.pop %v3792
    %v3794 = vadd.f32 %v3793, 1.0
    %v3795 = vrcp.pop %v3794
    %v3796 = vmul.f32 1.0, %v3795
    %v3797 = vtanh.pop %v3788
    %v3798 = vmul.f32 %v3796, %v3395
    %3800 = vrot.lane.b32.xlu0 %v3797, 32
    %v3801 = vpop.permute.xlu0 %3800
    %v3803 = vmul.f32 %v3796, %v3801
    %3805 = vrot.lane.b32.xlu0 %v3803, 32
    %v3806 = vpop.permute.xlu0 %3805
    %v3808 = vadd.f32 %v3798, %v3806
    %v3809 = vtanh.pop %v3808
    %3811 = vrot.lane.b32.xlu0 %v3809, 32
    %v3812 = vpop.permute.xlu0 %3811
    %v3814 = vmul.f32 %v3796, %v3812
    %3816 = vrot.lane.b32.xlu0 %v3814, 64
    %v3817 = vpop.permute.xlu0 %3816
    %3820 = vrot.lane.b32.xlu0 %v3507, 96
    %v3821 = vpop.permute.xlu0 %3820
    %v3823 = vsel %vm150, %v3817, %v3821
    %v3825 = vsel %vm69, %v3823, 0
    %3827 = vmatprep.subr.mxu0 0.0
    %3828 = vmatpush1.msra.mxu0 0.0
    %3829 = vmatprep.subr.mxu0 0.0
    %3830 = vmatpush1.msra.mxu0 0.0
    %3831 = vmatprep.subr.mxu0 0.0
    %3832 = vmatpush1.msra.mxu0 0.0
    %3833 = vmatprep.subr.mxu0 0.0
    %3834 = vmatpush1.msra.mxu0 0.0
    %3835 = vmatprep.subr.mxu0 0.0
    %3836 = vmatpush1.msra.mxu0 0.0
    %3837 = vmatprep.subr.mxu0 0.0
    %3838 = vmatpush1.msra.mxu0 0.0
    %3839 = vmatprep.subr.mxu0 0.0
    %3840 = vmatpush1.msra.mxu0 0.0
    %3841 = vmatprep.subr.mxu0 0.0
    %3842 = vmatpush1.msra.mxu0 0.0
    %3843 = vmatprep.subr.mxu0 0.0
    %3844 = vmatpush1.msra.mxu0 %v507
    %3845 = vmatprep.subr.mxu0 0.0
    %3846 = vmatpush1.msra.mxu0 %v506
    %3847 = vmatprep.subr.mxu0 0.0
    %3848 = vmatpush1.msra.mxu0 %v505
    %3849 = vmatprep.subr.mxu0 0.0
    %3850 = vmatpush1.msra.mxu0 %v504
    %3851 = vmatprep.subr.mxu0 0.0
    %3852 = vmatpush1.msra.mxu0 %v503
    %3853 = vmatprep.subr.mxu0 0.0
    %3854 = vmatpush1.msra.mxu0 %v502
    %3855 = vmatprep.subr.mxu0 0.0
    %3856 = vmatpush1.msra.mxu0 %v501
    %3857 = vmatprep.subr.mxu0 0.0
    %3858 = vmatpush1.msra.mxu0 %v500
    %3859 = vmatprep.subr.mxu0 0.0
    %3860 = vmatpush2.msra.mxu0 0.0
    %3861 = vmatprep.subr.mxu0 0.0
    %3862 = vmatpush2.msra.mxu0 0.0
    %3863 = vmatprep.subr.mxu0 0.0
    %3864 = vmatpush2.msra.mxu0 0.0
    %3865 = vmatprep.subr.mxu0 0.0
    %3866 = vmatpush2.msra.mxu0 0.0
    %3867 = vmatprep.subr.mxu0 0.0
    %3868 = vmatpush2.msra.mxu0 0.0
    %3869 = vmatprep.subr.mxu0 0.0
    %3870 = vmatpush2.msra.mxu0 0.0
    %3871 = vmatprep.subr.mxu0 0.0
    %3872 = vmatpush2.msra.mxu0 0.0
    %3873 = vmatprep.subr.mxu0 0.0
    %3874 = vmatpush2.msra.mxu0 0.0
    %3875 = vmatprep.subr.mxu0 0.0
    %3876 = vmatpush2.msra.mxu0 0.0
    %3877 = vmatprep.subr.mxu0 0.0
    %3878 = vmatpush2.msra.mxu0 0.0
    %3879 = vmatprep.subr.mxu0 0.0
    %3880 = vmatpush2.msra.mxu0 0.0
    %3881 = vmatprep.subr.mxu0 0.0
    %3882 = vmatpush2.msra.mxu0 0.0
    %3883 = vmatprep.subr.mxu0 0.0
    %3884 = vmatpush2.msra.mxu0 0.0
    %3885 = vmatprep.subr.mxu0 0.0
    %3886 = vmatpush2.msra.mxu0 0.0
    %3887 = vmatprep.subr.mxu0 0.0
    %3888 = vmatpush2.msra.mxu0 0.0
    %3889 = vmatprep.subr.mxu0 0.0
    %3890 = vmatpush2.msra.mxu0 0.0
    %3891 = vmatprep.mubr.f32.mxu0 0.0
    %3892 = vmatmul.mubr.f32.gmra.mxu0 %v3825
    %v3893 = vpop.f32.mrf.mxu0
    %v3894 = vadd.f32 %v508, %v3893
    %v3895 = vpop.f32.mrf.mxu0
    %3896 = vdwg.mxu0
    %v3897 = vxor.u32 %v3894, 2147483648
    %v3898 = vmul.f32 %v3897, 1.442695
    %v3899 = vpow.pop %v3898
    %v3900 = vadd.f32 %v3899, 1.0
    %v3901 = vrcp.pop %v3900
    %v3902 = vmul.f32 1.0, %v3901
    %v3903 = vtanh.pop %v3894
    %v3904 = vmul.f32 %v3902, %v3501
    %3906 = vrot.lane.b32.xlu0 %v3903, 32
    %v3907 = vpop.permute.xlu0 %3906
    %v3909 = vmul.f32 %v3902, %v3907
    %3911 = vrot.lane.b32.xlu0 %v3909, 32
    %v3912 = vpop.permute.xlu0 %3911
    %v3914 = vadd.f32 %v3904, %v3912
    %v3915 = vtanh.pop %v3914
    %3917 = vrot.lane.b32.xlu0 %v3915, 32
    %v3918 = vpop.permute.xlu0 %3917
    %v3920 = vmul.f32 %v3902, %v3918
    %3922 = vrot.lane.b32.xlu0 %v3920, 64
    %v3923 = vpop.permute.xlu0 %3922
    %vm3925 = vcmask 253952
    %3926 = vst.msk [vmem:[#allocation3] sm:$0x1] %vm3925, %v3923
    %v3927 = vld [vmem:[#allocation7 + $0x40] sm:$0xff]
    %v3928 = vld [vmem:[#allocation7 + $0x48] sm:$0xff]
    %v3929 = vld [vmem:[#allocation7 + $0x50] sm:$0xff]
    %v3930 = vld [vmem:[#allocation7 + $0x58] sm:$0xff]
    %v3931 = vld [vmem:[#allocation7 + $0x60] sm:$0x1]
    %v3932 = vsel %vm150, %v3606, 0
    %3934 = vmatprep.subr.mxu0 0.0
    %3935 = vmatpush1.msra.mxu0 0.0
    %3936 = vmatprep.subr.mxu0 0.0
    %3937 = vmatpush1.msra.mxu0 0.0
    %3938 = vmatprep.subr.mxu0 0.0
    %3939 = vmatpush1.msra.mxu0 0.0
    %3940 = vmatprep.subr.mxu0 0.0
    %3941 = vmatpush1.msra.mxu0 0.0
    %3942 = vmatprep.subr.mxu0 0.0
    %3943 = vmatpush1.msra.mxu0 0.0
    %3944 = vmatprep.subr.mxu0 0.0
    %3945 = vmatpush1.msra.mxu0 0.0
    %3946 = vmatprep.subr.mxu0 0.0
    %3947 = vmatpush1.msra.mxu0 0.0
    %3948 = vmatprep.subr.mxu0 0.0
    %3949 = vmatpush1.msra.mxu0 0.0
    %3950 = vmatprep.subr.mxu0 0.0
    %3951 = vmatpush1.msra.mxu0 0.0
    %3952 = vmatprep.subr.mxu0 0.0
    %3953 = vmatpush1.msra.mxu0 0.0
    %3954 = vmatprep.subr.mxu0 0.0
    %3955 = vmatpush1.msra.mxu0 0.0
    %3956 = vmatprep.subr.mxu0 0.0
    %3957 = vmatpush1.msra.mxu0 0.0
    %3958 = vmatprep.subr.mxu0 0.0
    %3959 = vmatpush1.msra.mxu0 %v3930
    %3960 = vmatprep.subr.mxu0 0.0
    %3961 = vmatpush1.msra.mxu0 %v3929
    %3962 = vmatprep.subr.mxu0 0.0
    %3963 = vmatpush1.msra.mxu0 %v3928
    %3964 = vmatprep.subr.mxu0 0.0
    %3965 = vmatpush1.msra.mxu0 %v3927
    %3966 = vmatprep.subr.mxu0 0.0
    %3967 = vmatpush2.msra.mxu0 0.0
    %3968 = vmatprep.subr.mxu0 0.0
    %3969 = vmatpush2.msra.mxu0 0.0
    %3970 = vmatprep.subr.mxu0 0.0
    %3971 = vmatpush2.msra.mxu0 0.0
    %3972 = vmatprep.subr.mxu0 0.0
    %3973 = vmatpush2.msra.mxu0 0.0
    %3974 = vmatprep.subr.mxu0 0.0
    %3975 = vmatpush2.msra.mxu0 0.0
    %3976 = vmatprep.subr.mxu0 0.0
    %3977 = vmatpush2.msra.mxu0 0.0
    %3978 = vmatprep.subr.mxu0 0.0
    %3979 = vmatpush2.msra.mxu0 0.0
    %3980 = vmatprep.subr.mxu0 0.0
    %3981 = vmatpush2.msra.mxu0 0.0
    %3982 = vmatprep.subr.mxu0 0.0
    %3983 = vmatpush2.msra.mxu0 0.0
    %3984 = vmatprep.subr.mxu0 0.0
    %3985 = vmatpush2.msra.mxu0 0.0
    %3986 = vmatprep.subr.mxu0 0.0
    %3987 = vmatpush2.msra.mxu0 0.0
    %3988 = vmatprep.subr.mxu0 0.0
    %3989 = vmatpush2.msra.mxu0 0.0
    %3990 = vmatprep.subr.mxu0 0.0
    %3991 = vmatpush2.msra.mxu0 0.0
    %3992 = vmatprep.subr.mxu0 0.0
    %3993 = vmatpush2.msra.mxu0 0.0
    %3994 = vmatprep.subr.mxu0 0.0
    %3995 = vmatpush2.msra.mxu0 0.0
    %3996 = vmatprep.subr.mxu0 0.0
    %3997 = vmatpush2.msra.mxu0 0.0
    %3998 = vmatprep.mubr.f32.mxu0 0.0
    %3999 = vmatmul.mubr.f32.gmra.mxu0 %v3932
    %v4000 = vpop.f32.mrf.mxu0
    %v4001 = vadd.f32 %v3931, %v4000
    %v4002 = vpop.f32.mrf.mxu0
    %4003 = vdwg.mxu0
    %v4004 = vxor.u32 %v4001, 2147483648
    %v4005 = vmul.f32 %v4004, 1.442695
    %v4006 = vpow.pop %v4005
    %v4007 = vadd.f32 %v4006, 1.0
    %v4008 = vrcp.pop %v4007
    %v4009 = vmul.f32 1.0, %v4008
    %v4010 = vtanh.pop %v4001
    %v4011 = vmul.f32 %v4009, %v3597
    %4013 = vrot.lane.b32.xlu0 %v4010, 32
    %v4014 = vpop.permute.xlu0 %4013
    %v4016 = vmul.f32 %v4009, %v4014
    %4018 = vrot.lane.b32.xlu0 %v4016, 32
    %v4019 = vpop.permute.xlu0 %4018
    %v4021 = vadd.f32 %v4011, %v4019
    %v4022 = vtanh.pop %v4021
    %4024 = vrot.lane.b32.xlu0 %v4022, 32
    %v4025 = vpop.permute.xlu0 %4024
    %v4027 = vmul.f32 %v4009, %v4025
    %4029 = vrot.lane.b32.xlu0 %v4027, 64
    %v4030 = vpop.permute.xlu0 %4029
    %4032 = vrot.lane.b32.xlu0 %v3708, 96
    %v4033 = vpop.permute.xlu0 %4032
    %v4035 = vsel %vm150, %v4030, %v4033
    %v4036 = vld [vmem:[#allocation7 + $0x68] sm:$0xff]
    %v4037 = vld [vmem:[#allocation7 + $0x70] sm:$0xff]
    %v4038 = vld [vmem:[#allocation7 + $0x78] sm:$0xff]
    %v4039 = vld [vmem:[#allocation7 + $0x80] sm:$0xff]
    %v4040 = vld [vmem:[#allocation7 + $0x88] sm:$0xff]
    %v4041 = vld [vmem:[#allocation7 + $0x90] sm:$0xff]
    %v4042 = vld [vmem:[#allocation7 + $0x98] sm:$0xff]
    %v4043 = vld [vmem:[#allocation7 + $0xa0] sm:$0xff]
    %v4044 = vld [vmem:[#allocation7 + $0xa8] sm:$0x1]
    %v4046 = vsel %vm69, %v4035, 0
    %4048 = vmatprep.subr.mxu0 0.0
    %4049 = vmatpush1.msra.mxu0 0.0
    %4050 = vmatprep.subr.mxu0 0.0
    %4051 = vmatpush1.msra.mxu0 0.0
    %4052 = vmatprep.subr.mxu0 0.0
    %4053 = vmatpush1.msra.mxu0 0.0
    %4054 = vmatprep.subr.mxu0 0.0
    %4055 = vmatpush1.msra.mxu0 0.0
    %4056 = vmatprep.subr.mxu0 0.0
    %4057 = vmatpush1.msra.mxu0 0.0
    %4058 = vmatprep.subr.mxu0 0.0
    %4059 = vmatpush1.msra.mxu0 0.0
    %4060 = vmatprep.subr.mxu0 0.0
    %4061 = vmatpush1.msra.mxu0 0.0
    %4062 = vmatprep.subr.mxu0 0.0
    %4063 = vmatpush1.msra.mxu0 0.0
    %4064 = vmatprep.subr.mxu0 0.0
    %4065 = vmatpush1.msra.mxu0 %v4043
    %4066 = vmatprep.subr.mxu0 0.0
    %4067 = vmatpush1.msra.mxu0 %v4042
    %4068 = vmatprep.subr.mxu0 0.0
    %4069 = vmatpush1.msra.mxu0 %v4041
    %4070 = vmatprep.subr.mxu0 0.0
    %4071 = vmatpush1.msra.mxu0 %v4040
    %4072 = vmatprep.subr.mxu0 0.0
    %4073 = vmatpush1.msra.mxu0 %v4039
    %4074 = vmatprep.subr.mxu0 0.0
    %4075 = vmatpush1.msra.mxu0 %v4038
    %4076 = vmatprep.subr.mxu0 0.0
    %4077 = vmatpush1.msra.mxu0 %v4037
    %4078 = vmatprep.subr.mxu0 0.0
    %4079 = vmatpush1.msra.mxu0 %v4036
    %4080 = vmatprep.subr.mxu0 0.0
    %4081 = vmatpush2.msra.mxu0 0.0
    %4082 = vmatprep.subr.mxu0 0.0
    %4083 = vmatpush2.msra.mxu0 0.0
    %4084 = vmatprep.subr.mxu0 0.0
    %4085 = vmatpush2.msra.mxu0 0.0
    %4086 = vmatprep.subr.mxu0 0.0
    %4087 = vmatpush2.msra.mxu0 0.0
    %4088 = vmatprep.subr.mxu0 0.0
    %4089 = vmatpush2.msra.mxu0 0.0
    %4090 = vmatprep.subr.mxu0 0.0
    %4091 = vmatpush2.msra.mxu0 0.0
    %4092 = vmatprep.subr.mxu0 0.0
    %4093 = vmatpush2.msra.mxu0 0.0
    %4094 = vmatprep.subr.mxu0 0.0
    %4095 = vmatpush2.msra.mxu0 0.0
    %4096 = vmatprep.subr.mxu0 0.0
    %4097 = vmatpush2.msra.mxu0 0.0
    %4098 = vmatprep.subr.mxu0 0.0
    %4099 = vmatpush2.msra.mxu0 0.0
    %4100 = vmatprep.subr.mxu0 0.0
    %4101 = vmatpush2.msra.mxu0 0.0
    %4102 = vmatprep.subr.mxu0 0.0
    %4103 = vmatpush2.msra.mxu0 0.0
    %4104 = vmatprep.subr.mxu0 0.0
    %4105 = vmatpush2.msra.mxu0 0.0
    %4106 = vmatprep.subr.mxu0 0.0
    %4107 = vmatpush2.msra.mxu0 0.0
    %4108 = vmatprep.subr.mxu0 0.0
    %4109 = vmatpush2.msra.mxu0 0.0
    %4110 = vmatprep.subr.mxu0 0.0
    %4111 = vmatpush2.msra.mxu0 0.0
    %4112 = vmatprep.mubr.f32.mxu0 0.0
    %4113 = vmatmul.mubr.f32.gmra.mxu0 %v4046
    %v4114 = vpop.f32.mrf.mxu0
    %v4115 = vadd.f32 %v4044, %v4114
    %v4116 = vpop.f32.mrf.mxu0
    %4117 = vdwg.mxu0
    %v4118 = vxor.u32 %v4115, 2147483648
    %v4119 = vmul.f32 %v4118, 1.442695
    %v4120 = vpow.pop %v4119
    %v4121 = vadd.f32 %v4120, 1.0
    %v4122 = vrcp.pop %v4121
    %v4123 = vmul.f32 1.0, %v4122
    %v4124 = vtanh.pop %v4115
    %v4125 = vmul.f32 %v4123, %v3702
    %4127 = vrot.lane.b32.xlu0 %v4124, 32
    %v4128 = vpop.permute.xlu0 %4127
    %v4130 = vmul.f32 %v4123, %v4128
    %4132 = vrot.lane.b32.xlu0 %v4130, 32
    %v4133 = vpop.permute.xlu0 %4132
    %v4135 = vadd.f32 %v4125, %v4133
    %v4136 = vtanh.pop %v4135
    %4138 = vrot.lane.b32.xlu0 %v4136, 32
    %v4139 = vpop.permute.xlu0 %4138
    %v4141 = vmul.f32 %v4123, %v4139
    %v4142 = vld [vmem:[#allocation7 + $0xf8] sm:$0x1]
    %4144 = vrot.lane.b32.xlu0 %v4141, 64
    %v4145 = vpop.permute.xlu0 %4144
    %4147 = vrot.lane.b32.xlu0 %v3814, 96
    %v4148 = vpop.permute.xlu0 %4147
    %v4150 = vsel %vm150, %v4145, %v4148
    %v4151 = vld [vmem:[#allocation7 + $0xb0] sm:$0xff]
    %v4152 = vld [vmem:[#allocation7 + $0xb8] sm:$0xff]
    %v4153 = vld [vmem:[#allocation7 + $0xc0] sm:$0xff]
    %v4154 = vld [vmem:[#allocation7 + $0xc8] sm:$0xff]
    %v4155 = vld [vmem:[#allocation7 + $0xd0] sm:$0xff]
    %v4156 = vld [vmem:[#allocation7 + $0xd8] sm:$0xff]
    %v4157 = vld [vmem:[#allocation7 + $0xe0] sm:$0xff]
    %v4158 = vld [vmem:[#allocation7 + $0xe8] sm:$0xff]
    %v4160 = vsel %vm69, %v4150, 0
    %4162 = vmatprep.subr.mxu0 0.0
    %4163 = vmatpush1.msra.mxu0 0.0
    %4164 = vmatprep.subr.mxu0 0.0
    %4165 = vmatpush1.msra.mxu0 0.0
    %4166 = vmatprep.subr.mxu0 0.0
    %4167 = vmatpush1.msra.mxu0 0.0
    %4168 = vmatprep.subr.mxu0 0.0
    %4169 = vmatpush1.msra.mxu0 0.0
    %4170 = vmatprep.subr.mxu0 0.0
    %4171 = vmatpush1.msra.mxu0 0.0
    %4172 = vmatprep.subr.mxu0 0.0
    %4173 = vmatpush1.msra.mxu0 0.0
    %4174 = vmatprep.subr.mxu0 0.0
    %4175 = vmatpush1.msra.mxu0 0.0
    %4176 = vmatprep.subr.mxu0 0.0
    %4177 = vmatpush1.msra.mxu0 0.0
    %4178 = vmatprep.subr.mxu0 0.0
    %4179 = vmatpush1.msra.mxu0 %v4158
    %4180 = vmatprep.subr.mxu0 0.0
    %4181 = vmatpush1.msra.mxu0 %v4157
    %4182 = vmatprep.subr.mxu0 0.0
    %4183 = vmatpush1.msra.mxu0 %v4156
    %4184 = vmatprep.subr.mxu0 0.0
    %4185 = vmatpush1.msra.mxu0 %v4155
    %4186 = vmatprep.subr.mxu0 0.0
    %4187 = vmatpush1.msra.mxu0 %v4154
    %4188 = vmatprep.subr.mxu0 0.0
    %4189 = vmatpush1.msra.mxu0 %v4153
    %4190 = vmatprep.subr.mxu0 0.0
    %4191 = vmatpush1.msra.mxu0 %v4152
    %4192 = vmatprep.subr.mxu0 0.0
    %4193 = vmatpush1.msra.mxu0 %v4151
    %4194 = vmatprep.subr.mxu0 0.0
    %4195 = vmatpush2.msra.mxu0 0.0
    %4196 = vmatprep.subr.mxu0 0.0
    %4197 = vmatpush2.msra.mxu0 0.0
    %4198 = vmatprep.subr.mxu0 0.0
    %4199 = vmatpush2.msra.mxu0 0.0
    %4200 = vmatprep.subr.mxu0 0.0
    %4201 = vmatpush2.msra.mxu0 0.0
    %4202 = vmatprep.subr.mxu0 0.0
    %4203 = vmatpush2.msra.mxu0 0.0
    %4204 = vmatprep.subr.mxu0 0.0
    %4205 = vmatpush2.msra.mxu0 0.0
    %4206 = vmatprep.subr.mxu0 0.0
    %4207 = vmatpush2.msra.mxu0 0.0
    %4208 = vmatprep.subr.mxu0 0.0
    %4209 = vmatpush2.msra.mxu0 0.0
    %4210 = vmatprep.subr.mxu0 0.0
    %4211 = vmatpush2.msra.mxu0 0.0
    %4212 = vmatprep.subr.mxu0 0.0
    %4213 = vmatpush2.msra.mxu0 0.0
    %4214 = vmatprep.subr.mxu0 0.0
    %4215 = vmatpush2.msra.mxu0 0.0
    %4216 = vmatprep.subr.mxu0 0.0
    %4217 = vmatpush2.msra.mxu0 0.0
    %4218 = vmatprep.subr.mxu0 0.0
    %4219 = vmatpush2.msra.mxu0 0.0
    %4220 = vmatprep.subr.mxu0 0.0
    %4221 = vmatpush2.msra.mxu0 0.0
    %4222 = vmatprep.subr.mxu0 0.0
    %4223 = vmatpush2.msra.mxu0 0.0
    %4224 = vmatprep.subr.mxu0 0.0
    %4225 = vmatpush2.msra.mxu0 0.0
    %4226 = vmatprep.mubr.f32.mxu0 0.0
    %4227 = vmatmul.mubr.f32.gmra.mxu0 %v4160
    %v4228 = vpop.f32.mrf.mxu0
    %v4229 = vadd.f32 %v4142, %v4228
    %v4230 = vpop.f32.mrf.mxu0
    %4231 = vdwg.mxu0
    %v4232 = vxor.u32 %v4229, 2147483648
    %v4233 = vmul.f32 %v4232, 1.442695
    %v4234 = vpow.pop %v4233
    %v4235 = vadd.f32 %v4234, 1.0
    %v4236 = vrcp.pop %v4235
    %v4237 = vmul.f32 1.0, %v4236
    %v4238 = vtanh.pop %v4229
    %v4239 = vmul.f32 %v4237, %v3808
    %4241 = vrot.lane.b32.xlu0 %v4238, 32
    %v4242 = vpop.permute.xlu0 %4241
    %v4244 = vmul.f32 %v4237, %v4242
    %4246 = vrot.lane.b32.xlu0 %v4244, 32
    %v4247 = vpop.permute.xlu0 %4246
    %v4249 = vadd.f32 %v4239, %v4247
    %v4250 = vtanh.pop %v4249
    %4252 = vrot.lane.b32.xlu0 %v4250, 32
    %v4253 = vpop.permute.xlu0 %4252
    %v4255 = vmul.f32 %v4237, %v4253
    %4257 = vrot.lane.b32.xlu0 %v4255, 64
    %v4258 = vpop.permute.xlu0 %4257
    %4260 = vrot.lane.b32.xlu0 %v3920, 96
    %v4261 = vpop.permute.xlu0 %4260
    %v4263 = vsel %vm150, %v4258, %v4261
    %v4264 = vld [vmem:[#allocation7 + $0x100] sm:$0xff]
    %v4265 = vld [vmem:[#allocation7 + $0x108] sm:$0xff]
    %v4266 = vld [vmem:[#allocation7 + $0x110] sm:$0xff]
    %v4267 = vld [vmem:[#allocation7 + $0x118] sm:$0xff]
    %v4268 = vld [vmem:[#allocation7 + $0x120] sm:$0xff]
    %v4269 = vld [vmem:[#allocation7 + $0x128] sm:$0xff]
    %v4270 = vld [vmem:[#allocation7 + $0x130] sm:$0xff]
    %v4271 = vld [vmem:[#allocation7 + $0x138] sm:$0xff]
    %v4272 = vld [vmem:[#allocation7 + $0x140] sm:$0x1]
    %v4274 = vsel %vm69, %v4263, 0
    %4276 = vmatprep.subr.mxu0 0.0
    %4277 = vmatpush1.msra.mxu0 0.0
    %4278 = vmatprep.subr.mxu0 0.0
    %4279 = vmatpush1.msra.mxu0 0.0
    %4280 = vmatprep.subr.mxu0 0.0
    %4281 = vmatpush1.msra.mxu0 0.0
    %4282 = vmatprep.subr.mxu0 0.0
    %4283 = vmatpush1.msra.mxu0 0.0
    %4284 = vmatprep.subr.mxu0 0.0
    %4285 = vmatpush1.msra.mxu0 0.0
    %4286 = vmatprep.subr.mxu0 0.0
    %4287 = vmatpush1.msra.mxu0 0.0
    %4288 = vmatprep.subr.mxu0 0.0
    %4289 = vmatpush1.msra.mxu0 0.0
    %4290 = vmatprep.subr.mxu0 0.0
    %4291 = vmatpush1.msra.mxu0 0.0
    %4292 = vmatprep.subr.mxu0 0.0
    %4293 = vmatpush1.msra.mxu0 %v4271
    %4294 = vmatprep.subr.mxu0 0.0
    %4295 = vmatpush1.msra.mxu0 %v4270
    %4296 = vmatprep.subr.mxu0 0.0
    %4297 = vmatpush1.msra.mxu0 %v4269
    %4298 = vmatprep.subr.mxu0 0.0
    %4299 = vmatpush1.msra.mxu0 %v4268
    %4300 = vmatprep.subr.mxu0 0.0
    %4301 = vmatpush1.msra.mxu0 %v4267
    %4302 = vmatprep.subr.mxu0 0.0
    %4303 = vmatpush1.msra.mxu0 %v4266
    %4304 = vmatprep.subr.mxu0 0.0
    %4305 = vmatpush1.msra.mxu0 %v4265
    %4306 = vmatprep.subr.mxu0 0.0
    %4307 = vmatpush1.msra.mxu0 %v4264
    %4308 = vmatprep.subr.mxu0 0.0
    %4309 = vmatpush2.msra.mxu0 0.0
    %4310 = vmatprep.subr.mxu0 0.0
    %4311 = vmatpush2.msra.mxu0 0.0
    %4312 = vmatprep.subr.mxu0 0.0
    %4313 = vmatpush2.msra.mxu0 0.0
    %4314 = vmatprep.subr.mxu0 0.0
    %4315 = vmatpush2.msra.mxu0 0.0
    %4316 = vmatprep.subr.mxu0 0.0
    %4317 = vmatpush2.msra.mxu0 0.0
    %4318 = vmatprep.subr.mxu0 0.0
    %4319 = vmatpush2.msra.mxu0 0.0
    %4320 = vmatprep.subr.mxu0 0.0
    %4321 = vmatpush2.msra.mxu0 0.0
    %4322 = vmatprep.subr.mxu0 0.0
    %4323 = vmatpush2.msra.mxu0 0.0
    %4324 = vmatprep.subr.mxu0 0.0
    %4325 = vmatpush2.msra.mxu0 0.0
    %4326 = vmatprep.subr.mxu0 0.0
    %4327 = vmatpush2.msra.mxu0 0.0
    %4328 = vmatprep.subr.mxu0 0.0
    %4329 = vmatpush2.msra.mxu0 0.0
    %4330 = vmatprep.subr.mxu0 0.0
    %4331 = vmatpush2.msra.mxu0 0.0
    %4332 = vmatprep.subr.mxu0 0.0
    %4333 = vmatpush2.msra.mxu0 0.0
    %4334 = vmatprep.subr.mxu0 0.0
    %4335 = vmatpush2.msra.mxu0 0.0
    %4336 = vmatprep.subr.mxu0 0.0
    %4337 = vmatpush2.msra.mxu0 0.0
    %4338 = vmatprep.subr.mxu0 0.0
    %4339 = vmatpush2.msra.mxu0 0.0
    %4340 = vmatprep.mubr.f32.mxu0 0.0
    %4341 = vmatmul.mubr.f32.gmra.mxu0 %v4274
    %v4342 = vpop.f32.mrf.mxu0
    %v4343 = vadd.f32 %v4272, %v4342
    %v4344 = vpop.f32.mrf.mxu0
    %4345 = vdwg.mxu0
    %v4346 = vxor.u32 %v4343, 2147483648
    %v4347 = vmul.f32 %v4346, 1.442695
    %v4348 = vpow.pop %v4347
    %v4349 = vadd.f32 %v4348, 1.0
    %v4350 = vrcp.pop %v4349
    %v4351 = vmul.f32 1.0, %v4350
    %v4352 = vtanh.pop %v4343
    %v4353 = vmul.f32 %v4351, %v3914
    %4355 = vrot.lane.b32.xlu0 %v4352, 32
    %v4356 = vpop.permute.xlu0 %4355
    %v4358 = vmul.f32 %v4351, %v4356
    %4360 = vrot.lane.b32.xlu0 %v4358, 32
    %v4361 = vpop.permute.xlu0 %4360
    %v4363 = vadd.f32 %v4353, %v4361
    %v4364 = vtanh.pop %v4363
    %4366 = vrot.lane.b32.xlu0 %v4364, 32
    %v4367 = vpop.permute.xlu0 %4366
    %v4369 = vmul.f32 %v4351, %v4367
    %4371 = vrot.lane.b32.xlu0 %v4369, 64
    %v4372 = vpop.permute.xlu0 %4371
    %4374 = vst.msk [vmem:[#allocation3 + $0x1] sm:$0x1] %vm3925, %v4372
    %v4375 = vld [vmem:[#allocation7 + $0x40] sm:$0xff]
    %v4376 = vld [vmem:[#allocation7 + $0x48] sm:$0xff]
    %v4377 = vld [vmem:[#allocation7 + $0x50] sm:$0xff]
    %v4378 = vld [vmem:[#allocation7 + $0x58] sm:$0xff]
    %v4379 = vld [vmem:[#allocation7 + $0x60] sm:$0x1]
    %v4380 = vsel %vm150, %v4030, 0
    %4382 = vmatprep.subr.mxu0 0.0
    %4383 = vmatpush1.msra.mxu0 0.0
    %4384 = vmatprep.subr.mxu0 0.0
    %4385 = vmatpush1.msra.mxu0 0.0
    %4386 = vmatprep.subr.mxu0 0.0
    %4387 = vmatpush1.msra.mxu0 0.0
    %4388 = vmatprep.subr.mxu0 0.0
    %4389 = vmatpush1.msra.mxu0 0.0
    %4390 = vmatprep.subr.mxu0 0.0
    %4391 = vmatpush1.msra.mxu0 0.0
    %4392 = vmatprep.subr.mxu0 0.0
    %4393 = vmatpush1.msra.mxu0 0.0
    %4394 = vmatprep.subr.mxu0 0.0
    %4395 = vmatpush1.msra.mxu0 0.0
    %4396 = vmatprep.subr.mxu0 0.0
    %4397 = vmatpush1.msra.mxu0 0.0
    %4398 = vmatprep.subr.mxu0 0.0
    %4399 = vmatpush1.msra.mxu0 0.0
    %4400 = vmatprep.subr.mxu0 0.0
    %4401 = vmatpush1.msra.mxu0 0.0
    %4402 = vmatprep.subr.mxu0 0.0
    %4403 = vmatpush1.msra.mxu0 0.0
    %4404 = vmatprep.subr.mxu0 0.0
    %4405 = vmatpush1.msra.mxu0 0.0
    %4406 = vmatprep.subr.mxu0 0.0
    %4407 = vmatpush1.msra.mxu0 %v4378
    %4408 = vmatprep.subr.mxu0 0.0
    %4409 = vmatpush1.msra.mxu0 %v4377
    %4410 = vmatprep.subr.mxu0 0.0
    %4411 = vmatpush1.msra.mxu0 %v4376
    %4412 = vmatprep.subr.mxu0 0.0
    %4413 = vmatpush1.msra.mxu0 %v4375
    %4414 = vmatprep.subr.mxu0 0.0
    %4415 = vmatpush2.msra.mxu0 0.0
    %4416 = vmatprep.subr.mxu0 0.0
    %4417 = vmatpush2.msra.mxu0 0.0
    %4418 = vmatprep.subr.mxu0 0.0
    %4419 = vmatpush2.msra.mxu0 0.0
    %4420 = vmatprep.subr.mxu0 0.0
    %4421 = vmatpush2.msra.mxu0 0.0
    %4422 = vmatprep.subr.mxu0 0.0
    %4423 = vmatpush2.msra.mxu0 0.0
    %4424 = vmatprep.subr.mxu0 0.0
    %4425 = vmatpush2.msra.mxu0 0.0
    %4426 = vmatprep.subr.mxu0 0.0
    %4427 = vmatpush2.msra.mxu0 0.0
    %4428 = vmatprep.subr.mxu0 0.0
    %4429 = vmatpush2.msra.mxu0 0.0
    %4430 = vmatprep.subr.mxu0 0.0
    %4431 = vmatpush2.msra.mxu0 0.0
    %4432 = vmatprep.subr.mxu0 0.0
    %4433 = vmatpush2.msra.mxu0 0.0
    %4434 = vmatprep.subr.mxu0 0.0
    %4435 = vmatpush2.msra.mxu0 0.0
    %4436 = vmatprep.subr.mxu0 0.0
    %4437 = vmatpush2.msra.mxu0 0.0
    %4438 = vmatprep.subr.mxu0 0.0
    %4439 = vmatpush2.msra.mxu0 0.0
    %4440 = vmatprep.subr.mxu0 0.0
    %4441 = vmatpush2.msra.mxu0 0.0
    %4442 = vmatprep.subr.mxu0 0.0
    %4443 = vmatpush2.msra.mxu0 0.0
    %4444 = vmatprep.subr.mxu0 0.0
    %4445 = vmatpush2.msra.mxu0 0.0
    %4446 = vmatprep.mubr.f32.mxu0 0.0
    %4447 = vmatmul.mubr.f32.gmra.mxu0 %v4380
    %v4448 = vpop.f32.mrf.mxu0
    %v4449 = vadd.f32 %v4379, %v4448
    %v4450 = vpop.f32.mrf.mxu0
    %4451 = vdwg.mxu0
    %v4452 = vxor.u32 %v4449, 2147483648
    %v4453 = vmul.f32 %v4452, 1.442695
    %v4454 = vpow.pop %v4453
    %v4455 = vadd.f32 %v4454, 1.0
    %v4456 = vrcp.pop %v4455
    %v4457 = vmul.f32 1.0, %v4456
    %v4458 = vtanh.pop %v4449
    %v4459 = vmul.f32 %v4457, %v4021
    %4461 = vrot.lane.b32.xlu0 %v4458, 32
    %v4462 = vpop.permute.xlu0 %4461
    %v4464 = vmul.f32 %v4457, %v4462
    %4466 = vrot.lane.b32.xlu0 %v4464, 32
    %v4467 = vpop.permute.xlu0 %4466
    %v4469 = vadd.f32 %v4459, %v4467
    %v4470 = vtanh.pop %v4469
    %4472 = vrot.lane.b32.xlu0 %v4470, 32
    %v4473 = vpop.permute.xlu0 %4472
    %v4475 = vmul.f32 %v4457, %v4473
    %4477 = vrot.lane.b32.xlu0 %v4475, 64
    %v4478 = vpop.permute.xlu0 %4477
    %4480 = vrot.lane.b32.xlu0 %v4141, 96
    %v4481 = vpop.permute.xlu0 %4480
    %v4483 = vsel %vm150, %v4478, %v4481
    %v4484 = vld [vmem:[#allocation7 + $0x68] sm:$0xff]
    %v4485 = vld [vmem:[#allocation7 + $0x70] sm:$0xff]
    %v4486 = vld [vmem:[#allocation7 + $0x78] sm:$0xff]
    %v4487 = vld [vmem:[#allocation7 + $0x80] sm:$0xff]
    %v4488 = vld [vmem:[#allocation7 + $0x88] sm:$0xff]
    %v4489 = vld [vmem:[#allocation7 + $0x90] sm:$0xff]
    %v4490 = vld [vmem:[#allocation7 + $0x98] sm:$0xff]
    %v4491 = vld [vmem:[#allocation7 + $0xa0] sm:$0xff]
    %v4492 = vld [vmem:[#allocation7 + $0xa8] sm:$0x1]
    %v4494 = vsel %vm69, %v4483, 0
    %4496 = vmatprep.subr.mxu0 0.0
    %4497 = vmatpush1.msra.mxu0 0.0
    %4498 = vmatprep.subr.mxu0 0.0
    %4499 = vmatpush1.msra.mxu0 0.0
    %4500 = vmatprep.subr.mxu0 0.0
    %4501 = vmatpush1.msra.mxu0 0.0
    %4502 = vmatprep.subr.mxu0 0.0
    %4503 = vmatpush1.msra.mxu0 0.0
    %4504 = vmatprep.subr.mxu0 0.0
    %4505 = vmatpush1.msra.mxu0 0.0
    %4506 = vmatprep.subr.mxu0 0.0
    %4507 = vmatpush1.msra.mxu0 0.0
    %4508 = vmatprep.subr.mxu0 0.0
    %4509 = vmatpush1.msra.mxu0 0.0
    %4510 = vmatprep.subr.mxu0 0.0
    %4511 = vmatpush1.msra.mxu0 0.0
    %4512 = vmatprep.subr.mxu0 0.0
    %4513 = vmatpush1.msra.mxu0 %v4491
    %4514 = vmatprep.subr.mxu0 0.0
    %4515 = vmatpush1.msra.mxu0 %v4490
    %4516 = vmatprep.subr.mxu0 0.0
    %4517 = vmatpush1.msra.mxu0 %v4489
    %4518 = vmatprep.subr.mxu0 0.0
    %4519 = vmatpush1.msra.mxu0 %v4488
    %4520 = vmatprep.subr.mxu0 0.0
    %4521 = vmatpush1.msra.mxu0 %v4487
    %4522 = vmatprep.subr.mxu0 0.0
    %4523 = vmatpush1.msra.mxu0 %v4486
    %4524 = vmatprep.subr.mxu0 0.0
    %4525 = vmatpush1.msra.mxu0 %v4485
    %4526 = vmatprep.subr.mxu0 0.0
    %4527 = vmatpush1.msra.mxu0 %v4484
    %4528 = vmatprep.subr.mxu0 0.0
    %4529 = vmatpush2.msra.mxu0 0.0
    %4530 = vmatprep.subr.mxu0 0.0
    %4531 = vmatpush2.msra.mxu0 0.0
    %4532 = vmatprep.subr.mxu0 0.0
    %4533 = vmatpush2.msra.mxu0 0.0
    %4534 = vmatprep.subr.mxu0 0.0
    %4535 = vmatpush2.msra.mxu0 0.0
    %4536 = vmatprep.subr.mxu0 0.0
    %4537 = vmatpush2.msra.mxu0 0.0
    %4538 = vmatprep.subr.mxu0 0.0
    %4539 = vmatpush2.msra.mxu0 0.0
    %4540 = vmatprep.subr.mxu0 0.0
    %4541 = vmatpush2.msra.mxu0 0.0
    %4542 = vmatprep.subr.mxu0 0.0
    %4543 = vmatpush2.msra.mxu0 0.0
    %4544 = vmatprep.subr.mxu0 0.0
    %4545 = vmatpush2.msra.mxu0 0.0
    %4546 = vmatprep.subr.mxu0 0.0
    %4547 = vmatpush2.msra.mxu0 0.0
    %4548 = vmatprep.subr.mxu0 0.0
    %4549 = vmatpush2.msra.mxu0 0.0
    %4550 = vmatprep.subr.mxu0 0.0
    %4551 = vmatpush2.msra.mxu0 0.0
    %4552 = vmatprep.subr.mxu0 0.0
    %4553 = vmatpush2.msra.mxu0 0.0
    %4554 = vmatprep.subr.mxu0 0.0
    %4555 = vmatpush2.msra.mxu0 0.0
    %4556 = vmatprep.subr.mxu0 0.0
    %4557 = vmatpush2.msra.mxu0 0.0
    %4558 = vmatprep.subr.mxu0 0.0
    %4559 = vmatpush2.msra.mxu0 0.0
    %4560 = vmatprep.mubr.f32.mxu0 0.0
    %4561 = vmatmul.mubr.f32.gmra.mxu0 %v4494
    %v4562 = vpop.f32.mrf.mxu0
    %v4563 = vadd.f32 %v4492, %v4562
    %v4564 = vpop.f32.mrf.mxu0
    %4565 = vdwg.mxu0
    %v4566 = vxor.u32 %v4563, 2147483648
    %v4567 = vmul.f32 %v4566, 1.442695
    %v4568 = vpow.pop %v4567
    %v4569 = vadd.f32 %v4568, 1.0
    %v4570 = vrcp.pop %v4569
    %v4571 = vmul.f32 1.0, %v4570
    %v4572 = vtanh.pop %v4563
    %v4573 = vmul.f32 %v4571, %v4135
    %4575 = vrot.lane.b32.xlu0 %v4572, 32
    %v4576 = vpop.permute.xlu0 %4575
    %v4578 = vmul.f32 %v4571, %v4576
    %4580 = vrot.lane.b32.xlu0 %v4578, 32
    %v4581 = vpop.permute.xlu0 %4580
    %v4583 = vadd.f32 %v4573, %v4581
    %v4584 = vtanh.pop %v4583
    %4586 = vrot.lane.b32.xlu0 %v4584, 32
    %v4587 = vpop.permute.xlu0 %4586
    %v4589 = vmul.f32 %v4571, %v4587
    %v4590 = vld [vmem:[#allocation7 + $0xf8] sm:$0x1]
    %4592 = vrot.lane.b32.xlu0 %v4589, 64
    %v4593 = vpop.permute.xlu0 %4592
    %4595 = vrot.lane.b32.xlu0 %v4255, 96
    %v4596 = vpop.permute.xlu0 %4595
    %v4598 = vsel %vm150, %v4593, %v4596
    %v4599 = vld [vmem:[#allocation7 + $0xb0] sm:$0xff]
    %v4600 = vld [vmem:[#allocation7 + $0xb8] sm:$0xff]
    %v4601 = vld [vmem:[#allocation7 + $0xc0] sm:$0xff]
    %v4602 = vld [vmem:[#allocation7 + $0xc8] sm:$0xff]
    %v4603 = vld [vmem:[#allocation7 + $0xd0] sm:$0xff]
    %v4604 = vld [vmem:[#allocation7 + $0xd8] sm:$0xff]
    %v4605 = vld [vmem:[#allocation7 + $0xe0] sm:$0xff]
    %v4606 = vld [vmem:[#allocation7 + $0xe8] sm:$0xff]
    %v4608 = vsel %vm69, %v4598, 0
    %4610 = vmatprep.subr.mxu0 0.0
    %4611 = vmatpush1.msra.mxu0 0.0
    %4612 = vmatprep.subr.mxu0 0.0
    %4613 = vmatpush1.msra.mxu0 0.0
    %4614 = vmatprep.subr.mxu0 0.0
    %4615 = vmatpush1.msra.mxu0 0.0
    %4616 = vmatprep.subr.mxu0 0.0
    %4617 = vmatpush1.msra.mxu0 0.0
    %4618 = vmatprep.subr.mxu0 0.0
    %4619 = vmatpush1.msra.mxu0 0.0
    %4620 = vmatprep.subr.mxu0 0.0
    %4621 = vmatpush1.msra.mxu0 0.0
    %4622 = vmatprep.subr.mxu0 0.0
    %4623 = vmatpush1.msra.mxu0 0.0
    %4624 = vmatprep.subr.mxu0 0.0
    %4625 = vmatpush1.msra.mxu0 0.0
    %4626 = vmatprep.subr.mxu0 0.0
    %4627 = vmatpush1.msra.mxu0 %v4606
    %4628 = vmatprep.subr.mxu0 0.0
    %4629 = vmatpush1.msra.mxu0 %v4605
    %4630 = vmatprep.subr.mxu0 0.0
    %4631 = vmatpush1.msra.mxu0 %v4604
    %4632 = vmatprep.subr.mxu0 0.0
    %4633 = vmatpush1.msra.mxu0 %v4603
    %4634 = vmatprep.subr.mxu0 0.0
    %4635 = vmatpush1.msra.mxu0 %v4602
    %4636 = vmatprep.subr.mxu0 0.0
    %4637 = vmatpush1.msra.mxu0 %v4601
    %4638 = vmatprep.subr.mxu0 0.0
    %4639 = vmatpush1.msra.mxu0 %v4600
    %4640 = vmatprep.subr.mxu0 0.0
    %4641 = vmatpush1.msra.mxu0 %v4599
    %4642 = vmatprep.subr.mxu0 0.0
    %4643 = vmatpush2.msra.mxu0 0.0
    %4644 = vmatprep.subr.mxu0 0.0
    %4645 = vmatpush2.msra.mxu0 0.0
    %4646 = vmatprep.subr.mxu0 0.0
    %4647 = vmatpush2.msra.mxu0 0.0
    %4648 = vmatprep.subr.mxu0 0.0
    %4649 = vmatpush2.msra.mxu0 0.0
    %4650 = vmatprep.subr.mxu0 0.0
    %4651 = vmatpush2.msra.mxu0 0.0
    %4652 = vmatprep.subr.mxu0 0.0
    %4653 = vmatpush2.msra.mxu0 0.0
    %4654 = vmatprep.subr.mxu0 0.0
    %4655 = vmatpush2.msra.mxu0 0.0
    %4656 = vmatprep.subr.mxu0 0.0
    %4657 = vmatpush2.msra.mxu0 0.0
    %4658 = vmatprep.subr.mxu0 0.0
    %4659 = vmatpush2.msra.mxu0 0.0
    %4660 = vmatprep.subr.mxu0 0.0
    %4661 = vmatpush2.msra.mxu0 0.0
    %4662 = vmatprep.subr.mxu0 0.0
    %4663 = vmatpush2.msra.mxu0 0.0
    %4664 = vmatprep.subr.mxu0 0.0
    %4665 = vmatpush2.msra.mxu0 0.0
    %4666 = vmatprep.subr.mxu0 0.0
    %4667 = vmatpush2.msra.mxu0 0.0
    %4668 = vmatprep.subr.mxu0 0.0
    %4669 = vmatpush2.msra.mxu0 0.0
    %4670 = vmatprep.subr.mxu0 0.0
    %4671 = vmatpush2.msra.mxu0 0.0
    %4672 = vmatprep.subr.mxu0 0.0
    %4673 = vmatpush2.msra.mxu0 0.0
    %4674 = vmatprep.mubr.f32.mxu0 0.0
    %4675 = vmatmul.mubr.f32.gmra.mxu0 %v4608
    %v4676 = vpop.f32.mrf.mxu0
    %v4677 = vadd.f32 %v4590, %v4676
    %v4678 = vpop.f32.mrf.mxu0
    %4679 = vdwg.mxu0
    %v4680 = vxor.u32 %v4677, 2147483648
    %v4681 = vmul.f32 %v4680, 1.442695
    %v4682 = vpow.pop %v4681
    %v4683 = vadd.f32 %v4682, 1.0
    %v4684 = vrcp.pop %v4683
    %v4685 = vmul.f32 1.0, %v4684
    %v4686 = vtanh.pop %v4677
    %v4687 = vmul.f32 %v4685, %v4249
    %4689 = vrot.lane.b32.xlu0 %v4686, 32
    %v4690 = vpop.permute.xlu0 %4689
    %v4692 = vmul.f32 %v4685, %v4690
    %4694 = vrot.lane.b32.xlu0 %v4692, 32
    %v4695 = vpop.permute.xlu0 %4694
    %v4697 = vadd.f32 %v4687, %v4695
    %v4698 = vtanh.pop %v4697
    %4700 = vrot.lane.b32.xlu0 %v4698, 32
    %v4701 = vpop.permute.xlu0 %4700
    %v4703 = vmul.f32 %v4685, %v4701
    %4705 = vrot.lane.b32.xlu0 %v4703, 64
    %v4706 = vpop.permute.xlu0 %4705
    %4708 = vrot.lane.b32.xlu0 %v4369, 96
    %v4709 = vpop.permute.xlu0 %4708
    %v4711 = vsel %vm150, %v4706, %v4709
    %v4712 = vld [vmem:[#allocation7 + $0x100] sm:$0xff]
    %v4713 = vld [vmem:[#allocation7 + $0x108] sm:$0xff]
    %v4714 = vld [vmem:[#allocation7 + $0x110] sm:$0xff]
    %v4715 = vld [vmem:[#allocation7 + $0x118] sm:$0xff]
    %v4716 = vld [vmem:[#allocation7 + $0x120] sm:$0xff]
    %v4717 = vld [vmem:[#allocation7 + $0x128] sm:$0xff]
    %v4718 = vld [vmem:[#allocation7 + $0x130] sm:$0xff]
    %v4719 = vld [vmem:[#allocation7 + $0x138] sm:$0xff]
    %v4720 = vld [vmem:[#allocation7 + $0x140] sm:$0x1]
    %v4722 = vsel %vm69, %v4711, 0
    %4724 = vmatprep.subr.mxu0 0.0
    %4725 = vmatpush1.msra.mxu0 0.0
    %4726 = vmatprep.subr.mxu0 0.0
    %4727 = vmatpush1.msra.mxu0 0.0
    %4728 = vmatprep.subr.mxu0 0.0
    %4729 = vmatpush1.msra.mxu0 0.0
    %4730 = vmatprep.subr.mxu0 0.0
    %4731 = vmatpush1.msra.mxu0 0.0
    %4732 = vmatprep.subr.mxu0 0.0
    %4733 = vmatpush1.msra.mxu0 0.0
    %4734 = vmatprep.subr.mxu0 0.0
    %4735 = vmatpush1.msra.mxu0 0.0
    %4736 = vmatprep.subr.mxu0 0.0
    %4737 = vmatpush1.msra.mxu0 0.0
    %4738 = vmatprep.subr.mxu0 0.0
    %4739 = vmatpush1.msra.mxu0 0.0
    %4740 = vmatprep.subr.mxu0 0.0
    %4741 = vmatpush1.msra.mxu0 %v4719
    %4742 = vmatprep.subr.mxu0 0.0
    %4743 = vmatpush1.msra.mxu0 %v4718
    %4744 = vmatprep.subr.mxu0 0.0
    %4745 = vmatpush1.msra.mxu0 %v4717
    %4746 = vmatprep.subr.mxu0 0.0
    %4747 = vmatpush1.msra.mxu0 %v4716
    %4748 = vmatprep.subr.mxu0 0.0
    %4749 = vmatpush1.msra.mxu0 %v4715
    %4750 = vmatprep.subr.mxu0 0.0
    %4751 = vmatpush1.msra.mxu0 %v4714
    %4752 = vmatprep.subr.mxu0 0.0
    %4753 = vmatpush1.msra.mxu0 %v4713
    %4754 = vmatprep.subr.mxu0 0.0
    %4755 = vmatpush1.msra.mxu0 %v4712
    %4756 = vmatprep.subr.mxu0 0.0
    %4757 = vmatpush2.msra.mxu0 0.0
    %4758 = vmatprep.subr.mxu0 0.0
    %4759 = vmatpush2.msra.mxu0 0.0
    %4760 = vmatprep.subr.mxu0 0.0
    %4761 = vmatpush2.msra.mxu0 0.0
    %4762 = vmatprep.subr.mxu0 0.0
    %4763 = vmatpush2.msra.mxu0 0.0
    %4764 = vmatprep.subr.mxu0 0.0
    %4765 = vmatpush2.msra.mxu0 0.0
    %4766 = vmatprep.subr.mxu0 0.0
    %4767 = vmatpush2.msra.mxu0 0.0
    %4768 = vmatprep.subr.mxu0 0.0
    %4769 = vmatpush2.msra.mxu0 0.0
    %4770 = vmatprep.subr.mxu0 0.0
    %4771 = vmatpush2.msra.mxu0 0.0
    %4772 = vmatprep.subr.mxu0 0.0
    %4773 = vmatpush2.msra.mxu0 0.0
    %4774 = vmatprep.subr.mxu0 0.0
    %4775 = vmatpush2.msra.mxu0 0.0
    %4776 = vmatprep.subr.mxu0 0.0
    %4777 = vmatpush2.msra.mxu0 0.0
    %4778 = vmatprep.subr.mxu0 0.0
    %4779 = vmatpush2.msra.mxu0 0.0
    %4780 = vmatprep.subr.mxu0 0.0
    %4781 = vmatpush2.msra.mxu0 0.0
    %4782 = vmatprep.subr.mxu0 0.0
    %4783 = vmatpush2.msra.mxu0 0.0
    %4784 = vmatprep.subr.mxu0 0.0
    %4785 = vmatpush2.msra.mxu0 0.0
    %4786 = vmatprep.subr.mxu0 0.0
    %4787 = vmatpush2.msra.mxu0 0.0
    %4788 = vmatprep.mubr.f32.mxu0 0.0
    %4789 = vmatmul.mubr.f32.gmra.mxu0 %v4722
    %v4790 = vpop.f32.mrf.mxu0
    %v4791 = vadd.f32 %v4720, %v4790
    %v4792 = vpop.f32.mrf.mxu0
    %4793 = vdwg.mxu0
    %v4794 = vxor.u32 %v4791, 2147483648
    %v4795 = vmul.f32 %v4794, 1.442695
    %v4796 = vpow.pop %v4795
    %v4797 = vadd.f32 %v4796, 1.0
    %v4798 = vrcp.pop %v4797
    %v4799 = vmul.f32 1.0, %v4798
    %v4800 = vtanh.pop %v4791
    %v4801 = vmul.f32 %v4799, %v4363
    %4803 = vrot.lane.b32.xlu0 %v4800, 32
    %v4804 = vpop.permute.xlu0 %4803
    %v4806 = vmul.f32 %v4799, %v4804
    %4808 = vrot.lane.b32.xlu0 %v4806, 32
    %v4809 = vpop.permute.xlu0 %4808
    %v4811 = vadd.f32 %v4801, %v4809
    %v4812 = vtanh.pop %v4811
    %4814 = vrot.lane.b32.xlu0 %v4812, 32
    %v4815 = vpop.permute.xlu0 %4814
    %v4817 = vmul.f32 %v4799, %v4815
    %4819 = vrot.lane.b32.xlu0 %v4817, 64
    %v4820 = vpop.permute.xlu0 %4819
    %4822 = vst.msk [vmem:[#allocation3 + $0x2] sm:$0x1] %vm3925, %v4820
    %v4823 = vld [vmem:[#allocation7 + $0x40] sm:$0xff]
    %v4824 = vld [vmem:[#allocation7 + $0x48] sm:$0xff]
    %v4825 = vld [vmem:[#allocation7 + $0x50] sm:$0xff]
    %v4826 = vld [vmem:[#allocation7 + $0x58] sm:$0xff]
    %v4827 = vld [vmem:[#allocation7 + $0x60] sm:$0x1]
    %v4828 = vsel %vm150, %v4478, 0
    %4830 = vmatprep.subr.mxu0 0.0
    %4831 = vmatpush1.msra.mxu0 0.0
    %4832 = vmatprep.subr.mxu0 0.0
    %4833 = vmatpush1.msra.mxu0 0.0
    %4834 = vmatprep.subr.mxu0 0.0
    %4835 = vmatpush1.msra.mxu0 0.0
    %4836 = vmatprep.subr.mxu0 0.0
    %4837 = vmatpush1.msra.mxu0 0.0
    %4838 = vmatprep.subr.mxu0 0.0
    %4839 = vmatpush1.msra.mxu0 0.0
    %4840 = vmatprep.subr.mxu0 0.0
    %4841 = vmatpush1.msra.mxu0 0.0
    %4842 = vmatprep.subr.mxu0 0.0
    %4843 = vmatpush1.msra.mxu0 0.0
    %4844 = vmatprep.subr.mxu0 0.0
    %4845 = vmatpush1.msra.mxu0 0.0
    %4846 = vmatprep.subr.mxu0 0.0
    %4847 = vmatpush1.msra.mxu0 0.0
    %4848 = vmatprep.subr.mxu0 0.0
    %4849 = vmatpush1.msra.mxu0 0.0
    %4850 = vmatprep.subr.mxu0 0.0
    %4851 = vmatpush1.msra.mxu0 0.0
    %4852 = vmatprep.subr.mxu0 0.0
    %4853 = vmatpush1.msra.mxu0 0.0
    %4854 = vmatprep.subr.mxu0 0.0
    %4855 = vmatpush1.msra.mxu0 %v4826
    %4856 = vmatprep.subr.mxu0 0.0
    %4857 = vmatpush1.msra.mxu0 %v4825
    %4858 = vmatprep.subr.mxu0 0.0
    %4859 = vmatpush1.msra.mxu0 %v4824
    %4860 = vmatprep.subr.mxu0 0.0
    %4861 = vmatpush1.msra.mxu0 %v4823
    %4862 = vmatprep.subr.mxu0 0.0
    %4863 = vmatpush2.msra.mxu0 0.0
    %4864 = vmatprep.subr.mxu0 0.0
    %4865 = vmatpush2.msra.mxu0 0.0
    %4866 = vmatprep.subr.mxu0 0.0
    %4867 = vmatpush2.msra.mxu0 0.0
    %4868 = vmatprep.subr.mxu0 0.0
    %4869 = vmatpush2.msra.mxu0 0.0
    %4870 = vmatprep.subr.mxu0 0.0
    %4871 = vmatpush2.msra.mxu0 0.0
    %4872 = vmatprep.subr.mxu0 0.0
    %4873 = vmatpush2.msra.mxu0 0.0
    %4874 = vmatprep.subr.mxu0 0.0
    %4875 = vmatpush2.msra.mxu0 0.0
    %4876 = vmatprep.subr.mxu0 0.0
    %4877 = vmatpush2.msra.mxu0 0.0
    %4878 = vmatprep.subr.mxu0 0.0
    %4879 = vmatpush2.msra.mxu0 0.0
    %4880 = vmatprep.subr.mxu0 0.0
    %4881 = vmatpush2.msra.mxu0 0.0
    %4882 = vmatprep.subr.mxu0 0.0
    %4883 = vmatpush2.msra.mxu0 0.0
    %4884 = vmatprep.subr.mxu0 0.0
    %4885 = vmatpush2.msra.mxu0 0.0
    %4886 = vmatprep.subr.mxu0 0.0
    %4887 = vmatpush2.msra.mxu0 0.0
    %4888 = vmatprep.subr.mxu0 0.0
    %4889 = vmatpush2.msra.mxu0 0.0
    %4890 = vmatprep.subr.mxu0 0.0
    %4891 = vmatpush2.msra.mxu0 0.0
    %4892 = vmatprep.subr.mxu0 0.0
    %4893 = vmatpush2.msra.mxu0 0.0
    %4894 = vmatprep.mubr.f32.mxu0 0.0
    %4895 = vmatmul.mubr.f32.gmra.mxu0 %v4828
    %v4896 = vpop.f32.mrf.mxu0
    %v4897 = vadd.f32 %v4827, %v4896
    %v4898 = vpop.f32.mrf.mxu0
    %4899 = vdwg.mxu0
    %v4900 = vxor.u32 %v4897, 2147483648
    %v4901 = vmul.f32 %v4900, 1.442695
    %v4902 = vpow.pop %v4901
    %v4903 = vadd.f32 %v4902, 1.0
    %v4904 = vrcp.pop %v4903
    %v4905 = vmul.f32 1.0, %v4904
    %v4906 = vtanh.pop %v4897
    %v4907 = vmul.f32 %v4905, %v4469
    %4909 = vrot.lane.b32.xlu0 %v4906, 32
    %v4910 = vpop.permute.xlu0 %4909
    %v4912 = vmul.f32 %v4905, %v4910
    %4914 = vrot.lane.b32.xlu0 %v4912, 32
    %v4915 = vpop.permute.xlu0 %4914
    %v4917 = vadd.f32 %v4907, %v4915
    %v4918 = vtanh.pop %v4917
    %4920 = vrot.lane.b32.xlu0 %v4918, 32
    %v4921 = vpop.permute.xlu0 %4920
    %v4923 = vmul.f32 %v4905, %v4921
    %4925 = vrot.lane.b32.xlu0 %v4923, 64
    %v4926 = vpop.permute.xlu0 %4925
    %4928 = vrot.lane.b32.xlu0 %v4589, 96
    %v4929 = vpop.permute.xlu0 %4928
    %v4931 = vsel %vm150, %v4926, %v4929
    %v4932 = vld [vmem:[#allocation7 + $0x68] sm:$0xff]
    %v4933 = vld [vmem:[#allocation7 + $0x70] sm:$0xff]
    %v4934 = vld [vmem:[#allocation7 + $0x78] sm:$0xff]
    %v4935 = vld [vmem:[#allocation7 + $0x80] sm:$0xff]
    %v4936 = vld [vmem:[#allocation7 + $0x88] sm:$0xff]
    %v4937 = vld [vmem:[#allocation7 + $0x90] sm:$0xff]
    %v4938 = vld [vmem:[#allocation7 + $0x98] sm:$0xff]
    %v4939 = vld [vmem:[#allocation7 + $0xa0] sm:$0xff]
    %v4940 = vld [vmem:[#allocation7 + $0xa8] sm:$0x1]
    %v4942 = vsel %vm69, %v4931, 0
    %4944 = vmatprep.subr.mxu0 0.0
    %4945 = vmatpush1.msra.mxu0 0.0
    %4946 = vmatprep.subr.mxu0 0.0
    %4947 = vmatpush1.msra.mxu0 0.0
    %4948 = vmatprep.subr.mxu0 0.0
    %4949 = vmatpush1.msra.mxu0 0.0
    %4950 = vmatprep.subr.mxu0 0.0
    %4951 = vmatpush1.msra.mxu0 0.0
    %4952 = vmatprep.subr.mxu0 0.0
    %4953 = vmatpush1.msra.mxu0 0.0
    %4954 = vmatprep.subr.mxu0 0.0
    %4955 = vmatpush1.msra.mxu0 0.0
    %4956 = vmatprep.subr.mxu0 0.0
    %4957 = vmatpush1.msra.mxu0 0.0
    %4958 = vmatprep.subr.mxu0 0.0
    %4959 = vmatpush1.msra.mxu0 0.0
    %4960 = vmatprep.subr.mxu0 0.0
    %4961 = vmatpush1.msra.mxu0 %v4939
    %4962 = vmatprep.subr.mxu0 0.0
    %4963 = vmatpush1.msra.mxu0 %v4938
    %4964 = vmatprep.subr.mxu0 0.0
    %4965 = vmatpush1.msra.mxu0 %v4937
    %4966 = vmatprep.subr.mxu0 0.0
    %4967 = vmatpush1.msra.mxu0 %v4936
    %4968 = vmatprep.subr.mxu0 0.0
    %4969 = vmatpush1.msra.mxu0 %v4935
    %4970 = vmatprep.subr.mxu0 0.0
    %4971 = vmatpush1.msra.mxu0 %v4934
    %4972 = vmatprep.subr.mxu0 0.0
    %4973 = vmatpush1.msra.mxu0 %v4933
    %4974 = vmatprep.subr.mxu0 0.0
    %4975 = vmatpush1.msra.mxu0 %v4932
    %4976 = vmatprep.subr.mxu0 0.0
    %4977 = vmatpush2.msra.mxu0 0.0
    %4978 = vmatprep.subr.mxu0 0.0
    %4979 = vmatpush2.msra.mxu0 0.0
    %4980 = vmatprep.subr.mxu0 0.0
    %4981 = vmatpush2.msra.mxu0 0.0
    %4982 = vmatprep.subr.mxu0 0.0
    %4983 = vmatpush2.msra.mxu0 0.0
    %4984 = vmatprep.subr.mxu0 0.0
    %4985 = vmatpush2.msra.mxu0 0.0
    %4986 = vmatprep.subr.mxu0 0.0
    %4987 = vmatpush2.msra.mxu0 0.0
    %4988 = vmatprep.subr.mxu0 0.0
    %4989 = vmatpush2.msra.mxu0 0.0
    %4990 = vmatprep.subr.mxu0 0.0
    %4991 = vmatpush2.msra.mxu0 0.0
    %4992 = vmatprep.subr.mxu0 0.0
    %4993 = vmatpush2.msra.mxu0 0.0
    %4994 = vmatprep.subr.mxu0 0.0
    %4995 = vmatpush2.msra.mxu0 0.0
    %4996 = vmatprep.subr.mxu0 0.0
    %4997 = vmatpush2.msra.mxu0 0.0
    %4998 = vmatprep.subr.mxu0 0.0
    %4999 = vmatpush2.msra.mxu0 0.0
    %5000 = vmatprep.subr.mxu0 0.0
    %5001 = vmatpush2.msra.mxu0 0.0
    %5002 = vmatprep.subr.mxu0 0.0
    %5003 = vmatpush2.msra.mxu0 0.0
    %5004 = vmatprep.subr.mxu0 0.0
    %5005 = vmatpush2.msra.mxu0 0.0
    %5006 = vmatprep.subr.mxu0 0.0
    %5007 = vmatpush2.msra.mxu0 0.0
    %5008 = vmatprep.mubr.f32.mxu0 0.0
    %5009 = vmatmul.mubr.f32.gmra.mxu0 %v4942
    %v5010 = vpop.f32.mrf.mxu0
    %v5011 = vadd.f32 %v4940, %v5010
    %v5012 = vpop.f32.mrf.mxu0
    %5013 = vdwg.mxu0
    %v5014 = vxor.u32 %v5011, 2147483648
    %v5015 = vmul.f32 %v5014, 1.442695
    %v5016 = vpow.pop %v5015
    %v5017 = vadd.f32 %v5016, 1.0
    %v5018 = vrcp.pop %v5017
    %v5019 = vmul.f32 1.0, %v5018
    %v5020 = vtanh.pop %v5011
    %v5021 = vmul.f32 %v5019, %v4583
    %5023 = vrot.lane.b32.xlu0 %v5020, 32
    %v5024 = vpop.permute.xlu0 %5023
    %v5026 = vmul.f32 %v5019, %v5024
    %5028 = vrot.lane.b32.xlu0 %v5026, 32
    %v5029 = vpop.permute.xlu0 %5028
    %v5031 = vadd.f32 %v5021, %v5029
    %v5032 = vtanh.pop %v5031
    %5034 = vrot.lane.b32.xlu0 %v5032, 32
    %v5035 = vpop.permute.xlu0 %5034
    %v5037 = vmul.f32 %v5019, %v5035
    %v5038 = vld [vmem:[#allocation7 + $0xf8] sm:$0x1]
    %5040 = vrot.lane.b32.xlu0 %v5037, 64
    %v5041 = vpop.permute.xlu0 %5040
    %5043 = vrot.lane.b32.xlu0 %v4703, 96
    %v5044 = vpop.permute.xlu0 %5043
    %v5046 = vsel %vm150, %v5041, %v5044
    %v5047 = vld [vmem:[#allocation7 + $0xb0] sm:$0xff]
    %v5048 = vld [vmem:[#allocation7 + $0xb8] sm:$0xff]
    %v5049 = vld [vmem:[#allocation7 + $0xc0] sm:$0xff]
    %v5050 = vld [vmem:[#allocation7 + $0xc8] sm:$0xff]
    %v5051 = vld [vmem:[#allocation7 + $0xd0] sm:$0xff]
    %v5052 = vld [vmem:[#allocation7 + $0xd8] sm:$0xff]
    %v5053 = vld [vmem:[#allocation7 + $0xe0] sm:$0xff]
    %v5054 = vld [vmem:[#allocation7 + $0xe8] sm:$0xff]
    %v5056 = vsel %vm69, %v5046, 0
    %5058 = vmatprep.subr.mxu0 0.0
    %5059 = vmatpush1.msra.mxu0 0.0
    %5060 = vmatprep.subr.mxu0 0.0
    %5061 = vmatpush1.msra.mxu0 0.0
    %5062 = vmatprep.subr.mxu0 0.0
    %5063 = vmatpush1.msra.mxu0 0.0
    %5064 = vmatprep.subr.mxu0 0.0
    %5065 = vmatpush1.msra.mxu0 0.0
    %5066 = vmatprep.subr.mxu0 0.0
    %5067 = vmatpush1.msra.mxu0 0.0
    %5068 = vmatprep.subr.mxu0 0.0
    %5069 = vmatpush1.msra.mxu0 0.0
    %5070 = vmatprep.subr.mxu0 0.0
    %5071 = vmatpush1.msra.mxu0 0.0
    %5072 = vmatprep.subr.mxu0 0.0
    %5073 = vmatpush1.msra.mxu0 0.0
    %5074 = vmatprep.subr.mxu0 0.0
    %5075 = vmatpush1.msra.mxu0 %v5054
    %5076 = vmatprep.subr.mxu0 0.0
    %5077 = vmatpush1.msra.mxu0 %v5053
    %5078 = vmatprep.subr.mxu0 0.0
    %5079 = vmatpush1.msra.mxu0 %v5052
    %5080 = vmatprep.subr.mxu0 0.0
    %5081 = vmatpush1.msra.mxu0 %v5051
    %5082 = vmatprep.subr.mxu0 0.0
    %5083 = vmatpush1.msra.mxu0 %v5050
    %5084 = vmatprep.subr.mxu0 0.0
    %5085 = vmatpush1.msra.mxu0 %v5049
    %5086 = vmatprep.subr.mxu0 0.0
    %5087 = vmatpush1.msra.mxu0 %v5048
    %5088 = vmatprep.subr.mxu0 0.0
    %5089 = vmatpush1.msra.mxu0 %v5047
    %5090 = vmatprep.subr.mxu0 0.0
    %5091 = vmatpush2.msra.mxu0 0.0
    %5092 = vmatprep.subr.mxu0 0.0
    %5093 = vmatpush2.msra.mxu0 0.0
    %5094 = vmatprep.subr.mxu0 0.0
    %5095 = vmatpush2.msra.mxu0 0.0
    %5096 = vmatprep.subr.mxu0 0.0
    %5097 = vmatpush2.msra.mxu0 0.0
    %5098 = vmatprep.subr.mxu0 0.0
    %5099 = vmatpush2.msra.mxu0 0.0
    %5100 = vmatprep.subr.mxu0 0.0
    %5101 = vmatpush2.msra.mxu0 0.0
    %5102 = vmatprep.subr.mxu0 0.0
    %5103 = vmatpush2.msra.mxu0 0.0
    %5104 = vmatprep.subr.mxu0 0.0
    %5105 = vmatpush2.msra.mxu0 0.0
    %5106 = vmatprep.subr.mxu0 0.0
    %5107 = vmatpush2.msra.mxu0 0.0
    %5108 = vmatprep.subr.mxu0 0.0
    %5109 = vmatpush2.msra.mxu0 0.0
    %5110 = vmatprep.subr.mxu0 0.0
    %5111 = vmatpush2.msra.mxu0 0.0
    %5112 = vmatprep.subr.mxu0 0.0
    %5113 = vmatpush2.msra.mxu0 0.0
    %5114 = vmatprep.subr.mxu0 0.0
    %5115 = vmatpush2.msra.mxu0 0.0
    %5116 = vmatprep.subr.mxu0 0.0
    %5117 = vmatpush2.msra.mxu0 0.0
    %5118 = vmatprep.subr.mxu0 0.0
    %5119 = vmatpush2.msra.mxu0 0.0
    %5120 = vmatprep.subr.mxu0 0.0
    %5121 = vmatpush2.msra.mxu0 0.0
    %5122 = vmatprep.mubr.f32.mxu0 0.0
    %5123 = vmatmul.mubr.f32.gmra.mxu0 %v5056
    %v5124 = vpop.f32.mrf.mxu0
    %v5125 = vadd.f32 %v5038, %v5124
    %v5126 = vpop.f32.mrf.mxu0
    %5127 = vdwg.mxu0
    %v5128 = vxor.u32 %v5125, 2147483648
    %v5129 = vmul.f32 %v5128, 1.442695
    %v5130 = vpow.pop %v5129
    %v5131 = vadd.f32 %v5130, 1.0
    %v5132 = vrcp.pop %v5131
    %v5133 = vmul.f32 1.0, %v5132
    %v5134 = vtanh.pop %v5125
    %v5135 = vmul.f32 %v5133, %v4697
    %5137 = vrot.lane.b32.xlu0 %v5134, 32
    %v5138 = vpop.permute.xlu0 %5137
    %v5140 = vmul.f32 %v5133, %v5138
    %5142 = vrot.lane.b32.xlu0 %v5140, 32
    %v5143 = vpop.permute.xlu0 %5142
    %v5145 = vadd.f32 %v5135, %v5143
    %v5146 = vtanh.pop %v5145
    %5148 = vrot.lane.b32.xlu0 %v5146, 32
    %v5149 = vpop.permute.xlu0 %5148
    %v5151 = vmul.f32 %v5133, %v5149
    %5153 = vrot.lane.b32.xlu0 %v5151, 64
    %v5154 = vpop.permute.xlu0 %5153
    %5156 = vrot.lane.b32.xlu0 %v4817, 96
    %v5157 = vpop.permute.xlu0 %5156
    %v5159 = vsel %vm150, %v5154, %v5157
    %v5160 = vld [vmem:[#allocation7 + $0x100] sm:$0xff]
    %v5161 = vld [vmem:[#allocation7 + $0x108] sm:$0xff]
    %v5162 = vld [vmem:[#allocation7 + $0x110] sm:$0xff]
    %v5163 = vld [vmem:[#allocation7 + $0x118] sm:$0xff]
    %v5164 = vld [vmem:[#allocation7 + $0x120] sm:$0xff]
    %v5165 = vld [vmem:[#allocation7 + $0x128] sm:$0xff]
    %v5166 = vld [vmem:[#allocation7 + $0x130] sm:$0xff]
    %v5167 = vld [vmem:[#allocation7 + $0x138] sm:$0xff]
    %v5168 = vld [vmem:[#allocation7 + $0x140] sm:$0x1]
    %v5170 = vsel %vm69, %v5159, 0
    %5172 = vmatprep.subr.mxu0 0.0
    %5173 = vmatpush1.msra.mxu0 0.0
    %5174 = vmatprep.subr.mxu0 0.0
    %5175 = vmatpush1.msra.mxu0 0.0
    %5176 = vmatprep.subr.mxu0 0.0
    %5177 = vmatpush1.msra.mxu0 0.0
    %5178 = vmatprep.subr.mxu0 0.0
    %5179 = vmatpush1.msra.mxu0 0.0
    %5180 = vmatprep.subr.mxu0 0.0
    %5181 = vmatpush1.msra.mxu0 0.0
    %5182 = vmatprep.subr.mxu0 0.0
    %5183 = vmatpush1.msra.mxu0 0.0
    %5184 = vmatprep.subr.mxu0 0.0
    %5185 = vmatpush1.msra.mxu0 0.0
    %5186 = vmatprep.subr.mxu0 0.0
    %5187 = vmatpush1.msra.mxu0 0.0
    %5188 = vmatprep.subr.mxu0 0.0
    %5189 = vmatpush1.msra.mxu0 %v5167
    %5190 = vmatprep.subr.mxu0 0.0
    %5191 = vmatpush1.msra.mxu0 %v5166
    %5192 = vmatprep.subr.mxu0 0.0
    %5193 = vmatpush1.msra.mxu0 %v5165
    %5194 = vmatprep.subr.mxu0 0.0
    %5195 = vmatpush1.msra.mxu0 %v5164
    %5196 = vmatprep.subr.mxu0 0.0
    %5197 = vmatpush1.msra.mxu0 %v5163
    %5198 = vmatprep.subr.mxu0 0.0
    %5199 = vmatpush1.msra.mxu0 %v5162
    %5200 = vmatprep.subr.mxu0 0.0
    %5201 = vmatpush1.msra.mxu0 %v5161
    %5202 = vmatprep.subr.mxu0 0.0
    %5203 = vmatpush1.msra.mxu0 %v5160
    %5204 = vmatprep.subr.mxu0 0.0
    %5205 = vmatpush2.msra.mxu0 0.0
    %5206 = vmatprep.subr.mxu0 0.0
    %5207 = vmatpush2.msra.mxu0 0.0
    %5208 = vmatprep.subr.mxu0 0.0
    %5209 = vmatpush2.msra.mxu0 0.0
    %5210 = vmatprep.subr.mxu0 0.0
    %5211 = vmatpush2.msra.mxu0 0.0
    %5212 = vmatprep.subr.mxu0 0.0
    %5213 = vmatpush2.msra.mxu0 0.0
    %5214 = vmatprep.subr.mxu0 0.0
    %5215 = vmatpush2.msra.mxu0 0.0
    %5216 = vmatprep.subr.mxu0 0.0
    %5217 = vmatpush2.msra.mxu0 0.0
    %5218 = vmatprep.subr.mxu0 0.0
    %5219 = vmatpush2.msra.mxu0 0.0
    %5220 = vmatprep.subr.mxu0 0.0
    %5221 = vmatpush2.msra.mxu0 0.0
    %5222 = vmatprep.subr.mxu0 0.0
    %5223 = vmatpush2.msra.mxu0 0.0
    %5224 = vmatprep.subr.mxu0 0.0
    %5225 = vmatpush2.msra.mxu0 0.0
    %5226 = vmatprep.subr.mxu0 0.0
    %5227 = vmatpush2.msra.mxu0 0.0
    %5228 = vmatprep.subr.mxu0 0.0
    %5229 = vmatpush2.msra.mxu0 0.0
    %5230 = vmatprep.subr.mxu0 0.0
    %5231 = vmatpush2.msra.mxu0 0.0
    %5232 = vmatprep.subr.mxu0 0.0
    %5233 = vmatpush2.msra.mxu0 0.0
    %5234 = vmatprep.subr.mxu0 0.0
    %5235 = vmatpush2.msra.mxu0 0.0
    %5236 = vmatprep.mubr.f32.mxu0 0.0
    %5237 = vmatmul.mubr.f32.gmra.mxu0 %v5170
    %v5238 = vpop.f32.mrf.mxu0
    %v5239 = vadd.f32 %v5168, %v5238
    %v5240 = vpop.f32.mrf.mxu0
    %5241 = vdwg.mxu0
    %v5242 = vxor.u32 %v5239, 2147483648
    %v5243 = vmul.f32 %v5242, 1.442695
    %v5244 = vpow.pop %v5243
    %v5245 = vadd.f32 %v5244, 1.0
    %v5246 = vrcp.pop %v5245
    %v5247 = vmul.f32 1.0, %v5246
    %v5248 = vtanh.pop %v5239
    %v5249 = vmul.f32 %v5247, %v4811
    %5251 = vrot.lane.b32.xlu0 %v5248, 32
    %v5252 = vpop.permute.xlu0 %5251
    %v5254 = vmul.f32 %v5247, %v5252
    %5256 = vrot.lane.b32.xlu0 %v5254, 32
    %v5257 = vpop.permute.xlu0 %5256
    %v5259 = vadd.f32 %v5249, %v5257
    %v5260 = vtanh.pop %v5259
    %5262 = vrot.lane.b32.xlu0 %v5260, 32
    %v5263 = vpop.permute.xlu0 %5262
    %v5265 = vmul.f32 %v5247, %v5263
    %5267 = vrot.lane.b32.xlu0 %v5265, 64
    %v5268 = vpop.permute.xlu0 %5267
    %5270 = vst.msk [vmem:[#allocation3 + $0x3] sm:$0x1] %vm3925, %v5268
    %v5271 = vld [vmem:[#allocation7 + $0x40] sm:$0xff]
    %v5272 = vld [vmem:[#allocation7 + $0x48] sm:$0xff]
    %v5273 = vld [vmem:[#allocation7 + $0x50] sm:$0xff]
    %v5274 = vld [vmem:[#allocation7 + $0x58] sm:$0xff]
    %v5275 = vld [vmem:[#allocation7 + $0x60] sm:$0x1]
    %v5276 = vsel %vm150, %v4926, 0
    %5278 = vmatprep.subr.mxu0 0.0
    %5279 = vmatpush1.msra.mxu0 0.0
    %5280 = vmatprep.subr.mxu0 0.0
    %5281 = vmatpush1.msra.mxu0 0.0
    %5282 = vmatprep.subr.mxu0 0.0
    %5283 = vmatpush1.msra.mxu0 0.0
    %5284 = vmatprep.subr.mxu0 0.0
    %5285 = vmatpush1.msra.mxu0 0.0
    %5286 = vmatprep.subr.mxu0 0.0
    %5287 = vmatpush1.msra.mxu0 0.0
    %5288 = vmatprep.subr.mxu0 0.0
    %5289 = vmatpush1.msra.mxu0 0.0
    %5290 = vmatprep.subr.mxu0 0.0
    %5291 = vmatpush1.msra.mxu0 0.0
    %5292 = vmatprep.subr.mxu0 0.0
    %5293 = vmatpush1.msra.mxu0 0.0
    %5294 = vmatprep.subr.mxu0 0.0
    %5295 = vmatpush1.msra.mxu0 0.0
    %5296 = vmatprep.subr.mxu0 0.0
    %5297 = vmatpush1.msra.mxu0 0.0
    %5298 = vmatprep.subr.mxu0 0.0
    %5299 = vmatpush1.msra.mxu0 0.0
    %5300 = vmatprep.subr.mxu0 0.0
    %5301 = vmatpush1.msra.mxu0 0.0
    %5302 = vmatprep.subr.mxu0 0.0
    %5303 = vmatpush1.msra.mxu0 %v5274
    %5304 = vmatprep.subr.mxu0 0.0
    %5305 = vmatpush1.msra.mxu0 %v5273
    %5306 = vmatprep.subr.mxu0 0.0
    %5307 = vmatpush1.msra.mxu0 %v5272
    %5308 = vmatprep.subr.mxu0 0.0
    %5309 = vmatpush1.msra.mxu0 %v5271
    %5310 = vmatprep.subr.mxu0 0.0
    %5311 = vmatpush2.msra.mxu0 0.0
    %5312 = vmatprep.subr.mxu0 0.0
    %5313 = vmatpush2.msra.mxu0 0.0
    %5314 = vmatprep.subr.mxu0 0.0
    %5315 = vmatpush2.msra.mxu0 0.0
    %5316 = vmatprep.subr.mxu0 0.0
    %5317 = vmatpush2.msra.mxu0 0.0
    %5318 = vmatprep.subr.mxu0 0.0
    %5319 = vmatpush2.msra.mxu0 0.0
    %5320 = vmatprep.subr.mxu0 0.0
    %5321 = vmatpush2.msra.mxu0 0.0
    %5322 = vmatprep.subr.mxu0 0.0
    %5323 = vmatpush2.msra.mxu0 0.0
    %5324 = vmatprep.subr.mxu0 0.0
    %5325 = vmatpush2.msra.mxu0 0.0
    %5326 = vmatprep.subr.mxu0 0.0
    %5327 = vmatpush2.msra.mxu0 0.0
    %5328 = vmatprep.subr.mxu0 0.0
    %5329 = vmatpush2.msra.mxu0 0.0
    %5330 = vmatprep.subr.mxu0 0.0
    %5331 = vmatpush2.msra.mxu0 0.0
    %5332 = vmatprep.subr.mxu0 0.0
    %5333 = vmatpush2.msra.mxu0 0.0
    %5334 = vmatprep.subr.mxu0 0.0
    %5335 = vmatpush2.msra.mxu0 0.0
    %5336 = vmatprep.subr.mxu0 0.0
    %5337 = vmatpush2.msra.mxu0 0.0
    %5338 = vmatprep.subr.mxu0 0.0
    %5339 = vmatpush2.msra.mxu0 0.0
    %5340 = vmatprep.subr.mxu0 0.0
    %5341 = vmatpush2.msra.mxu0 0.0
    %5342 = vmatprep.mubr.f32.mxu0 0.0
    %5343 = vmatmul.mubr.f32.gmra.mxu0 %v5276
    %v5344 = vpop.f32.mrf.mxu0
    %v5345 = vadd.f32 %v5275, %v5344
    %v5346 = vpop.f32.mrf.mxu0
    %5347 = vdwg.mxu0
    %v5348 = vxor.u32 %v5345, 2147483648
    %v5349 = vmul.f32 %v5348, 1.442695
    %v5350 = vpow.pop %v5349
    %v5351 = vadd.f32 %v5350, 1.0
    %v5352 = vrcp.pop %v5351
    %v5353 = vmul.f32 1.0, %v5352
    %v5354 = vtanh.pop %v5345
    %v5355 = vmul.f32 %v5353, %v4917
    %5357 = vrot.lane.b32.xlu0 %v5354, 32
    %v5358 = vpop.permute.xlu0 %5357
    %v5360 = vmul.f32 %v5353, %v5358
    %5362 = vrot.lane.b32.xlu0 %v5360, 32
    %v5363 = vpop.permute.xlu0 %5362
    %v5365 = vadd.f32 %v5355, %v5363
    %v5366 = vtanh.pop %v5365
    %5368 = vrot.lane.b32.xlu0 %v5366, 32
    %v5369 = vpop.permute.xlu0 %5368
    %v5371 = vmul.f32 %v5353, %v5369
    %5373 = vrot.lane.b32.xlu0 %v5371, 64
    %v5374 = vpop.permute.xlu0 %5373
    %5376 = vrot.lane.b32.xlu0 %v5037, 96
    %v5377 = vpop.permute.xlu0 %5376
    %v5379 = vsel %vm150, %v5374, %v5377
    %v5380 = vld [vmem:[#allocation7 + $0x68] sm:$0xff]
    %v5381 = vld [vmem:[#allocation7 + $0x70] sm:$0xff]
    %v5382 = vld [vmem:[#allocation7 + $0x78] sm:$0xff]
    %v5383 = vld [vmem:[#allocation7 + $0x80] sm:$0xff]
    %v5384 = vld [vmem:[#allocation7 + $0x88] sm:$0xff]
    %v5385 = vld [vmem:[#allocation7 + $0x90] sm:$0xff]
    %v5386 = vld [vmem:[#allocation7 + $0x98] sm:$0xff]
    %v5387 = vld [vmem:[#allocation7 + $0xa0] sm:$0xff]
    %v5388 = vld [vmem:[#allocation7 + $0xa8] sm:$0x1]
    %v5390 = vsel %vm69, %v5379, 0
    %5392 = vmatprep.subr.mxu0 0.0
    %5393 = vmatpush1.msra.mxu0 0.0
    %5394 = vmatprep.subr.mxu0 0.0
    %5395 = vmatpush1.msra.mxu0 0.0
    %5396 = vmatprep.subr.mxu0 0.0
    %5397 = vmatpush1.msra.mxu0 0.0
    %5398 = vmatprep.subr.mxu0 0.0
    %5399 = vmatpush1.msra.mxu0 0.0
    %5400 = vmatprep.subr.mxu0 0.0
    %5401 = vmatpush1.msra.mxu0 0.0
    %5402 = vmatprep.subr.mxu0 0.0
    %5403 = vmatpush1.msra.mxu0 0.0
    %5404 = vmatprep.subr.mxu0 0.0
    %5405 = vmatpush1.msra.mxu0 0.0
    %5406 = vmatprep.subr.mxu0 0.0
    %5407 = vmatpush1.msra.mxu0 0.0
    %5408 = vmatprep.subr.mxu0 0.0
    %5409 = vmatpush1.msra.mxu0 %v5387
    %5410 = vmatprep.subr.mxu0 0.0
    %5411 = vmatpush1.msra.mxu0 %v5386
    %5412 = vmatprep.subr.mxu0 0.0
    %5413 = vmatpush1.msra.mxu0 %v5385
    %5414 = vmatprep.subr.mxu0 0.0
    %5415 = vmatpush1.msra.mxu0 %v5384
    %5416 = vmatprep.subr.mxu0 0.0
    %5417 = vmatpush1.msra.mxu0 %v5383
    %5418 = vmatprep.subr.mxu0 0.0
    %5419 = vmatpush1.msra.mxu0 %v5382
    %5420 = vmatprep.subr.mxu0 0.0
    %5421 = vmatpush1.msra.mxu0 %v5381
    %5422 = vmatprep.subr.mxu0 0.0
    %5423 = vmatpush1.msra.mxu0 %v5380
    %5424 = vmatprep.subr.mxu0 0.0
    %5425 = vmatpush2.msra.mxu0 0.0
    %5426 = vmatprep.subr.mxu0 0.0
    %5427 = vmatpush2.msra.mxu0 0.0
    %5428 = vmatprep.subr.mxu0 0.0
    %5429 = vmatpush2.msra.mxu0 0.0
    %5430 = vmatprep.subr.mxu0 0.0
    %5431 = vmatpush2.msra.mxu0 0.0
    %5432 = vmatprep.subr.mxu0 0.0
    %5433 = vmatpush2.msra.mxu0 0.0
    %5434 = vmatprep.subr.mxu0 0.0
    %5435 = vmatpush2.msra.mxu0 0.0
    %5436 = vmatprep.subr.mxu0 0.0
    %5437 = vmatpush2.msra.mxu0 0.0
    %5438 = vmatprep.subr.mxu0 0.0
    %5439 = vmatpush2.msra.mxu0 0.0
    %5440 = vmatprep.subr.mxu0 0.0
    %5441 = vmatpush2.msra.mxu0 0.0
    %5442 = vmatprep.subr.mxu0 0.0
    %5443 = vmatpush2.msra.mxu0 0.0
    %5444 = vmatprep.subr.mxu0 0.0
    %5445 = vmatpush2.msra.mxu0 0.0
    %5446 = vmatprep.subr.mxu0 0.0
    %5447 = vmatpush2.msra.mxu0 0.0
    %5448 = vmatprep.subr.mxu0 0.0
    %5449 = vmatpush2.msra.mxu0 0.0
    %5450 = vmatprep.subr.mxu0 0.0
    %5451 = vmatpush2.msra.mxu0 0.0
    %5452 = vmatprep.subr.mxu0 0.0
    %5453 = vmatpush2.msra.mxu0 0.0
    %5454 = vmatprep.subr.mxu0 0.0
    %5455 = vmatpush2.msra.mxu0 0.0
    %5456 = vmatprep.mubr.f32.mxu0 0.0
    %5457 = vmatmul.mubr.f32.gmra.mxu0 %v5390
    %v5458 = vpop.f32.mrf.mxu0
    %v5459 = vadd.f32 %v5388, %v5458
    %v5460 = vpop.f32.mrf.mxu0
    %5461 = vdwg.mxu0
    %v5462 = vxor.u32 %v5459, 2147483648
    %v5463 = vmul.f32 %v5462, 1.442695
    %v5464 = vpow.pop %v5463
    %v5465 = vadd.f32 %v5464, 1.0
    %v5466 = vrcp.pop %v5465
    %v5467 = vmul.f32 1.0, %v5466
    %v5468 = vtanh.pop %v5459
    %v5469 = vmul.f32 %v5467, %v5031
    %5471 = vrot.lane.b32.xlu0 %v5468, 32
    %v5472 = vpop.permute.xlu0 %5471
    %v5474 = vmul.f32 %v5467, %v5472
    %5476 = vrot.lane.b32.xlu0 %v5474, 32
    %v5477 = vpop.permute.xlu0 %5476
    %v5479 = vadd.f32 %v5469, %v5477
    %v5480 = vtanh.pop %v5479
    %5482 = vrot.lane.b32.xlu0 %v5480, 32
    %v5483 = vpop.permute.xlu0 %5482
    %v5485 = vmul.f32 %v5467, %v5483
    %v5486 = vld [vmem:[#allocation7 + $0xf8] sm:$0x1]
    %5488 = vrot.lane.b32.xlu0 %v5485, 64
    %v5489 = vpop.permute.xlu0 %5488
    %5491 = vrot.lane.b32.xlu0 %v5151, 96
    %v5492 = vpop.permute.xlu0 %5491
    %v5494 = vsel %vm150, %v5489, %v5492
    %v5495 = vld [vmem:[#allocation7 + $0xb0] sm:$0xff]
    %v5496 = vld [vmem:[#allocation7 + $0xb8] sm:$0xff]
    %v5497 = vld [vmem:[#allocation7 + $0xc0] sm:$0xff]
    %v5498 = vld [vmem:[#allocation7 + $0xc8] sm:$0xff]
    %v5499 = vld [vmem:[#allocation7 + $0xd0] sm:$0xff]
    %v5500 = vld [vmem:[#allocation7 + $0xd8] sm:$0xff]
    %v5501 = vld [vmem:[#allocation7 + $0xe0] sm:$0xff]
    %v5502 = vld [vmem:[#allocation7 + $0xe8] sm:$0xff]
    %v5504 = vsel %vm69, %v5494, 0
    %5506 = vmatprep.subr.mxu0 0.0
    %5507 = vmatpush1.msra.mxu0 0.0
    %5508 = vmatprep.subr.mxu0 0.0
    %5509 = vmatpush1.msra.mxu0 0.0
    %5510 = vmatprep.subr.mxu0 0.0
    %5511 = vmatpush1.msra.mxu0 0.0
    %5512 = vmatprep.subr.mxu0 0.0
    %5513 = vmatpush1.msra.mxu0 0.0
    %5514 = vmatprep.subr.mxu0 0.0
    %5515 = vmatpush1.msra.mxu0 0.0
    %5516 = vmatprep.subr.mxu0 0.0
    %5517 = vmatpush1.msra.mxu0 0.0
    %5518 = vmatprep.subr.mxu0 0.0
    %5519 = vmatpush1.msra.mxu0 0.0
    %5520 = vmatprep.subr.mxu0 0.0
    %5521 = vmatpush1.msra.mxu0 0.0
    %5522 = vmatprep.subr.mxu0 0.0
    %5523 = vmatpush1.msra.mxu0 %v5502
    %5524 = vmatprep.subr.mxu0 0.0
    %5525 = vmatpush1.msra.mxu0 %v5501
    %5526 = vmatprep.subr.mxu0 0.0
    %5527 = vmatpush1.msra.mxu0 %v5500
    %5528 = vmatprep.subr.mxu0 0.0
    %5529 = vmatpush1.msra.mxu0 %v5499
    %5530 = vmatprep.subr.mxu0 0.0
    %5531 = vmatpush1.msra.mxu0 %v5498
    %5532 = vmatprep.subr.mxu0 0.0
    %5533 = vmatpush1.msra.mxu0 %v5497
    %5534 = vmatprep.subr.mxu0 0.0
    %5535 = vmatpush1.msra.mxu0 %v5496
    %5536 = vmatprep.subr.mxu0 0.0
    %5537 = vmatpush1.msra.mxu0 %v5495
    %5538 = vmatprep.subr.mxu0 0.0
    %5539 = vmatpush2.msra.mxu0 0.0
    %5540 = vmatprep.subr.mxu0 0.0
    %5541 = vmatpush2.msra.mxu0 0.0
    %5542 = vmatprep.subr.mxu0 0.0
    %5543 = vmatpush2.msra.mxu0 0.0
    %5544 = vmatprep.subr.mxu0 0.0
    %5545 = vmatpush2.msra.mxu0 0.0
    %5546 = vmatprep.subr.mxu0 0.0
    %5547 = vmatpush2.msra.mxu0 0.0
    %5548 = vmatprep.subr.mxu0 0.0
    %5549 = vmatpush2.msra.mxu0 0.0
    %5550 = vmatprep.subr.mxu0 0.0
    %5551 = vmatpush2.msra.mxu0 0.0
    %5552 = vmatprep.subr.mxu0 0.0
    %5553 = vmatpush2.msra.mxu0 0.0
    %5554 = vmatprep.subr.mxu0 0.0
    %5555 = vmatpush2.msra.mxu0 0.0
    %5556 = vmatprep.subr.mxu0 0.0
    %5557 = vmatpush2.msra.mxu0 0.0
    %5558 = vmatprep.subr.mxu0 0.0
    %5559 = vmatpush2.msra.mxu0 0.0
    %5560 = vmatprep.subr.mxu0 0.0
    %5561 = vmatpush2.msra.mxu0 0.0
    %5562 = vmatprep.subr.mxu0 0.0
    %5563 = vmatpush2.msra.mxu0 0.0
    %5564 = vmatprep.subr.mxu0 0.0
    %5565 = vmatpush2.msra.mxu0 0.0
    %5566 = vmatprep.subr.mxu0 0.0
    %5567 = vmatpush2.msra.mxu0 0.0
    %5568 = vmatprep.subr.mxu0 0.0
    %5569 = vmatpush2.msra.mxu0 0.0
    %5570 = vmatprep.mubr.f32.mxu0 0.0
    %5571 = vmatmul.mubr.f32.gmra.mxu0 %v5504
    %v5572 = vpop.f32.mrf.mxu0
    %v5573 = vadd.f32 %v5486, %v5572
    %v5574 = vpop.f32.mrf.mxu0
    %5575 = vdwg.mxu0
    %v5576 = vxor.u32 %v5573, 2147483648
    %v5577 = vmul.f32 %v5576, 1.442695
    %v5578 = vpow.pop %v5577
    %v5579 = vadd.f32 %v5578, 1.0
    %v5580 = vrcp.pop %v5579
    %v5581 = vmul.f32 1.0, %v5580
    %v5582 = vtanh.pop %v5573
    %v5583 = vmul.f32 %v5581, %v5145
    %5585 = vrot.lane.b32.xlu0 %v5582, 32
    %v5586 = vpop.permute.xlu0 %5585
    %v5588 = vmul.f32 %v5581, %v5586
    %5590 = vrot.lane.b32.xlu0 %v5588, 32
    %v5591 = vpop.permute.xlu0 %5590
    %v5593 = vadd.f32 %v5583, %v5591
    %v5594 = vtanh.pop %v5593
    %5596 = vrot.lane.b32.xlu0 %v5594, 32
    %v5597 = vpop.permute.xlu0 %5596
    %v5599 = vmul.f32 %v5581, %v5597
    %5601 = vrot.lane.b32.xlu0 %v5599, 64
    %v5602 = vpop.permute.xlu0 %5601
    %5604 = vrot.lane.b32.xlu0 %v5265, 96
    %v5605 = vpop.permute.xlu0 %5604
    %v5607 = vsel %vm150, %v5602, %v5605
    %v5608 = vld [vmem:[#allocation7 + $0x100] sm:$0xff]
    %v5609 = vld [vmem:[#allocation7 + $0x108] sm:$0xff]
    %v5610 = vld [vmem:[#allocation7 + $0x110] sm:$0xff]
    %v5611 = vld [vmem:[#allocation7 + $0x118] sm:$0xff]
    %v5612 = vld [vmem:[#allocation7 + $0x120] sm:$0xff]
    %v5613 = vld [vmem:[#allocation7 + $0x128] sm:$0xff]
    %v5614 = vld [vmem:[#allocation7 + $0x130] sm:$0xff]
    %v5615 = vld [vmem:[#allocation7 + $0x138] sm:$0xff]
    %v5616 = vld [vmem:[#allocation7 + $0x140] sm:$0x1]
    %v5618 = vsel %vm69, %v5607, 0
    %5620 = vmatprep.subr.mxu0 0.0
    %5621 = vmatpush1.msra.mxu0 0.0
    %5622 = vmatprep.subr.mxu0 0.0
    %5623 = vmatpush1.msra.mxu0 0.0
    %5624 = vmatprep.subr.mxu0 0.0
    %5625 = vmatpush1.msra.mxu0 0.0
    %5626 = vmatprep.subr.mxu0 0.0
    %5627 = vmatpush1.msra.mxu0 0.0
    %5628 = vmatprep.subr.mxu0 0.0
    %5629 = vmatpush1.msra.mxu0 0.0
    %5630 = vmatprep.subr.mxu0 0.0
    %5631 = vmatpush1.msra.mxu0 0.0
    %5632 = vmatprep.subr.mxu0 0.0
    %5633 = vmatpush1.msra.mxu0 0.0
    %5634 = vmatprep.subr.mxu0 0.0
    %5635 = vmatpush1.msra.mxu0 0.0
    %5636 = vmatprep.subr.mxu0 0.0
    %5637 = vmatpush1.msra.mxu0 %v5615
    %5638 = vmatprep.subr.mxu0 0.0
    %5639 = vmatpush1.msra.mxu0 %v5614
    %5640 = vmatprep.subr.mxu0 0.0
    %5641 = vmatpush1.msra.mxu0 %v5613
    %5642 = vmatprep.subr.mxu0 0.0
    %5643 = vmatpush1.msra.mxu0 %v5612
    %5644 = vmatprep.subr.mxu0 0.0
    %5645 = vmatpush1.msra.mxu0 %v5611
    %5646 = vmatprep.subr.mxu0 0.0
    %5647 = vmatpush1.msra.mxu0 %v5610
    %5648 = vmatprep.subr.mxu0 0.0
    %5649 = vmatpush1.msra.mxu0 %v5609
    %5650 = vmatprep.subr.mxu0 0.0
    %5651 = vmatpush1.msra.mxu0 %v5608
    %5652 = vmatprep.subr.mxu0 0.0
    %5653 = vmatpush2.msra.mxu0 0.0
    %5654 = vmatprep.subr.mxu0 0.0
    %5655 = vmatpush2.msra.mxu0 0.0
    %5656 = vmatprep.subr.mxu0 0.0
    %5657 = vmatpush2.msra.mxu0 0.0
    %5658 = vmatprep.subr.mxu0 0.0
    %5659 = vmatpush2.msra.mxu0 0.0
    %5660 = vmatprep.subr.mxu0 0.0
    %5661 = vmatpush2.msra.mxu0 0.0
    %5662 = vmatprep.subr.mxu0 0.0
    %5663 = vmatpush2.msra.mxu0 0.0
    %5664 = vmatprep.subr.mxu0 0.0
    %5665 = vmatpush2.msra.mxu0 0.0
    %5666 = vmatprep.subr.mxu0 0.0
    %5667 = vmatpush2.msra.mxu0 0.0
    %5668 = vmatprep.subr.mxu0 0.0
    %5669 = vmatpush2.msra.mxu0 0.0
    %5670 = vmatprep.subr.mxu0 0.0
    %5671 = vmatpush2.msra.mxu0 0.0
    %5672 = vmatprep.subr.mxu0 0.0
    %5673 = vmatpush2.msra.mxu0 0.0
    %5674 = vmatprep.subr.mxu0 0.0
    %5675 = vmatpush2.msra.mxu0 0.0
    %5676 = vmatprep.subr.mxu0 0.0
    %5677 = vmatpush2.msra.mxu0 0.0
    %5678 = vmatprep.subr.mxu0 0.0
    %5679 = vmatpush2.msra.mxu0 0.0
    %5680 = vmatprep.subr.mxu0 0.0
    %5681 = vmatpush2.msra.mxu0 0.0
    %5682 = vmatprep.subr.mxu0 0.0
    %5683 = vmatpush2.msra.mxu0 0.0
    %5684 = vmatprep.mubr.f32.mxu0 0.0
    %5685 = vmatmul.mubr.f32.gmra.mxu0 %v5618
    %v5686 = vpop.f32.mrf.mxu0
    %v5687 = vadd.f32 %v5616, %v5686
    %v5688 = vpop.f32.mrf.mxu0
    %5689 = vdwg.mxu0
    %v5690 = vxor.u32 %v5687, 2147483648
    %v5691 = vmul.f32 %v5690, 1.442695
    %v5692 = vpow.pop %v5691
    %v5693 = vadd.f32 %v5692, 1.0
    %v5694 = vrcp.pop %v5693
    %v5695 = vmul.f32 1.0, %v5694
    %v5696 = vtanh.pop %v5687
    %v5697 = vmul.f32 %v5695, %v5259
    %5699 = vrot.lane.b32.xlu0 %v5696, 32
    %v5700 = vpop.permute.xlu0 %5699
    %v5702 = vmul.f32 %v5695, %v5700
    %5704 = vrot.lane.b32.xlu0 %v5702, 32
    %v5705 = vpop.permute.xlu0 %5704
    %v5707 = vadd.f32 %v5697, %v5705
    %v5708 = vtanh.pop %v5707
    %5710 = vrot.lane.b32.xlu0 %v5708, 32
    %v5711 = vpop.permute.xlu0 %5710
    %v5713 = vmul.f32 %v5695, %v5711
    %5715 = vrot.lane.b32.xlu0 %v5713, 64
    %v5716 = vpop.permute.xlu0 %5715
    %5718 = vst.msk [vmem:[#allocation3 + $0x4] sm:$0x1] %vm3925, %v5716
    %v5719 = vld [vmem:[#allocation3] sm:$0x1f]
    %v5720 = vld [vmem:[#allocation7 + $0x148] sm:$0xff]
    %v5721 = vld [vmem:[#allocation7 + $0x150] sm:$0xff]
    %v5722 = vld [vmem:[#allocation7 + $0x158] sm:$0xff]
    %v5723 = vld [vmem:[#allocation7 + $0x160] sm:$0xff]
    %v5724 = vld [vmem:[#allocation7 + $0x168] sm:$0x1]
    %v5725 = vlaneseq
    %v5726 = vshrl.u32 %v5725, 7
    %v5727 = vsub.s32 0, %v5726
    %v5728 = vrot.slane %v5724, %v5727
    %v5730 = vsel %vm150, %v5719, 0
    %5732 = vmatprep.subr.mxu0 0.0
    %5733 = vmatpush1.msra.mxu0 0.0
    %5734 = vmatprep.subr.mxu0 0.0
    %5735 = vmatpush1.msra.mxu0 0.0
    %5736 = vmatprep.subr.mxu0 0.0
    %5737 = vmatpush1.msra.mxu0 0.0
    %5738 = vmatprep.subr.mxu0 0.0
    %5739 = vmatpush1.msra.mxu0 0.0
    %5740 = vmatprep.subr.mxu0 0.0
    %5741 = vmatpush1.msra.mxu0 0.0
    %5742 = vmatprep.subr.mxu0 0.0
    %5743 = vmatpush1.msra.mxu0 0.0
    %5744 = vmatprep.subr.mxu0 0.0
    %5745 = vmatpush1.msra.mxu0 0.0
    %5746 = vmatprep.subr.mxu0 0.0
    %5747 = vmatpush1.msra.mxu0 0.0
    %5748 = vmatprep.subr.mxu0 0.0
    %5749 = vmatpush1.msra.mxu0 0.0
    %5750 = vmatprep.subr.mxu0 0.0
    %5751 = vmatpush1.msra.mxu0 0.0
    %5752 = vmatprep.subr.mxu0 0.0
    %5753 = vmatpush1.msra.mxu0 0.0
    %5754 = vmatprep.subr.mxu0 0.0
    %5755 = vmatpush1.msra.mxu0 0.0
    %5756 = vmatprep.subr.mxu0 0.0
    %5757 = vmatpush1.msra.mxu0 %v5723
    %5758 = vmatprep.subr.mxu0 0.0
    %5759 = vmatpush1.msra.mxu0 %v5722
    %5760 = vmatprep.subr.mxu0 0.0
    %5761 = vmatpush1.msra.mxu0 %v5721
    %5762 = vmatprep.subr.mxu0 0.0
    %5763 = vmatpush1.msra.mxu0 %v5720
    %5764 = vmatprep.subr.mxu0 0.0
    %5765 = vmatpush2.msra.mxu0 0.0
    %5766 = vmatprep.subr.mxu0 0.0
    %5767 = vmatpush2.msra.mxu0 0.0
    %5768 = vmatprep.subr.mxu0 0.0
    %5769 = vmatpush2.msra.mxu0 0.0
    %5770 = vmatprep.subr.mxu0 0.0
    %5771 = vmatpush2.msra.mxu0 0.0
    %5772 = vmatprep.subr.mxu0 0.0
    %5773 = vmatpush2.msra.mxu0 0.0
    %5774 = vmatprep.subr.mxu0 0.0
    %5775 = vmatpush2.msra.mxu0 0.0
    %5776 = vmatprep.subr.mxu0 0.0
    %5777 = vmatpush2.msra.mxu0 0.0
    %5778 = vmatprep.subr.mxu0 0.0
    %5779 = vmatpush2.msra.mxu0 0.0
    %5780 = vmatprep.subr.mxu0 0.0
    %5781 = vmatpush2.msra.mxu0 0.0
    %5782 = vmatprep.subr.mxu0 0.0
    %5783 = vmatpush2.msra.mxu0 0.0
    %5784 = vmatprep.subr.mxu0 0.0
    %5785 = vmatpush2.msra.mxu0 0.0
    %5786 = vmatprep.subr.mxu0 0.0
    %5787 = vmatpush2.msra.mxu0 0.0
    %5788 = vmatprep.subr.mxu0 0.0
    %5789 = vmatpush2.msra.mxu0 0.0
    %5790 = vmatprep.subr.mxu0 0.0
    %5791 = vmatpush2.msra.mxu0 0.0
    %5792 = vmatprep.subr.mxu0 0.0
    %5793 = vmatpush2.msra.mxu0 0.0
    %5794 = vmatprep.subr.mxu0 0.0
    %5795 = vmatpush2.msra.mxu0 0.0
    %5796 = vmatprep.mubr.f32.mxu0 0.0
    %5797 = vmatmul.mubr.f32.gmra.mxu0 %v5730
    %v5798 = vpop.f32.mrf.mxu0
    %v5799 = vadd.f32 %v5728, %v5798
    %v5800 = vpop.f32.mrf.mxu0
    %5801 = vdwg.mxu0
    %vm5802 = vcmask 1044480
    %v5803 = vsel %vm5802, %v5799, -inf
    %5804 = vmax.xlane.f32.xlu0 %v5803
    %v5805 = vpop.xlane.xlu0 %5804
    %v5806 = vsub.f32 %v5799, %v5805
    %v5807 = vmul.f32 %v5806, 1.442695
    %v5808 = vpow.pop %v5807
    %v5809 = vsel %vm5802, %v5808, 0.0
    %5810 = vadd.xlane.f32.xlu0 %v5809
    %v5811 = vpop.xlane.xlu0 %5810
    %v5812 = vlog2.pop %v5811
    %v5813 = vmul.f32 %v5812, 0.6931472
    %v5814 = vsub.f32 %v5806, %v5813
    %5815 = vst [vmem:[#allocation10] sm:$0x1f] %v5814
    // Predicated region
    $region26: #{tpu_custom_call.1} parent=1 // pred_check
      _
    $region27: #{tpu_custom_call.1} parent=1 // pred_check_branch
      %5817 = sbr.rel (0) target = $region29
    $region28: #{tpu_custom_call.1} parent=1 // pred_region
      %s5819 = ssub.s32 128, 128
      %5820 = vsyncadd [#allocation6], %s5819
      %s5822 = sshll.u32 [#allocation10], 4
      %s5823 = int_to_ptr.vmem [resolvable:$true] %s5822
      %5825 = dma.vmem_to_hbm [thread:$0]  %s5823, 128, %s3, [#allocation6]
    $region29: #{tpu_custom_call.1} parent=1 // pred_fallthru
      _
    // Predicated region
    $region30: #{tpu_custom_call.1} parent=1 // pred_check
      _
    $region31: #{tpu_custom_call.1} parent=1 // pred_check_branch
      %5827 = sbr.rel (0) target = $region33
    $region32: #{tpu_custom_call.1} parent=1 // pred_region
      %5828 = dma.done [#allocation6], 128
    $region33: #{tpu_custom_call.1} parent=1 // pred_fallthru
      _
    %5829 = vsyncpa [#allocation5], 1
    %5830 = vsyncpa [#allocation8], 1
    %5831 = vsyncpa [#allocation6], 1

</llo_original>
